<compile_context>
chip_gen: v5e
topology: v5e:2x2
jax: 0.10.0
libtpu: 0.0.40
codegen_flags: <defaults>
</compile_context>

<pallas_src>
import jax
import jax.numpy as jnp
from jax.experimental import pallas as pl
from jax.experimental.pallas import tpu as pltpu

EPS = 1e-5


def _vmem():
    return pl.BlockSpec(memory_space=pltpu.MemorySpace.VMEM)


def _band_mats(size, taps=3):
    # D[k, i, o] = 1 if i == o + k - 1 (conv tap k reads input index o+k-1).
    idx = jnp.arange(size)
    return jnp.stack(
        [(idx[:, None] == idx[None, :] + k - 1).astype(jnp.float32)
         for k in range(taps)], axis=0)                       # (taps, in, out)


def _toeplitz_hw(w_dhwio, h2, w2):
    """(3,3,3,Cin,Cout) DHWIO -> (3, h2*w2*Cin, h2*w2*Cout) banded matrices.

    T[kz, (hi,wi,ci), (ho,wo,co)] = w[kz, hi-ho+1, wi-wo+1, ci, co] when both
    offsets lie in {0,1,2}, else 0.  Folds the ky/kx taps and the channel
    contraction into one matmul K dim; H/W zero padding is handled by the band
    structure (out-of-range taps simply absent).
    """
    kd, kh, kw, cin, cout = w_dhwio.shape
    dh = _band_mats(h2, kh)                                   # [ky, hi, ho]
    dw = _band_mats(w2, kw)                                   # [kx, wi, wo]
    t = jnp.einsum('khH,xwW,zkxio->zhwiHWo', dh, dw, w_dhwio)
    return t.reshape(kd, h2 * w2 * cin, h2 * w2 * cout)


def _make_encoder_kernel(n, d2, h2, w2, cin, cmid, cout):
    m_rows = n * d2
    m_total = float(n * d2 * h2 * w2)        # BN population size per channel
    kin = h2 * w2 * cin
    kmid = h2 * w2 * cmid
    kout = h2 * w2 * cout

    def _conv_bn_relu(p_ref, t_ref, f_ref, e_ref, g_ref, b_ref, n_lanes):
        k_lanes = p_ref.shape[-1]
        # ---- conv: 3 kz taps; ky, kx and channels folded into K = k_lanes ----
        acc = jnp.zeros((m_rows, n_lanes), jnp.float32)    # register accumulator
        for kz in range(3):
            lhs = p_ref[:, kz:kz + d2, :].reshape(m_rows, k_lanes)
            acc = acc + jnp.dot(lhs, t_ref[kz],
                                preferred_element_type=jnp.float32)
        # (Conv bias omitted: exactly cancelled by training-mode BN mean sub.)
        # ---- BatchNorm (batch stats, biased var) + ReLU, single pass ----
        s = jnp.concatenate([jnp.sum(acc, axis=0, keepdims=True),
                             jnp.sum(acc * acc, axis=0, keepdims=True)],
                            axis=0)                            # (2, n_lanes)
        # Fold (h,w) lane groups -> per-channel [sum, sumsq].  HIGHEST keeps
        # the f32 statistics exact; default (bf16) misses the 5e-3 tolerance.
        s = jnp.dot(s, f_ref[...], preferred_element_type=jnp.float32,
                    precision=jax.lax.Precision.HIGHEST)       # (2, c)
        mu = s[0:1] / m_total
        var = jnp.maximum(s[1:2] / m_total - mu * mu, 0.0)
        scale = g_ref[...] * jax.lax.rsqrt(var + EPS)          # (1, c)
        shift = b_ref[...] - mu * scale                        # (1, c)
        # Replicate per-channel scale/shift across the (h,w) lane groups.
        ss = jnp.dot(jnp.concatenate([scale, shift], axis=0), e_ref[...],
                     preferred_element_type=jnp.float32,
                     precision=jax.lax.Precision.HIGHEST)      # (2, n_lanes)
        return jnp.maximum(acc * ss[0:1] + ss[1:2], 0.0)       # (m_rows, n_lanes)

    def kernel(x8_ref, t1_ref, f1_ref, e1_ref, g1_ref, b1_ref,
               t2_ref, f2_ref, e2_ref, g2_ref, b2_ref,
               o_ref, p0_ref, p1_ref):
        # ---- MaxPool3d(2): 7 dense bf16 maxima over the offset axis ----
        # (On v5e, which lacks bf16 VALU, Mosaic inserts casts; still correct.)
        pooled = x8_ref[0]
        for j in range(1, 8):
            pooled = jnp.maximum(pooled, x8_ref[j])    # (n, d2, h2*w2*cin) bf16

        # ---- stage with zero D-halo: borders only, interior written once ----
        p0_ref[:, 0:1, :] = jnp.zeros((n, 1, kin), p0_ref.dtype)
        p0_ref[:, d2 + 1:d2 + 2, :] = jnp.zeros((n, 1, kin), p0_ref.dtype)
        p0_ref[:, 1:1 + d2, :] = pooled

        # ---- conv1 + BN + ReLU ----
        h1 = _conv_bn_relu(p0_ref, t1_ref, f1_ref, e1_ref, g1_ref, b1_ref, kmid)

        p1_ref[:, 0:1, :] = jnp.zeros((n, 1, kmid), p1_ref.dtype)
        p1_ref[:, d2 + 1:d2 + 2, :] = jnp.zeros((n, 1, kmid), p1_ref.dtype)
        p1_ref[:, 1:1 + d2, :] = h1.astype(p1_ref.dtype).reshape(n, d2, kmid)

        # ---- conv2 + BN + ReLU ----
        o_ref[...] = _conv_bn_relu(p1_ref, t2_ref, f2_ref, e2_ref,
                                   g2_ref, b2_ref, kout)       # (n*d2, kout)

    return kernel


def encoder3d_forward(x_ncdhw, params):
    n, cin, d, h, w = x_ncdhw.shape
    d2, h2, w2 = d // 2, h // 2, w // 2
    cmid = params['w1'].shape[-1]
    cout = params['w2'].shape[-1]

    # NCDHW -> NDHWC in bf16 (max-pool commutes with monotone rounding, so this
    # halves the x8 DMA with bit-identical results), then expose the 2x2x2
    # pooling offsets as a leading axis of 8 with (H2*W2*Cin) dense in lanes.
    x = jnp.transpose(x_ncdhw, (0, 2, 3, 4, 1)).astype(jnp.bfloat16)
    x8 = (x.reshape(n, d2, 2, h2, 2, w2, 2, cin)
           .transpose(2, 4, 6, 0, 1, 3, 5, 7)
           .reshape(8, n, d2, h2 * w2 * cin))

    t1 = _toeplitz_hw(params['w1'], h2, w2).astype(jnp.bfloat16)  # (3, kin,  kmid)
    t2 = _toeplitz_hw(params['w2'], h2, w2).astype(jnp.bfloat16)  # (3, kmid, kout)
    f1 = jnp.tile(jnp.eye(cmid, dtype=jnp.float32), (h2 * w2, 1)) # fold  (kmid, cmid)
    e1 = jnp.tile(jnp.eye(cmid, dtype=jnp.float32), (1, h2 * w2)) # expand(cmid, kmid)
    f2 = jnp.tile(jnp.eye(cout, dtype=jnp.float32), (h2 * w2, 1))
    e2 = jnp.tile(jnp.eye(cout, dtype=jnp.float32), (1, h2 * w2))
    g1 = params['g1'].reshape(1, -1).astype(jnp.float32)
    b1 = params['beta1'].reshape(1, -1).astype(jnp.float32)
    g2 = params['g2'].reshape(1, -1).astype(jnp.float32)
    b2 = params['beta2'].reshape(1, -1).astype(jnp.float32)

    kernel = _make_encoder_kernel(n, d2, h2, w2, cin, cmid, cout)
    out2d = pl.pallas_call(
        kernel,
        out_shape=jax.ShapeDtypeStruct((n * d2, h2 * w2 * cout), jnp.float32),
        in_specs=[_vmem()] * 11,
        out_specs=_vmem(),
        scratch_shapes=[
            pltpu.VMEM((n, d2 + 2, h2 * w2 * cin), jnp.bfloat16),   # D-padded pooled
            pltpu.VMEM((n, d2 + 2, h2 * w2 * cmid), jnp.bfloat16),  # D-padded mid act
        ],
        compiler_params=pltpu.CompilerParams(vmem_limit_bytes=32 * 1024 * 1024),
    )(x8, t1, f1, e1, g1, b1, t2, f2, e2, g2, b2)

    out = out2d.reshape(n, d2, h2, w2, cout)
    return jnp.transpose(out, (0, 4, 1, 2, 3))                  # NDHWC -> NCDHW


# ------------------- pure-JAX reference (validation only) -------------------
def encoder3d_reference(x_ncdhw, params):
    x = jnp.transpose(x_ncdhw, (0, 2, 3, 4, 1))
    n, d, h, w, c = x.shape
    xp = x.reshape(n, d // 2, 2, h // 2, 2, w // 2, 2, c).max(axis=(2, 4, 6))

    def block(z, wgt, b, g, be):
        y = jax.lax.conv_general_dilated(
            z.astype(jnp.bfloat16), wgt.astype(jnp.bfloat16),
            window_strides=(1, 1, 1), padding=((1, 1), (1, 1), (1, 1)),
            dimension_numbers=('NDHWC', 'DHWIO', 'NDHWC'),
            preferred_element_type=jnp.float32) + b   # bias kept; cancelled by BN
        mu = y.mean(axis=(0, 1, 2, 3), keepdims=True)
        var = jnp.square(y - mu).mean(axis=(0, 1, 2, 3), keepdims=True)
        y = (y - mu) * jax.lax.rsqrt(var + EPS) * g + be
        return jnp.maximum(y, 0.0)

    hh = block(xp, params['w1'], params['b1'], params['g1'], params['beta1'])
    yy = block(hh, params['w2'], params['b2'], params['g2'], params['beta2'])
    return jnp.transpose(yy, (0, 4, 1, 2, 3))


if __name__ == "__main__":
    N, Cin, S = 2, 4, 16          # input: (N, Cin, 16, 16, 16) NCDHW
    Cmid, Cout = 8, 8

    key = jax.random.PRNGKey(0)
    ks = jax.random.split(key, 9)
    x = jax.random.normal(ks[0], (N, Cin, S, S, S), jnp.float32)
    params = dict(
        w1=0.2 * jax.random.normal(ks[1], (3, 3, 3, Cin, Cmid), jnp.float32),
        b1=0.1 * jax.random.normal(ks[2], (Cmid,), jnp.float32),   # unused by kernel (BN cancels it)
        g1=1.0 + 0.1 * jax.random.normal(ks[3], (Cmid,), jnp.float32),
        beta1=0.1 * jax.random.normal(ks[4], (Cmid,), jnp.float32),
        w2=0.2 * jax.random.normal(ks[5], (3, 3, 3, Cmid, Cout), jnp.float32),
        b2=0.1 * jax.random.normal(ks[6], (Cout,), jnp.float32),   # unused by kernel (BN cancels it)
        g2=1.0 + 0.1 * jax.random.normal(ks[7], (Cout,), jnp.float32),
        beta2=0.1 * jax.random.normal(ks[8], (Cout,), jnp.float32),
    )

    out = jax.block_until_ready(jax.jit(encoder3d_forward)(x, params))
    assert out.shape == (N, Cout, S // 2, S // 2, S // 2)

    ref = jax.block_until_ready(encoder3d_reference(x, params))
    err = float(jnp.max(jnp.abs(out - ref)))
    assert err < 5e-3, f"max abs error too large: {err}"

    print("KERNEL_OK")
</pallas_src>

<mosaic_0001>
module attributes {stable_mosaic.version = 11 : i64} {
  func.func @kernel(%arg0: memref<8x2x8x256xbf16, #tpu.memory_space<vmem>>, %arg1: memref<3x256x512xbf16, #tpu.memory_space<vmem>>, %arg2: memref<512x8xf32, #tpu.memory_space<vmem>>, %arg3: memref<8x512xf32, #tpu.memory_space<vmem>>, %arg4: memref<1x8xf32, #tpu.memory_space<vmem>>, %arg5: memref<1x8xf32, #tpu.memory_space<vmem>>, %arg6: memref<3x512x512xbf16, #tpu.memory_space<vmem>>, %arg7: memref<512x8xf32, #tpu.memory_space<vmem>>, %arg8: memref<8x512xf32, #tpu.memory_space<vmem>>, %arg9: memref<1x8xf32, #tpu.memory_space<vmem>>, %arg10: memref<1x8xf32, #tpu.memory_space<vmem>>, %arg11: memref<16x512xf32, #tpu.memory_space<vmem>>, %arg12: memref<2x10x256xbf16, #tpu.memory_space<vmem>>, %arg13: memref<2x10x512xbf16, #tpu.memory_space<vmem>>) attributes {dimension_semantics = [], scalar_prefetch = 0 : i64, scratch_operands = 2 : i64, tpu.core_type = #tpu.core_type<tc>} {
    %c0 = arith.constant 0 : index
    %c0_0 = arith.constant 0 : index
    %c0_1 = arith.constant 0 : index
    %c0_2 = arith.constant 0 : index
    %0 = vector.load %arg0[%c0, %c0_0, %c0_1, %c0_2] : memref<8x2x8x256xbf16, #tpu.memory_space<vmem>>, vector<1x2x8x256xbf16>
    %1 = vector.shape_cast %0 : vector<1x2x8x256xbf16> to vector<2x8x256xbf16>
    %c1 = arith.constant 1 : index
    %c0_3 = arith.constant 0 : index
    %c0_4 = arith.constant 0 : index
    %c0_5 = arith.constant 0 : index
    %2 = vector.load %arg0[%c1, %c0_3, %c0_4, %c0_5] : memref<8x2x8x256xbf16, #tpu.memory_space<vmem>>, vector<1x2x8x256xbf16>
    %3 = vector.shape_cast %2 : vector<1x2x8x256xbf16> to vector<2x8x256xbf16>
    %4 = arith.maximumf %1, %3 : vector<2x8x256xbf16>
    %c2 = arith.constant 2 : index
    %c0_6 = arith.constant 0 : index
    %c0_7 = arith.constant 0 : index
    %c0_8 = arith.constant 0 : index
    %5 = vector.load %arg0[%c2, %c0_6, %c0_7, %c0_8] : memref<8x2x8x256xbf16, #tpu.memory_space<vmem>>, vector<1x2x8x256xbf16>
    %6 = vector.shape_cast %5 : vector<1x2x8x256xbf16> to vector<2x8x256xbf16>
    %7 = arith.maximumf %4, %6 : vector<2x8x256xbf16>
    %c3 = arith.constant 3 : index
    %c0_9 = arith.constant 0 : index
    %c0_10 = arith.constant 0 : index
    %c0_11 = arith.constant 0 : index
    %8 = vector.load %arg0[%c3, %c0_9, %c0_10, %c0_11] : memref<8x2x8x256xbf16, #tpu.memory_space<vmem>>, vector<1x2x8x256xbf16>
    %9 = vector.shape_cast %8 : vector<1x2x8x256xbf16> to vector<2x8x256xbf16>
    %10 = arith.maximumf %7, %9 : vector<2x8x256xbf16>
    %c4 = arith.constant 4 : index
    %c0_12 = arith.constant 0 : index
    %c0_13 = arith.constant 0 : index
    %c0_14 = arith.constant 0 : index
    %11 = vector.load %arg0[%c4, %c0_12, %c0_13, %c0_14] : memref<8x2x8x256xbf16, #tpu.memory_space<vmem>>, vector<1x2x8x256xbf16>
    %12 = vector.shape_cast %11 : vector<1x2x8x256xbf16> to vector<2x8x256xbf16>
    %13 = arith.maximumf %10, %12 : vector<2x8x256xbf16>
    %c5 = arith.constant 5 : index
    %c0_15 = arith.constant 0 : index
    %c0_16 = arith.constant 0 : index
    %c0_17 = arith.constant 0 : index
    %14 = vector.load %arg0[%c5, %c0_15, %c0_16, %c0_17] : memref<8x2x8x256xbf16, #tpu.memory_space<vmem>>, vector<1x2x8x256xbf16>
    %15 = vector.shape_cast %14 : vector<1x2x8x256xbf16> to vector<2x8x256xbf16>
    %16 = arith.maximumf %13, %15 : vector<2x8x256xbf16>
    %c6 = arith.constant 6 : index
    %c0_18 = arith.constant 0 : index
    %c0_19 = arith.constant 0 : index
    %c0_20 = arith.constant 0 : index
    %17 = vector.load %arg0[%c6, %c0_18, %c0_19, %c0_20] : memref<8x2x8x256xbf16, #tpu.memory_space<vmem>>, vector<1x2x8x256xbf16>
    %18 = vector.shape_cast %17 : vector<1x2x8x256xbf16> to vector<2x8x256xbf16>
    %19 = arith.maximumf %16, %18 : vector<2x8x256xbf16>
    %c7 = arith.constant 7 : index
    %c0_21 = arith.constant 0 : index
    %c0_22 = arith.constant 0 : index
    %c0_23 = arith.constant 0 : index
    %20 = vector.load %arg0[%c7, %c0_21, %c0_22, %c0_23] : memref<8x2x8x256xbf16, #tpu.memory_space<vmem>>, vector<1x2x8x256xbf16>
    %21 = vector.shape_cast %20 : vector<1x2x8x256xbf16> to vector<2x8x256xbf16>
    %22 = arith.maximumf %19, %21 : vector<2x8x256xbf16>
    %cst = arith.constant 0.000000e+00 : bf16
    %23 = vector.broadcast %cst : bf16 to vector<2x1x256xbf16>
    %c0_24 = arith.constant 0 : index
    %c0_25 = arith.constant 0 : index
    %c0_26 = arith.constant 0 : index
    %24 = vector.load %arg12[%c0_24, %c0_25, %c0_26] : memref<2x10x256xbf16, #tpu.memory_space<vmem>>, vector<2x1x256xbf16>
    tpu.vector_store %arg12[%c0_24, %c0_25, %c0_26], %23 {strides = array<i32>} : memref<2x10x256xbf16, #tpu.memory_space<vmem>>, vector<2x1x256xbf16>,
    %cst_27 = arith.constant 0.000000e+00 : bf16
    %25 = vector.broadcast %cst_27 : bf16 to vector<2x1x256xbf16>
    %c0_28 = arith.constant 0 : index
    %c9 = arith.constant 9 : index
    %c0_29 = arith.constant 0 : index
    %26 = vector.load %arg12[%c0_28, %c9, %c0_29] : memref<2x10x256xbf16, #tpu.memory_space<vmem>>, vector<2x1x256xbf16>
    tpu.vector_store %arg12[%c0_28, %c9, %c0_29], %25 {strides = array<i32>} : memref<2x10x256xbf16, #tpu.memory_space<vmem>>, vector<2x1x256xbf16>,
    %c0_30 = arith.constant 0 : index
    %c1_31 = arith.constant 1 : index
    %c0_32 = arith.constant 0 : index
    %27 = vector.load %arg12[%c0_30, %c1_31, %c0_32] : memref<2x10x256xbf16, #tpu.memory_space<vmem>>, vector<2x8x256xbf16>
    tpu.vector_store %arg12[%c0_30, %c1_31, %c0_32], %22 {strides = array<i32>} : memref<2x10x256xbf16, #tpu.memory_space<vmem>>, vector<2x8x256xbf16>,
    %cst_33 = arith.constant 0.000000e+00 : f32
    %28 = vector.broadcast %cst_33 : f32 to vector<16x512xf32>
    %c0_34 = arith.constant 0 : index
    %c0_35 = arith.constant 0 : index
    %c0_36 = arith.constant 0 : index
    %29 = vector.load %arg12[%c0_34, %c0_35, %c0_36] : memref<2x10x256xbf16, #tpu.memory_space<vmem>>, vector<2x8x256xbf16>
    %30 = vector.shape_cast %29 : vector<2x8x256xbf16> to vector<16x256xbf16>
    %c0_37 = arith.constant 0 : index
    %c0_38 = arith.constant 0 : index
    %c0_39 = arith.constant 0 : index
    %31 = vector.load %arg1[%c0_37, %c0_38, %c0_39] : memref<3x256x512xbf16, #tpu.memory_space<vmem>>, vector<1x256x512xbf16>
    %32 = vector.shape_cast %31 : vector<1x256x512xbf16> to vector<256x512xbf16>
    %cst_40 = arith.constant dense<0.000000e+00> : vector<16x512xf32>
    %33 = tpu.matmul %30, %32, %cst_40 {dimension_numbers = #tpu.dot_dimension_numbers<[1], [0], [0], [1], [0, 0, 1, 1], [], []>} : vector<16x256xbf16>, vector<256x512xbf16>, vector<16x512xf32> -> vector<16x512xf32>
    %34 = arith.addf %28, %33 : vector<16x512xf32>
    %c0_41 = arith.constant 0 : index
    %c1_42 = arith.constant 1 : index
    %c0_43 = arith.constant 0 : index
    %35 = vector.load %arg12[%c0_41, %c1_42, %c0_43] : memref<2x10x256xbf16, #tpu.memory_space<vmem>>, vector<2x8x256xbf16>
    %36 = vector.shape_cast %35 : vector<2x8x256xbf16> to vector<16x256xbf16>
    %c1_44 = arith.constant 1 : index
    %c0_45 = arith.constant 0 : index
    %c0_46 = arith.constant 0 : index
    %37 = vector.load %arg1[%c1_44, %c0_45, %c0_46] : memref<3x256x512xbf16, #tpu.memory_space<vmem>>, vector<1x256x512xbf16>
    %38 = vector.shape_cast %37 : vector<1x256x512xbf16> to vector<256x512xbf16>
    %cst_47 = arith.constant dense<0.000000e+00> : vector<16x512xf32>
    %39 = tpu.matmul %36, %38, %cst_47 {dimension_numbers = #tpu.dot_dimension_numbers<[1], [0], [0], [1], [0, 0, 1, 1], [], []>} : vector<16x256xbf16>, vector<256x512xbf16>, vector<16x512xf32> -> vector<16x512xf32>
    %40 = arith.addf %34, %39 : vector<16x512xf32>
    %c0_48 = arith.constant 0 : index
    %c2_49 = arith.constant 2 : index
    %c0_50 = arith.constant 0 : index
    %41 = vector.load %arg12[%c0_48, %c2_49, %c0_50] : memref<2x10x256xbf16, #tpu.memory_space<vmem>>, vector<2x8x256xbf16>
    %42 = vector.shape_cast %41 : vector<2x8x256xbf16> to vector<16x256xbf16>
    %c2_51 = arith.constant 2 : index
    %c0_52 = arith.constant 0 : index
    %c0_53 = arith.constant 0 : index
    %43 = vector.load %arg1[%c2_51, %c0_52, %c0_53] : memref<3x256x512xbf16, #tpu.memory_space<vmem>>, vector<1x256x512xbf16>
    %44 = vector.shape_cast %43 : vector<1x256x512xbf16> to vector<256x512xbf16>
    %cst_54 = arith.constant dense<0.000000e+00> : vector<16x512xf32>
    %45 = tpu.matmul %42, %44, %cst_54 {dimension_numbers = #tpu.dot_dimension_numbers<[1], [0], [0], [1], [0, 0, 1, 1], [], []>} : vector<16x256xbf16>, vector<256x512xbf16>, vector<16x512xf32> -> vector<16x512xf32>
    %46 = arith.addf %40, %45 : vector<16x512xf32>
    %cst_55 = arith.constant dense<0.000000e+00> : vector<512xf32>
    %47 = vector.multi_reduction <add>, %46, %cst_55 [0] : vector<16x512xf32> to vector<512xf32>
    %48 = vector.shape_cast %47 : vector<512xf32> to vector<1x512xf32>
    %49 = arith.mulf %46, %46 : vector<16x512xf32>
    %cst_56 = arith.constant dense<0.000000e+00> : vector<512xf32>
    %50 = vector.multi_reduction <add>, %49, %cst_56 [0] : vector<16x512xf32> to vector<512xf32>
    %51 = vector.shape_cast %50 : vector<512xf32> to vector<1x512xf32>
    %52 = tpu.concatenate %48, %51 in 0 : vector<1x512xf32>, vector<1x512xf32> -> vector<2x512xf32>
    %c0_57 = arith.constant 0 : index
    %c0_58 = arith.constant 0 : index
    %53 = vector.load %arg2[%c0_57, %c0_58] : memref<512x8xf32, #tpu.memory_space<vmem>>, vector<512x8xf32>
    %cst_59 = arith.constant dense<0.000000e+00> : vector<2x8xf32>
    %54 = tpu.matmul %52, %53, %cst_59 {dimension_numbers = #tpu.dot_dimension_numbers<[1], [0], [0], [1], [0, 0, 1, 1], [], []>, precision = #tpu.contract_precision<fp32>} : vector<2x512xf32>, vector<512x8xf32>, vector<2x8xf32> -> vector<2x8xf32>
    %55 = vector.extract_strided_slice %54 {offsets = [0, 0], sizes = [1, 8], strides = [1, 1]} : vector<2x8xf32> to vector<1x8xf32>
    %cst_60 = arith.constant 1.024000e+03 : f32
    %56 = vector.broadcast %cst_60 : f32 to vector<1x8xf32>
    %57 = arith.divf %55, %56 : vector<1x8xf32>
    %58 = vector.extract_strided_slice %54 {offsets = [1, 0], sizes = [1, 8], strides = [1, 1]} : vector<2x8xf32> to vector<1x8xf32>
    %cst_61 = arith.constant 1.024000e+03 : f32
    %59 = vector.broadcast %cst_61 : f32 to vector<1x8xf32>
    %60 = arith.divf %58, %59 : vector<1x8xf32>
    %61 = arith.mulf %57, %57 : vector<1x8xf32>
    %62 = arith.subf %60, %61 : vector<1x8xf32>
    %cst_62 = arith.constant 0.000000e+00 : f32
    %63 = vector.broadcast %cst_62 : f32 to vector<1x8xf32>
    %64 = arith.maximumf %62, %63 : vector<1x8xf32>
    %c0_63 = arith.constant 0 : index
    %c0_64 = arith.constant 0 : index
    %65 = vector.load %arg4[%c0_63, %c0_64] : memref<1x8xf32, #tpu.memory_space<vmem>>, vector<1x8xf32>
    %cst_65 = arith.constant 9.99999974E-6 : f32
    %66 = vector.broadcast %cst_65 : f32 to vector<1x8xf32>
    %67 = arith.addf %64, %66 : vector<1x8xf32>
    %68 = math.rsqrt %67 : vector<1x8xf32>
    %69 = arith.mulf %65, %68 : vector<1x8xf32>
    %c0_66 = arith.constant 0 : index
    %c0_67 = arith.constant 0 : index
    %70 = vector.load %arg5[%c0_66, %c0_67] : memref<1x8xf32, #tpu.memory_space<vmem>>, vector<1x8xf32>
    %71 = arith.mulf %57, %69 : vector<1x8xf32>
    %72 = arith.subf %70, %71 : vector<1x8xf32>
    %73 = tpu.concatenate %69, %72 in 0 : vector<1x8xf32>, vector<1x8xf32> -> vector<2x8xf32>
    %c0_68 = arith.constant 0 : index
    %c0_69 = arith.constant 0 : index
    %74 = vector.load %arg3[%c0_68, %c0_69] : memref<8x512xf32, #tpu.memory_space<vmem>>, vector<8x512xf32>
    %cst_70 = arith.constant dense<0.000000e+00> : vector<2x512xf32>
    %75 = tpu.matmul %73, %74, %cst_70 {dimension_numbers = #tpu.dot_dimension_numbers<[1], [0], [0], [1], [0, 0, 1, 1], [], []>, precision = #tpu.contract_precision<fp32>} : vector<2x8xf32>, vector<8x512xf32>, vector<2x512xf32> -> vector<2x512xf32>
    %76 = vector.extract_strided_slice %75 {offsets = [0, 0], sizes = [1, 512], strides = [1, 1]} : vector<2x512xf32> to vector<1x512xf32>
    %77 = vector.broadcast %76 : vector<1x512xf32> to vector<16x512xf32>
    %78 = arith.mulf %46, %77 : vector<16x512xf32>
    %79 = vector.extract_strided_slice %75 {offsets = [1, 0], sizes = [1, 512], strides = [1, 1]} : vector<2x512xf32> to vector<1x512xf32>
    %80 = vector.broadcast %79 : vector<1x512xf32> to vector<16x512xf32>
    %81 = arith.addf %78, %80 : vector<16x512xf32>
    %cst_71 = arith.constant 0.000000e+00 : f32
    %82 = vector.broadcast %cst_71 : f32 to vector<16x512xf32>
    %83 = arith.maximumf %81, %82 : vector<16x512xf32>
    %cst_72 = arith.constant 0.000000e+00 : bf16
    %84 = vector.broadcast %cst_72 : bf16 to vector<2x1x512xbf16>
    %c0_73 = arith.constant 0 : index
    %c0_74 = arith.constant 0 : index
    %c0_75 = arith.constant 0 : index
    %85 = vector.load %arg13[%c0_73, %c0_74, %c0_75] : memref<2x10x512xbf16, #tpu.memory_space<vmem>>, vector<2x1x512xbf16>
    tpu.vector_store %arg13[%c0_73, %c0_74, %c0_75], %84 {strides = array<i32>} : memref<2x10x512xbf16, #tpu.memory_space<vmem>>, vector<2x1x512xbf16>,
    %cst_76 = arith.constant 0.000000e+00 : bf16
    %86 = vector.broadcast %cst_76 : bf16 to vector<2x1x512xbf16>
    %c0_77 = arith.constant 0 : index
    %c9_78 = arith.constant 9 : index
    %c0_79 = arith.constant 0 : index
    %87 = vector.load %arg13[%c0_77, %c9_78, %c0_79] : memref<2x10x512xbf16, #tpu.memory_space<vmem>>, vector<2x1x512xbf16>
    tpu.vector_store %arg13[%c0_77, %c9_78, %c0_79], %86 {strides = array<i32>} : memref<2x10x512xbf16, #tpu.memory_space<vmem>>, vector<2x1x512xbf16>,
    %88 = arith.truncf %83 : vector<16x512xf32> to vector<16x512xbf16>
    %89 = vector.shape_cast %88 : vector<16x512xbf16> to vector<2x8x512xbf16>
    %c0_80 = arith.constant 0 : index
    %c1_81 = arith.constant 1 : index
    %c0_82 = arith.constant 0 : index
    %90 = vector.load %arg13[%c0_80, %c1_81, %c0_82] : memref<2x10x512xbf16, #tpu.memory_space<vmem>>, vector<2x8x512xbf16>
    tpu.vector_store %arg13[%c0_80, %c1_81, %c0_82], %89 {strides = array<i32>} : memref<2x10x512xbf16, #tpu.memory_space<vmem>>, vector<2x8x512xbf16>,
    %cst_83 = arith.constant 0.000000e+00 : f32
    %91 = vector.broadcast %cst_83 : f32 to vector<16x512xf32>
    %c0_84 = arith.constant 0 : index
    %c0_85 = arith.constant 0 : index
    %c0_86 = arith.constant 0 : index
    %92 = vector.load %arg13[%c0_84, %c0_85, %c0_86] : memref<2x10x512xbf16, #tpu.memory_space<vmem>>, vector<2x8x512xbf16>
    %93 = vector.shape_cast %92 : vector<2x8x512xbf16> to vector<16x512xbf16>
    %c0_87 = arith.constant 0 : index
    %c0_88 = arith.constant 0 : index
    %c0_89 = arith.constant 0 : index
    %94 = vector.load %arg6[%c0_87, %c0_88, %c0_89] : memref<3x512x512xbf16, #tpu.memory_space<vmem>>, vector<1x512x512xbf16>
    %95 = vector.shape_cast %94 : vector<1x512x512xbf16> to vector<512x512xbf16>
    %cst_90 = arith.constant dense<0.000000e+00> : vector<16x512xf32>
    %96 = tpu.matmul %93, %95, %cst_90 {dimension_numbers = #tpu.dot_dimension_numbers<[1], [0], [0], [1], [0, 0, 1, 1], [], []>} : vector<16x512xbf16>, vector<512x512xbf16>, vector<16x512xf32> -> vector<16x512xf32>
    %97 = arith.addf %91, %96 : vector<16x512xf32>
    %c0_91 = arith.constant 0 : index
    %c1_92 = arith.constant 1 : index
    %c0_93 = arith.constant 0 : index
    %98 = vector.load %arg13[%c0_91, %c1_92, %c0_93] : memref<2x10x512xbf16, #tpu.memory_space<vmem>>, vector<2x8x512xbf16>
    %99 = vector.shape_cast %98 : vector<2x8x512xbf16> to vector<16x512xbf16>
    %c1_94 = arith.constant 1 : index
    %c0_95 = arith.constant 0 : index
    %c0_96 = arith.constant 0 : index
    %100 = vector.load %arg6[%c1_94, %c0_95, %c0_96] : memref<3x512x512xbf16, #tpu.memory_space<vmem>>, vector<1x512x512xbf16>
    %101 = vector.shape_cast %100 : vector<1x512x512xbf16> to vector<512x512xbf16>
    %cst_97 = arith.constant dense<0.000000e+00> : vector<16x512xf32>
    %102 = tpu.matmul %99, %101, %cst_97 {dimension_numbers = #tpu.dot_dimension_numbers<[1], [0], [0], [1], [0, 0, 1, 1], [], []>} : vector<16x512xbf16>, vector<512x512xbf16>, vector<16x512xf32> -> vector<16x512xf32>
    %103 = arith.addf %97, %102 : vector<16x512xf32>
    %c0_98 = arith.constant 0 : index
    %c2_99 = arith.constant 2 : index
    %c0_100 = arith.constant 0 : index
    %104 = vector.load %arg13[%c0_98, %c2_99, %c0_100] : memref<2x10x512xbf16, #tpu.memory_space<vmem>>, vector<2x8x512xbf16>
    %105 = vector.shape_cast %104 : vector<2x8x512xbf16> to vector<16x512xbf16>
    %c2_101 = arith.constant 2 : index
    %c0_102 = arith.constant 0 : index
    %c0_103 = arith.constant 0 : index
    %106 = vector.load %arg6[%c2_101, %c0_102, %c0_103] : memref<3x512x512xbf16, #tpu.memory_space<vmem>>, vector<1x512x512xbf16>
    %107 = vector.shape_cast %106 : vector<1x512x512xbf16> to vector<512x512xbf16>
    %cst_104 = arith.constant dense<0.000000e+00> : vector<16x512xf32>
    %108 = tpu.matmul %105, %107, %cst_104 {dimension_numbers = #tpu.dot_dimension_numbers<[1], [0], [0], [1], [0, 0, 1, 1], [], []>} : vector<16x512xbf16>, vector<512x512xbf16>, vector<16x512xf32> -> vector<16x512xf32>
    %109 = arith.addf %103, %108 : vector<16x512xf32>
    %cst_105 = arith.constant dense<0.000000e+00> : vector<512xf32>
    %110 = vector.multi_reduction <add>, %109, %cst_105 [0] : vector<16x512xf32> to vector<512xf32>
    %111 = vector.shape_cast %110 : vector<512xf32> to vector<1x512xf32>
    %112 = arith.mulf %109, %109 : vector<16x512xf32>
    %cst_106 = arith.constant dense<0.000000e+00> : vector<512xf32>
    %113 = vector.multi_reduction <add>, %112, %cst_106 [0] : vector<16x512xf32> to vector<512xf32>
    %114 = vector.shape_cast %113 : vector<512xf32> to vector<1x512xf32>
    %115 = tpu.concatenate %111, %114 in 0 : vector<1x512xf32>, vector<1x512xf32> -> vector<2x512xf32>
    %c0_107 = arith.constant 0 : index
    %c0_108 = arith.constant 0 : index
    %116 = vector.load %arg7[%c0_107, %c0_108] : memref<512x8xf32, #tpu.memory_space<vmem>>, vector<512x8xf32>
    %cst_109 = arith.constant dense<0.000000e+00> : vector<2x8xf32>
    %117 = tpu.matmul %115, %116, %cst_109 {dimension_numbers = #tpu.dot_dimension_numbers<[1], [0], [0], [1], [0, 0, 1, 1], [], []>, precision = #tpu.contract_precision<fp32>} : vector<2x512xf32>, vector<512x8xf32>, vector<2x8xf32> -> vector<2x8xf32>
    %118 = vector.extract_strided_slice %117 {offsets = [0, 0], sizes = [1, 8], strides = [1, 1]} : vector<2x8xf32> to vector<1x8xf32>
    %cst_110 = arith.constant 1.024000e+03 : f32
    %119 = vector.broadcast %cst_110 : f32 to vector<1x8xf32>
    %120 = arith.divf %118, %119 : vector<1x8xf32>
    %121 = vector.extract_strided_slice %117 {offsets = [1, 0], sizes = [1, 8], strides = [1, 1]} : vector<2x8xf32> to vector<1x8xf32>
    %cst_111 = arith.constant 1.024000e+03 : f32
    %122 = vector.broadcast %cst_111 : f32 to vector<1x8xf32>
    %123 = arith.divf %121, %122 : vector<1x8xf32>
    %124 = arith.mulf %120, %120 : vector<1x8xf32>
    %125 = arith.subf %123, %124 : vector<1x8xf32>
    %cst_112 = arith.constant 0.000000e+00 : f32
    %126 = vector.broadcast %cst_112 : f32 to vector<1x8xf32>
    %127 = arith.maximumf %125, %126 : vector<1x8xf32>
    %c0_113 = arith.constant 0 : index
    %c0_114 = arith.constant 0 : index
    %128 = vector.load %arg9[%c0_113, %c0_114] : memref<1x8xf32, #tpu.memory_space<vmem>>, vector<1x8xf32>
    %cst_115 = arith.constant 9.99999974E-6 : f32
    %129 = vector.broadcast %cst_115 : f32 to vector<1x8xf32>
    %130 = arith.addf %127, %129 : vector<1x8xf32>
    %131 = math.rsqrt %130 : vector<1x8xf32>
    %132 = arith.mulf %128, %131 : vector<1x8xf32>
    %c0_116 = arith.constant 0 : index
    %c0_117 = arith.constant 0 : index
    %133 = vector.load %arg10[%c0_116, %c0_117] : memref<1x8xf32, #tpu.memory_space<vmem>>, vector<1x8xf32>
    %134 = arith.mulf %120, %132 : vector<1x8xf32>
    %135 = arith.subf %133, %134 : vector<1x8xf32>
    %136 = tpu.concatenate %132, %135 in 0 : vector<1x8xf32>, vector<1x8xf32> -> vector<2x8xf32>
    %c0_118 = arith.constant 0 : index
    %c0_119 = arith.constant 0 : index
    %137 = vector.load %arg8[%c0_118, %c0_119] : memref<8x512xf32, #tpu.memory_space<vmem>>, vector<8x512xf32>
    %cst_120 = arith.constant dense<0.000000e+00> : vector<2x512xf32>
    %138 = tpu.matmul %136, %137, %cst_120 {dimension_numbers = #tpu.dot_dimension_numbers<[1], [0], [0], [1], [0, 0, 1, 1], [], []>, precision = #tpu.contract_precision<fp32>} : vector<2x8xf32>, vector<8x512xf32>, vector<2x512xf32> -> vector<2x512xf32>
    %139 = vector.extract_strided_slice %138 {offsets = [0, 0], sizes = [1, 512], strides = [1, 1]} : vector<2x512xf32> to vector<1x512xf32>
    %140 = vector.broadcast %139 : vector<1x512xf32> to vector<16x512xf32>
    %141 = arith.mulf %109, %140 : vector<16x512xf32>
    %142 = vector.extract_strided_slice %138 {offsets = [1, 0], sizes = [1, 512], strides = [1, 1]} : vector<2x512xf32> to vector<1x512xf32>
    %143 = vector.broadcast %142 : vector<1x512xf32> to vector<16x512xf32>
    %144 = arith.addf %141, %143 : vector<16x512xf32>
    %cst_121 = arith.constant 0.000000e+00 : f32
    %145 = vector.broadcast %cst_121 : f32 to vector<16x512xf32>
    %146 = arith.maximumf %144, %145 : vector<16x512xf32>
    %c0_122 = arith.constant 0 : index
    %c0_123 = arith.constant 0 : index
    %147 = vector.load %arg11[%c0_122, %c0_123] : memref<16x512xf32, #tpu.memory_space<vmem>>, vector<16x512xf32>
    tpu.vector_store %arg11[%c0_122, %c0_123], %146 {strides = array<i32>} : memref<16x512xf32, #tpu.memory_space<vmem>>, vector<16x512xf32>,
    return
  }
}

</mosaic_0001>

<llo_original>
// kernel: tile.29
$region0: #{tile.29}
  %s0 = inlined_call_operand.vmem [shape: f32[8,64,8], index: 0, kind: input, shape index: {}]
  %s1 = inlined_call_operand.vmem [shape: f32[8,512], index: 1, kind: output, shape index: {}]
  %s2 = smov 3
  %v3 = vld [vmem:[%s0] ss:$16 sm:%s2]
  %s4 = smov 12
  %v5 = vld [vmem:[%s0] ss:$16 sm:%s4]
  %vm6 = vcmask 1043458
  %v7 = vsel %vm6, %v5, %v3
  %s8 = smov 48
  %v9 = vld [vmem:[%s0] ss:$16 sm:%s8]
  %vm10 = vcmask 1045508
  %v11 = vsel %vm10, %v9, %v7
  %s12 = smov 192
  %v13 = vld [vmem:[%s0] ss:$16 sm:%s12]
  %vm14 = vcmask 1047558
  %v15 = vsel %vm14, %v13, %v11
  %vm16 = vcmask 64512
  %17 = vst.msk [vmem:[%s1] ss:$8 sm:$0xf] %vm16, %v15
  %s18 = scalar_lea.vmem %s1, 4294967265
  %19 = vst.msk [vmem:[%s18] ss:$8 sm:$0xf0] %vm16, %v15
  %s20 = scalar_lea.vmem %s0, 128
  %s21 = smov 3
  %v22 = vld [vmem:[%s20] ss:$16 sm:%s21]
  %s23 = scalar_lea.vmem %s0, 128
  %s24 = smov 12
  %v25 = vld [vmem:[%s23] ss:$16 sm:%s24]
  %vm26 = vcmask 1043458
  %v27 = vsel %vm26, %v25, %v22
  %s28 = scalar_lea.vmem %s0, 128
  %s29 = smov 48
  %v30 = vld [vmem:[%s28] ss:$16 sm:%s29]
  %vm31 = vcmask 1045508
  %v32 = vsel %vm31, %v30, %v27
  %s33 = scalar_lea.vmem %s0, 128
  %s34 = smov 192
  %v35 = vld [vmem:[%s33] ss:$16 sm:%s34]
  %vm36 = vcmask 1047558
  %v37 = vsel %vm36, %v35, %v32
  %vm38 = vcmask 64512
  %s39 = scalar_lea.vmem %s1, 2
  %40 = vst.msk [vmem:[%s39] ss:$8 sm:$0xf] %vm38, %v37
  %s41 = scalar_lea.vmem %s1, 4294967267
  %42 = vst.msk [vmem:[%s41] ss:$8 sm:$0xf0] %vm38, %v37
  %s43 = scalar_lea.vmem %s0, 256
  %s44 = smov 3
  %v45 = vld [vmem:[%s43] ss:$16 sm:%s44]
  %s46 = scalar_lea.vmem %s0, 256
  %s47 = smov 12
  %v48 = vld [vmem:[%s46] ss:$16 sm:%s47]
  %vm49 = vcmask 1043458
  %v50 = vsel %vm49, %v48, %v45
  %s51 = scalar_lea.vmem %s0, 256
  %s52 = smov 48
  %v53 = vld [vmem:[%s51] ss:$16 sm:%s52]
  %vm54 = vcmask 1045508
  %v55 = vsel %vm54, %v53, %v50
  %s56 = scalar_lea.vmem %s0, 256
  %s57 = smov 192
  %v58 = vld [vmem:[%s56] ss:$16 sm:%s57]
  %vm59 = vcmask 1047558
  %v60 = vsel %vm59, %v58, %v55
  %vm61 = vcmask 64512
  %s62 = scalar_lea.vmem %s1, 4
  %63 = vst.msk [vmem:[%s62] ss:$8 sm:$0xf] %vm61, %v60
  %s64 = scalar_lea.vmem %s1, 4294967269
  %65 = vst.msk [vmem:[%s64] ss:$8 sm:$0xf0] %vm61, %v60
  %s66 = scalar_lea.vmem %s0, 384
  %s67 = smov 3
  %v68 = vld [vmem:[%s66] ss:$16 sm:%s67]
  %s69 = scalar_lea.vmem %s0, 384
  %s70 = smov 12
  %v71 = vld [vmem:[%s69] ss:$16 sm:%s70]
  %vm72 = vcmask 1043458
  %v73 = vsel %vm72, %v71, %v68
  %s74 = scalar_lea.vmem %s0, 384
  %s75 = smov 48
  %v76 = vld [vmem:[%s74] ss:$16 sm:%s75]
  %vm77 = vcmask 1045508
  %v78 = vsel %vm77, %v76, %v73
  %s79 = scalar_lea.vmem %s0, 384
  %s80 = smov 192
  %v81 = vld [vmem:[%s79] ss:$16 sm:%s80]
  %vm82 = vcmask 1047558
  %v83 = vsel %vm82, %v81, %v78
  %vm84 = vcmask 64512
  %s85 = scalar_lea.vmem %s1, 6
  %86 = vst.msk [vmem:[%s85] ss:$8 sm:$0xf] %vm84, %v83
  %s87 = scalar_lea.vmem %s1, 4294967271
  %88 = vst.msk [vmem:[%s87] ss:$8 sm:$0xf0] %vm84, %v83
  %s89 = scalar_lea.vmem %s0, 15
  %v90 = vld [vmem:[%s89] sm:$0x1]
  %s91 = scalar_lea.vmem %s0, 78
  %v92 = vld [vmem:[%s91] sm:$0x2]
  %vm93 = vcmask 1041409
  %v94 = vsel %vm93, %v92, %v90
  %s95 = scalar_lea.vmem %s0, 141
  %v96 = vld [vmem:[%s95] sm:$0x4]
  %vm97 = vcmask 1042434
  %v98 = vsel %vm97, %v96, %v94
  %s99 = scalar_lea.vmem %s0, 204
  %v100 = vld [vmem:[%s99] sm:$0x8]
  %vm101 = vcmask 1043459
  %v102 = vsel %vm101, %v100, %v98
  %s103 = scalar_lea.vmem %s0, 267
  %v104 = vld [vmem:[%s103] sm:$0x10]
  %vm105 = vcmask 1044484
  %v106 = vsel %vm105, %v104, %v102
  %s107 = scalar_lea.vmem %s0, 330
  %v108 = vld [vmem:[%s107] sm:$0x20]
  %vm109 = vcmask 1045509
  %v110 = vsel %vm109, %v108, %v106
  %s111 = scalar_lea.vmem %s0, 393
  %v112 = vld [vmem:[%s111] sm:$0x40]
  %vm113 = vcmask 1046534
  %v114 = vsel %vm113, %v112, %v110
  %s115 = scalar_lea.vmem %s0, 456
  %v116 = vld [vmem:[%s115] sm:$0x80]
  %vm117 = vcmask 1047559
  %v118 = vsel %vm117, %v116, %v114
  %119 = vrot.lane.b32.xlu0 %v118, 120
  %v120 = vpop.permute.xlu0 %119
  %vm121 = vcmask 1048512
  %122 = vst.msk [vmem:[%s1] sm:$0xff] %vm121, %v120
  %s123 = scalar_lea.vmem %s0, 31
  %v124 = vld [vmem:[%s123] sm:$0x1]
  %s125 = scalar_lea.vmem %s0, 94
  %v126 = vld [vmem:[%s125] sm:$0x2]
  %vm127 = vcmask 1041409
  %v128 = vsel %vm127, %v126, %v124
  %s129 = scalar_lea.vmem %s0, 157
  %v130 = vld [vmem:[%s129] sm:$0x4]
  %vm131 = vcmask 1042434
  %v132 = vsel %vm131, %v130, %v128
  %s133 = scalar_lea.vmem %s0, 220
  %v134 = vld [vmem:[%s133] sm:$0x8]
  %vm135 = vcmask 1043459
  %v136 = vsel %vm135, %v134, %v132
  %s137 = scalar_lea.vmem %s0, 283
  %v138 = vld [vmem:[%s137] sm:$0x10]
  %vm139 = vcmask 1044484
  %v140 = vsel %vm139, %v138, %v136
  %s141 = scalar_lea.vmem %s0, 346
  %v142 = vld [vmem:[%s141] sm:$0x20]
  %vm143 = vcmask 1045509
  %v144 = vsel %vm143, %v142, %v140
  %s145 = scalar_lea.vmem %s0, 409
  %v146 = vld [vmem:[%s145] sm:$0x40]
  %vm147 = vcmask 1046534
  %v148 = vsel %vm147, %v146, %v144
  %s149 = scalar_lea.vmem %s0, 472
  %v150 = vld [vmem:[%s149] sm:$0x80]
  %vm151 = vcmask 1047559
  %v152 = vsel %vm151, %v150, %v148
  %153 = vrot.lane.b32.xlu0 %v152, 120
  %v154 = vpop.permute.xlu0 %153
  %vm155 = vcmask 1048512
  %s156 = scalar_lea.vmem %s1, 8
  %157 = vst.msk [vmem:[%s156] sm:$0xff] %vm155, %v154
  %s158 = scalar_lea.vmem %s0, 47
  %v159 = vld [vmem:[%s158] sm:$0x1]
  %s160 = scalar_lea.vmem %s0, 110
  %v161 = vld [vmem:[%s160] sm:$0x2]
  %vm162 = vcmask 1041409
  %v163 = vsel %vm162, %v161, %v159
  %s164 = scalar_lea.vmem %s0, 173
  %v165 = vld [vmem:[%s164] sm:$0x4]
  %vm166 = vcmask 1042434
  %v167 = vsel %vm166, %v165, %v163
  %s168 = scalar_lea.vmem %s0, 236
  %v169 = vld [vmem:[%s168] sm:$0x8]
  %vm170 = vcmask 1043459
  %v171 = vsel %vm170, %v169, %v167
  %s172 = scalar_lea.vmem %s0, 299
  %v173 = vld [vmem:[%s172] sm:$0x10]
  %vm174 = vcmask 1044484
  %v175 = vsel %vm174, %v173, %v171
  %s176 = scalar_lea.vmem %s0, 362
  %v177 = vld [vmem:[%s176] sm:$0x20]
  %vm178 = vcmask 1045509
  %v179 = vsel %vm178, %v177, %v175
  %s180 = scalar_lea.vmem %s0, 425
  %v181 = vld [vmem:[%s180] sm:$0x40]
  %vm182 = vcmask 1046534
  %v183 = vsel %vm182, %v181, %v179
  %s184 = scalar_lea.vmem %s0, 488
  %v185 = vld [vmem:[%s184] sm:$0x80]
  %vm186 = vcmask 1047559
  %v187 = vsel %vm186, %v185, %v183
  %188 = vrot.lane.b32.xlu0 %v187, 120
  %v189 = vpop.permute.xlu0 %188
  %vm190 = vcmask 1048512
  %s191 = scalar_lea.vmem %s1, 16
  %192 = vst.msk [vmem:[%s191] sm:$0xff] %vm190, %v189
  %s193 = scalar_lea.vmem %s0, 63
  %v194 = vld [vmem:[%s193] sm:$0x1]
  %s195 = scalar_lea.vmem %s0, 126
  %v196 = vld [vmem:[%s195] sm:$0x2]
  %vm197 = vcmask 1041409
  %v198 = vsel %vm197, %v196, %v194
  %s199 = scalar_lea.vmem %s0, 189
  %v200 = vld [vmem:[%s199] sm:$0x4]
  %vm201 = vcmask 1042434
  %v202 = vsel %vm201, %v200, %v198
  %s203 = scalar_lea.vmem %s0, 252
  %v204 = vld [vmem:[%s203] sm:$0x8]
  %vm205 = vcmask 1043459
  %v206 = vsel %vm205, %v204, %v202
  %s207 = scalar_lea.vmem %s0, 315
  %v208 = vld [vmem:[%s207] sm:$0x10]
  %vm209 = vcmask 1044484
  %v210 = vsel %vm209, %v208, %v206
  %s211 = scalar_lea.vmem %s0, 378
  %v212 = vld [vmem:[%s211] sm:$0x20]
  %vm213 = vcmask 1045509
  %v214 = vsel %vm213, %v212, %v210
  %s215 = scalar_lea.vmem %s0, 441
  %v216 = vld [vmem:[%s215] sm:$0x40]
  %vm217 = vcmask 1046534
  %v218 = vsel %vm217, %v216, %v214
  %s219 = scalar_lea.vmem %s0, 504
  %v220 = vld [vmem:[%s219] sm:$0x80]
  %vm221 = vcmask 1047559
  %v222 = vsel %vm221, %v220, %v218
  %223 = vrot.lane.b32.xlu0 %v222, 120
  %v224 = vpop.permute.xlu0 %223
  %vm225 = vcmask 1048512
  %s226 = scalar_lea.vmem %s1, 24
  %227 = vst.msk [vmem:[%s226] sm:$0xff] %vm225, %v224
  %s228 = scalar_lea.vmem %s0, 14
  %v229 = vld [vmem:[%s228] sm:$0x1]
  %s230 = scalar_lea.vmem %s0, 77
  %v231 = vld [vmem:[%s230] sm:$0x2]
  %vm232 = vcmask 1041409
  %v233 = vsel %vm232, %v231, %v229
  %s234 = scalar_lea.vmem %s0, 140
  %v235 = vld [vmem:[%s234] sm:$0x4]
  %vm236 = vcmask 1042434
  %v237 = vsel %vm236, %v235, %v233
  %s238 = scalar_lea.vmem %s0, 203
  %v239 = vld [vmem:[%s238] sm:$0x8]
  %vm240 = vcmask 1043459
  %v241 = vsel %vm240, %v239, %v237
  %s242 = scalar_lea.vmem %s0, 266
  %v243 = vld [vmem:[%s242] sm:$0x10]
  %vm244 = vcmask 1044484
  %v245 = vsel %vm244, %v243, %v241
  %s246 = scalar_lea.vmem %s0, 329
  %v247 = vld [vmem:[%s246] sm:$0x20]
  %vm248 = vcmask 1045509
  %v249 = vsel %vm248, %v247, %v245
  %s250 = scalar_lea.vmem %s0, 392
  %v251 = vld [vmem:[%s250] sm:$0x40]
  %vm252 = vcmask 1046534
  %v253 = vsel %vm252, %v251, %v249
  %s254 = scalar_lea.vmem %s0, 455
  %v255 = vld [vmem:[%s254] sm:$0x80]
  %vm256 = vcmask 1047559
  %v257 = vsel %vm256, %v255, %v253
  %258 = vrot.lane.b32.xlu0 %v257, 112
  %v259 = vpop.permute.xlu0 %258
  %vm260 = vcmask 982912
  %261 = vst.msk [vmem:[%s1] sm:$0xff] %vm260, %v259
  %s262 = scalar_lea.vmem %s0, 30
  %v263 = vld [vmem:[%s262] sm:$0x1]
  %s264 = scalar_lea.vmem %s0, 93
  %v265 = vld [vmem:[%s264] sm:$0x2]
  %vm266 = vcmask 1041409
  %v267 = vsel %vm266, %v265, %v263
  %s268 = scalar_lea.vmem %s0, 156
  %v269 = vld [vmem:[%s268] sm:$0x4]
  %vm270 = vcmask 1042434
  %v271 = vsel %vm270, %v269, %v267
  %s272 = scalar_lea.vmem %s0, 219
  %v273 = vld [vmem:[%s272] sm:$0x8]
  %vm274 = vcmask 1043459
  %v275 = vsel %vm274, %v273, %v271
  %s276 = scalar_lea.vmem %s0, 282
  %v277 = vld [vmem:[%s276] sm:$0x10]
  %vm278 = vcmask 1044484
  %v279 = vsel %vm278, %v277, %v275
  %s280 = scalar_lea.vmem %s0, 345
  %v281 = vld [vmem:[%s280] sm:$0x20]
  %vm282 = vcmask 1045509
  %v283 = vsel %vm282, %v281, %v279
  %s284 = scalar_lea.vmem %s0, 408
  %v285 = vld [vmem:[%s284] sm:$0x40]
  %vm286 = vcmask 1046534
  %v287 = vsel %vm286, %v285, %v283
  %s288 = scalar_lea.vmem %s0, 471
  %v289 = vld [vmem:[%s288] sm:$0x80]
  %vm290 = vcmask 1047559
  %v291 = vsel %vm290, %v289, %v287
  %292 = vrot.lane.b32.xlu0 %v291, 112
  %v293 = vpop.permute.xlu0 %292
  %vm294 = vcmask 982912
  %s295 = scalar_lea.vmem %s1, 8
  %296 = vst.msk [vmem:[%s295] sm:$0xff] %vm294, %v293
  %s297 = scalar_lea.vmem %s0, 46
  %v298 = vld [vmem:[%s297] sm:$0x1]
  %s299 = scalar_lea.vmem %s0, 109
  %v300 = vld [vmem:[%s299] sm:$0x2]
  %vm301 = vcmask 1041409
  %v302 = vsel %vm301, %v300, %v298
  %s303 = scalar_lea.vmem %s0, 172
  %v304 = vld [vmem:[%s303] sm:$0x4]
  %vm305 = vcmask 1042434
  %v306 = vsel %vm305, %v304, %v302
  %s307 = scalar_lea.vmem %s0, 235
  %v308 = vld [vmem:[%s307] sm:$0x8]
  %vm309 = vcmask 1043459
  %v310 = vsel %vm309, %v308, %v306
  %s311 = scalar_lea.vmem %s0, 298
  %v312 = vld [vmem:[%s311] sm:$0x10]
  %vm313 = vcmask 1044484
  %v314 = vsel %vm313, %v312, %v310
  %s315 = scalar_lea.vmem %s0, 361
  %v316 = vld [vmem:[%s315] sm:$0x20]
  %vm317 = vcmask 1045509
  %v318 = vsel %vm317, %v316, %v314
  %s319 = scalar_lea.vmem %s0, 424
  %v320 = vld [vmem:[%s319] sm:$0x40]
  %vm321 = vcmask 1046534
  %v322 = vsel %vm321, %v320, %v318
  %s323 = scalar_lea.vmem %s0, 487
  %v324 = vld [vmem:[%s323] sm:$0x80]
  %vm325 = vcmask 1047559
  %v326 = vsel %vm325, %v324, %v322
  %327 = vrot.lane.b32.xlu0 %v326, 112
  %v328 = vpop.permute.xlu0 %327
  %vm329 = vcmask 982912
  %s330 = scalar_lea.vmem %s1, 16
  %331 = vst.msk [vmem:[%s330] sm:$0xff] %vm329, %v328
  %s332 = scalar_lea.vmem %s0, 62
  %v333 = vld [vmem:[%s332] sm:$0x1]
  %s334 = scalar_lea.vmem %s0, 125
  %v335 = vld [vmem:[%s334] sm:$0x2]
  %vm336 = vcmask 1041409
  %v337 = vsel %vm336, %v335, %v333
  %s338 = scalar_lea.vmem %s0, 188
  %v339 = vld [vmem:[%s338] sm:$0x4]
  %vm340 = vcmask 1042434
  %v341 = vsel %vm340, %v339, %v337
  %s342 = scalar_lea.vmem %s0, 251
  %v343 = vld [vmem:[%s342] sm:$0x8]
  %vm344 = vcmask 1043459
  %v345 = vsel %vm344, %v343, %v341
  %s346 = scalar_lea.vmem %s0, 314
  %v347 = vld [vmem:[%s346] sm:$0x10]
  %vm348 = vcmask 1044484
  %v349 = vsel %vm348, %v347, %v345
  %s350 = scalar_lea.vmem %s0, 377
  %v351 = vld [vmem:[%s350] sm:$0x20]
  %vm352 = vcmask 1045509
  %v353 = vsel %vm352, %v351, %v349
  %s354 = scalar_lea.vmem %s0, 440
  %v355 = vld [vmem:[%s354] sm:$0x40]
  %vm356 = vcmask 1046534
  %v357 = vsel %vm356, %v355, %v353
  %s358 = scalar_lea.vmem %s0, 503
  %v359 = vld [vmem:[%s358] sm:$0x80]
  %vm360 = vcmask 1047559
  %v361 = vsel %vm360, %v359, %v357
  %362 = vrot.lane.b32.xlu0 %v361, 112
  %v363 = vpop.permute.xlu0 %362
  %vm364 = vcmask 982912
  %s365 = scalar_lea.vmem %s1, 24
  %366 = vst.msk [vmem:[%s365] sm:$0xff] %vm364, %v363
  %s367 = scalar_lea.vmem %s0, 13
  %v368 = vld [vmem:[%s367] sm:$0x1]
  %s369 = scalar_lea.vmem %s0, 76
  %v370 = vld [vmem:[%s369] sm:$0x2]
  %vm371 = vcmask 1041409
  %v372 = vsel %vm371, %v370, %v368
  %s373 = scalar_lea.vmem %s0, 139
  %v374 = vld [vmem:[%s373] sm:$0x4]
  %vm375 = vcmask 1042434
  %v376 = vsel %vm375, %v374, %v372
  %s377 = scalar_lea.vmem %s0, 202
  %v378 = vld [vmem:[%s377] sm:$0x8]
  %vm379 = vcmask 1043459
  %v380 = vsel %vm379, %v378, %v376
  %s381 = scalar_lea.vmem %s0, 265
  %v382 = vld [vmem:[%s381] sm:$0x10]
  %vm383 = vcmask 1044484
  %v384 = vsel %vm383, %v382, %v380
  %s385 = scalar_lea.vmem %s0, 328
  %v386 = vld [vmem:[%s385] sm:$0x20]
  %vm387 = vcmask 1045509
  %v388 = vsel %vm387, %v386, %v384
  %s389 = scalar_lea.vmem %s0, 391
  %v390 = vld [vmem:[%s389] sm:$0x40]
  %vm391 = vcmask 1046534
  %v392 = vsel %vm391, %v390, %v388
  %s393 = scalar_lea.vmem %s0, 454
  %v394 = vld [vmem:[%s393] sm:$0x80]
  %vm395 = vcmask 1047559
  %v396 = vsel %vm395, %v394, %v392
  %397 = vrot.lane.b32.xlu0 %v396, 104
  %v398 = vpop.permute.xlu0 %397
  %vm399 = vcmask 917312
  %400 = vst.msk [vmem:[%s1] sm:$0xff] %vm399, %v398
  %s401 = scalar_lea.vmem %s0, 29
  %v402 = vld [vmem:[%s401] sm:$0x1]
  %s403 = scalar_lea.vmem %s0, 92
  %v404 = vld [vmem:[%s403] sm:$0x2]
  %vm405 = vcmask 1041409
  %v406 = vsel %vm405, %v404, %v402
  %s407 = scalar_lea.vmem %s0, 155
  %v408 = vld [vmem:[%s407] sm:$0x4]
  %vm409 = vcmask 1042434
  %v410 = vsel %vm409, %v408, %v406
  %s411 = scalar_lea.vmem %s0, 218
  %v412 = vld [vmem:[%s411] sm:$0x8]
  %vm413 = vcmask 1043459
  %v414 = vsel %vm413, %v412, %v410
  %s415 = scalar_lea.vmem %s0, 281
  %v416 = vld [vmem:[%s415] sm:$0x10]
  %vm417 = vcmask 1044484
  %v418 = vsel %vm417, %v416, %v414
  %s419 = scalar_lea.vmem %s0, 344
  %v420 = vld [vmem:[%s419] sm:$0x20]
  %vm421 = vcmask 1045509
  %v422 = vsel %vm421, %v420, %v418
  %s423 = scalar_lea.vmem %s0, 407
  %v424 = vld [vmem:[%s423] sm:$0x40]
  %vm425 = vcmask 1046534
  %v426 = vsel %vm425, %v424, %v422
  %s427 = scalar_lea.vmem %s0, 470
  %v428 = vld [vmem:[%s427] sm:$0x80]
  %vm429 = vcmask 1047559
  %v430 = vsel %vm429, %v428, %v426
  %431 = vrot.lane.b32.xlu0 %v430, 104
  %v432 = vpop.permute.xlu0 %431
  %vm433 = vcmask 917312
  %s434 = scalar_lea.vmem %s1, 8
  %435 = vst.msk [vmem:[%s434] sm:$0xff] %vm433, %v432
  %s436 = scalar_lea.vmem %s0, 45
  %v437 = vld [vmem:[%s436] sm:$0x1]
  %s438 = scalar_lea.vmem %s0, 108
  %v439 = vld [vmem:[%s438] sm:$0x2]
  %vm440 = vcmask 1041409
  %v441 = vsel %vm440, %v439, %v437
  %s442 = scalar_lea.vmem %s0, 171
  %v443 = vld [vmem:[%s442] sm:$0x4]
  %vm444 = vcmask 1042434
  %v445 = vsel %vm444, %v443, %v441
  %s446 = scalar_lea.vmem %s0, 234
  %v447 = vld [vmem:[%s446] sm:$0x8]
  %vm448 = vcmask 1043459
  %v449 = vsel %vm448, %v447, %v445
  %s450 = scalar_lea.vmem %s0, 297
  %v451 = vld [vmem:[%s450] sm:$0x10]
  %vm452 = vcmask 1044484
  %v453 = vsel %vm452, %v451, %v449
  %s454 = scalar_lea.vmem %s0, 360
  %v455 = vld [vmem:[%s454] sm:$0x20]
  %vm456 = vcmask 1045509
  %v457 = vsel %vm456, %v455, %v453
  %s458 = scalar_lea.vmem %s0, 423
  %v459 = vld [vmem:[%s458] sm:$0x40]
  %vm460 = vcmask 1046534
  %v461 = vsel %vm460, %v459, %v457
  %s462 = scalar_lea.vmem %s0, 486
  %v463 = vld [vmem:[%s462] sm:$0x80]
  %vm464 = vcmask 1047559
  %v465 = vsel %vm464, %v463, %v461
  %466 = vrot.lane.b32.xlu0 %v465, 104
  %v467 = vpop.permute.xlu0 %466
  %vm468 = vcmask 917312
  %s469 = scalar_lea.vmem %s1, 16
  %470 = vst.msk [vmem:[%s469] sm:$0xff] %vm468, %v467
  %s471 = scalar_lea.vmem %s0, 61
  %v472 = vld [vmem:[%s471] sm:$0x1]
  %s473 = scalar_lea.vmem %s0, 124
  %v474 = vld [vmem:[%s473] sm:$0x2]
  %vm475 = vcmask 1041409
  %v476 = vsel %vm475, %v474, %v472
  %s477 = scalar_lea.vmem %s0, 187
  %v478 = vld [vmem:[%s477] sm:$0x4]
  %vm479 = vcmask 1042434
  %v480 = vsel %vm479, %v478, %v476
  %s481 = scalar_lea.vmem %s0, 250
  %v482 = vld [vmem:[%s481] sm:$0x8]
  %vm483 = vcmask 1043459
  %v484 = vsel %vm483, %v482, %v480
  %s485 = scalar_lea.vmem %s0, 313
  %v486 = vld [vmem:[%s485] sm:$0x10]
  %vm487 = vcmask 1044484
  %v488 = vsel %vm487, %v486, %v484
  %s489 = scalar_lea.vmem %s0, 376
  %v490 = vld [vmem:[%s489] sm:$0x20]
  %vm491 = vcmask 1045509
  %v492 = vsel %vm491, %v490, %v488
  %s493 = scalar_lea.vmem %s0, 439
  %v494 = vld [vmem:[%s493] sm:$0x40]
  %vm495 = vcmask 1046534
  %v496 = vsel %vm495, %v494, %v492
  %s497 = scalar_lea.vmem %s0, 502
  %v498 = vld [vmem:[%s497] sm:$0x80]
  %vm499 = vcmask 1047559
  %v500 = vsel %vm499, %v498, %v496
  %501 = vrot.lane.b32.xlu0 %v500, 104
  %v502 = vpop.permute.xlu0 %501
  %vm503 = vcmask 917312
  %s504 = scalar_lea.vmem %s1, 24
  %505 = vst.msk [vmem:[%s504] sm:$0xff] %vm503, %v502
  %s506 = scalar_lea.vmem %s0, 12
  %v507 = vld [vmem:[%s506] sm:$0x1]
  %s508 = scalar_lea.vmem %s0, 75
  %v509 = vld [vmem:[%s508] sm:$0x2]
  %vm510 = vcmask 1041409
  %v511 = vsel %vm510, %v509, %v507
  %s512 = scalar_lea.vmem %s0, 138
  %v513 = vld [vmem:[%s512] sm:$0x4]
  %vm514 = vcmask 1042434
  %v515 = vsel %vm514, %v513, %v511
  %s516 = scalar_lea.vmem %s0, 201
  %v517 = vld [vmem:[%s516] sm:$0x8]
  %vm518 = vcmask 1043459
  %v519 = vsel %vm518, %v517, %v515
  %s520 = scalar_lea.vmem %s0, 264
  %v521 = vld [vmem:[%s520] sm:$0x10]
  %vm522 = vcmask 1044484
  %v523 = vsel %vm522, %v521, %v519
  %s524 = scalar_lea.vmem %s0, 327
  %v525 = vld [vmem:[%s524] sm:$0x20]
  %vm526 = vcmask 1045509
  %v527 = vsel %vm526, %v525, %v523
  %s528 = scalar_lea.vmem %s0, 390
  %v529 = vld [vmem:[%s528] sm:$0x40]
  %vm530 = vcmask 1046534
  %v531 = vsel %vm530, %v529, %v527
  %s532 = scalar_lea.vmem %s0, 453
  %v533 = vld [vmem:[%s532] sm:$0x80]
  %vm534 = vcmask 1047559
  %v535 = vsel %vm534, %v533, %v531
  %536 = vrot.lane.b32.xlu0 %v535, 96
  %v537 = vpop.permute.xlu0 %536
  %vm538 = vcmask 851712
  %539 = vst.msk [vmem:[%s1] sm:$0xff] %vm538, %v537
  %s540 = scalar_lea.vmem %s0, 28
  %v541 = vld [vmem:[%s540] sm:$0x1]
  %s542 = scalar_lea.vmem %s0, 91
  %v543 = vld [vmem:[%s542] sm:$0x2]
  %vm544 = vcmask 1041409
  %v545 = vsel %vm544, %v543, %v541
  %s546 = scalar_lea.vmem %s0, 154
  %v547 = vld [vmem:[%s546] sm:$0x4]
  %vm548 = vcmask 1042434
  %v549 = vsel %vm548, %v547, %v545
  %s550 = scalar_lea.vmem %s0, 217
  %v551 = vld [vmem:[%s550] sm:$0x8]
  %vm552 = vcmask 1043459
  %v553 = vsel %vm552, %v551, %v549
  %s554 = scalar_lea.vmem %s0, 280
  %v555 = vld [vmem:[%s554] sm:$0x10]
  %vm556 = vcmask 1044484
  %v557 = vsel %vm556, %v555, %v553
  %s558 = scalar_lea.vmem %s0, 343
  %v559 = vld [vmem:[%s558] sm:$0x20]
  %vm560 = vcmask 1045509
  %v561 = vsel %vm560, %v559, %v557
  %s562 = scalar_lea.vmem %s0, 406
  %v563 = vld [vmem:[%s562] sm:$0x40]
  %vm564 = vcmask 1046534
  %v565 = vsel %vm564, %v563, %v561
  %s566 = scalar_lea.vmem %s0, 469
  %v567 = vld [vmem:[%s566] sm:$0x80]
  %vm568 = vcmask 1047559
  %v569 = vsel %vm568, %v567, %v565
  %570 = vrot.lane.b32.xlu0 %v569, 96
  %v571 = vpop.permute.xlu0 %570
  %vm572 = vcmask 851712
  %s573 = scalar_lea.vmem %s1, 8
  %574 = vst.msk [vmem:[%s573] sm:$0xff] %vm572, %v571
  %s575 = scalar_lea.vmem %s0, 44
  %v576 = vld [vmem:[%s575] sm:$0x1]
  %s577 = scalar_lea.vmem %s0, 107
  %v578 = vld [vmem:[%s577] sm:$0x2]
  %vm579 = vcmask 1041409
  %v580 = vsel %vm579, %v578, %v576
  %s581 = scalar_lea.vmem %s0, 170
  %v582 = vld [vmem:[%s581] sm:$0x4]
  %vm583 = vcmask 1042434
  %v584 = vsel %vm583, %v582, %v580
  %s585 = scalar_lea.vmem %s0, 233
  %v586 = vld [vmem:[%s585] sm:$0x8]
  %vm587 = vcmask 1043459
  %v588 = vsel %vm587, %v586, %v584
  %s589 = scalar_lea.vmem %s0, 296
  %v590 = vld [vmem:[%s589] sm:$0x10]
  %vm591 = vcmask 1044484
  %v592 = vsel %vm591, %v590, %v588
  %s593 = scalar_lea.vmem %s0, 359
  %v594 = vld [vmem:[%s593] sm:$0x20]
  %vm595 = vcmask 1045509
  %v596 = vsel %vm595, %v594, %v592
  %s597 = scalar_lea.vmem %s0, 422
  %v598 = vld [vmem:[%s597] sm:$0x40]
  %vm599 = vcmask 1046534
  %v600 = vsel %vm599, %v598, %v596
  %s601 = scalar_lea.vmem %s0, 485
  %v602 = vld [vmem:[%s601] sm:$0x80]
  %vm603 = vcmask 1047559
  %v604 = vsel %vm603, %v602, %v600
  %605 = vrot.lane.b32.xlu0 %v604, 96
  %v606 = vpop.permute.xlu0 %605
  %vm607 = vcmask 851712
  %s608 = scalar_lea.vmem %s1, 16
  %609 = vst.msk [vmem:[%s608] sm:$0xff] %vm607, %v606
  %s610 = scalar_lea.vmem %s0, 60
  %v611 = vld [vmem:[%s610] sm:$0x1]
  %s612 = scalar_lea.vmem %s0, 123
  %v613 = vld [vmem:[%s612] sm:$0x2]
  %vm614 = vcmask 1041409
  %v615 = vsel %vm614, %v613, %v611
  %s616 = scalar_lea.vmem %s0, 186
  %v617 = vld [vmem:[%s616] sm:$0x4]
  %vm618 = vcmask 1042434
  %v619 = vsel %vm618, %v617, %v615
  %s620 = scalar_lea.vmem %s0, 249
  %v621 = vld [vmem:[%s620] sm:$0x8]
  %vm622 = vcmask 1043459
  %v623 = vsel %vm622, %v621, %v619
  %s624 = scalar_lea.vmem %s0, 312
  %v625 = vld [vmem:[%s624] sm:$0x10]
  %vm626 = vcmask 1044484
  %v627 = vsel %vm626, %v625, %v623
  %s628 = scalar_lea.vmem %s0, 375
  %v629 = vld [vmem:[%s628] sm:$0x20]
  %vm630 = vcmask 1045509
  %v631 = vsel %vm630, %v629, %v627
  %s632 = scalar_lea.vmem %s0, 438
  %v633 = vld [vmem:[%s632] sm:$0x40]
  %vm634 = vcmask 1046534
  %v635 = vsel %vm634, %v633, %v631
  %s636 = scalar_lea.vmem %s0, 501
  %v637 = vld [vmem:[%s636] sm:$0x80]
  %vm638 = vcmask 1047559
  %v639 = vsel %vm638, %v637, %v635
  %640 = vrot.lane.b32.xlu0 %v639, 96
  %v641 = vpop.permute.xlu0 %640
  %vm642 = vcmask 851712
  %s643 = scalar_lea.vmem %s1, 24
  %644 = vst.msk [vmem:[%s643] sm:$0xff] %vm642, %v641
  %s645 = scalar_lea.vmem %s0, 11
  %v646 = vld [vmem:[%s645] sm:$0x1]
  %s647 = scalar_lea.vmem %s0, 74
  %v648 = vld [vmem:[%s647] sm:$0x2]
  %vm649 = vcmask 1041409
  %v650 = vsel %vm649, %v648, %v646
  %s651 = scalar_lea.vmem %s0, 137
  %v652 = vld [vmem:[%s651] sm:$0x4]
  %vm653 = vcmask 1042434
  %v654 = vsel %vm653, %v652, %v650
  %s655 = scalar_lea.vmem %s0, 200
  %v656 = vld [vmem:[%s655] sm:$0x8]
  %vm657 = vcmask 1043459
  %v658 = vsel %vm657, %v656, %v654
  %s659 = scalar_lea.vmem %s0, 263
  %v660 = vld [vmem:[%s659] sm:$0x10]
  %vm661 = vcmask 1044484
  %v662 = vsel %vm661, %v660, %v658
  %s663 = scalar_lea.vmem %s0, 326
  %v664 = vld [vmem:[%s663] sm:$0x20]
  %vm665 = vcmask 1045509
  %v666 = vsel %vm665, %v664, %v662
  %s667 = scalar_lea.vmem %s0, 389
  %v668 = vld [vmem:[%s667] sm:$0x40]
  %vm669 = vcmask 1046534
  %v670 = vsel %vm669, %v668, %v666
  %s671 = scalar_lea.vmem %s0, 452
  %v672 = vld [vmem:[%s671] sm:$0x80]
  %vm673 = vcmask 1047559
  %v674 = vsel %vm673, %v672, %v670
  %675 = vrot.lane.b32.xlu0 %v674, 88
  %v676 = vpop.permute.xlu0 %675
  %vm677 = vcmask 786112
  %678 = vst.msk [vmem:[%s1] sm:$0xff] %vm677, %v676
  %s679 = scalar_lea.vmem %s0, 27
  %v680 = vld [vmem:[%s679] sm:$0x1]
  %s681 = scalar_lea.vmem %s0, 90
  %v682 = vld [vmem:[%s681] sm:$0x2]
  %vm683 = vcmask 1041409
  %v684 = vsel %vm683, %v682, %v680
  %s685 = scalar_lea.vmem %s0, 153
  %v686 = vld [vmem:[%s685] sm:$0x4]
  %vm687 = vcmask 1042434
  %v688 = vsel %vm687, %v686, %v684
  %s689 = scalar_lea.vmem %s0, 216
  %v690 = vld [vmem:[%s689] sm:$0x8]
  %vm691 = vcmask 1043459
  %v692 = vsel %vm691, %v690, %v688
  %s693 = scalar_lea.vmem %s0, 279
  %v694 = vld [vmem:[%s693] sm:$0x10]
  %vm695 = vcmask 1044484
  %v696 = vsel %vm695, %v694, %v692
  %s697 = scalar_lea.vmem %s0, 342
  %v698 = vld [vmem:[%s697] sm:$0x20]
  %vm699 = vcmask 1045509
  %v700 = vsel %vm699, %v698, %v696
  %s701 = scalar_lea.vmem %s0, 405
  %v702 = vld [vmem:[%s701] sm:$0x40]
  %vm703 = vcmask 1046534
  %v704 = vsel %vm703, %v702, %v700
  %s705 = scalar_lea.vmem %s0, 468
  %v706 = vld [vmem:[%s705] sm:$0x80]
  %vm707 = vcmask 1047559
  %v708 = vsel %vm707, %v706, %v704
  %709 = vrot.lane.b32.xlu0 %v708, 88
  %v710 = vpop.permute.xlu0 %709
  %vm711 = vcmask 786112
  %s712 = scalar_lea.vmem %s1, 8
  %713 = vst.msk [vmem:[%s712] sm:$0xff] %vm711, %v710
  %s714 = scalar_lea.vmem %s0, 43
  %v715 = vld [vmem:[%s714] sm:$0x1]
  %s716 = scalar_lea.vmem %s0, 106
  %v717 = vld [vmem:[%s716] sm:$0x2]
  %vm718 = vcmask 1041409
  %v719 = vsel %vm718, %v717, %v715
  %s720 = scalar_lea.vmem %s0, 169
  %v721 = vld [vmem:[%s720] sm:$0x4]
  %vm722 = vcmask 1042434
  %v723 = vsel %vm722, %v721, %v719
  %s724 = scalar_lea.vmem %s0, 232
  %v725 = vld [vmem:[%s724] sm:$0x8]
  %vm726 = vcmask 1043459
  %v727 = vsel %vm726, %v725, %v723
  %s728 = scalar_lea.vmem %s0, 295
  %v729 = vld [vmem:[%s728] sm:$0x10]
  %vm730 = vcmask 1044484
  %v731 = vsel %vm730, %v729, %v727
  %s732 = scalar_lea.vmem %s0, 358
  %v733 = vld [vmem:[%s732] sm:$0x20]
  %vm734 = vcmask 1045509
  %v735 = vsel %vm734, %v733, %v731
  %s736 = scalar_lea.vmem %s0, 421
  %v737 = vld [vmem:[%s736] sm:$0x40]
  %vm738 = vcmask 1046534
  %v739 = vsel %vm738, %v737, %v735
  %s740 = scalar_lea.vmem %s0, 484
  %v741 = vld [vmem:[%s740] sm:$0x80]
  %vm742 = vcmask 1047559
  %v743 = vsel %vm742, %v741, %v739
  %744 = vrot.lane.b32.xlu0 %v743, 88
  %v745 = vpop.permute.xlu0 %744
  %vm746 = vcmask 786112
  %s747 = scalar_lea.vmem %s1, 16
  %748 = vst.msk [vmem:[%s747] sm:$0xff] %vm746, %v745
  %s749 = scalar_lea.vmem %s0, 59
  %v750 = vld [vmem:[%s749] sm:$0x1]
  %s751 = scalar_lea.vmem %s0, 122
  %v752 = vld [vmem:[%s751] sm:$0x2]
  %vm753 = vcmask 1041409
  %v754 = vsel %vm753, %v752, %v750
  %s755 = scalar_lea.vmem %s0, 185
  %v756 = vld [vmem:[%s755] sm:$0x4]
  %vm757 = vcmask 1042434
  %v758 = vsel %vm757, %v756, %v754
  %s759 = scalar_lea.vmem %s0, 248
  %v760 = vld [vmem:[%s759] sm:$0x8]
  %vm761 = vcmask 1043459
  %v762 = vsel %vm761, %v760, %v758
  %s763 = scalar_lea.vmem %s0, 311
  %v764 = vld [vmem:[%s763] sm:$0x10]
  %vm765 = vcmask 1044484
  %v766 = vsel %vm765, %v764, %v762
  %s767 = scalar_lea.vmem %s0, 374
  %v768 = vld [vmem:[%s767] sm:$0x20]
  %vm769 = vcmask 1045509
  %v770 = vsel %vm769, %v768, %v766
  %s771 = scalar_lea.vmem %s0, 437
  %v772 = vld [vmem:[%s771] sm:$0x40]
  %vm773 = vcmask 1046534
  %v774 = vsel %vm773, %v772, %v770
  %s775 = scalar_lea.vmem %s0, 500
  %v776 = vld [vmem:[%s775] sm:$0x80]
  %vm777 = vcmask 1047559
  %v778 = vsel %vm777, %v776, %v774
  %779 = vrot.lane.b32.xlu0 %v778, 88
  %v780 = vpop.permute.xlu0 %779
  %vm781 = vcmask 786112
  %s782 = scalar_lea.vmem %s1, 24
  %783 = vst.msk [vmem:[%s782] sm:$0xff] %vm781, %v780
  %s784 = scalar_lea.vmem %s0, 10
  %v785 = vld [vmem:[%s784] sm:$0x1]
  %s786 = scalar_lea.vmem %s0, 73
  %v787 = vld [vmem:[%s786] sm:$0x2]
  %vm788 = vcmask 1041409
  %v789 = vsel %vm788, %v787, %v785
  %s790 = scalar_lea.vmem %s0, 136
  %v791 = vld [vmem:[%s790] sm:$0x4]
  %vm792 = vcmask 1042434
  %v793 = vsel %vm792, %v791, %v789
  %s794 = scalar_lea.vmem %s0, 199
  %v795 = vld [vmem:[%s794] sm:$0x8]
  %vm796 = vcmask 1043459
  %v797 = vsel %vm796, %v795, %v793
  %s798 = scalar_lea.vmem %s0, 262
  %v799 = vld [vmem:[%s798] sm:$0x10]
  %vm800 = vcmask 1044484
  %v801 = vsel %vm800, %v799, %v797
  %s802 = scalar_lea.vmem %s0, 325
  %v803 = vld [vmem:[%s802] sm:$0x20]
  %vm804 = vcmask 1045509
  %v805 = vsel %vm804, %v803, %v801
  %s806 = scalar_lea.vmem %s0, 388
  %v807 = vld [vmem:[%s806] sm:$0x40]
  %vm808 = vcmask 1046534
  %v809 = vsel %vm808, %v807, %v805
  %s810 = scalar_lea.vmem %s0, 451
  %v811 = vld [vmem:[%s810] sm:$0x80]
  %vm812 = vcmask 1047559
  %v813 = vsel %vm812, %v811, %v809
  %814 = vrot.lane.b32.xlu0 %v813, 80
  %v815 = vpop.permute.xlu0 %814
  %vm816 = vcmask 720512
  %817 = vst.msk [vmem:[%s1] sm:$0xff] %vm816, %v815
  %s818 = scalar_lea.vmem %s0, 26
  %v819 = vld [vmem:[%s818] sm:$0x1]
  %s820 = scalar_lea.vmem %s0, 89
  %v821 = vld [vmem:[%s820] sm:$0x2]
  %vm822 = vcmask 1041409
  %v823 = vsel %vm822, %v821, %v819
  %s824 = scalar_lea.vmem %s0, 152
  %v825 = vld [vmem:[%s824] sm:$0x4]
  %vm826 = vcmask 1042434
  %v827 = vsel %vm826, %v825, %v823
  %s828 = scalar_lea.vmem %s0, 215
  %v829 = vld [vmem:[%s828] sm:$0x8]
  %vm830 = vcmask 1043459
  %v831 = vsel %vm830, %v829, %v827
  %s832 = scalar_lea.vmem %s0, 278
  %v833 = vld [vmem:[%s832] sm:$0x10]
  %vm834 = vcmask 1044484
  %v835 = vsel %vm834, %v833, %v831
  %s836 = scalar_lea.vmem %s0, 341
  %v837 = vld [vmem:[%s836] sm:$0x20]
  %vm838 = vcmask 1045509
  %v839 = vsel %vm838, %v837, %v835
  %s840 = scalar_lea.vmem %s0, 404
  %v841 = vld [vmem:[%s840] sm:$0x40]
  %vm842 = vcmask 1046534
  %v843 = vsel %vm842, %v841, %v839
  %s844 = scalar_lea.vmem %s0, 467
  %v845 = vld [vmem:[%s844] sm:$0x80]
  %vm846 = vcmask 1047559
  %v847 = vsel %vm846, %v845, %v843
  %848 = vrot.lane.b32.xlu0 %v847, 80
  %v849 = vpop.permute.xlu0 %848
  %vm850 = vcmask 720512
  %s851 = scalar_lea.vmem %s1, 8
  %852 = vst.msk [vmem:[%s851] sm:$0xff] %vm850, %v849
  %s853 = scalar_lea.vmem %s0, 42
  %v854 = vld [vmem:[%s853] sm:$0x1]
  %s855 = scalar_lea.vmem %s0, 105
  %v856 = vld [vmem:[%s855] sm:$0x2]
  %vm857 = vcmask 1041409
  %v858 = vsel %vm857, %v856, %v854
  %s859 = scalar_lea.vmem %s0, 168
  %v860 = vld [vmem:[%s859] sm:$0x4]
  %vm861 = vcmask 1042434
  %v862 = vsel %vm861, %v860, %v858
  %s863 = scalar_lea.vmem %s0, 231
  %v864 = vld [vmem:[%s863] sm:$0x8]
  %vm865 = vcmask 1043459
  %v866 = vsel %vm865, %v864, %v862
  %s867 = scalar_lea.vmem %s0, 294
  %v868 = vld [vmem:[%s867] sm:$0x10]
  %vm869 = vcmask 1044484
  %v870 = vsel %vm869, %v868, %v866
  %s871 = scalar_lea.vmem %s0, 357
  %v872 = vld [vmem:[%s871] sm:$0x20]
  %vm873 = vcmask 1045509
  %v874 = vsel %vm873, %v872, %v870
  %s875 = scalar_lea.vmem %s0, 420
  %v876 = vld [vmem:[%s875] sm:$0x40]
  %vm877 = vcmask 1046534
  %v878 = vsel %vm877, %v876, %v874
  %s879 = scalar_lea.vmem %s0, 483
  %v880 = vld [vmem:[%s879] sm:$0x80]
  %vm881 = vcmask 1047559
  %v882 = vsel %vm881, %v880, %v878
  %883 = vrot.lane.b32.xlu0 %v882, 80
  %v884 = vpop.permute.xlu0 %883
  %vm885 = vcmask 720512
  %s886 = scalar_lea.vmem %s1, 16
  %887 = vst.msk [vmem:[%s886] sm:$0xff] %vm885, %v884
  %s888 = scalar_lea.vmem %s0, 58
  %v889 = vld [vmem:[%s888] sm:$0x1]
  %s890 = scalar_lea.vmem %s0, 121
  %v891 = vld [vmem:[%s890] sm:$0x2]
  %vm892 = vcmask 1041409
  %v893 = vsel %vm892, %v891, %v889
  %s894 = scalar_lea.vmem %s0, 184
  %v895 = vld [vmem:[%s894] sm:$0x4]
  %vm896 = vcmask 1042434
  %v897 = vsel %vm896, %v895, %v893
  %s898 = scalar_lea.vmem %s0, 247
  %v899 = vld [vmem:[%s898] sm:$0x8]
  %vm900 = vcmask 1043459
  %v901 = vsel %vm900, %v899, %v897
  %s902 = scalar_lea.vmem %s0, 310
  %v903 = vld [vmem:[%s902] sm:$0x10]
  %vm904 = vcmask 1044484
  %v905 = vsel %vm904, %v903, %v901
  %s906 = scalar_lea.vmem %s0, 373
  %v907 = vld [vmem:[%s906] sm:$0x20]
  %vm908 = vcmask 1045509
  %v909 = vsel %vm908, %v907, %v905
  %s910 = scalar_lea.vmem %s0, 436
  %v911 = vld [vmem:[%s910] sm:$0x40]
  %vm912 = vcmask 1046534
  %v913 = vsel %vm912, %v911, %v909
  %s914 = scalar_lea.vmem %s0, 499
  %v915 = vld [vmem:[%s914] sm:$0x80]
  %vm916 = vcmask 1047559
  %v917 = vsel %vm916, %v915, %v913
  %918 = vrot.lane.b32.xlu0 %v917, 80
  %v919 = vpop.permute.xlu0 %918
  %vm920 = vcmask 720512
  %s921 = scalar_lea.vmem %s1, 24
  %922 = vst.msk [vmem:[%s921] sm:$0xff] %vm920, %v919
  %s923 = scalar_lea.vmem %s0, 9
  %v924 = vld [vmem:[%s923] sm:$0x1]
  %s925 = scalar_lea.vmem %s0, 72
  %v926 = vld [vmem:[%s925] sm:$0x2]
  %vm927 = vcmask 1041409
  %v928 = vsel %vm927, %v926, %v924
  %s929 = scalar_lea.vmem %s0, 135
  %v930 = vld [vmem:[%s929] sm:$0x4]
  %vm931 = vcmask 1042434
  %v932 = vsel %vm931, %v930, %v928
  %s933 = scalar_lea.vmem %s0, 198
  %v934 = vld [vmem:[%s933] sm:$0x8]
  %vm935 = vcmask 1043459
  %v936 = vsel %vm935, %v934, %v932
  %s937 = scalar_lea.vmem %s0, 261
  %v938 = vld [vmem:[%s937] sm:$0x10]
  %vm939 = vcmask 1044484
  %v940 = vsel %vm939, %v938, %v936
  %s941 = scalar_lea.vmem %s0, 324
  %v942 = vld [vmem:[%s941] sm:$0x20]
  %vm943 = vcmask 1045509
  %v944 = vsel %vm943, %v942, %v940
  %s945 = scalar_lea.vmem %s0, 387
  %v946 = vld [vmem:[%s945] sm:$0x40]
  %vm947 = vcmask 1046534
  %v948 = vsel %vm947, %v946, %v944
  %s949 = scalar_lea.vmem %s0, 450
  %v950 = vld [vmem:[%s949] sm:$0x80]
  %vm951 = vcmask 1047559
  %v952 = vsel %vm951, %v950, %v948
  %953 = vrot.lane.b32.xlu0 %v952, 72
  %v954 = vpop.permute.xlu0 %953
  %vm955 = vcmask 654912
  %956 = vst.msk [vmem:[%s1] sm:$0xff] %vm955, %v954
  %s957 = scalar_lea.vmem %s0, 25
  %v958 = vld [vmem:[%s957] sm:$0x1]
  %s959 = scalar_lea.vmem %s0, 88
  %v960 = vld [vmem:[%s959] sm:$0x2]
  %vm961 = vcmask 1041409
  %v962 = vsel %vm961, %v960, %v958
  %s963 = scalar_lea.vmem %s0, 151
  %v964 = vld [vmem:[%s963] sm:$0x4]
  %vm965 = vcmask 1042434
  %v966 = vsel %vm965, %v964, %v962
  %s967 = scalar_lea.vmem %s0, 214
  %v968 = vld [vmem:[%s967] sm:$0x8]
  %vm969 = vcmask 1043459
  %v970 = vsel %vm969, %v968, %v966
  %s971 = scalar_lea.vmem %s0, 277
  %v972 = vld [vmem:[%s971] sm:$0x10]
  %vm973 = vcmask 1044484
  %v974 = vsel %vm973, %v972, %v970
  %s975 = scalar_lea.vmem %s0, 340
  %v976 = vld [vmem:[%s975] sm:$0x20]
  %vm977 = vcmask 1045509
  %v978 = vsel %vm977, %v976, %v974
  %s979 = scalar_lea.vmem %s0, 403
  %v980 = vld [vmem:[%s979] sm:$0x40]
  %vm981 = vcmask 1046534
  %v982 = vsel %vm981, %v980, %v978
  %s983 = scalar_lea.vmem %s0, 466
  %v984 = vld [vmem:[%s983] sm:$0x80]
  %vm985 = vcmask 1047559
  %v986 = vsel %vm985, %v984, %v982
  %987 = vrot.lane.b32.xlu0 %v986, 72
  %v988 = vpop.permute.xlu0 %987
  %vm989 = vcmask 654912
  %s990 = scalar_lea.vmem %s1, 8
  %991 = vst.msk [vmem:[%s990] sm:$0xff] %vm989, %v988
  %s992 = scalar_lea.vmem %s0, 41
  %v993 = vld [vmem:[%s992] sm:$0x1]
  %s994 = scalar_lea.vmem %s0, 104
  %v995 = vld [vmem:[%s994] sm:$0x2]
  %vm996 = vcmask 1041409
  %v997 = vsel %vm996, %v995, %v993
  %s998 = scalar_lea.vmem %s0, 167
  %v999 = vld [vmem:[%s998] sm:$0x4]
  %vm1000 = vcmask 1042434
  %v1001 = vsel %vm1000, %v999, %v997
  %s1002 = scalar_lea.vmem %s0, 230
  %v1003 = vld [vmem:[%s1002] sm:$0x8]
  %vm1004 = vcmask 1043459
  %v1005 = vsel %vm1004, %v1003, %v1001
  %s1006 = scalar_lea.vmem %s0, 293
  %v1007 = vld [vmem:[%s1006] sm:$0x10]
  %vm1008 = vcmask 1044484
  %v1009 = vsel %vm1008, %v1007, %v1005
  %s1010 = scalar_lea.vmem %s0, 356
  %v1011 = vld [vmem:[%s1010] sm:$0x20]
  %vm1012 = vcmask 1045509
  %v1013 = vsel %vm1012, %v1011, %v1009
  %s1014 = scalar_lea.vmem %s0, 419
  %v1015 = vld [vmem:[%s1014] sm:$0x40]
  %vm1016 = vcmask 1046534
  %v1017 = vsel %vm1016, %v1015, %v1013
  %s1018 = scalar_lea.vmem %s0, 482
  %v1019 = vld [vmem:[%s1018] sm:$0x80]
  %vm1020 = vcmask 1047559
  %v1021 = vsel %vm1020, %v1019, %v1017
  %1022 = vrot.lane.b32.xlu0 %v1021, 72
  %v1023 = vpop.permute.xlu0 %1022
  %vm1024 = vcmask 654912
  %s1025 = scalar_lea.vmem %s1, 16
  %1026 = vst.msk [vmem:[%s1025] sm:$0xff] %vm1024, %v1023
  %s1027 = scalar_lea.vmem %s0, 57
  %v1028 = vld [vmem:[%s1027] sm:$0x1]
  %s1029 = scalar_lea.vmem %s0, 120
  %v1030 = vld [vmem:[%s1029] sm:$0x2]
  %vm1031 = vcmask 1041409
  %v1032 = vsel %vm1031, %v1030, %v1028
  %s1033 = scalar_lea.vmem %s0, 183
  %v1034 = vld [vmem:[%s1033] sm:$0x4]
  %vm1035 = vcmask 1042434
  %v1036 = vsel %vm1035, %v1034, %v1032
  %s1037 = scalar_lea.vmem %s0, 246
  %v1038 = vld [vmem:[%s1037] sm:$0x8]
  %vm1039 = vcmask 1043459
  %v1040 = vsel %vm1039, %v1038, %v1036
  %s1041 = scalar_lea.vmem %s0, 309
  %v1042 = vld [vmem:[%s1041] sm:$0x10]
  %vm1043 = vcmask 1044484
  %v1044 = vsel %vm1043, %v1042, %v1040
  %s1045 = scalar_lea.vmem %s0, 372
  %v1046 = vld [vmem:[%s1045] sm:$0x20]
  %vm1047 = vcmask 1045509
  %v1048 = vsel %vm1047, %v1046, %v1044
  %s1049 = scalar_lea.vmem %s0, 435
  %v1050 = vld [vmem:[%s1049] sm:$0x40]
  %vm1051 = vcmask 1046534
  %v1052 = vsel %vm1051, %v1050, %v1048
  %s1053 = scalar_lea.vmem %s0, 498
  %v1054 = vld [vmem:[%s1053] sm:$0x80]
  %vm1055 = vcmask 1047559
  %v1056 = vsel %vm1055, %v1054, %v1052
  %1057 = vrot.lane.b32.xlu0 %v1056, 72
  %v1058 = vpop.permute.xlu0 %1057
  %vm1059 = vcmask 654912
  %s1060 = scalar_lea.vmem %s1, 24
  %1061 = vst.msk [vmem:[%s1060] sm:$0xff] %vm1059, %v1058
  %s1062 = scalar_lea.vmem %s0, 8
  %v1063 = vld [vmem:[%s1062] sm:$0x1]
  %s1064 = scalar_lea.vmem %s0, 71
  %v1065 = vld [vmem:[%s1064] sm:$0x2]
  %vm1066 = vcmask 1041409
  %v1067 = vsel %vm1066, %v1065, %v1063
  %s1068 = scalar_lea.vmem %s0, 134
  %v1069 = vld [vmem:[%s1068] sm:$0x4]
  %vm1070 = vcmask 1042434
  %v1071 = vsel %vm1070, %v1069, %v1067
  %s1072 = scalar_lea.vmem %s0, 197
  %v1073 = vld [vmem:[%s1072] sm:$0x8]
  %vm1074 = vcmask 1043459
  %v1075 = vsel %vm1074, %v1073, %v1071
  %s1076 = scalar_lea.vmem %s0, 260
  %v1077 = vld [vmem:[%s1076] sm:$0x10]
  %vm1078 = vcmask 1044484
  %v1079 = vsel %vm1078, %v1077, %v1075
  %s1080 = scalar_lea.vmem %s0, 323
  %v1081 = vld [vmem:[%s1080] sm:$0x20]
  %vm1082 = vcmask 1045509
  %v1083 = vsel %vm1082, %v1081, %v1079
  %s1084 = scalar_lea.vmem %s0, 386
  %v1085 = vld [vmem:[%s1084] sm:$0x40]
  %vm1086 = vcmask 1046534
  %v1087 = vsel %vm1086, %v1085, %v1083
  %s1088 = scalar_lea.vmem %s0, 449
  %v1089 = vld [vmem:[%s1088] sm:$0x80]
  %vm1090 = vcmask 1047559
  %v1091 = vsel %vm1090, %v1089, %v1087
  %1092 = vrot.lane.b32.xlu0 %v1091, 64
  %v1093 = vpop.permute.xlu0 %1092
  %vm1094 = vcmask 589312
  %1095 = vst.msk [vmem:[%s1] sm:$0xff] %vm1094, %v1093
  %s1096 = scalar_lea.vmem %s0, 24
  %v1097 = vld [vmem:[%s1096] sm:$0x1]
  %s1098 = scalar_lea.vmem %s0, 87
  %v1099 = vld [vmem:[%s1098] sm:$0x2]
  %vm1100 = vcmask 1041409
  %v1101 = vsel %vm1100, %v1099, %v1097
  %s1102 = scalar_lea.vmem %s0, 150
  %v1103 = vld [vmem:[%s1102] sm:$0x4]
  %vm1104 = vcmask 1042434
  %v1105 = vsel %vm1104, %v1103, %v1101
  %s1106 = scalar_lea.vmem %s0, 213
  %v1107 = vld [vmem:[%s1106] sm:$0x8]
  %vm1108 = vcmask 1043459
  %v1109 = vsel %vm1108, %v1107, %v1105
  %s1110 = scalar_lea.vmem %s0, 276
  %v1111 = vld [vmem:[%s1110] sm:$0x10]
  %vm1112 = vcmask 1044484
  %v1113 = vsel %vm1112, %v1111, %v1109
  %s1114 = scalar_lea.vmem %s0, 339
  %v1115 = vld [vmem:[%s1114] sm:$0x20]
  %vm1116 = vcmask 1045509
  %v1117 = vsel %vm1116, %v1115, %v1113
  %s1118 = scalar_lea.vmem %s0, 402
  %v1119 = vld [vmem:[%s1118] sm:$0x40]
  %vm1120 = vcmask 1046534
  %v1121 = vsel %vm1120, %v1119, %v1117
  %s1122 = scalar_lea.vmem %s0, 465
  %v1123 = vld [vmem:[%s1122] sm:$0x80]
  %vm1124 = vcmask 1047559
  %v1125 = vsel %vm1124, %v1123, %v1121
  %1126 = vrot.lane.b32.xlu0 %v1125, 64
  %v1127 = vpop.permute.xlu0 %1126
  %vm1128 = vcmask 589312
  %s1129 = scalar_lea.vmem %s1, 8
  %1130 = vst.msk [vmem:[%s1129] sm:$0xff] %vm1128, %v1127
  %s1131 = scalar_lea.vmem %s0, 40
  %v1132 = vld [vmem:[%s1131] sm:$0x1]
  %s1133 = scalar_lea.vmem %s0, 103
  %v1134 = vld [vmem:[%s1133] sm:$0x2]
  %vm1135 = vcmask 1041409
  %v1136 = vsel %vm1135, %v1134, %v1132
  %s1137 = scalar_lea.vmem %s0, 166
  %v1138 = vld [vmem:[%s1137] sm:$0x4]
  %vm1139 = vcmask 1042434
  %v1140 = vsel %vm1139, %v1138, %v1136
  %s1141 = scalar_lea.vmem %s0, 229
  %v1142 = vld [vmem:[%s1141] sm:$0x8]
  %vm1143 = vcmask 1043459
  %v1144 = vsel %vm1143, %v1142, %v1140
  %s1145 = scalar_lea.vmem %s0, 292
  %v1146 = vld [vmem:[%s1145] sm:$0x10]
  %vm1147 = vcmask 1044484
  %v1148 = vsel %vm1147, %v1146, %v1144
  %s1149 = scalar_lea.vmem %s0, 355
  %v1150 = vld [vmem:[%s1149] sm:$0x20]
  %vm1151 = vcmask 1045509
  %v1152 = vsel %vm1151, %v1150, %v1148
  %s1153 = scalar_lea.vmem %s0, 418
  %v1154 = vld [vmem:[%s1153] sm:$0x40]
  %vm1155 = vcmask 1046534
  %v1156 = vsel %vm1155, %v1154, %v1152
  %s1157 = scalar_lea.vmem %s0, 481
  %v1158 = vld [vmem:[%s1157] sm:$0x80]
  %vm1159 = vcmask 1047559
  %v1160 = vsel %vm1159, %v1158, %v1156
  %1161 = vrot.lane.b32.xlu0 %v1160, 64
  %v1162 = vpop.permute.xlu0 %1161
  %vm1163 = vcmask 589312
  %s1164 = scalar_lea.vmem %s1, 16
  %1165 = vst.msk [vmem:[%s1164] sm:$0xff] %vm1163, %v1162
  %s1166 = scalar_lea.vmem %s0, 56
  %v1167 = vld [vmem:[%s1166] sm:$0x1]
  %s1168 = scalar_lea.vmem %s0, 119
  %v1169 = vld [vmem:[%s1168] sm:$0x2]
  %vm1170 = vcmask 1041409
  %v1171 = vsel %vm1170, %v1169, %v1167
  %s1172 = scalar_lea.vmem %s0, 182
  %v1173 = vld [vmem:[%s1172] sm:$0x4]
  %vm1174 = vcmask 1042434
  %v1175 = vsel %vm1174, %v1173, %v1171
  %s1176 = scalar_lea.vmem %s0, 245
  %v1177 = vld [vmem:[%s1176] sm:$0x8]
  %vm1178 = vcmask 1043459
  %v1179 = vsel %vm1178, %v1177, %v1175
  %s1180 = scalar_lea.vmem %s0, 308
  %v1181 = vld [vmem:[%s1180] sm:$0x10]
  %vm1182 = vcmask 1044484
  %v1183 = vsel %vm1182, %v1181, %v1179
  %s1184 = scalar_lea.vmem %s0, 371
  %v1185 = vld [vmem:[%s1184] sm:$0x20]
  %vm1186 = vcmask 1045509
  %v1187 = vsel %vm1186, %v1185, %v1183
  %s1188 = scalar_lea.vmem %s0, 434
  %v1189 = vld [vmem:[%s1188] sm:$0x40]
  %vm1190 = vcmask 1046534
  %v1191 = vsel %vm1190, %v1189, %v1187
  %s1192 = scalar_lea.vmem %s0, 497
  %v1193 = vld [vmem:[%s1192] sm:$0x80]
  %vm1194 = vcmask 1047559
  %v1195 = vsel %vm1194, %v1193, %v1191
  %1196 = vrot.lane.b32.xlu0 %v1195, 64
  %v1197 = vpop.permute.xlu0 %1196
  %vm1198 = vcmask 589312
  %s1199 = scalar_lea.vmem %s1, 24
  %1200 = vst.msk [vmem:[%s1199] sm:$0xff] %vm1198, %v1197
  %s1201 = scalar_lea.vmem %s0, 7
  %v1202 = vld [vmem:[%s1201] sm:$0x1]
  %s1203 = scalar_lea.vmem %s0, 70
  %v1204 = vld [vmem:[%s1203] sm:$0x2]
  %vm1205 = vcmask 1041409
  %v1206 = vsel %vm1205, %v1204, %v1202
  %s1207 = scalar_lea.vmem %s0, 133
  %v1208 = vld [vmem:[%s1207] sm:$0x4]
  %vm1209 = vcmask 1042434
  %v1210 = vsel %vm1209, %v1208, %v1206
  %s1211 = scalar_lea.vmem %s0, 196
  %v1212 = vld [vmem:[%s1211] sm:$0x8]
  %vm1213 = vcmask 1043459
  %v1214 = vsel %vm1213, %v1212, %v1210
  %s1215 = scalar_lea.vmem %s0, 259
  %v1216 = vld [vmem:[%s1215] sm:$0x10]
  %vm1217 = vcmask 1044484
  %v1218 = vsel %vm1217, %v1216, %v1214
  %s1219 = scalar_lea.vmem %s0, 322
  %v1220 = vld [vmem:[%s1219] sm:$0x20]
  %vm1221 = vcmask 1045509
  %v1222 = vsel %vm1221, %v1220, %v1218
  %s1223 = scalar_lea.vmem %s0, 385
  %v1224 = vld [vmem:[%s1223] sm:$0x40]
  %vm1225 = vcmask 1046534
  %v1226 = vsel %vm1225, %v1224, %v1222
  %s1227 = scalar_lea.vmem %s0, 448
  %v1228 = vld [vmem:[%s1227] sm:$0x80]
  %vm1229 = vcmask 1047559
  %v1230 = vsel %vm1229, %v1228, %v1226
  %1231 = vrot.lane.b32.xlu0 %v1230, 56
  %v1232 = vpop.permute.xlu0 %1231
  %vm1233 = vcmask 523712
  %1234 = vst.msk [vmem:[%s1] sm:$0xff] %vm1233, %v1232
  %s1235 = scalar_lea.vmem %s0, 23
  %v1236 = vld [vmem:[%s1235] sm:$0x1]
  %s1237 = scalar_lea.vmem %s0, 86
  %v1238 = vld [vmem:[%s1237] sm:$0x2]
  %vm1239 = vcmask 1041409
  %v1240 = vsel %vm1239, %v1238, %v1236
  %s1241 = scalar_lea.vmem %s0, 149
  %v1242 = vld [vmem:[%s1241] sm:$0x4]
  %vm1243 = vcmask 1042434
  %v1244 = vsel %vm1243, %v1242, %v1240
  %s1245 = scalar_lea.vmem %s0, 212
  %v1246 = vld [vmem:[%s1245] sm:$0x8]
  %vm1247 = vcmask 1043459
  %v1248 = vsel %vm1247, %v1246, %v1244
  %s1249 = scalar_lea.vmem %s0, 275
  %v1250 = vld [vmem:[%s1249] sm:$0x10]
  %vm1251 = vcmask 1044484
  %v1252 = vsel %vm1251, %v1250, %v1248
  %s1253 = scalar_lea.vmem %s0, 338
  %v1254 = vld [vmem:[%s1253] sm:$0x20]
  %vm1255 = vcmask 1045509
  %v1256 = vsel %vm1255, %v1254, %v1252
  %s1257 = scalar_lea.vmem %s0, 401
  %v1258 = vld [vmem:[%s1257] sm:$0x40]
  %vm1259 = vcmask 1046534
  %v1260 = vsel %vm1259, %v1258, %v1256
  %s1261 = scalar_lea.vmem %s0, 464
  %v1262 = vld [vmem:[%s1261] sm:$0x80]
  %vm1263 = vcmask 1047559
  %v1264 = vsel %vm1263, %v1262, %v1260
  %1265 = vrot.lane.b32.xlu0 %v1264, 56
  %v1266 = vpop.permute.xlu0 %1265
  %vm1267 = vcmask 523712
  %s1268 = scalar_lea.vmem %s1, 8
  %1269 = vst.msk [vmem:[%s1268] sm:$0xff] %vm1267, %v1266
  %s1270 = scalar_lea.vmem %s0, 39
  %v1271 = vld [vmem:[%s1270] sm:$0x1]
  %s1272 = scalar_lea.vmem %s0, 102
  %v1273 = vld [vmem:[%s1272] sm:$0x2]
  %vm1274 = vcmask 1041409
  %v1275 = vsel %vm1274, %v1273, %v1271
  %s1276 = scalar_lea.vmem %s0, 165
  %v1277 = vld [vmem:[%s1276] sm:$0x4]
  %vm1278 = vcmask 1042434
  %v1279 = vsel %vm1278, %v1277, %v1275
  %s1280 = scalar_lea.vmem %s0, 228
  %v1281 = vld [vmem:[%s1280] sm:$0x8]
  %vm1282 = vcmask 1043459
  %v1283 = vsel %vm1282, %v1281, %v1279
  %s1284 = scalar_lea.vmem %s0, 291
  %v1285 = vld [vmem:[%s1284] sm:$0x10]
  %vm1286 = vcmask 1044484
  %v1287 = vsel %vm1286, %v1285, %v1283
  %s1288 = scalar_lea.vmem %s0, 354
  %v1289 = vld [vmem:[%s1288] sm:$0x20]
  %vm1290 = vcmask 1045509
  %v1291 = vsel %vm1290, %v1289, %v1287
  %s1292 = scalar_lea.vmem %s0, 417
  %v1293 = vld [vmem:[%s1292] sm:$0x40]
  %vm1294 = vcmask 1046534
  %v1295 = vsel %vm1294, %v1293, %v1291
  %s1296 = scalar_lea.vmem %s0, 480
  %v1297 = vld [vmem:[%s1296] sm:$0x80]
  %vm1298 = vcmask 1047559
  %v1299 = vsel %vm1298, %v1297, %v1295
  %1300 = vrot.lane.b32.xlu0 %v1299, 56
  %v1301 = vpop.permute.xlu0 %1300
  %vm1302 = vcmask 523712
  %s1303 = scalar_lea.vmem %s1, 16
  %1304 = vst.msk [vmem:[%s1303] sm:$0xff] %vm1302, %v1301
  %s1305 = scalar_lea.vmem %s0, 55
  %v1306 = vld [vmem:[%s1305] sm:$0x1]
  %s1307 = scalar_lea.vmem %s0, 118
  %v1308 = vld [vmem:[%s1307] sm:$0x2]
  %vm1309 = vcmask 1041409
  %v1310 = vsel %vm1309, %v1308, %v1306
  %s1311 = scalar_lea.vmem %s0, 181
  %v1312 = vld [vmem:[%s1311] sm:$0x4]
  %vm1313 = vcmask 1042434
  %v1314 = vsel %vm1313, %v1312, %v1310
  %s1315 = scalar_lea.vmem %s0, 244
  %v1316 = vld [vmem:[%s1315] sm:$0x8]
  %vm1317 = vcmask 1043459
  %v1318 = vsel %vm1317, %v1316, %v1314
  %s1319 = scalar_lea.vmem %s0, 307
  %v1320 = vld [vmem:[%s1319] sm:$0x10]
  %vm1321 = vcmask 1044484
  %v1322 = vsel %vm1321, %v1320, %v1318
  %s1323 = scalar_lea.vmem %s0, 370
  %v1324 = vld [vmem:[%s1323] sm:$0x20]
  %vm1325 = vcmask 1045509
  %v1326 = vsel %vm1325, %v1324, %v1322
  %s1327 = scalar_lea.vmem %s0, 433
  %v1328 = vld [vmem:[%s1327] sm:$0x40]
  %vm1329 = vcmask 1046534
  %v1330 = vsel %vm1329, %v1328, %v1326
  %s1331 = scalar_lea.vmem %s0, 496
  %v1332 = vld [vmem:[%s1331] sm:$0x80]
  %vm1333 = vcmask 1047559
  %v1334 = vsel %vm1333, %v1332, %v1330
  %1335 = vrot.lane.b32.xlu0 %v1334, 56
  %v1336 = vpop.permute.xlu0 %1335
  %vm1337 = vcmask 523712
  %s1338 = scalar_lea.vmem %s1, 24
  %1339 = vst.msk [vmem:[%s1338] sm:$0xff] %vm1337, %v1336
  %s1340 = scalar_lea.vmem %s0, 6
  %v1341 = vld [vmem:[%s1340] sm:$0x1]
  %s1342 = scalar_lea.vmem %s0, 69
  %v1343 = vld [vmem:[%s1342] sm:$0x2]
  %vm1344 = vcmask 1041409
  %v1345 = vsel %vm1344, %v1343, %v1341
  %s1346 = scalar_lea.vmem %s0, 132
  %v1347 = vld [vmem:[%s1346] sm:$0x4]
  %vm1348 = vcmask 1042434
  %v1349 = vsel %vm1348, %v1347, %v1345
  %s1350 = scalar_lea.vmem %s0, 195
  %v1351 = vld [vmem:[%s1350] sm:$0x8]
  %vm1352 = vcmask 1043459
  %v1353 = vsel %vm1352, %v1351, %v1349
  %s1354 = scalar_lea.vmem %s0, 258
  %v1355 = vld [vmem:[%s1354] sm:$0x10]
  %vm1356 = vcmask 1044484
  %v1357 = vsel %vm1356, %v1355, %v1353
  %s1358 = scalar_lea.vmem %s0, 321
  %v1359 = vld [vmem:[%s1358] sm:$0x20]
  %vm1360 = vcmask 1045509
  %v1361 = vsel %vm1360, %v1359, %v1357
  %s1362 = scalar_lea.vmem %s0, 384
  %v1363 = vld [vmem:[%s1362] sm:$0x40]
  %vm1364 = vcmask 1046534
  %v1365 = vsel %vm1364, %v1363, %v1361
  %s1366 = scalar_lea.vmem %s0, 447
  %v1367 = vld [vmem:[%s1366] sm:$0x80]
  %vm1368 = vcmask 1047559
  %v1369 = vsel %vm1368, %v1367, %v1365
  %1370 = vrot.lane.b32.xlu0 %v1369, 48
  %v1371 = vpop.permute.xlu0 %1370
  %vm1372 = vcmask 458112
  %1373 = vst.msk [vmem:[%s1] sm:$0xff] %vm1372, %v1371
  %s1374 = scalar_lea.vmem %s0, 22
  %v1375 = vld [vmem:[%s1374] sm:$0x1]
  %s1376 = scalar_lea.vmem %s0, 85
  %v1377 = vld [vmem:[%s1376] sm:$0x2]
  %vm1378 = vcmask 1041409
  %v1379 = vsel %vm1378, %v1377, %v1375
  %s1380 = scalar_lea.vmem %s0, 148
  %v1381 = vld [vmem:[%s1380] sm:$0x4]
  %vm1382 = vcmask 1042434
  %v1383 = vsel %vm1382, %v1381, %v1379
  %s1384 = scalar_lea.vmem %s0, 211
  %v1385 = vld [vmem:[%s1384] sm:$0x8]
  %vm1386 = vcmask 1043459
  %v1387 = vsel %vm1386, %v1385, %v1383
  %s1388 = scalar_lea.vmem %s0, 274
  %v1389 = vld [vmem:[%s1388] sm:$0x10]
  %vm1390 = vcmask 1044484
  %v1391 = vsel %vm1390, %v1389, %v1387
  %s1392 = scalar_lea.vmem %s0, 337
  %v1393 = vld [vmem:[%s1392] sm:$0x20]
  %vm1394 = vcmask 1045509
  %v1395 = vsel %vm1394, %v1393, %v1391
  %s1396 = scalar_lea.vmem %s0, 400
  %v1397 = vld [vmem:[%s1396] sm:$0x40]
  %vm1398 = vcmask 1046534
  %v1399 = vsel %vm1398, %v1397, %v1395
  %s1400 = scalar_lea.vmem %s0, 463
  %v1401 = vld [vmem:[%s1400] sm:$0x80]
  %vm1402 = vcmask 1047559
  %v1403 = vsel %vm1402, %v1401, %v1399
  %1404 = vrot.lane.b32.xlu0 %v1403, 48
  %v1405 = vpop.permute.xlu0 %1404
  %vm1406 = vcmask 458112
  %s1407 = scalar_lea.vmem %s1, 8
  %1408 = vst.msk [vmem:[%s1407] sm:$0xff] %vm1406, %v1405
  %s1409 = scalar_lea.vmem %s0, 38
  %v1410 = vld [vmem:[%s1409] sm:$0x1]
  %s1411 = scalar_lea.vmem %s0, 101
  %v1412 = vld [vmem:[%s1411] sm:$0x2]
  %vm1413 = vcmask 1041409
  %v1414 = vsel %vm1413, %v1412, %v1410
  %s1415 = scalar_lea.vmem %s0, 164
  %v1416 = vld [vmem:[%s1415] sm:$0x4]
  %vm1417 = vcmask 1042434
  %v1418 = vsel %vm1417, %v1416, %v1414
  %s1419 = scalar_lea.vmem %s0, 227
  %v1420 = vld [vmem:[%s1419] sm:$0x8]
  %vm1421 = vcmask 1043459
  %v1422 = vsel %vm1421, %v1420, %v1418
  %s1423 = scalar_lea.vmem %s0, 290
  %v1424 = vld [vmem:[%s1423] sm:$0x10]
  %vm1425 = vcmask 1044484
  %v1426 = vsel %vm1425, %v1424, %v1422
  %s1427 = scalar_lea.vmem %s0, 353
  %v1428 = vld [vmem:[%s1427] sm:$0x20]
  %vm1429 = vcmask 1045509
  %v1430 = vsel %vm1429, %v1428, %v1426
  %s1431 = scalar_lea.vmem %s0, 416
  %v1432 = vld [vmem:[%s1431] sm:$0x40]
  %vm1433 = vcmask 1046534
  %v1434 = vsel %vm1433, %v1432, %v1430
  %s1435 = scalar_lea.vmem %s0, 479
  %v1436 = vld [vmem:[%s1435] sm:$0x80]
  %vm1437 = vcmask 1047559
  %v1438 = vsel %vm1437, %v1436, %v1434
  %1439 = vrot.lane.b32.xlu0 %v1438, 48
  %v1440 = vpop.permute.xlu0 %1439
  %vm1441 = vcmask 458112
  %s1442 = scalar_lea.vmem %s1, 16
  %1443 = vst.msk [vmem:[%s1442] sm:$0xff] %vm1441, %v1440
  %s1444 = scalar_lea.vmem %s0, 54
  %v1445 = vld [vmem:[%s1444] sm:$0x1]
  %s1446 = scalar_lea.vmem %s0, 117
  %v1447 = vld [vmem:[%s1446] sm:$0x2]
  %vm1448 = vcmask 1041409
  %v1449 = vsel %vm1448, %v1447, %v1445
  %s1450 = scalar_lea.vmem %s0, 180
  %v1451 = vld [vmem:[%s1450] sm:$0x4]
  %vm1452 = vcmask 1042434
  %v1453 = vsel %vm1452, %v1451, %v1449
  %s1454 = scalar_lea.vmem %s0, 243
  %v1455 = vld [vmem:[%s1454] sm:$0x8]
  %vm1456 = vcmask 1043459
  %v1457 = vsel %vm1456, %v1455, %v1453
  %s1458 = scalar_lea.vmem %s0, 306
  %v1459 = vld [vmem:[%s1458] sm:$0x10]
  %vm1460 = vcmask 1044484
  %v1461 = vsel %vm1460, %v1459, %v1457
  %s1462 = scalar_lea.vmem %s0, 369
  %v1463 = vld [vmem:[%s1462] sm:$0x20]
  %vm1464 = vcmask 1045509
  %v1465 = vsel %vm1464, %v1463, %v1461
  %s1466 = scalar_lea.vmem %s0, 432
  %v1467 = vld [vmem:[%s1466] sm:$0x40]
  %vm1468 = vcmask 1046534
  %v1469 = vsel %vm1468, %v1467, %v1465
  %s1470 = scalar_lea.vmem %s0, 495
  %v1471 = vld [vmem:[%s1470] sm:$0x80]
  %vm1472 = vcmask 1047559
  %v1473 = vsel %vm1472, %v1471, %v1469
  %1474 = vrot.lane.b32.xlu0 %v1473, 48
  %v1475 = vpop.permute.xlu0 %1474
  %vm1476 = vcmask 458112
  %s1477 = scalar_lea.vmem %s1, 24
  %1478 = vst.msk [vmem:[%s1477] sm:$0xff] %vm1476, %v1475
  %s1479 = scalar_lea.vmem %s0, 5
  %v1480 = vld [vmem:[%s1479] sm:$0x1]
  %s1481 = scalar_lea.vmem %s0, 68
  %v1482 = vld [vmem:[%s1481] sm:$0x2]
  %vm1483 = vcmask 1041409
  %v1484 = vsel %vm1483, %v1482, %v1480
  %s1485 = scalar_lea.vmem %s0, 131
  %v1486 = vld [vmem:[%s1485] sm:$0x4]
  %vm1487 = vcmask 1042434
  %v1488 = vsel %vm1487, %v1486, %v1484
  %s1489 = scalar_lea.vmem %s0, 194
  %v1490 = vld [vmem:[%s1489] sm:$0x8]
  %vm1491 = vcmask 1043459
  %v1492 = vsel %vm1491, %v1490, %v1488
  %s1493 = scalar_lea.vmem %s0, 257
  %v1494 = vld [vmem:[%s1493] sm:$0x10]
  %vm1495 = vcmask 1044484
  %v1496 = vsel %vm1495, %v1494, %v1492
  %s1497 = scalar_lea.vmem %s0, 320
  %v1498 = vld [vmem:[%s1497] sm:$0x20]
  %vm1499 = vcmask 1045509
  %v1500 = vsel %vm1499, %v1498, %v1496
  %s1501 = scalar_lea.vmem %s0, 383
  %v1502 = vld [vmem:[%s1501] sm:$0x40]
  %vm1503 = vcmask 1046534
  %v1504 = vsel %vm1503, %v1502, %v1500
  %s1505 = scalar_lea.vmem %s0, 446
  %v1506 = vld [vmem:[%s1505] sm:$0x80]
  %vm1507 = vcmask 1047559
  %v1508 = vsel %vm1507, %v1506, %v1504
  %1509 = vrot.lane.b32.xlu0 %v1508, 40
  %v1510 = vpop.permute.xlu0 %1509
  %vm1511 = vcmask 392512
  %1512 = vst.msk [vmem:[%s1] sm:$0xff] %vm1511, %v1510
  %s1513 = scalar_lea.vmem %s0, 21
  %v1514 = vld [vmem:[%s1513] sm:$0x1]
  %s1515 = scalar_lea.vmem %s0, 84
  %v1516 = vld [vmem:[%s1515] sm:$0x2]
  %vm1517 = vcmask 1041409
  %v1518 = vsel %vm1517, %v1516, %v1514
  %s1519 = scalar_lea.vmem %s0, 147
  %v1520 = vld [vmem:[%s1519] sm:$0x4]
  %vm1521 = vcmask 1042434
  %v1522 = vsel %vm1521, %v1520, %v1518
  %s1523 = scalar_lea.vmem %s0, 210
  %v1524 = vld [vmem:[%s1523] sm:$0x8]
  %vm1525 = vcmask 1043459
  %v1526 = vsel %vm1525, %v1524, %v1522
  %s1527 = scalar_lea.vmem %s0, 273
  %v1528 = vld [vmem:[%s1527] sm:$0x10]
  %vm1529 = vcmask 1044484
  %v1530 = vsel %vm1529, %v1528, %v1526
  %s1531 = scalar_lea.vmem %s0, 336
  %v1532 = vld [vmem:[%s1531] sm:$0x20]
  %vm1533 = vcmask 1045509
  %v1534 = vsel %vm1533, %v1532, %v1530
  %s1535 = scalar_lea.vmem %s0, 399
  %v1536 = vld [vmem:[%s1535] sm:$0x40]
  %vm1537 = vcmask 1046534
  %v1538 = vsel %vm1537, %v1536, %v1534
  %s1539 = scalar_lea.vmem %s0, 462
  %v1540 = vld [vmem:[%s1539] sm:$0x80]
  %vm1541 = vcmask 1047559
  %v1542 = vsel %vm1541, %v1540, %v1538
  %1543 = vrot.lane.b32.xlu0 %v1542, 40
  %v1544 = vpop.permute.xlu0 %1543
  %vm1545 = vcmask 392512
  %s1546 = scalar_lea.vmem %s1, 8
  %1547 = vst.msk [vmem:[%s1546] sm:$0xff] %vm1545, %v1544
  %s1548 = scalar_lea.vmem %s0, 37
  %v1549 = vld [vmem:[%s1548] sm:$0x1]
  %s1550 = scalar_lea.vmem %s0, 100
  %v1551 = vld [vmem:[%s1550] sm:$0x2]
  %vm1552 = vcmask 1041409
  %v1553 = vsel %vm1552, %v1551, %v1549
  %s1554 = scalar_lea.vmem %s0, 163
  %v1555 = vld [vmem:[%s1554] sm:$0x4]
  %vm1556 = vcmask 1042434
  %v1557 = vsel %vm1556, %v1555, %v1553
  %s1558 = scalar_lea.vmem %s0, 226
  %v1559 = vld [vmem:[%s1558] sm:$0x8]
  %vm1560 = vcmask 1043459
  %v1561 = vsel %vm1560, %v1559, %v1557
  %s1562 = scalar_lea.vmem %s0, 289
  %v1563 = vld [vmem:[%s1562] sm:$0x10]
  %vm1564 = vcmask 1044484
  %v1565 = vsel %vm1564, %v1563, %v1561
  %s1566 = scalar_lea.vmem %s0, 352
  %v1567 = vld [vmem:[%s1566] sm:$0x20]
  %vm1568 = vcmask 1045509
  %v1569 = vsel %vm1568, %v1567, %v1565
  %s1570 = scalar_lea.vmem %s0, 415
  %v1571 = vld [vmem:[%s1570] sm:$0x40]
  %vm1572 = vcmask 1046534
  %v1573 = vsel %vm1572, %v1571, %v1569
  %s1574 = scalar_lea.vmem %s0, 478
  %v1575 = vld [vmem:[%s1574] sm:$0x80]
  %vm1576 = vcmask 1047559
  %v1577 = vsel %vm1576, %v1575, %v1573
  %1578 = vrot.lane.b32.xlu0 %v1577, 40
  %v1579 = vpop.permute.xlu0 %1578
  %vm1580 = vcmask 392512
  %s1581 = scalar_lea.vmem %s1, 16
  %1582 = vst.msk [vmem:[%s1581] sm:$0xff] %vm1580, %v1579
  %s1583 = scalar_lea.vmem %s0, 53
  %v1584 = vld [vmem:[%s1583] sm:$0x1]
  %s1585 = scalar_lea.vmem %s0, 116
  %v1586 = vld [vmem:[%s1585] sm:$0x2]
  %vm1587 = vcmask 1041409
  %v1588 = vsel %vm1587, %v1586, %v1584
  %s1589 = scalar_lea.vmem %s0, 179
  %v1590 = vld [vmem:[%s1589] sm:$0x4]
  %vm1591 = vcmask 1042434
  %v1592 = vsel %vm1591, %v1590, %v1588
  %s1593 = scalar_lea.vmem %s0, 242
  %v1594 = vld [vmem:[%s1593] sm:$0x8]
  %vm1595 = vcmask 1043459
  %v1596 = vsel %vm1595, %v1594, %v1592
  %s1597 = scalar_lea.vmem %s0, 305
  %v1598 = vld [vmem:[%s1597] sm:$0x10]
  %vm1599 = vcmask 1044484
  %v1600 = vsel %vm1599, %v1598, %v1596
  %s1601 = scalar_lea.vmem %s0, 368
  %v1602 = vld [vmem:[%s1601] sm:$0x20]
  %vm1603 = vcmask 1045509
  %v1604 = vsel %vm1603, %v1602, %v1600
  %s1605 = scalar_lea.vmem %s0, 431
  %v1606 = vld [vmem:[%s1605] sm:$0x40]
  %vm1607 = vcmask 1046534
  %v1608 = vsel %vm1607, %v1606, %v1604
  %s1609 = scalar_lea.vmem %s0, 494
  %v1610 = vld [vmem:[%s1609] sm:$0x80]
  %vm1611 = vcmask 1047559
  %v1612 = vsel %vm1611, %v1610, %v1608
  %1613 = vrot.lane.b32.xlu0 %v1612, 40
  %v1614 = vpop.permute.xlu0 %1613
  %vm1615 = vcmask 392512
  %s1616 = scalar_lea.vmem %s1, 24
  %1617 = vst.msk [vmem:[%s1616] sm:$0xff] %vm1615, %v1614
  %s1618 = scalar_lea.vmem %s0, 4
  %v1619 = vld [vmem:[%s1618] sm:$0x1]
  %s1620 = scalar_lea.vmem %s0, 67
  %v1621 = vld [vmem:[%s1620] sm:$0x2]
  %vm1622 = vcmask 1041409
  %v1623 = vsel %vm1622, %v1621, %v1619
  %s1624 = scalar_lea.vmem %s0, 130
  %v1625 = vld [vmem:[%s1624] sm:$0x4]
  %vm1626 = vcmask 1042434
  %v1627 = vsel %vm1626, %v1625, %v1623
  %s1628 = scalar_lea.vmem %s0, 193
  %v1629 = vld [vmem:[%s1628] sm:$0x8]
  %vm1630 = vcmask 1043459
  %v1631 = vsel %vm1630, %v1629, %v1627
  %s1632 = scalar_lea.vmem %s0, 256
  %v1633 = vld [vmem:[%s1632] sm:$0x10]
  %vm1634 = vcmask 1044484
  %v1635 = vsel %vm1634, %v1633, %v1631
  %s1636 = scalar_lea.vmem %s0, 319
  %v1637 = vld [vmem:[%s1636] sm:$0x20]
  %vm1638 = vcmask 1045509
  %v1639 = vsel %vm1638, %v1637, %v1635
  %s1640 = scalar_lea.vmem %s0, 382
  %v1641 = vld [vmem:[%s1640] sm:$0x40]
  %vm1642 = vcmask 1046534
  %v1643 = vsel %vm1642, %v1641, %v1639
  %s1644 = scalar_lea.vmem %s0, 445
  %v1645 = vld [vmem:[%s1644] sm:$0x80]
  %vm1646 = vcmask 1047559
  %v1647 = vsel %vm1646, %v1645, %v1643
  %1648 = vrot.lane.b32.xlu0 %v1647, 32
  %v1649 = vpop.permute.xlu0 %1648
  %vm1650 = vcmask 326912
  %1651 = vst.msk [vmem:[%s1] sm:$0xff] %vm1650, %v1649
  %s1652 = scalar_lea.vmem %s0, 20
  %v1653 = vld [vmem:[%s1652] sm:$0x1]
  %s1654 = scalar_lea.vmem %s0, 83
  %v1655 = vld [vmem:[%s1654] sm:$0x2]
  %vm1656 = vcmask 1041409
  %v1657 = vsel %vm1656, %v1655, %v1653
  %s1658 = scalar_lea.vmem %s0, 146
  %v1659 = vld [vmem:[%s1658] sm:$0x4]
  %vm1660 = vcmask 1042434
  %v1661 = vsel %vm1660, %v1659, %v1657
  %s1662 = scalar_lea.vmem %s0, 209
  %v1663 = vld [vmem:[%s1662] sm:$0x8]
  %vm1664 = vcmask 1043459
  %v1665 = vsel %vm1664, %v1663, %v1661
  %s1666 = scalar_lea.vmem %s0, 272
  %v1667 = vld [vmem:[%s1666] sm:$0x10]
  %vm1668 = vcmask 1044484
  %v1669 = vsel %vm1668, %v1667, %v1665
  %s1670 = scalar_lea.vmem %s0, 335
  %v1671 = vld [vmem:[%s1670] sm:$0x20]
  %vm1672 = vcmask 1045509
  %v1673 = vsel %vm1672, %v1671, %v1669
  %s1674 = scalar_lea.vmem %s0, 398
  %v1675 = vld [vmem:[%s1674] sm:$0x40]
  %vm1676 = vcmask 1046534
  %v1677 = vsel %vm1676, %v1675, %v1673
  %s1678 = scalar_lea.vmem %s0, 461
  %v1679 = vld [vmem:[%s1678] sm:$0x80]
  %vm1680 = vcmask 1047559
  %v1681 = vsel %vm1680, %v1679, %v1677
  %1682 = vrot.lane.b32.xlu0 %v1681, 32
  %v1683 = vpop.permute.xlu0 %1682
  %vm1684 = vcmask 326912
  %s1685 = scalar_lea.vmem %s1, 8
  %1686 = vst.msk [vmem:[%s1685] sm:$0xff] %vm1684, %v1683
  %s1687 = scalar_lea.vmem %s0, 36
  %v1688 = vld [vmem:[%s1687] sm:$0x1]
  %s1689 = scalar_lea.vmem %s0, 99
  %v1690 = vld [vmem:[%s1689] sm:$0x2]
  %vm1691 = vcmask 1041409
  %v1692 = vsel %vm1691, %v1690, %v1688
  %s1693 = scalar_lea.vmem %s0, 162
  %v1694 = vld [vmem:[%s1693] sm:$0x4]
  %vm1695 = vcmask 1042434
  %v1696 = vsel %vm1695, %v1694, %v1692
  %s1697 = scalar_lea.vmem %s0, 225
  %v1698 = vld [vmem:[%s1697] sm:$0x8]
  %vm1699 = vcmask 1043459
  %v1700 = vsel %vm1699, %v1698, %v1696
  %s1701 = scalar_lea.vmem %s0, 288
  %v1702 = vld [vmem:[%s1701] sm:$0x10]
  %vm1703 = vcmask 1044484
  %v1704 = vsel %vm1703, %v1702, %v1700
  %s1705 = scalar_lea.vmem %s0, 351
  %v1706 = vld [vmem:[%s1705] sm:$0x20]
  %vm1707 = vcmask 1045509
  %v1708 = vsel %vm1707, %v1706, %v1704
  %s1709 = scalar_lea.vmem %s0, 414
  %v1710 = vld [vmem:[%s1709] sm:$0x40]
  %vm1711 = vcmask 1046534
  %v1712 = vsel %vm1711, %v1710, %v1708
  %s1713 = scalar_lea.vmem %s0, 477
  %v1714 = vld [vmem:[%s1713] sm:$0x80]
  %vm1715 = vcmask 1047559
  %v1716 = vsel %vm1715, %v1714, %v1712
  %1717 = vrot.lane.b32.xlu0 %v1716, 32
  %v1718 = vpop.permute.xlu0 %1717
  %vm1719 = vcmask 326912
  %s1720 = scalar_lea.vmem %s1, 16
  %1721 = vst.msk [vmem:[%s1720] sm:$0xff] %vm1719, %v1718
  %s1722 = scalar_lea.vmem %s0, 52
  %v1723 = vld [vmem:[%s1722] sm:$0x1]
  %s1724 = scalar_lea.vmem %s0, 115
  %v1725 = vld [vmem:[%s1724] sm:$0x2]
  %vm1726 = vcmask 1041409
  %v1727 = vsel %vm1726, %v1725, %v1723
  %s1728 = scalar_lea.vmem %s0, 178
  %v1729 = vld [vmem:[%s1728] sm:$0x4]
  %vm1730 = vcmask 1042434
  %v1731 = vsel %vm1730, %v1729, %v1727
  %s1732 = scalar_lea.vmem %s0, 241
  %v1733 = vld [vmem:[%s1732] sm:$0x8]
  %vm1734 = vcmask 1043459
  %v1735 = vsel %vm1734, %v1733, %v1731
  %s1736 = scalar_lea.vmem %s0, 304
  %v1737 = vld [vmem:[%s1736] sm:$0x10]
  %vm1738 = vcmask 1044484
  %v1739 = vsel %vm1738, %v1737, %v1735
  %s1740 = scalar_lea.vmem %s0, 367
  %v1741 = vld [vmem:[%s1740] sm:$0x20]
  %vm1742 = vcmask 1045509
  %v1743 = vsel %vm1742, %v1741, %v1739
  %s1744 = scalar_lea.vmem %s0, 430
  %v1745 = vld [vmem:[%s1744] sm:$0x40]
  %vm1746 = vcmask 1046534
  %v1747 = vsel %vm1746, %v1745, %v1743
  %s1748 = scalar_lea.vmem %s0, 493
  %v1749 = vld [vmem:[%s1748] sm:$0x80]
  %vm1750 = vcmask 1047559
  %v1751 = vsel %vm1750, %v1749, %v1747
  %1752 = vrot.lane.b32.xlu0 %v1751, 32
  %v1753 = vpop.permute.xlu0 %1752
  %vm1754 = vcmask 326912
  %s1755 = scalar_lea.vmem %s1, 24
  %1756 = vst.msk [vmem:[%s1755] sm:$0xff] %vm1754, %v1753
  %s1757 = scalar_lea.vmem %s0, 3
  %v1758 = vld [vmem:[%s1757] sm:$0x1]
  %s1759 = scalar_lea.vmem %s0, 66
  %v1760 = vld [vmem:[%s1759] sm:$0x2]
  %vm1761 = vcmask 1041409
  %v1762 = vsel %vm1761, %v1760, %v1758
  %s1763 = scalar_lea.vmem %s0, 129
  %v1764 = vld [vmem:[%s1763] sm:$0x4]
  %vm1765 = vcmask 1042434
  %v1766 = vsel %vm1765, %v1764, %v1762
  %s1767 = scalar_lea.vmem %s0, 192
  %v1768 = vld [vmem:[%s1767] sm:$0x8]
  %vm1769 = vcmask 1043459
  %v1770 = vsel %vm1769, %v1768, %v1766
  %s1771 = scalar_lea.vmem %s0, 255
  %v1772 = vld [vmem:[%s1771] sm:$0x10]
  %vm1773 = vcmask 1044484
  %v1774 = vsel %vm1773, %v1772, %v1770
  %s1775 = scalar_lea.vmem %s0, 318
  %v1776 = vld [vmem:[%s1775] sm:$0x20]
  %vm1777 = vcmask 1045509
  %v1778 = vsel %vm1777, %v1776, %v1774
  %s1779 = scalar_lea.vmem %s0, 381
  %v1780 = vld [vmem:[%s1779] sm:$0x40]
  %vm1781 = vcmask 1046534
  %v1782 = vsel %vm1781, %v1780, %v1778
  %s1783 = scalar_lea.vmem %s0, 444
  %v1784 = vld [vmem:[%s1783] sm:$0x80]
  %vm1785 = vcmask 1047559
  %v1786 = vsel %vm1785, %v1784, %v1782
  %1787 = vrot.lane.b32.xlu0 %v1786, 24
  %v1788 = vpop.permute.xlu0 %1787
  %vm1789 = vcmask 261312
  %1790 = vst.msk [vmem:[%s1] sm:$0xff] %vm1789, %v1788
  %s1791 = scalar_lea.vmem %s0, 19
  %v1792 = vld [vmem:[%s1791] sm:$0x1]
  %s1793 = scalar_lea.vmem %s0, 82
  %v1794 = vld [vmem:[%s1793] sm:$0x2]
  %vm1795 = vcmask 1041409
  %v1796 = vsel %vm1795, %v1794, %v1792
  %s1797 = scalar_lea.vmem %s0, 145
  %v1798 = vld [vmem:[%s1797] sm:$0x4]
  %vm1799 = vcmask 1042434
  %v1800 = vsel %vm1799, %v1798, %v1796
  %s1801 = scalar_lea.vmem %s0, 208
  %v1802 = vld [vmem:[%s1801] sm:$0x8]
  %vm1803 = vcmask 1043459
  %v1804 = vsel %vm1803, %v1802, %v1800
  %s1805 = scalar_lea.vmem %s0, 271
  %v1806 = vld [vmem:[%s1805] sm:$0x10]
  %vm1807 = vcmask 1044484
  %v1808 = vsel %vm1807, %v1806, %v1804
  %s1809 = scalar_lea.vmem %s0, 334
  %v1810 = vld [vmem:[%s1809] sm:$0x20]
  %vm1811 = vcmask 1045509
  %v1812 = vsel %vm1811, %v1810, %v1808
  %s1813 = scalar_lea.vmem %s0, 397
  %v1814 = vld [vmem:[%s1813] sm:$0x40]
  %vm1815 = vcmask 1046534
  %v1816 = vsel %vm1815, %v1814, %v1812
  %s1817 = scalar_lea.vmem %s0, 460
  %v1818 = vld [vmem:[%s1817] sm:$0x80]
  %vm1819 = vcmask 1047559
  %v1820 = vsel %vm1819, %v1818, %v1816
  %1821 = vrot.lane.b32.xlu0 %v1820, 24
  %v1822 = vpop.permute.xlu0 %1821
  %vm1823 = vcmask 261312
  %s1824 = scalar_lea.vmem %s1, 8
  %1825 = vst.msk [vmem:[%s1824] sm:$0xff] %vm1823, %v1822
  %s1826 = scalar_lea.vmem %s0, 35
  %v1827 = vld [vmem:[%s1826] sm:$0x1]
  %s1828 = scalar_lea.vmem %s0, 98
  %v1829 = vld [vmem:[%s1828] sm:$0x2]
  %vm1830 = vcmask 1041409
  %v1831 = vsel %vm1830, %v1829, %v1827
  %s1832 = scalar_lea.vmem %s0, 161
  %v1833 = vld [vmem:[%s1832] sm:$0x4]
  %vm1834 = vcmask 1042434
  %v1835 = vsel %vm1834, %v1833, %v1831
  %s1836 = scalar_lea.vmem %s0, 224
  %v1837 = vld [vmem:[%s1836] sm:$0x8]
  %vm1838 = vcmask 1043459
  %v1839 = vsel %vm1838, %v1837, %v1835
  %s1840 = scalar_lea.vmem %s0, 287
  %v1841 = vld [vmem:[%s1840] sm:$0x10]
  %vm1842 = vcmask 1044484
  %v1843 = vsel %vm1842, %v1841, %v1839
  %s1844 = scalar_lea.vmem %s0, 350
  %v1845 = vld [vmem:[%s1844] sm:$0x20]
  %vm1846 = vcmask 1045509
  %v1847 = vsel %vm1846, %v1845, %v1843
  %s1848 = scalar_lea.vmem %s0, 413
  %v1849 = vld [vmem:[%s1848] sm:$0x40]
  %vm1850 = vcmask 1046534
  %v1851 = vsel %vm1850, %v1849, %v1847
  %s1852 = scalar_lea.vmem %s0, 476
  %v1853 = vld [vmem:[%s1852] sm:$0x80]
  %vm1854 = vcmask 1047559
  %v1855 = vsel %vm1854, %v1853, %v1851
  %1856 = vrot.lane.b32.xlu0 %v1855, 24
  %v1857 = vpop.permute.xlu0 %1856
  %vm1858 = vcmask 261312
  %s1859 = scalar_lea.vmem %s1, 16
  %1860 = vst.msk [vmem:[%s1859] sm:$0xff] %vm1858, %v1857
  %s1861 = scalar_lea.vmem %s0, 51
  %v1862 = vld [vmem:[%s1861] sm:$0x1]
  %s1863 = scalar_lea.vmem %s0, 114
  %v1864 = vld [vmem:[%s1863] sm:$0x2]
  %vm1865 = vcmask 1041409
  %v1866 = vsel %vm1865, %v1864, %v1862
  %s1867 = scalar_lea.vmem %s0, 177
  %v1868 = vld [vmem:[%s1867] sm:$0x4]
  %vm1869 = vcmask 1042434
  %v1870 = vsel %vm1869, %v1868, %v1866
  %s1871 = scalar_lea.vmem %s0, 240
  %v1872 = vld [vmem:[%s1871] sm:$0x8]
  %vm1873 = vcmask 1043459
  %v1874 = vsel %vm1873, %v1872, %v1870
  %s1875 = scalar_lea.vmem %s0, 303
  %v1876 = vld [vmem:[%s1875] sm:$0x10]
  %vm1877 = vcmask 1044484
  %v1878 = vsel %vm1877, %v1876, %v1874
  %s1879 = scalar_lea.vmem %s0, 366
  %v1880 = vld [vmem:[%s1879] sm:$0x20]
  %vm1881 = vcmask 1045509
  %v1882 = vsel %vm1881, %v1880, %v1878
  %s1883 = scalar_lea.vmem %s0, 429
  %v1884 = vld [vmem:[%s1883] sm:$0x40]
  %vm1885 = vcmask 1046534
  %v1886 = vsel %vm1885, %v1884, %v1882
  %s1887 = scalar_lea.vmem %s0, 492
  %v1888 = vld [vmem:[%s1887] sm:$0x80]
  %vm1889 = vcmask 1047559
  %v1890 = vsel %vm1889, %v1888, %v1886
  %1891 = vrot.lane.b32.xlu0 %v1890, 24
  %v1892 = vpop.permute.xlu0 %1891
  %vm1893 = vcmask 261312
  %s1894 = scalar_lea.vmem %s1, 24
  %1895 = vst.msk [vmem:[%s1894] sm:$0xff] %vm1893, %v1892
  %s1896 = scalar_lea.vmem %s0, 2
  %v1897 = vld [vmem:[%s1896] sm:$0x1]
  %s1898 = scalar_lea.vmem %s0, 65
  %v1899 = vld [vmem:[%s1898] sm:$0x2]
  %vm1900 = vcmask 1041409
  %v1901 = vsel %vm1900, %v1899, %v1897
  %s1902 = scalar_lea.vmem %s0, 128
  %v1903 = vld [vmem:[%s1902] sm:$0x4]
  %vm1904 = vcmask 1042434
  %v1905 = vsel %vm1904, %v1903, %v1901
  %s1906 = scalar_lea.vmem %s0, 191
  %v1907 = vld [vmem:[%s1906] sm:$0x8]
  %vm1908 = vcmask 1043459
  %v1909 = vsel %vm1908, %v1907, %v1905
  %s1910 = scalar_lea.vmem %s0, 254
  %v1911 = vld [vmem:[%s1910] sm:$0x10]
  %vm1912 = vcmask 1044484
  %v1913 = vsel %vm1912, %v1911, %v1909
  %s1914 = scalar_lea.vmem %s0, 317
  %v1915 = vld [vmem:[%s1914] sm:$0x20]
  %vm1916 = vcmask 1045509
  %v1917 = vsel %vm1916, %v1915, %v1913
  %s1918 = scalar_lea.vmem %s0, 380
  %v1919 = vld [vmem:[%s1918] sm:$0x40]
  %vm1920 = vcmask 1046534
  %v1921 = vsel %vm1920, %v1919, %v1917
  %s1922 = scalar_lea.vmem %s0, 443
  %v1923 = vld [vmem:[%s1922] sm:$0x80]
  %vm1924 = vcmask 1047559
  %v1925 = vsel %vm1924, %v1923, %v1921
  %1926 = vrot.lane.b32.xlu0 %v1925, 16
  %v1927 = vpop.permute.xlu0 %1926
  %vm1928 = vcmask 195712
  %1929 = vst.msk [vmem:[%s1] sm:$0xff] %vm1928, %v1927
  %s1930 = scalar_lea.vmem %s0, 18
  %v1931 = vld [vmem:[%s1930] sm:$0x1]
  %s1932 = scalar_lea.vmem %s0, 81
  %v1933 = vld [vmem:[%s1932] sm:$0x2]
  %vm1934 = vcmask 1041409
  %v1935 = vsel %vm1934, %v1933, %v1931
  %s1936 = scalar_lea.vmem %s0, 144
  %v1937 = vld [vmem:[%s1936] sm:$0x4]
  %vm1938 = vcmask 1042434
  %v1939 = vsel %vm1938, %v1937, %v1935
  %s1940 = scalar_lea.vmem %s0, 207
  %v1941 = vld [vmem:[%s1940] sm:$0x8]
  %vm1942 = vcmask 1043459
  %v1943 = vsel %vm1942, %v1941, %v1939
  %s1944 = scalar_lea.vmem %s0, 270
  %v1945 = vld [vmem:[%s1944] sm:$0x10]
  %vm1946 = vcmask 1044484
  %v1947 = vsel %vm1946, %v1945, %v1943
  %s1948 = scalar_lea.vmem %s0, 333
  %v1949 = vld [vmem:[%s1948] sm:$0x20]
  %vm1950 = vcmask 1045509
  %v1951 = vsel %vm1950, %v1949, %v1947
  %s1952 = scalar_lea.vmem %s0, 396
  %v1953 = vld [vmem:[%s1952] sm:$0x40]
  %vm1954 = vcmask 1046534
  %v1955 = vsel %vm1954, %v1953, %v1951
  %s1956 = scalar_lea.vmem %s0, 459
  %v1957 = vld [vmem:[%s1956] sm:$0x80]
  %vm1958 = vcmask 1047559
  %v1959 = vsel %vm1958, %v1957, %v1955
  %1960 = vrot.lane.b32.xlu0 %v1959, 16
  %v1961 = vpop.permute.xlu0 %1960
  %vm1962 = vcmask 195712
  %s1963 = scalar_lea.vmem %s1, 8
  %1964 = vst.msk [vmem:[%s1963] sm:$0xff] %vm1962, %v1961
  %s1965 = scalar_lea.vmem %s0, 34
  %v1966 = vld [vmem:[%s1965] sm:$0x1]
  %s1967 = scalar_lea.vmem %s0, 97
  %v1968 = vld [vmem:[%s1967] sm:$0x2]
  %vm1969 = vcmask 1041409
  %v1970 = vsel %vm1969, %v1968, %v1966
  %s1971 = scalar_lea.vmem %s0, 160
  %v1972 = vld [vmem:[%s1971] sm:$0x4]
  %vm1973 = vcmask 1042434
  %v1974 = vsel %vm1973, %v1972, %v1970
  %s1975 = scalar_lea.vmem %s0, 223
  %v1976 = vld [vmem:[%s1975] sm:$0x8]
  %vm1977 = vcmask 1043459
  %v1978 = vsel %vm1977, %v1976, %v1974
  %s1979 = scalar_lea.vmem %s0, 286
  %v1980 = vld [vmem:[%s1979] sm:$0x10]
  %vm1981 = vcmask 1044484
  %v1982 = vsel %vm1981, %v1980, %v1978
  %s1983 = scalar_lea.vmem %s0, 349
  %v1984 = vld [vmem:[%s1983] sm:$0x20]
  %vm1985 = vcmask 1045509
  %v1986 = vsel %vm1985, %v1984, %v1982
  %s1987 = scalar_lea.vmem %s0, 412
  %v1988 = vld [vmem:[%s1987] sm:$0x40]
  %vm1989 = vcmask 1046534
  %v1990 = vsel %vm1989, %v1988, %v1986
  %s1991 = scalar_lea.vmem %s0, 475
  %v1992 = vld [vmem:[%s1991] sm:$0x80]
  %vm1993 = vcmask 1047559
  %v1994 = vsel %vm1993, %v1992, %v1990
  %1995 = vrot.lane.b32.xlu0 %v1994, 16
  %v1996 = vpop.permute.xlu0 %1995
  %vm1997 = vcmask 195712
  %s1998 = scalar_lea.vmem %s1, 16
  %1999 = vst.msk [vmem:[%s1998] sm:$0xff] %vm1997, %v1996
  %s2000 = scalar_lea.vmem %s0, 50
  %v2001 = vld [vmem:[%s2000] sm:$0x1]
  %s2002 = scalar_lea.vmem %s0, 113
  %v2003 = vld [vmem:[%s2002] sm:$0x2]
  %vm2004 = vcmask 1041409
  %v2005 = vsel %vm2004, %v2003, %v2001
  %s2006 = scalar_lea.vmem %s0, 176
  %v2007 = vld [vmem:[%s2006] sm:$0x4]
  %vm2008 = vcmask 1042434
  %v2009 = vsel %vm2008, %v2007, %v2005
  %s2010 = scalar_lea.vmem %s0, 239
  %v2011 = vld [vmem:[%s2010] sm:$0x8]
  %vm2012 = vcmask 1043459
  %v2013 = vsel %vm2012, %v2011, %v2009
  %s2014 = scalar_lea.vmem %s0, 302
  %v2015 = vld [vmem:[%s2014] sm:$0x10]
  %vm2016 = vcmask 1044484
  %v2017 = vsel %vm2016, %v2015, %v2013
  %s2018 = scalar_lea.vmem %s0, 365
  %v2019 = vld [vmem:[%s2018] sm:$0x20]
  %vm2020 = vcmask 1045509
  %v2021 = vsel %vm2020, %v2019, %v2017
  %s2022 = scalar_lea.vmem %s0, 428
  %v2023 = vld [vmem:[%s2022] sm:$0x40]
  %vm2024 = vcmask 1046534
  %v2025 = vsel %vm2024, %v2023, %v2021
  %s2026 = scalar_lea.vmem %s0, 491
  %v2027 = vld [vmem:[%s2026] sm:$0x80]
  %vm2028 = vcmask 1047559
  %v2029 = vsel %vm2028, %v2027, %v2025
  %2030 = vrot.lane.b32.xlu0 %v2029, 16
  %v2031 = vpop.permute.xlu0 %2030
  %vm2032 = vcmask 195712
  %s2033 = scalar_lea.vmem %s1, 24
  %2034 = vst.msk [vmem:[%s2033] sm:$0xff] %vm2032, %v2031
  %s2035 = scalar_lea.vmem %s0, 1
  %v2036 = vld [vmem:[%s2035] sm:$0x1]
  %s2037 = scalar_lea.vmem %s0, 64
  %v2038 = vld [vmem:[%s2037] sm:$0x2]
  %vm2039 = vcmask 1041409
  %v2040 = vsel %vm2039, %v2038, %v2036
  %s2041 = scalar_lea.vmem %s0, 127
  %v2042 = vld [vmem:[%s2041] sm:$0x4]
  %vm2043 = vcmask 1042434
  %v2044 = vsel %vm2043, %v2042, %v2040
  %s2045 = scalar_lea.vmem %s0, 190
  %v2046 = vld [vmem:[%s2045] sm:$0x8]
  %vm2047 = vcmask 1043459
  %v2048 = vsel %vm2047, %v2046, %v2044
  %s2049 = scalar_lea.vmem %s0, 253
  %v2050 = vld [vmem:[%s2049] sm:$0x10]
  %vm2051 = vcmask 1044484
  %v2052 = vsel %vm2051, %v2050, %v2048
  %s2053 = scalar_lea.vmem %s0, 316
  %v2054 = vld [vmem:[%s2053] sm:$0x20]
  %vm2055 = vcmask 1045509
  %v2056 = vsel %vm2055, %v2054, %v2052
  %s2057 = scalar_lea.vmem %s0, 379
  %v2058 = vld [vmem:[%s2057] sm:$0x40]
  %vm2059 = vcmask 1046534
  %v2060 = vsel %vm2059, %v2058, %v2056
  %s2061 = scalar_lea.vmem %s0, 442
  %v2062 = vld [vmem:[%s2061] sm:$0x80]
  %vm2063 = vcmask 1047559
  %v2064 = vsel %vm2063, %v2062, %v2060
  %2065 = vrot.lane.b32.xlu0 %v2064, 8
  %v2066 = vpop.permute.xlu0 %2065
  %vm2067 = vcmask 130112
  %2068 = vst.msk [vmem:[%s1] sm:$0xff] %vm2067, %v2066
  %s2069 = scalar_lea.vmem %s0, 17
  %v2070 = vld [vmem:[%s2069] sm:$0x1]
  %s2071 = scalar_lea.vmem %s0, 80
  %v2072 = vld [vmem:[%s2071] sm:$0x2]
  %vm2073 = vcmask 1041409
  %v2074 = vsel %vm2073, %v2072, %v2070
  %s2075 = scalar_lea.vmem %s0, 143
  %v2076 = vld [vmem:[%s2075] sm:$0x4]
  %vm2077 = vcmask 1042434
  %v2078 = vsel %vm2077, %v2076, %v2074
  %s2079 = scalar_lea.vmem %s0, 206
  %v2080 = vld [vmem:[%s2079] sm:$0x8]
  %vm2081 = vcmask 1043459
  %v2082 = vsel %vm2081, %v2080, %v2078
  %s2083 = scalar_lea.vmem %s0, 269
  %v2084 = vld [vmem:[%s2083] sm:$0x10]
  %vm2085 = vcmask 1044484
  %v2086 = vsel %vm2085, %v2084, %v2082
  %s2087 = scalar_lea.vmem %s0, 332
  %v2088 = vld [vmem:[%s2087] sm:$0x20]
  %vm2089 = vcmask 1045509
  %v2090 = vsel %vm2089, %v2088, %v2086
  %s2091 = scalar_lea.vmem %s0, 395
  %v2092 = vld [vmem:[%s2091] sm:$0x40]
  %vm2093 = vcmask 1046534
  %v2094 = vsel %vm2093, %v2092, %v2090
  %s2095 = scalar_lea.vmem %s0, 458
  %v2096 = vld [vmem:[%s2095] sm:$0x80]
  %vm2097 = vcmask 1047559
  %v2098 = vsel %vm2097, %v2096, %v2094
  %2099 = vrot.lane.b32.xlu0 %v2098, 8
  %v2100 = vpop.permute.xlu0 %2099
  %vm2101 = vcmask 130112
  %s2102 = scalar_lea.vmem %s1, 8
  %2103 = vst.msk [vmem:[%s2102] sm:$0xff] %vm2101, %v2100
  %s2104 = scalar_lea.vmem %s0, 33
  %v2105 = vld [vmem:[%s2104] sm:$0x1]
  %s2106 = scalar_lea.vmem %s0, 96
  %v2107 = vld [vmem:[%s2106] sm:$0x2]
  %vm2108 = vcmask 1041409
  %v2109 = vsel %vm2108, %v2107, %v2105
  %s2110 = scalar_lea.vmem %s0, 159
  %v2111 = vld [vmem:[%s2110] sm:$0x4]
  %vm2112 = vcmask 1042434
  %v2113 = vsel %vm2112, %v2111, %v2109
  %s2114 = scalar_lea.vmem %s0, 222
  %v2115 = vld [vmem:[%s2114] sm:$0x8]
  %vm2116 = vcmask 1043459
  %v2117 = vsel %vm2116, %v2115, %v2113
  %s2118 = scalar_lea.vmem %s0, 285
  %v2119 = vld [vmem:[%s2118] sm:$0x10]
  %vm2120 = vcmask 1044484
  %v2121 = vsel %vm2120, %v2119, %v2117
  %s2122 = scalar_lea.vmem %s0, 348
  %v2123 = vld [vmem:[%s2122] sm:$0x20]
  %vm2124 = vcmask 1045509
  %v2125 = vsel %vm2124, %v2123, %v2121
  %s2126 = scalar_lea.vmem %s0, 411
  %v2127 = vld [vmem:[%s2126] sm:$0x40]
  %vm2128 = vcmask 1046534
  %v2129 = vsel %vm2128, %v2127, %v2125
  %s2130 = scalar_lea.vmem %s0, 474
  %v2131 = vld [vmem:[%s2130] sm:$0x80]
  %vm2132 = vcmask 1047559
  %v2133 = vsel %vm2132, %v2131, %v2129
  %2134 = vrot.lane.b32.xlu0 %v2133, 8
  %v2135 = vpop.permute.xlu0 %2134
  %vm2136 = vcmask 130112
  %s2137 = scalar_lea.vmem %s1, 16
  %2138 = vst.msk [vmem:[%s2137] sm:$0xff] %vm2136, %v2135
  %s2139 = scalar_lea.vmem %s0, 49
  %v2140 = vld [vmem:[%s2139] sm:$0x1]
  %s2141 = scalar_lea.vmem %s0, 112
  %v2142 = vld [vmem:[%s2141] sm:$0x2]
  %vm2143 = vcmask 1041409
  %v2144 = vsel %vm2143, %v2142, %v2140
  %s2145 = scalar_lea.vmem %s0, 175
  %v2146 = vld [vmem:[%s2145] sm:$0x4]
  %vm2147 = vcmask 1042434
  %v2148 = vsel %vm2147, %v2146, %v2144
  %s2149 = scalar_lea.vmem %s0, 238
  %v2150 = vld [vmem:[%s2149] sm:$0x8]
  %vm2151 = vcmask 1043459
  %v2152 = vsel %vm2151, %v2150, %v2148
  %s2153 = scalar_lea.vmem %s0, 301
  %v2154 = vld [vmem:[%s2153] sm:$0x10]
  %vm2155 = vcmask 1044484
  %v2156 = vsel %vm2155, %v2154, %v2152
  %s2157 = scalar_lea.vmem %s0, 364
  %v2158 = vld [vmem:[%s2157] sm:$0x20]
  %vm2159 = vcmask 1045509
  %v2160 = vsel %vm2159, %v2158, %v2156
  %s2161 = scalar_lea.vmem %s0, 427
  %v2162 = vld [vmem:[%s2161] sm:$0x40]
  %vm2163 = vcmask 1046534
  %v2164 = vsel %vm2163, %v2162, %v2160
  %s2165 = scalar_lea.vmem %s0, 490
  %v2166 = vld [vmem:[%s2165] sm:$0x80]
  %vm2167 = vcmask 1047559
  %v2168 = vsel %vm2167, %v2166, %v2164
  %2169 = vrot.lane.b32.xlu0 %v2168, 8
  %v2170 = vpop.permute.xlu0 %2169
  %vm2171 = vcmask 130112
  %s2172 = scalar_lea.vmem %s1, 24
  %2173 = vst.msk [vmem:[%s2172] sm:$0xff] %vm2171, %v2170

// kernel: encoder3d_forward.1
$region0: #{encoder3d_forward.1}
  #allocation0 [shape = 'u32[]', space=smem, size = 0x4, offset = 0x4, fixed_abs, tag = 'smem constant byte address 0x4 - core index']
  #allocation1 [shape = 'u32[72,128]{1,0:T(1,128)}', space=vmem, size = 0x9000, scoped, tag = 'internal scratch']
  #allocation2 [shape = 'bf16[2,10,256]{2,1,0:T(8,128)(2,1)}', space=vmem, size = 0x4000, scoped, tag = 'scratch operand']
  #allocation3 [shape = 'bf16[2,10,512]{2,1,0:T(8,128)(2,1)}', space=vmem, size = 0x8000, scoped, tag = 'scratch operand']
  %s0 = inlined_call_operand.vmem [shape: bf16[8,2,8,256], index: 0, kind: input, shape index: {}]
  %s1 = inlined_call_operand.vmem [shape: bf16[3,256,512], index: 1, kind: input, shape index: {}]
  %s2 = inlined_call_operand.vmem [shape: f32[512,8], index: 2, kind: input, shape index: {}, may-alias: {2,7}]
  %s3 = inlined_call_operand.vmem [shape: f32[8,512], index: 3, kind: input, shape index: {}, may-alias: {3,8}]
  %s4 = inlined_call_operand.vmem [shape: f32[1,8], index: 4, kind: input, shape index: {}]
  %s5 = inlined_call_operand.vmem [shape: f32[1,8], index: 5, kind: input, shape index: {}]
  %s6 = inlined_call_operand.vmem [shape: bf16[3,512,512], index: 6, kind: input, shape index: {}]
  %s7 = inlined_call_operand.vmem [shape: f32[512,8], index: 7, kind: input, shape index: {}, may-alias: {2,7}]
  %s8 = inlined_call_operand.vmem [shape: f32[8,512], index: 8, kind: input, shape index: {}, may-alias: {3,8}]
  %s9 = inlined_call_operand.vmem [shape: f32[1,8], index: 9, kind: input, shape index: {}]
  %s10 = inlined_call_operand.vmem [shape: f32[1,8], index: 10, kind: input, shape index: {}]
  %s11 = inlined_call_operand.vmem [shape: f32[16,512], index: 11, kind: output, shape index: {}]
  %s12 = sld [smem:[#allocation0]]
  $region54: #{encoder3d_forward.1} parent=0
    _
  %s14 = ssub.s32 1, %s12
  %s15 = scalar_select 0, %s14, %s12
  // Predicated region
  $region2: #{encoder3d_forward.1} parent=0 // pred_check
    _
  $region3: #{encoder3d_forward.1} parent=0 // pred_check_branch
    %17 = sbr.rel (0) target = $region5
  $region4: #{encoder3d_forward.1} parent=0 // pred_region
    _
  $region5: #{encoder3d_forward.1} parent=0 // pred_fallthru
    _
  // Predicated region
  $region6: #{encoder3d_forward.1} parent=0 // pred_check
    _
  $region7: #{encoder3d_forward.1} parent=0 // pred_check_branch
    %19 = sbr.rel (0) target = $region9
  $region8: #{encoder3d_forward.1} parent=0 // pred_region
    _
  $region9: #{encoder3d_forward.1} parent=0 // pred_fallthru
    _
  // Predicated region
  $region10: #{encoder3d_forward.1} parent=0 // pred_check
    _
  $region11: #{encoder3d_forward.1} parent=0 // pred_check_branch
    %21 = sbr.rel (0) target = $region13
  $region12: #{encoder3d_forward.1} parent=0 // pred_region
    _
  $region13: #{encoder3d_forward.1} parent=0 // pred_fallthru
    _
  // Predicated region
  $region14: #{encoder3d_forward.1} parent=0 // pred_check
    _
  $region15: #{encoder3d_forward.1} parent=0 // pred_check_branch
    %23 = sbr.rel (0) target = $region17
  $region16: #{encoder3d_forward.1} parent=0 // pred_region
    _
  $region17: #{encoder3d_forward.1} parent=0 // pred_fallthru
    _
  // Predicated region
  $region18: #{encoder3d_forward.1} parent=0 // pred_check
    _
  $region19: #{encoder3d_forward.1} parent=0 // pred_check_branch
    %25 = sbr.rel (0) target = $region21
  $region20: #{encoder3d_forward.1} parent=0 // pred_region
    _
  $region21: #{encoder3d_forward.1} parent=0 // pred_fallthru
    _
  // Predicated region
  $region22: #{encoder3d_forward.1} parent=0 // pred_check
    _
  $region23: #{encoder3d_forward.1} parent=0 // pred_check_branch
    %27 = sbr.rel (0) target = $region25
  $region24: #{encoder3d_forward.1} parent=0 // pred_region
    _
  $region25: #{encoder3d_forward.1} parent=0 // pred_fallthru
    _
  // Predicated region
  $region26: #{encoder3d_forward.1} parent=0 // pred_check
    _
  $region27: #{encoder3d_forward.1} parent=0 // pred_check_branch
    %29 = sbr.rel (0) target = $region29
  $region28: #{encoder3d_forward.1} parent=0 // pred_region
    _
  $region29: #{encoder3d_forward.1} parent=0 // pred_fallthru
    _
  // Predicated region
  $region30: #{encoder3d_forward.1} parent=0 // pred_check
    _
  $region31: #{encoder3d_forward.1} parent=0 // pred_check_branch
    %31 = sbr.rel (0) target = $region33
  $region32: #{encoder3d_forward.1} parent=0 // pred_region
    _
  $region33: #{encoder3d_forward.1} parent=0 // pred_fallthru
    _
  // Predicated region
  $region34: #{encoder3d_forward.1} parent=0 // pred_check
    _
  $region35: #{encoder3d_forward.1} parent=0 // pred_check_branch
    %33 = sbr.rel (0) target = $region37
  $region36: #{encoder3d_forward.1} parent=0 // pred_region
    _
  $region37: #{encoder3d_forward.1} parent=0 // pred_fallthru
    _
  // Predicated region
  $region38: #{encoder3d_forward.1} parent=0 // pred_check
    _
  $region39: #{encoder3d_forward.1} parent=0 // pred_check_branch
    %35 = sbr.rel (0) target = $region41
  $region40: #{encoder3d_forward.1} parent=0 // pred_region
    _
  $region41: #{encoder3d_forward.1} parent=0 // pred_fallthru
    _
  // Predicated region
  $region42: #{encoder3d_forward.1} parent=0 // pred_check
    _
  $region43: #{encoder3d_forward.1} parent=0 // pred_check_branch
    %37 = sbr.rel (0) target = $region45
  $region44: #{encoder3d_forward.1} parent=0 // pred_region
    _
  $region45: #{encoder3d_forward.1} parent=0 // pred_fallthru
    _
  %v39 = vld [vmem:[%s0] sm:$0xff]
  %v40 = vld [vmem:[%s0 + $0x8] sm:$0xff]
  %s41 = scalar_lea.vmem %s0, 16
  %v42 = vld [vmem:[%s41] sm:$0xff]
  %v43 = vld [vmem:[%s41 + $0x8] sm:$0xff]
  %v44 = vunpack.c.l.bf16 %v39
  %v45 = vunpack.c.h.bf16 %v39
  %v46 = vunpack.c.l.bf16 %v40
  %v47 = vunpack.c.h.bf16 %v40
  %v48 = vunpack.c.l.bf16 %v42
  %v49 = vunpack.c.h.bf16 %v42
  %v50 = vunpack.c.l.bf16 %v43
  %v51 = vunpack.c.h.bf16 %v43
  %v52 = vmax.f32 %v44, %v48
  %v53 = vmax.f32 %v45, %v49
  %v54 = vmax.f32 %v46, %v50
  %v55 = vmax.f32 %v47, %v51
  %v56 = vpack.c.bf16 %v53, %v52
  %v57 = vpack.c.bf16 %v55, %v54
  %s58 = scalar_lea.vmem %s0, 32
  %v59 = vld [vmem:[%s58] sm:$0xff]
  %v60 = vld [vmem:[%s58 + $0x8] sm:$0xff]
  %v61 = vunpack.c.l.bf16 %v56
  %v62 = vunpack.c.h.bf16 %v56
  %v63 = vunpack.c.l.bf16 %v57
  %v64 = vunpack.c.h.bf16 %v57
  %v65 = vunpack.c.l.bf16 %v59
  %v66 = vunpack.c.h.bf16 %v59
  %v67 = vunpack.c.l.bf16 %v60
  %v68 = vunpack.c.h.bf16 %v60
  %v69 = vmax.f32 %v61, %v65
  %v70 = vmax.f32 %v62, %v66
  %v71 = vmax.f32 %v63, %v67
  %v72 = vmax.f32 %v64, %v68
  %v73 = vpack.c.bf16 %v70, %v69
  %v74 = vpack.c.bf16 %v72, %v71
  %s75 = scalar_lea.vmem %s0, 48
  %v76 = vld [vmem:[%s75] sm:$0xff]
  %v77 = vld [vmem:[%s75 + $0x8] sm:$0xff]
  %v78 = vunpack.c.l.bf16 %v73
  %v79 = vunpack.c.h.bf16 %v73
  %v80 = vunpack.c.l.bf16 %v74
  %v81 = vunpack.c.h.bf16 %v74
  %v82 = vunpack.c.l.bf16 %v76
  %v83 = vunpack.c.h.bf16 %v76
  %v84 = vunpack.c.l.bf16 %v77
  %v85 = vunpack.c.h.bf16 %v77
  %v86 = vmax.f32 %v78, %v82
  %v87 = vmax.f32 %v79, %v83
  %v88 = vmax.f32 %v80, %v84
  %v89 = vmax.f32 %v81, %v85
  %v90 = vpack.c.bf16 %v87, %v86
  %v91 = vpack.c.bf16 %v89, %v88
  %s92 = scalar_lea.vmem %s0, 64
  %v93 = vld [vmem:[%s92] sm:$0xff]
  %v94 = vld [vmem:[%s92 + $0x8] sm:$0xff]
  %v95 = vunpack.c.l.bf16 %v90
  %v96 = vunpack.c.h.bf16 %v90
  %v97 = vunpack.c.l.bf16 %v91
  %v98 = vunpack.c.h.bf16 %v91
  %v99 = vunpack.c.l.bf16 %v93
  %v100 = vunpack.c.h.bf16 %v93
  %v101 = vunpack.c.l.bf16 %v94
  %v102 = vunpack.c.h.bf16 %v94
  %v103 = vmax.f32 %v95, %v99
  %v104 = vmax.f32 %v96, %v100
  %v105 = vmax.f32 %v97, %v101
  %v106 = vmax.f32 %v98, %v102
  %v107 = vpack.c.bf16 %v104, %v103
  %v108 = vpack.c.bf16 %v106, %v105
  %s109 = scalar_lea.vmem %s0, 80
  %v110 = vld [vmem:[%s109] sm:$0xff]
  %v111 = vld [vmem:[%s109 + $0x8] sm:$0xff]
  %v112 = vunpack.c.l.bf16 %v107
  %v113 = vunpack.c.h.bf16 %v107
  %v114 = vunpack.c.l.bf16 %v108
  %v115 = vunpack.c.h.bf16 %v108
  %v116 = vunpack.c.l.bf16 %v110
  %v117 = vunpack.c.h.bf16 %v110
  %v118 = vunpack.c.l.bf16 %v111
  %v119 = vunpack.c.h.bf16 %v111
  %v120 = vmax.f32 %v112, %v116
  %v121 = vmax.f32 %v113, %v117
  %v122 = vmax.f32 %v114, %v118
  %v123 = vmax.f32 %v115, %v119
  %v124 = vpack.c.bf16 %v121, %v120
  %v125 = vpack.c.bf16 %v123, %v122
  %s126 = scalar_lea.vmem %s0, 96
  %v127 = vld [vmem:[%s126] sm:$0xff]
  %v128 = vld [vmem:[%s126 + $0x8] sm:$0xff]
  %v129 = vunpack.c.l.bf16 %v124
  %v130 = vunpack.c.h.bf16 %v124
  %v131 = vunpack.c.l.bf16 %v125
  %v132 = vunpack.c.h.bf16 %v125
  %v133 = vunpack.c.l.bf16 %v127
  %v134 = vunpack.c.h.bf16 %v127
  %v135 = vunpack.c.l.bf16 %v128
  %v136 = vunpack.c.h.bf16 %v128
  %v137 = vmax.f32 %v129, %v133
  %v138 = vmax.f32 %v130, %v134
  %v139 = vmax.f32 %v131, %v135
  %v140 = vmax.f32 %v132, %v136
  %v141 = vpack.c.bf16 %v138, %v137
  %v142 = vpack.c.bf16 %v140, %v139
  %s143 = scalar_lea.vmem %s0, 112
  %v144 = vld [vmem:[%s143] sm:$0xff]
  %v145 = vld [vmem:[%s143 + $0x8] sm:$0xff]
  %v146 = vunpack.c.l.bf16 %v141
  %v147 = vunpack.c.h.bf16 %v141
  %v148 = vunpack.c.l.bf16 %v142
  %v149 = vunpack.c.h.bf16 %v142
  %v150 = vunpack.c.l.bf16 %v144
  %v151 = vunpack.c.h.bf16 %v144
  %v152 = vunpack.c.l.bf16 %v145
  %v153 = vunpack.c.h.bf16 %v145
  %v154 = vmax.f32 %v146, %v150
  %v155 = vmax.f32 %v147, %v151
  %v156 = vmax.f32 %v148, %v152
  %v157 = vmax.f32 %v149, %v153
  %v158 = vpack.c.bf16 %v155, %v154
  %v159 = vpack.c.bf16 %v157, %v156
  %vm160 = vcmask 1040384
  %vm161 = vsmask.f32 256
  %vm162 = vmand %vm160, %vm161
  %vm163 = vcmask 1044484
  %vm164 = vsmask.f32 4352
  %vm165 = vmand %vm163, %vm164
  %vm166 = vmor %vm165, %vm162
  %v167 = vld [vmem:[#allocation2] sm:$0x11]
  %v168 = vsel %vm166, 0, %v167
  %169 = vst [vmem:[#allocation2] sm:$0x11] %v168
  %v170 = vld [vmem:[#allocation2 + $0x10] sm:$0x11]
  %v171 = vsel %vm166, 0, %v170
  %172 = vst [vmem:[#allocation2 + $0x10] sm:$0x11] %v171
  %vm173 = vsmask.f32 7938
  %vm174 = vmand %vm160, %vm173
  %vm175 = vsmask.f32 7954
  %vm176 = vmand %vm163, %vm175
  %vm177 = vmor %vm176, %vm174
  %v178 = vld [vmem:[#allocation2 + $0x8] sm:$0x11]
  %v179 = vsel %vm177, 0, %v178
  %180 = vst [vmem:[#allocation2 + $0x8] sm:$0x11] %v179
  %v181 = vld [vmem:[#allocation2 + $0x18] sm:$0x11]
  %v182 = vsel %vm177, 0, %v181
  %183 = vst [vmem:[#allocation2 + $0x18] sm:$0x11] %v182
  %v185 = vshrl.u32 %v158, 16
  %v187 = vrot.slane %v185, 7
  %v188 = vshll.u32 %v158, 16
  %v190 = vor.u32 %v187, %v188
  %v191 = vrot.slane %v187, 4
  %v193 = vshrl.u32 %v159, 16
  %v195 = vrot.slane %v193, 7
  %v196 = vshll.u32 %v159, 16
  %v198 = vor.u32 %v195, %v196
  %v199 = vrot.slane %v195, 4
  %vm204 = vcmask 1043456
  %vm205 = vmand %vm204, %vm173
  %vm206 = vcmask 1047556
  %vm207 = vmand %vm206, %vm175
  %vm208 = vmor %vm207, %vm205
  %v209 = vld [vmem:[#allocation2] sm:$0xff]
  %v210 = vsel %vm208, %v190, %v209
  %211 = vst [vmem:[#allocation2] sm:$0xff] %v210
  %v212 = vld [vmem:[#allocation2 + $0x8] sm:$0x11]
  %v213 = vsel %vm166, %v191, %v212
  %214 = vst [vmem:[#allocation2 + $0x8] sm:$0x11] %v213
  %v215 = vld [vmem:[#allocation2 + $0x10] sm:$0xff]
  %v216 = vsel %vm208, %v198, %v215
  %217 = vst [vmem:[#allocation2 + $0x10] sm:$0xff] %v216
  %v218 = vld [vmem:[#allocation2 + $0x18] sm:$0x11]
  %v219 = vsel %vm166, %v199, %v218
  %220 = vst [vmem:[#allocation2 + $0x18] sm:$0x11] %v219
  %v221 = vld [vmem:[#allocation2] sm:$0xff]
  %v222 = vld [vmem:[#allocation2 + $0x10] sm:$0xff]
  %v223 = vld [vmem:[%s1] sm:$0xff]
  %v224 = vld [vmem:[%s1 + $0x8] sm:$0xff]
  %v225 = vld [vmem:[%s1 + $0x10] sm:$0xff]
  %v226 = vld [vmem:[%s1 + $0x18] sm:$0xff]
  %v227 = vld [vmem:[%s1 + $0x20] sm:$0xff]
  %v228 = vld [vmem:[%s1 + $0x28] sm:$0xff]
  %v229 = vld [vmem:[%s1 + $0x30] sm:$0xff]
  %v230 = vld [vmem:[%s1 + $0x38] sm:$0xff]
  %v231 = vld [vmem:[%s1 + $0x40] sm:$0xff]
  %v232 = vld [vmem:[%s1 + $0x48] sm:$0xff]
  %v233 = vld [vmem:[%s1 + $0x50] sm:$0xff]
  %v234 = vld [vmem:[%s1 + $0x58] sm:$0xff]
  %v235 = vld [vmem:[%s1 + $0x60] sm:$0xff]
  %v236 = vld [vmem:[%s1 + $0x68] sm:$0xff]
  %v237 = vld [vmem:[%s1 + $0x70] sm:$0xff]
  %v238 = vld [vmem:[%s1 + $0x78] sm:$0xff]
  %v239 = vld [vmem:[%s1 + $0x80] sm:$0xff]
  %v240 = vld [vmem:[%s1 + $0x88] sm:$0xff]
  %v241 = vld [vmem:[%s1 + $0x90] sm:$0xff]
  %v242 = vld [vmem:[%s1 + $0x98] sm:$0xff]
  %v243 = vld [vmem:[%s1 + $0xa0] sm:$0xff]
  %v244 = vld [vmem:[%s1 + $0xa8] sm:$0xff]
  %v245 = vld [vmem:[%s1 + $0xb0] sm:$0xff]
  %v246 = vld [vmem:[%s1 + $0xb8] sm:$0xff]
  %v247 = vld [vmem:[%s1 + $0xc0] sm:$0xff]
  %v248 = vld [vmem:[%s1 + $0xc8] sm:$0xff]
  %v249 = vld [vmem:[%s1 + $0xd0] sm:$0xff]
  %v250 = vld [vmem:[%s1 + $0xd8] sm:$0xff]
  %v251 = vld [vmem:[%s1 + $0xe0] sm:$0xff]
  %v252 = vld [vmem:[%s1 + $0xe8] sm:$0xff]
  %v253 = vld [vmem:[%s1 + $0xf0] sm:$0xff]
  %v254 = vld [vmem:[%s1 + $0xf8] sm:$0xff]
  %v255 = vld [vmem:[%s1 + $0x100] sm:$0xff]
  %v256 = vld [vmem:[%s1 + $0x108] sm:$0xff]
  %v257 = vld [vmem:[%s1 + $0x110] sm:$0xff]
  %v258 = vld [vmem:[%s1 + $0x118] sm:$0xff]
  %v259 = vld [vmem:[%s1 + $0x120] sm:$0xff]
  %v260 = vld [vmem:[%s1 + $0x128] sm:$0xff]
  %v261 = vld [vmem:[%s1 + $0x130] sm:$0xff]
  %v262 = vld [vmem:[%s1 + $0x138] sm:$0xff]
  %v263 = vld [vmem:[%s1 + $0x140] sm:$0xff]
  %v264 = vld [vmem:[%s1 + $0x148] sm:$0xff]
  %v265 = vld [vmem:[%s1 + $0x150] sm:$0xff]
  %v266 = vld [vmem:[%s1 + $0x158] sm:$0xff]
  %v267 = vld [vmem:[%s1 + $0x160] sm:$0xff]
  %v268 = vld [vmem:[%s1 + $0x168] sm:$0xff]
  %v269 = vld [vmem:[%s1 + $0x170] sm:$0xff]
  %v270 = vld [vmem:[%s1 + $0x178] sm:$0xff]
  %v271 = vld [vmem:[%s1 + $0x180] sm:$0xff]
  %v272 = vld [vmem:[%s1 + $0x188] sm:$0xff]
  %v273 = vld [vmem:[%s1 + $0x190] sm:$0xff]
  %v274 = vld [vmem:[%s1 + $0x198] sm:$0xff]
  %v275 = vld [vmem:[%s1 + $0x1a0] sm:$0xff]
  %v276 = vld [vmem:[%s1 + $0x1a8] sm:$0xff]
  %v277 = vld [vmem:[%s1 + $0x1b0] sm:$0xff]
  %v278 = vld [vmem:[%s1 + $0x1b8] sm:$0xff]
  %v279 = vld [vmem:[%s1 + $0x1c0] sm:$0xff]
  %v280 = vld [vmem:[%s1 + $0x1c8] sm:$0xff]
  %v281 = vld [vmem:[%s1 + $0x1d0] sm:$0xff]
  %v282 = vld [vmem:[%s1 + $0x1d8] sm:$0xff]
  %v283 = vld [vmem:[%s1 + $0x1e0] sm:$0xff]
  %v284 = vld [vmem:[%s1 + $0x1e8] sm:$0xff]
  %v285 = vld [vmem:[%s1 + $0x1f0] sm:$0xff]
  %v286 = vld [vmem:[%s1 + $0x1f8] sm:$0xff]
  %v287 = vld [vmem:[#allocation2 + $0x8] sm:$0x11]
  %v288 = vld [vmem:[#allocation2 + $0x18] sm:$0x11]
  %vm289 = vsmask.f32 3328
  %vm290 = vsmask.f32 7440
  %vm291 = vmor %vm289, %vm290
  %v293 = vshrl.u32 %v221, 16
  %v295 = vrot.slane %v293, 4
  %v296 = vshll.u32 %v221, 16
  %v298 = vrot.slane %v296, 5
  %v299 = vor.u32 %v295, %v298
  %v300 = vrot.slane %v299, 4
  %v302 = vshll.u32 %v287, 16
  %v304 = vrot.slane %v302, 5
  %v305 = vsel %vm291, %v300, %v304
  %v307 = vshrl.u32 %v222, 16
  %v309 = vrot.slane %v307, 4
  %v310 = vshll.u32 %v222, 16
  %v312 = vrot.slane %v310, 5
  %v313 = vor.u32 %v309, %v312
  %v314 = vrot.slane %v313, 4
  %v316 = vshll.u32 %v288, 16
  %v318 = vrot.slane %v316, 5
  %v319 = vsel %vm291, %v314, %v318
  %s320 = scalar_lea.vmem %s1, 512
  %v321 = vld [vmem:[%s320] sm:$0xff]
  %v322 = vld [vmem:[%s320 + $0x8] sm:$0xff]
  %v323 = vld [vmem:[%s320 + $0x10] sm:$0xff]
  %v324 = vld [vmem:[%s320 + $0x18] sm:$0xff]
  %v325 = vld [vmem:[%s320 + $0x20] sm:$0xff]
  %v326 = vld [vmem:[%s320 + $0x28] sm:$0xff]
  %v327 = vld [vmem:[%s320 + $0x30] sm:$0xff]
  %v328 = vld [vmem:[%s320 + $0x38] sm:$0xff]
  %v329 = vld [vmem:[%s320 + $0x40] sm:$0xff]
  %v330 = vld [vmem:[%s320 + $0x48] sm:$0xff]
  %v331 = vld [vmem:[%s320 + $0x50] sm:$0xff]
  %v332 = vld [vmem:[%s320 + $0x58] sm:$0xff]
  %v333 = vld [vmem:[%s320 + $0x60] sm:$0xff]
  %v334 = vld [vmem:[%s320 + $0x68] sm:$0xff]
  %v335 = vld [vmem:[%s320 + $0x70] sm:$0xff]
  %v336 = vld [vmem:[%s320 + $0x78] sm:$0xff]
  %v337 = vld [vmem:[%s320 + $0x80] sm:$0xff]
  %v338 = vld [vmem:[%s320 + $0x88] sm:$0xff]
  %v339 = vld [vmem:[%s320 + $0x90] sm:$0xff]
  %v340 = vld [vmem:[%s320 + $0x98] sm:$0xff]
  %v341 = vld [vmem:[%s320 + $0xa0] sm:$0xff]
  %v342 = vld [vmem:[%s320 + $0xa8] sm:$0xff]
  %v343 = vld [vmem:[%s320 + $0xb0] sm:$0xff]
  %v344 = vld [vmem:[%s320 + $0xb8] sm:$0xff]
  %v345 = vld [vmem:[%s320 + $0xc0] sm:$0xff]
  %v346 = vld [vmem:[%s320 + $0xc8] sm:$0xff]
  %v347 = vld [vmem:[%s320 + $0xd0] sm:$0xff]
  %v348 = vld [vmem:[%s320 + $0xd8] sm:$0xff]
  %v349 = vld [vmem:[%s320 + $0xe0] sm:$0xff]
  %v350 = vld [vmem:[%s320 + $0xe8] sm:$0xff]
  %v351 = vld [vmem:[%s320 + $0xf0] sm:$0xff]
  %v352 = vld [vmem:[%s320 + $0xf8] sm:$0xff]
  %v353 = vld [vmem:[%s320 + $0x100] sm:$0xff]
  %v354 = vld [vmem:[%s320 + $0x108] sm:$0xff]
  %v355 = vld [vmem:[%s320 + $0x110] sm:$0xff]
  %v356 = vld [vmem:[%s320 + $0x118] sm:$0xff]
  %v357 = vld [vmem:[%s320 + $0x120] sm:$0xff]
  %v358 = vld [vmem:[%s320 + $0x128] sm:$0xff]
  %v359 = vld [vmem:[%s320 + $0x130] sm:$0xff]
  %v360 = vld [vmem:[%s320 + $0x138] sm:$0xff]
  %v361 = vld [vmem:[%s320 + $0x140] sm:$0xff]
  %v362 = vld [vmem:[%s320 + $0x148] sm:$0xff]
  %v363 = vld [vmem:[%s320 + $0x150] sm:$0xff]
  %v364 = vld [vmem:[%s320 + $0x158] sm:$0xff]
  %v365 = vld [vmem:[%s320 + $0x160] sm:$0xff]
  %v366 = vld [vmem:[%s320 + $0x168] sm:$0xff]
  %v367 = vld [vmem:[%s320 + $0x170] sm:$0xff]
  %v368 = vld [vmem:[%s320 + $0x178] sm:$0xff]
  %v369 = vld [vmem:[%s320 + $0x180] sm:$0xff]
  %v370 = vld [vmem:[%s320 + $0x188] sm:$0xff]
  %v371 = vld [vmem:[%s320 + $0x190] sm:$0xff]
  %v372 = vld [vmem:[%s320 + $0x198] sm:$0xff]
  %v373 = vld [vmem:[%s320 + $0x1a0] sm:$0xff]
  %v374 = vld [vmem:[%s320 + $0x1a8] sm:$0xff]
  %v375 = vld [vmem:[%s320 + $0x1b0] sm:$0xff]
  %v376 = vld [vmem:[%s320 + $0x1b8] sm:$0xff]
  %v377 = vld [vmem:[%s320 + $0x1c0] sm:$0xff]
  %v378 = vld [vmem:[%s320 + $0x1c8] sm:$0xff]
  %v379 = vld [vmem:[%s320 + $0x1d0] sm:$0xff]
  %v380 = vld [vmem:[%s320 + $0x1d8] sm:$0xff]
  %v381 = vld [vmem:[%s320 + $0x1e0] sm:$0xff]
  %v382 = vld [vmem:[%s320 + $0x1e8] sm:$0xff]
  %v383 = vld [vmem:[%s320 + $0x1f0] sm:$0xff]
  %v384 = vld [vmem:[%s320 + $0x1f8] sm:$0xff]
  %v385 = vunpack.c.l.b16 %v305
  %v386 = vunpack.c.h.b16 %v305
  %v387 = vunpack.c.l.b16 %v319
  %v388 = vunpack.c.h.b16 %v319
  %v389 = vpack.c.b16 %v387, %v385
  %v390 = vpack.c.b16 %v388, %v386
  %v457 = vunpack.c.l.b16 %v321
  %v458 = vunpack.c.h.b16 %v321
  %v459 = vunpack.c.l.b16 %v322
  %v460 = vunpack.c.h.b16 %v322
  %v461 = vunpack.c.l.b16 %v323
  %v462 = vunpack.c.h.b16 %v323
  %v463 = vunpack.c.l.b16 %v324
  %v464 = vunpack.c.h.b16 %v324
  %v465 = vunpack.c.l.b16 %v325
  %v466 = vunpack.c.h.b16 %v325
  %v467 = vunpack.c.l.b16 %v326
  %v468 = vunpack.c.h.b16 %v326
  %v469 = vunpack.c.l.b16 %v327
  %v470 = vunpack.c.h.b16 %v327
  %v471 = vunpack.c.l.b16 %v328
  %v472 = vunpack.c.h.b16 %v328
  %v473 = vunpack.c.l.b16 %v329
  %v474 = vunpack.c.h.b16 %v329
  %v475 = vunpack.c.l.b16 %v330
  %v476 = vunpack.c.h.b16 %v330
  %v477 = vunpack.c.l.b16 %v331
  %v478 = vunpack.c.h.b16 %v331
  %v479 = vunpack.c.l.b16 %v332
  %v480 = vunpack.c.h.b16 %v332
  %v481 = vunpack.c.l.b16 %v333
  %v482 = vunpack.c.h.b16 %v333
  %v483 = vunpack.c.l.b16 %v334
  %v484 = vunpack.c.h.b16 %v334
  %v485 = vunpack.c.l.b16 %v335
  %v486 = vunpack.c.h.b16 %v335
  %v487 = vunpack.c.l.b16 %v336
  %v488 = vunpack.c.h.b16 %v336
  %v489 = vunpack.c.l.b16 %v337
  %v490 = vunpack.c.h.b16 %v337
  %v491 = vunpack.c.l.b16 %v338
  %v492 = vunpack.c.h.b16 %v338
  %v493 = vunpack.c.l.b16 %v339
  %v494 = vunpack.c.h.b16 %v339
  %v495 = vunpack.c.l.b16 %v340
  %v496 = vunpack.c.h.b16 %v340
  %v497 = vunpack.c.l.b16 %v341
  %v498 = vunpack.c.h.b16 %v341
  %v499 = vunpack.c.l.b16 %v342
  %v500 = vunpack.c.h.b16 %v342
  %v501 = vunpack.c.l.b16 %v343
  %v502 = vunpack.c.h.b16 %v343
  %v503 = vunpack.c.l.b16 %v344
  %v504 = vunpack.c.h.b16 %v344
  %v505 = vunpack.c.l.b16 %v345
  %v506 = vunpack.c.h.b16 %v345
  %v507 = vunpack.c.l.b16 %v346
  %v508 = vunpack.c.h.b16 %v346
  %v509 = vunpack.c.l.b16 %v347
  %v510 = vunpack.c.h.b16 %v347
  %v511 = vunpack.c.l.b16 %v348
  %v512 = vunpack.c.h.b16 %v348
  %v513 = vunpack.c.l.b16 %v349
  %v514 = vunpack.c.h.b16 %v349
  %v515 = vunpack.c.l.b16 %v350
  %v516 = vunpack.c.h.b16 %v350
  %v517 = vunpack.c.l.b16 %v351
  %v518 = vunpack.c.h.b16 %v351
  %v519 = vunpack.c.l.b16 %v352
  %v520 = vunpack.c.h.b16 %v352
  %v521 = vunpack.c.l.b16 %v353
  %v522 = vunpack.c.h.b16 %v353
  %v523 = vunpack.c.l.b16 %v354
  %v524 = vunpack.c.h.b16 %v354
  %v525 = vunpack.c.l.b16 %v355
  %v526 = vunpack.c.h.b16 %v355
  %v527 = vunpack.c.l.b16 %v356
  %v528 = vunpack.c.h.b16 %v356
  %v529 = vunpack.c.l.b16 %v357
  %v530 = vunpack.c.h.b16 %v357
  %v531 = vunpack.c.l.b16 %v358
  %v532 = vunpack.c.h.b16 %v358
  %v533 = vunpack.c.l.b16 %v359
  %v534 = vunpack.c.h.b16 %v359
  %v535 = vunpack.c.l.b16 %v360
  %v536 = vunpack.c.h.b16 %v360
  %v537 = vunpack.c.l.b16 %v361
  %v538 = vunpack.c.h.b16 %v361
  %v539 = vunpack.c.l.b16 %v362
  %v540 = vunpack.c.h.b16 %v362
  %v541 = vunpack.c.l.b16 %v363
  %v542 = vunpack.c.h.b16 %v363
  %v543 = vunpack.c.l.b16 %v364
  %v544 = vunpack.c.h.b16 %v364
  %v545 = vunpack.c.l.b16 %v365
  %v546 = vunpack.c.h.b16 %v365
  %v547 = vunpack.c.l.b16 %v366
  %v548 = vunpack.c.h.b16 %v366
  %v549 = vunpack.c.l.b16 %v367
  %v550 = vunpack.c.h.b16 %v367
  %v551 = vunpack.c.l.b16 %v368
  %v552 = vunpack.c.h.b16 %v368
  %v553 = vunpack.c.l.b16 %v369
  %v554 = vunpack.c.h.b16 %v369
  %v555 = vunpack.c.l.b16 %v370
  %v556 = vunpack.c.h.b16 %v370
  %v557 = vunpack.c.l.b16 %v371
  %v558 = vunpack.c.h.b16 %v371
  %v559 = vunpack.c.l.b16 %v372
  %v560 = vunpack.c.h.b16 %v372
  %v561 = vunpack.c.l.b16 %v373
  %v562 = vunpack.c.h.b16 %v373
  %v563 = vunpack.c.l.b16 %v374
  %v564 = vunpack.c.h.b16 %v374
  %v565 = vunpack.c.l.b16 %v375
  %v566 = vunpack.c.h.b16 %v375
  %v567 = vunpack.c.l.b16 %v376
  %v568 = vunpack.c.h.b16 %v376
  %v569 = vunpack.c.l.b16 %v377
  %v570 = vunpack.c.h.b16 %v377
  %v571 = vunpack.c.l.b16 %v378
  %v572 = vunpack.c.h.b16 %v378
  %v573 = vunpack.c.l.b16 %v379
  %v574 = vunpack.c.h.b16 %v379
  %v575 = vunpack.c.l.b16 %v380
  %v576 = vunpack.c.h.b16 %v380
  %v577 = vunpack.c.l.b16 %v381
  %v578 = vunpack.c.h.b16 %v381
  %v579 = vunpack.c.l.b16 %v382
  %v580 = vunpack.c.h.b16 %v382
  %v581 = vunpack.c.l.b16 %v383
  %v582 = vunpack.c.h.b16 %v383
  %v583 = vunpack.c.l.b16 %v384
  %v584 = vunpack.c.h.b16 %v384
  %v585 = vpack.c.b16 %v461, %v457
  %v586 = vpack.c.b16 %v462, %v458
  %v587 = vpack.c.b16 %v463, %v459
  %v588 = vpack.c.b16 %v464, %v460
  %v589 = vpack.c.b16 %v469, %v465
  %v590 = vpack.c.b16 %v470, %v466
  %v591 = vpack.c.b16 %v471, %v467
  %v592 = vpack.c.b16 %v472, %v468
  %v593 = vpack.c.b16 %v477, %v473
  %v594 = vpack.c.b16 %v478, %v474
  %v595 = vpack.c.b16 %v479, %v475
  %v596 = vpack.c.b16 %v480, %v476
  %v597 = vpack.c.b16 %v485, %v481
  %v598 = vpack.c.b16 %v486, %v482
  %v599 = vpack.c.b16 %v487, %v483
  %v600 = vpack.c.b16 %v488, %v484
  %v601 = vpack.c.b16 %v493, %v489
  %v602 = vpack.c.b16 %v494, %v490
  %v603 = vpack.c.b16 %v495, %v491
  %v604 = vpack.c.b16 %v496, %v492
  %v605 = vpack.c.b16 %v501, %v497
  %v606 = vpack.c.b16 %v502, %v498
  %v607 = vpack.c.b16 %v503, %v499
  %v608 = vpack.c.b16 %v504, %v500
  %v609 = vpack.c.b16 %v509, %v505
  %v610 = vpack.c.b16 %v510, %v506
  %v611 = vpack.c.b16 %v511, %v507
  %v612 = vpack.c.b16 %v512, %v508
  %v613 = vpack.c.b16 %v517, %v513
  %v614 = vpack.c.b16 %v518, %v514
  %v615 = vpack.c.b16 %v519, %v515
  %v616 = vpack.c.b16 %v520, %v516
  %v617 = vpack.c.b16 %v525, %v521
  %v618 = vpack.c.b16 %v526, %v522
  %v619 = vpack.c.b16 %v527, %v523
  %v620 = vpack.c.b16 %v528, %v524
  %v621 = vpack.c.b16 %v533, %v529
  %v622 = vpack.c.b16 %v534, %v530
  %v623 = vpack.c.b16 %v535, %v531
  %v624 = vpack.c.b16 %v536, %v532
  %v625 = vpack.c.b16 %v541, %v537
  %v626 = vpack.c.b16 %v542, %v538
  %v627 = vpack.c.b16 %v543, %v539
  %v628 = vpack.c.b16 %v544, %v540
  %v629 = vpack.c.b16 %v549, %v545
  %v630 = vpack.c.b16 %v550, %v546
  %v631 = vpack.c.b16 %v551, %v547
  %v632 = vpack.c.b16 %v552, %v548
  %v633 = vpack.c.b16 %v557, %v553
  %v634 = vpack.c.b16 %v558, %v554
  %v635 = vpack.c.b16 %v559, %v555
  %v636 = vpack.c.b16 %v560, %v556
  %v637 = vpack.c.b16 %v565, %v561
  %v638 = vpack.c.b16 %v566, %v562
  %v639 = vpack.c.b16 %v567, %v563
  %v640 = vpack.c.b16 %v568, %v564
  %v641 = vpack.c.b16 %v573, %v569
  %v642 = vpack.c.b16 %v574, %v570
  %v643 = vpack.c.b16 %v575, %v571
  %v644 = vpack.c.b16 %v576, %v572
  %v645 = vpack.c.b16 %v581, %v577
  %v646 = vpack.c.b16 %v582, %v578
  %v647 = vpack.c.b16 %v583, %v579
  %v648 = vpack.c.b16 %v584, %v580
  %713 = vmatpush.bf16.msra.mxu0 %v613
  %714 = vmatpush.bf16.msra.mxu0 %v609
  %715 = vmatpush.bf16.msra.mxu0 %v605
  %716 = vmatpush.bf16.msra.mxu0 %v601
  %717 = vmatpush.bf16.msra.mxu0 %v597
  %718 = vmatpush.bf16.msra.mxu0 %v593
  %719 = vmatpush.bf16.msra.mxu0 %v589
  %720 = vmatpush.bf16.msra.mxu0 %v585
  %721 = vmatmul.bf16.gmra.mxu0 %v389
  %v722 = vpop.f32.mrf.mxu0
  %v723 = vadd.f32 0.0, %v722
  %v724 = vpop.f32.mrf.mxu0
  %v725 = vadd.f32 0.0, %v724
  %726 = vdwg.mxu0
  %727 = vmatpush.bf16.msra.mxu0 %v645
  %728 = vmatpush.bf16.msra.mxu0 %v641
  %729 = vmatpush.bf16.msra.mxu0 %v637
  %730 = vmatpush.bf16.msra.mxu0 %v633
  %731 = vmatpush.bf16.msra.mxu0 %v629
  %732 = vmatpush.bf16.msra.mxu0 %v625
  %733 = vmatpush.bf16.msra.mxu0 %v621
  %734 = vmatpush.bf16.msra.mxu0 %v617
  %735 = vmatmul.bf16.gmra.mxu0 %v390
  %v736 = vpop.f32.mrf.mxu0
  %v737 = vadd.f32 %v723, %v736
  %v738 = vpop.f32.mrf.mxu0
  %v739 = vadd.f32 %v725, %v738
  %740 = vdwg.mxu0
  %741 = vmatpush.bf16.msra.mxu0 %v614
  %742 = vmatpush.bf16.msra.mxu0 %v610
  %743 = vmatpush.bf16.msra.mxu0 %v606
  %744 = vmatpush.bf16.msra.mxu0 %v602
  %745 = vmatpush.bf16.msra.mxu0 %v598
  %746 = vmatpush.bf16.msra.mxu0 %v594
  %747 = vmatpush.bf16.msra.mxu0 %v590
  %748 = vmatpush.bf16.msra.mxu0 %v586
  %749 = vmatmul.bf16.gmra.mxu0 %v389
  %v750 = vpop.f32.mrf.mxu0
  %v751 = vadd.f32 0.0, %v750
  %v752 = vpop.f32.mrf.mxu0
  %v753 = vadd.f32 0.0, %v752
  %754 = vdwg.mxu0
  %755 = vmatpush.bf16.msra.mxu0 %v646
  %756 = vmatpush.bf16.msra.mxu0 %v642
  %757 = vmatpush.bf16.msra.mxu0 %v638
  %758 = vmatpush.bf16.msra.mxu0 %v634
  %759 = vmatpush.bf16.msra.mxu0 %v630
  %760 = vmatpush.bf16.msra.mxu0 %v626
  %761 = vmatpush.bf16.msra.mxu0 %v622
  %762 = vmatpush.bf16.msra.mxu0 %v618
  %763 = vmatmul.bf16.gmra.mxu0 %v390
  %v764 = vpop.f32.mrf.mxu0
  %v765 = vadd.f32 %v751, %v764
  %v766 = vpop.f32.mrf.mxu0
  %v767 = vadd.f32 %v753, %v766
  %768 = vdwg.mxu0
  %769 = vmatpush.bf16.msra.mxu0 %v615
  %770 = vmatpush.bf16.msra.mxu0 %v611
  %771 = vmatpush.bf16.msra.mxu0 %v607
  %772 = vmatpush.bf16.msra.mxu0 %v603
  %773 = vmatpush.bf16.msra.mxu0 %v599
  %774 = vmatpush.bf16.msra.mxu0 %v595
  %775 = vmatpush.bf16.msra.mxu0 %v591
  %776 = vmatpush.bf16.msra.mxu0 %v587
  %777 = vmatmul.bf16.gmra.mxu0 %v389
  %v778 = vpop.f32.mrf.mxu0
  %v779 = vadd.f32 0.0, %v778
  %v780 = vpop.f32.mrf.mxu0
  %v781 = vadd.f32 0.0, %v780
  %782 = vdwg.mxu0
  %783 = vmatpush.bf16.msra.mxu0 %v647
  %784 = vmatpush.bf16.msra.mxu0 %v643
  %785 = vmatpush.bf16.msra.mxu0 %v639
  %786 = vmatpush.bf16.msra.mxu0 %v635
  %787 = vmatpush.bf16.msra.mxu0 %v631
  %788 = vmatpush.bf16.msra.mxu0 %v627
  %789 = vmatpush.bf16.msra.mxu0 %v623
  %790 = vmatpush.bf16.msra.mxu0 %v619
  %791 = vmatmul.bf16.gmra.mxu0 %v390
  %v792 = vpop.f32.mrf.mxu0
  %v793 = vadd.f32 %v779, %v792
  %v794 = vpop.f32.mrf.mxu0
  %v795 = vadd.f32 %v781, %v794
  %796 = vdwg.mxu0
  %797 = vmatpush.bf16.msra.mxu0 %v616
  %798 = vmatpush.bf16.msra.mxu0 %v612
  %799 = vmatpush.bf16.msra.mxu0 %v608
  %800 = vmatpush.bf16.msra.mxu0 %v604
  %801 = vmatpush.bf16.msra.mxu0 %v600
  %802 = vmatpush.bf16.msra.mxu0 %v596
  %803 = vmatpush.bf16.msra.mxu0 %v592
  %804 = vmatpush.bf16.msra.mxu0 %v588
  %805 = vmatmul.bf16.gmra.mxu0 %v389
  %v806 = vpop.f32.mrf.mxu0
  %v807 = vadd.f32 0.0, %v806
  %v808 = vpop.f32.mrf.mxu0
  %v809 = vadd.f32 0.0, %v808
  %810 = vdwg.mxu0
  %811 = vmatpush.bf16.msra.mxu0 %v648
  %812 = vmatpush.bf16.msra.mxu0 %v644
  %813 = vmatpush.bf16.msra.mxu0 %v640
  %814 = vmatpush.bf16.msra.mxu0 %v636
  %815 = vmatpush.bf16.msra.mxu0 %v632
  %816 = vmatpush.bf16.msra.mxu0 %v628
  %817 = vmatpush.bf16.msra.mxu0 %v624
  %818 = vmatpush.bf16.msra.mxu0 %v620
  %819 = vmatmul.bf16.gmra.mxu0 %v390
  %v820 = vpop.f32.mrf.mxu0
  %v821 = vadd.f32 %v807, %v820
  %v822 = vpop.f32.mrf.mxu0
  %v823 = vadd.f32 %v809, %v822
  %824 = vdwg.mxu0
  %v827 = vunpack.c.l.b16 %v221
  %v828 = vunpack.c.h.b16 %v221
  %v829 = vunpack.c.l.b16 %v222
  %v830 = vunpack.c.h.b16 %v222
  %v831 = vpack.c.b16 %v829, %v827
  %v832 = vpack.c.b16 %v830, %v828
  %v899 = vunpack.c.l.b16 %v223
  %v900 = vunpack.c.h.b16 %v223
  %v901 = vunpack.c.l.b16 %v224
  %v902 = vunpack.c.h.b16 %v224
  %v903 = vunpack.c.l.b16 %v225
  %v904 = vunpack.c.h.b16 %v225
  %v905 = vunpack.c.l.b16 %v226
  %v906 = vunpack.c.h.b16 %v226
  %v907 = vunpack.c.l.b16 %v227
  %v908 = vunpack.c.h.b16 %v227
  %v909 = vunpack.c.l.b16 %v228
  %v910 = vunpack.c.h.b16 %v228
  %v911 = vunpack.c.l.b16 %v229
  %v912 = vunpack.c.h.b16 %v229
  %v913 = vunpack.c.l.b16 %v230
  %v914 = vunpack.c.h.b16 %v230
  %v915 = vunpack.c.l.b16 %v231
  %v916 = vunpack.c.h.b16 %v231
  %v917 = vunpack.c.l.b16 %v232
  %v918 = vunpack.c.h.b16 %v232
  %v919 = vunpack.c.l.b16 %v233
  %v920 = vunpack.c.h.b16 %v233
  %v921 = vunpack.c.l.b16 %v234
  %v922 = vunpack.c.h.b16 %v234
  %v923 = vunpack.c.l.b16 %v235
  %v924 = vunpack.c.h.b16 %v235
  %v925 = vunpack.c.l.b16 %v236
  %v926 = vunpack.c.h.b16 %v236
  %v927 = vunpack.c.l.b16 %v237
  %v928 = vunpack.c.h.b16 %v237
  %v929 = vunpack.c.l.b16 %v238
  %v930 = vunpack.c.h.b16 %v238
  %v931 = vunpack.c.l.b16 %v239
  %v932 = vunpack.c.h.b16 %v239
  %v933 = vunpack.c.l.b16 %v240
  %v934 = vunpack.c.h.b16 %v240
  %v935 = vunpack.c.l.b16 %v241
  %v936 = vunpack.c.h.b16 %v241
  %v937 = vunpack.c.l.b16 %v242
  %v938 = vunpack.c.h.b16 %v242
  %v939 = vunpack.c.l.b16 %v243
  %v940 = vunpack.c.h.b16 %v243
  %v941 = vunpack.c.l.b16 %v244
  %v942 = vunpack.c.h.b16 %v244
  %v943 = vunpack.c.l.b16 %v245
  %v944 = vunpack.c.h.b16 %v245
  %v945 = vunpack.c.l.b16 %v246
  %v946 = vunpack.c.h.b16 %v246
  %v947 = vunpack.c.l.b16 %v247
  %v948 = vunpack.c.h.b16 %v247
  %v949 = vunpack.c.l.b16 %v248
  %v950 = vunpack.c.h.b16 %v248
  %v951 = vunpack.c.l.b16 %v249
  %v952 = vunpack.c.h.b16 %v249
  %v953 = vunpack.c.l.b16 %v250
  %v954 = vunpack.c.h.b16 %v250
  %v955 = vunpack.c.l.b16 %v251
  %v956 = vunpack.c.h.b16 %v251
  %v957 = vunpack.c.l.b16 %v252
  %v958 = vunpack.c.h.b16 %v252
  %v959 = vunpack.c.l.b16 %v253
  %v960 = vunpack.c.h.b16 %v253
  %v961 = vunpack.c.l.b16 %v254
  %v962 = vunpack.c.h.b16 %v254
  %v963 = vunpack.c.l.b16 %v255
  %v964 = vunpack.c.h.b16 %v255
  %v965 = vunpack.c.l.b16 %v256
  %v966 = vunpack.c.h.b16 %v256
  %v967 = vunpack.c.l.b16 %v257
  %v968 = vunpack.c.h.b16 %v257
  %v969 = vunpack.c.l.b16 %v258
  %v970 = vunpack.c.h.b16 %v258
  %v971 = vunpack.c.l.b16 %v259
  %v972 = vunpack.c.h.b16 %v259
  %v973 = vunpack.c.l.b16 %v260
  %v974 = vunpack.c.h.b16 %v260
  %v975 = vunpack.c.l.b16 %v261
  %v976 = vunpack.c.h.b16 %v261
  %v977 = vunpack.c.l.b16 %v262
  %v978 = vunpack.c.h.b16 %v262
  %v979 = vunpack.c.l.b16 %v263
  %v980 = vunpack.c.h.b16 %v263
  %v981 = vunpack.c.l.b16 %v264
  %v982 = vunpack.c.h.b16 %v264
  %v983 = vunpack.c.l.b16 %v265
  %v984 = vunpack.c.h.b16 %v265
  %v985 = vunpack.c.l.b16 %v266
  %v986 = vunpack.c.h.b16 %v266
  %v987 = vunpack.c.l.b16 %v267
  %v988 = vunpack.c.h.b16 %v267
  %v989 = vunpack.c.l.b16 %v268
  %v990 = vunpack.c.h.b16 %v268
  %v991 = vunpack.c.l.b16 %v269
  %v992 = vunpack.c.h.b16 %v269
  %v993 = vunpack.c.l.b16 %v270
  %v994 = vunpack.c.h.b16 %v270
  %v995 = vunpack.c.l.b16 %v271
  %v996 = vunpack.c.h.b16 %v271
  %v997 = vunpack.c.l.b16 %v272
  %v998 = vunpack.c.h.b16 %v272
  %v999 = vunpack.c.l.b16 %v273
  %v1000 = vunpack.c.h.b16 %v273
  %v1001 = vunpack.c.l.b16 %v274
  %v1002 = vunpack.c.h.b16 %v274
  %v1003 = vunpack.c.l.b16 %v275
  %v1004 = vunpack.c.h.b16 %v275
  %v1005 = vunpack.c.l.b16 %v276
  %v1006 = vunpack.c.h.b16 %v276
  %v1007 = vunpack.c.l.b16 %v277
  %v1008 = vunpack.c.h.b16 %v277
  %v1009 = vunpack.c.l.b16 %v278
  %v1010 = vunpack.c.h.b16 %v278
  %v1011 = vunpack.c.l.b16 %v279
  %v1012 = vunpack.c.h.b16 %v279
  %v1013 = vunpack.c.l.b16 %v280
  %v1014 = vunpack.c.h.b16 %v280
  %v1015 = vunpack.c.l.b16 %v281
  %v1016 = vunpack.c.h.b16 %v281
  %v1017 = vunpack.c.l.b16 %v282
  %v1018 = vunpack.c.h.b16 %v282
  %v1019 = vunpack.c.l.b16 %v283
  %v1020 = vunpack.c.h.b16 %v283
  %v1021 = vunpack.c.l.b16 %v284
  %v1022 = vunpack.c.h.b16 %v284
  %v1023 = vunpack.c.l.b16 %v285
  %v1024 = vunpack.c.h.b16 %v285
  %v1025 = vunpack.c.l.b16 %v286
  %v1026 = vunpack.c.h.b16 %v286
  %v1027 = vpack.c.b16 %v903, %v899
  %v1028 = vpack.c.b16 %v904, %v900
  %v1029 = vpack.c.b16 %v905, %v901
  %v1030 = vpack.c.b16 %v906, %v902
  %v1031 = vpack.c.b16 %v911, %v907
  %v1032 = vpack.c.b16 %v912, %v908
  %v1033 = vpack.c.b16 %v913, %v909
  %v1034 = vpack.c.b16 %v914, %v910
  %v1035 = vpack.c.b16 %v919, %v915
  %v1036 = vpack.c.b16 %v920, %v916
  %v1037 = vpack.c.b16 %v921, %v917
  %v1038 = vpack.c.b16 %v922, %v918
  %v1039 = vpack.c.b16 %v927, %v923
  %v1040 = vpack.c.b16 %v928, %v924
  %v1041 = vpack.c.b16 %v929, %v925
  %v1042 = vpack.c.b16 %v930, %v926
  %v1043 = vpack.c.b16 %v935, %v931
  %v1044 = vpack.c.b16 %v936, %v932
  %v1045 = vpack.c.b16 %v937, %v933
  %v1046 = vpack.c.b16 %v938, %v934
  %v1047 = vpack.c.b16 %v943, %v939
  %v1048 = vpack.c.b16 %v944, %v940
  %v1049 = vpack.c.b16 %v945, %v941
  %v1050 = vpack.c.b16 %v946, %v942
  %v1051 = vpack.c.b16 %v951, %v947
  %v1052 = vpack.c.b16 %v952, %v948
  %v1053 = vpack.c.b16 %v953, %v949
  %v1054 = vpack.c.b16 %v954, %v950
  %v1055 = vpack.c.b16 %v959, %v955
  %v1056 = vpack.c.b16 %v960, %v956
  %v1057 = vpack.c.b16 %v961, %v957
  %v1058 = vpack.c.b16 %v962, %v958
  %v1059 = vpack.c.b16 %v967, %v963
  %v1060 = vpack.c.b16 %v968, %v964
  %v1061 = vpack.c.b16 %v969, %v965
  %v1062 = vpack.c.b16 %v970, %v966
  %v1063 = vpack.c.b16 %v975, %v971
  %v1064 = vpack.c.b16 %v976, %v972
  %v1065 = vpack.c.b16 %v977, %v973
  %v1066 = vpack.c.b16 %v978, %v974
  %v1067 = vpack.c.b16 %v983, %v979
  %v1068 = vpack.c.b16 %v984, %v980
  %v1069 = vpack.c.b16 %v985, %v981
  %v1070 = vpack.c.b16 %v986, %v982
  %v1071 = vpack.c.b16 %v991, %v987
  %v1072 = vpack.c.b16 %v992, %v988
  %v1073 = vpack.c.b16 %v993, %v989
  %v1074 = vpack.c.b16 %v994, %v990
  %v1075 = vpack.c.b16 %v999, %v995
  %v1076 = vpack.c.b16 %v1000, %v996
  %v1077 = vpack.c.b16 %v1001, %v997
  %v1078 = vpack.c.b16 %v1002, %v998
  %v1079 = vpack.c.b16 %v1007, %v1003
  %v1080 = vpack.c.b16 %v1008, %v1004
  %v1081 = vpack.c.b16 %v1009, %v1005
  %v1082 = vpack.c.b16 %v1010, %v1006
  %v1083 = vpack.c.b16 %v1015, %v1011
  %v1084 = vpack.c.b16 %v1016, %v1012
  %v1085 = vpack.c.b16 %v1017, %v1013
  %v1086 = vpack.c.b16 %v1018, %v1014
  %v1087 = vpack.c.b16 %v1023, %v1019
  %v1088 = vpack.c.b16 %v1024, %v1020
  %v1089 = vpack.c.b16 %v1025, %v1021
  %v1090 = vpack.c.b16 %v1026, %v1022
  %1155 = vmatpush.bf16.msra.mxu0 %v1055
  %1156 = vmatpush.bf16.msra.mxu0 %v1051
  %1157 = vmatpush.bf16.msra.mxu0 %v1047
  %1158 = vmatpush.bf16.msra.mxu0 %v1043
  %1159 = vmatpush.bf16.msra.mxu0 %v1039
  %1160 = vmatpush.bf16.msra.mxu0 %v1035
  %1161 = vmatpush.bf16.msra.mxu0 %v1031
  %1162 = vmatpush.bf16.msra.mxu0 %v1027
  %1163 = vmatmul.bf16.gmra.mxu0 %v831
  %v1164 = vpop.f32.mrf.mxu0
  %v1165 = vadd.f32 %v737, %v1164
  %v1166 = vpop.f32.mrf.mxu0
  %v1167 = vadd.f32 %v739, %v1166
  %1168 = vdwg.mxu0
  %1169 = vmatpush.bf16.msra.mxu0 %v1087
  %1170 = vmatpush.bf16.msra.mxu0 %v1083
  %1171 = vmatpush.bf16.msra.mxu0 %v1079
  %1172 = vmatpush.bf16.msra.mxu0 %v1075
  %1173 = vmatpush.bf16.msra.mxu0 %v1071
  %1174 = vmatpush.bf16.msra.mxu0 %v1067
  %1175 = vmatpush.bf16.msra.mxu0 %v1063
  %1176 = vmatpush.bf16.msra.mxu0 %v1059
  %1177 = vmatmul.bf16.gmra.mxu0 %v832
  %v1178 = vpop.f32.mrf.mxu0
  %v1179 = vadd.f32 %v1165, %v1178
  %v1180 = vpop.f32.mrf.mxu0
  %v1181 = vadd.f32 %v1167, %v1180
  %1182 = vdwg.mxu0
  %1183 = vmatpush.bf16.msra.mxu0 %v1056
  %1184 = vmatpush.bf16.msra.mxu0 %v1052
  %1185 = vmatpush.bf16.msra.mxu0 %v1048
  %1186 = vmatpush.bf16.msra.mxu0 %v1044
  %1187 = vmatpush.bf16.msra.mxu0 %v1040
  %1188 = vmatpush.bf16.msra.mxu0 %v1036
  %1189 = vmatpush.bf16.msra.mxu0 %v1032
  %1190 = vmatpush.bf16.msra.mxu0 %v1028
  %1191 = vmatmul.bf16.gmra.mxu0 %v831
  %v1192 = vpop.f32.mrf.mxu0
  %v1193 = vadd.f32 %v765, %v1192
  %v1194 = vpop.f32.mrf.mxu0
  %v1195 = vadd.f32 %v767, %v1194
  %1196 = vdwg.mxu0
  %1197 = vmatpush.bf16.msra.mxu0 %v1088
  %1198 = vmatpush.bf16.msra.mxu0 %v1084
  %1199 = vmatpush.bf16.msra.mxu0 %v1080
  %1200 = vmatpush.bf16.msra.mxu0 %v1076
  %1201 = vmatpush.bf16.msra.mxu0 %v1072
  %1202 = vmatpush.bf16.msra.mxu0 %v1068
  %1203 = vmatpush.bf16.msra.mxu0 %v1064
  %1204 = vmatpush.bf16.msra.mxu0 %v1060
  %1205 = vmatmul.bf16.gmra.mxu0 %v832
  %v1206 = vpop.f32.mrf.mxu0
  %v1207 = vadd.f32 %v1193, %v1206
  %v1208 = vpop.f32.mrf.mxu0
  %v1209 = vadd.f32 %v1195, %v1208
  %1210 = vdwg.mxu0
  %1211 = vmatpush.bf16.msra.mxu0 %v1057
  %1212 = vmatpush.bf16.msra.mxu0 %v1053
  %1213 = vmatpush.bf16.msra.mxu0 %v1049
  %1214 = vmatpush.bf16.msra.mxu0 %v1045
  %1215 = vmatpush.bf16.msra.mxu0 %v1041
  %1216 = vmatpush.bf16.msra.mxu0 %v1037
  %1217 = vmatpush.bf16.msra.mxu0 %v1033
  %1218 = vmatpush.bf16.msra.mxu0 %v1029
  %1219 = vmatmul.bf16.gmra.mxu0 %v831
  %v1220 = vpop.f32.mrf.mxu0
  %v1221 = vadd.f32 %v793, %v1220
  %v1222 = vpop.f32.mrf.mxu0
  %v1223 = vadd.f32 %v795, %v1222
  %1224 = vdwg.mxu0
  %1225 = vmatpush.bf16.msra.mxu0 %v1089
  %1226 = vmatpush.bf16.msra.mxu0 %v1085
  %1227 = vmatpush.bf16.msra.mxu0 %v1081
  %1228 = vmatpush.bf16.msra.mxu0 %v1077
  %1229 = vmatpush.bf16.msra.mxu0 %v1073
  %1230 = vmatpush.bf16.msra.mxu0 %v1069
  %1231 = vmatpush.bf16.msra.mxu0 %v1065
  %1232 = vmatpush.bf16.msra.mxu0 %v1061
  %1233 = vmatmul.bf16.gmra.mxu0 %v832
  %v1234 = vpop.f32.mrf.mxu0
  %v1235 = vadd.f32 %v1221, %v1234
  %v1236 = vpop.f32.mrf.mxu0
  %v1237 = vadd.f32 %v1223, %v1236
  %1238 = vdwg.mxu0
  %1239 = vmatpush.bf16.msra.mxu0 %v1058
  %1240 = vmatpush.bf16.msra.mxu0 %v1054
  %1241 = vmatpush.bf16.msra.mxu0 %v1050
  %1242 = vmatpush.bf16.msra.mxu0 %v1046
  %1243 = vmatpush.bf16.msra.mxu0 %v1042
  %1244 = vmatpush.bf16.msra.mxu0 %v1038
  %1245 = vmatpush.bf16.msra.mxu0 %v1034
  %1246 = vmatpush.bf16.msra.mxu0 %v1030
  %1247 = vmatmul.bf16.gmra.mxu0 %v831
  %v1248 = vpop.f32.mrf.mxu0
  %v1249 = vadd.f32 %v821, %v1248
  %v1250 = vpop.f32.mrf.mxu0
  %v1251 = vadd.f32 %v823, %v1250
  %1252 = vdwg.mxu0
  %1253 = vmatpush.bf16.msra.mxu0 %v1090
  %1254 = vmatpush.bf16.msra.mxu0 %v1086
  %1255 = vmatpush.bf16.msra.mxu0 %v1082
  %1256 = vmatpush.bf16.msra.mxu0 %v1078
  %1257 = vmatpush.bf16.msra.mxu0 %v1074
  %1258 = vmatpush.bf16.msra.mxu0 %v1070
  %1259 = vmatpush.bf16.msra.mxu0 %v1066
  %1260 = vmatpush.bf16.msra.mxu0 %v1062
  %1261 = vmatmul.bf16.gmra.mxu0 %v832
  %v1262 = vpop.f32.mrf.mxu0
  %v1263 = vadd.f32 %v1249, %v1262
  %v1264 = vpop.f32.mrf.mxu0
  %v1265 = vadd.f32 %v1251, %v1264
  %1266 = vdwg.mxu0
  %v1267 = vld [vmem:[#allocation2] sm:$0xee]
  %v1268 = vld [vmem:[#allocation2 + $0x10] sm:$0xee]
  %vm1273 = vcmask 1042432
  %vm1274 = vcmask 1046532
  %vm1275 = vmor %vm1273, %vm1274
  %v1276 = vrot.slane %v1267, 5
  %v1277 = vrot.slane %v1276, 4
  %v1278 = vrot.slane %v287, 5
  %v1279 = vsel %vm1275, %v1277, %v1278
  %v1280 = vrot.slane %v1268, 5
  %v1281 = vrot.slane %v1280, 4
  %v1282 = vrot.slane %v288, 5
  %v1283 = vsel %vm1275, %v1281, %v1282
  %s1284 = scalar_lea.vmem %s1, 1024
  %v1285 = vld [vmem:[%s1284] sm:$0xff]
  %v1286 = vld [vmem:[%s1284 + $0x8] sm:$0xff]
  %v1287 = vld [vmem:[%s1284 + $0x10] sm:$0xff]
  %v1288 = vld [vmem:[%s1284 + $0x18] sm:$0xff]
  %v1289 = vld [vmem:[%s1284 + $0x20] sm:$0xff]
  %v1290 = vld [vmem:[%s1284 + $0x28] sm:$0xff]
  %v1291 = vld [vmem:[%s1284 + $0x30] sm:$0xff]
  %v1292 = vld [vmem:[%s1284 + $0x38] sm:$0xff]
  %v1293 = vld [vmem:[%s1284 + $0x40] sm:$0xff]
  %v1294 = vld [vmem:[%s1284 + $0x48] sm:$0xff]
  %v1295 = vld [vmem:[%s1284 + $0x50] sm:$0xff]
  %v1296 = vld [vmem:[%s1284 + $0x58] sm:$0xff]
  %v1297 = vld [vmem:[%s1284 + $0x60] sm:$0xff]
  %v1298 = vld [vmem:[%s1284 + $0x68] sm:$0xff]
  %v1299 = vld [vmem:[%s1284 + $0x70] sm:$0xff]
  %v1300 = vld [vmem:[%s1284 + $0x78] sm:$0xff]
  %v1301 = vld [vmem:[%s1284 + $0x80] sm:$0xff]
  %v1302 = vld [vmem:[%s1284 + $0x88] sm:$0xff]
  %v1303 = vld [vmem:[%s1284 + $0x90] sm:$0xff]
  %v1304 = vld [vmem:[%s1284 + $0x98] sm:$0xff]
  %v1305 = vld [vmem:[%s1284 + $0xa0] sm:$0xff]
  %v1306 = vld [vmem:[%s1284 + $0xa8] sm:$0xff]
  %v1307 = vld [vmem:[%s1284 + $0xb0] sm:$0xff]
  %v1308 = vld [vmem:[%s1284 + $0xb8] sm:$0xff]
  %v1309 = vld [vmem:[%s1284 + $0xc0] sm:$0xff]
  %v1310 = vld [vmem:[%s1284 + $0xc8] sm:$0xff]
  %v1311 = vld [vmem:[%s1284 + $0xd0] sm:$0xff]
  %v1312 = vld [vmem:[%s1284 + $0xd8] sm:$0xff]
  %v1313 = vld [vmem:[%s1284 + $0xe0] sm:$0xff]
  %v1314 = vld [vmem:[%s1284 + $0xe8] sm:$0xff]
  %v1315 = vld [vmem:[%s1284 + $0xf0] sm:$0xff]
  %v1316 = vld [vmem:[%s1284 + $0xf8] sm:$0xff]
  %v1317 = vld [vmem:[%s1284 + $0x100] sm:$0xff]
  %v1318 = vld [vmem:[%s1284 + $0x108] sm:$0xff]
  %v1319 = vld [vmem:[%s1284 + $0x110] sm:$0xff]
  %v1320 = vld [vmem:[%s1284 + $0x118] sm:$0xff]
  %v1321 = vld [vmem:[%s1284 + $0x120] sm:$0xff]
  %v1322 = vld [vmem:[%s1284 + $0x128] sm:$0xff]
  %v1323 = vld [vmem:[%s1284 + $0x130] sm:$0xff]
  %v1324 = vld [vmem:[%s1284 + $0x138] sm:$0xff]
  %v1325 = vld [vmem:[%s1284 + $0x140] sm:$0xff]
  %v1326 = vld [vmem:[%s1284 + $0x148] sm:$0xff]
  %v1327 = vld [vmem:[%s1284 + $0x150] sm:$0xff]
  %v1328 = vld [vmem:[%s1284 + $0x158] sm:$0xff]
  %v1329 = vld [vmem:[%s1284 + $0x160] sm:$0xff]
  %v1330 = vld [vmem:[%s1284 + $0x168] sm:$0xff]
  %v1331 = vld [vmem:[%s1284 + $0x170] sm:$0xff]
  %v1332 = vld [vmem:[%s1284 + $0x178] sm:$0xff]
  %v1333 = vld [vmem:[%s1284 + $0x180] sm:$0xff]
  %v1334 = vld [vmem:[%s1284 + $0x188] sm:$0xff]
  %v1335 = vld [vmem:[%s1284 + $0x190] sm:$0xff]
  %v1336 = vld [vmem:[%s1284 + $0x198] sm:$0xff]
  %v1337 = vld [vmem:[%s1284 + $0x1a0] sm:$0xff]
  %v1338 = vld [vmem:[%s1284 + $0x1a8] sm:$0xff]
  %v1339 = vld [vmem:[%s1284 + $0x1b0] sm:$0xff]
  %v1340 = vld [vmem:[%s1284 + $0x1b8] sm:$0xff]
  %v1341 = vld [vmem:[%s1284 + $0x1c0] sm:$0xff]
  %v1342 = vld [vmem:[%s1284 + $0x1c8] sm:$0xff]
  %v1343 = vld [vmem:[%s1284 + $0x1d0] sm:$0xff]
  %v1344 = vld [vmem:[%s1284 + $0x1d8] sm:$0xff]
  %v1345 = vld [vmem:[%s1284 + $0x1e0] sm:$0xff]
  %v1346 = vld [vmem:[%s1284 + $0x1e8] sm:$0xff]
  %v1347 = vld [vmem:[%s1284 + $0x1f0] sm:$0xff]
  %v1348 = vld [vmem:[%s1284 + $0x1f8] sm:$0xff]
  %v1349 = vunpack.c.l.b16 %v1279
  %v1350 = vunpack.c.h.b16 %v1279
  %v1351 = vunpack.c.l.b16 %v1283
  %v1352 = vunpack.c.h.b16 %v1283
  %v1353 = vpack.c.b16 %v1351, %v1349
  %v1354 = vpack.c.b16 %v1352, %v1350
  %v1421 = vunpack.c.l.b16 %v1285
  %v1422 = vunpack.c.h.b16 %v1285
  %v1423 = vunpack.c.l.b16 %v1286
  %v1424 = vunpack.c.h.b16 %v1286
  %v1425 = vunpack.c.l.b16 %v1287
  %v1426 = vunpack.c.h.b16 %v1287
  %v1427 = vunpack.c.l.b16 %v1288
  %v1428 = vunpack.c.h.b16 %v1288
  %v1429 = vunpack.c.l.b16 %v1289
  %v1430 = vunpack.c.h.b16 %v1289
  %v1431 = vunpack.c.l.b16 %v1290
  %v1432 = vunpack.c.h.b16 %v1290
  %v1433 = vunpack.c.l.b16 %v1291
  %v1434 = vunpack.c.h.b16 %v1291
  %v1435 = vunpack.c.l.b16 %v1292
  %v1436 = vunpack.c.h.b16 %v1292
  %v1437 = vunpack.c.l.b16 %v1293
  %v1438 = vunpack.c.h.b16 %v1293
  %v1439 = vunpack.c.l.b16 %v1294
  %v1440 = vunpack.c.h.b16 %v1294
  %v1441 = vunpack.c.l.b16 %v1295
  %v1442 = vunpack.c.h.b16 %v1295
  %v1443 = vunpack.c.l.b16 %v1296
  %v1444 = vunpack.c.h.b16 %v1296
  %v1445 = vunpack.c.l.b16 %v1297
  %v1446 = vunpack.c.h.b16 %v1297
  %v1447 = vunpack.c.l.b16 %v1298
  %v1448 = vunpack.c.h.b16 %v1298
  %v1449 = vunpack.c.l.b16 %v1299
  %v1450 = vunpack.c.h.b16 %v1299
  %v1451 = vunpack.c.l.b16 %v1300
  %v1452 = vunpack.c.h.b16 %v1300
  %v1453 = vunpack.c.l.b16 %v1301
  %v1454 = vunpack.c.h.b16 %v1301
  %v1455 = vunpack.c.l.b16 %v1302
  %v1456 = vunpack.c.h.b16 %v1302
  %v1457 = vunpack.c.l.b16 %v1303
  %v1458 = vunpack.c.h.b16 %v1303
  %v1459 = vunpack.c.l.b16 %v1304
  %v1460 = vunpack.c.h.b16 %v1304
  %v1461 = vunpack.c.l.b16 %v1305
  %v1462 = vunpack.c.h.b16 %v1305
  %v1463 = vunpack.c.l.b16 %v1306
  %v1464 = vunpack.c.h.b16 %v1306
  %v1465 = vunpack.c.l.b16 %v1307
  %v1466 = vunpack.c.h.b16 %v1307
  %v1467 = vunpack.c.l.b16 %v1308
  %v1468 = vunpack.c.h.b16 %v1308
  %v1469 = vunpack.c.l.b16 %v1309
  %v1470 = vunpack.c.h.b16 %v1309
  %v1471 = vunpack.c.l.b16 %v1310
  %v1472 = vunpack.c.h.b16 %v1310
  %v1473 = vunpack.c.l.b16 %v1311
  %v1474 = vunpack.c.h.b16 %v1311
  %v1475 = vunpack.c.l.b16 %v1312
  %v1476 = vunpack.c.h.b16 %v1312
  %v1477 = vunpack.c.l.b16 %v1313
  %v1478 = vunpack.c.h.b16 %v1313
  %v1479 = vunpack.c.l.b16 %v1314
  %v1480 = vunpack.c.h.b16 %v1314
  %v1481 = vunpack.c.l.b16 %v1315
  %v1482 = vunpack.c.h.b16 %v1315
  %v1483 = vunpack.c.l.b16 %v1316
  %v1484 = vunpack.c.h.b16 %v1316
  %v1485 = vunpack.c.l.b16 %v1317
  %v1486 = vunpack.c.h.b16 %v1317
  %v1487 = vunpack.c.l.b16 %v1318
  %v1488 = vunpack.c.h.b16 %v1318
  %v1489 = vunpack.c.l.b16 %v1319
  %v1490 = vunpack.c.h.b16 %v1319
  %v1491 = vunpack.c.l.b16 %v1320
  %v1492 = vunpack.c.h.b16 %v1320
  %v1493 = vunpack.c.l.b16 %v1321
  %v1494 = vunpack.c.h.b16 %v1321
  %v1495 = vunpack.c.l.b16 %v1322
  %v1496 = vunpack.c.h.b16 %v1322
  %v1497 = vunpack.c.l.b16 %v1323
  %v1498 = vunpack.c.h.b16 %v1323
  %v1499 = vunpack.c.l.b16 %v1324
  %v1500 = vunpack.c.h.b16 %v1324
  %v1501 = vunpack.c.l.b16 %v1325
  %v1502 = vunpack.c.h.b16 %v1325
  %v1503 = vunpack.c.l.b16 %v1326
  %v1504 = vunpack.c.h.b16 %v1326
  %v1505 = vunpack.c.l.b16 %v1327
  %v1506 = vunpack.c.h.b16 %v1327
  %v1507 = vunpack.c.l.b16 %v1328
  %v1508 = vunpack.c.h.b16 %v1328
  %v1509 = vunpack.c.l.b16 %v1329
  %v1510 = vunpack.c.h.b16 %v1329
  %v1511 = vunpack.c.l.b16 %v1330
  %v1512 = vunpack.c.h.b16 %v1330
  %v1513 = vunpack.c.l.b16 %v1331
  %v1514 = vunpack.c.h.b16 %v1331
  %v1515 = vunpack.c.l.b16 %v1332
  %v1516 = vunpack.c.h.b16 %v1332
  %v1517 = vunpack.c.l.b16 %v1333
  %v1518 = vunpack.c.h.b16 %v1333
  %v1519 = vunpack.c.l.b16 %v1334
  %v1520 = vunpack.c.h.b16 %v1334
  %v1521 = vunpack.c.l.b16 %v1335
  %v1522 = vunpack.c.h.b16 %v1335
  %v1523 = vunpack.c.l.b16 %v1336
  %v1524 = vunpack.c.h.b16 %v1336
  %v1525 = vunpack.c.l.b16 %v1337
  %v1526 = vunpack.c.h.b16 %v1337
  %v1527 = vunpack.c.l.b16 %v1338
  %v1528 = vunpack.c.h.b16 %v1338
  %v1529 = vunpack.c.l.b16 %v1339
  %v1530 = vunpack.c.h.b16 %v1339
  %v1531 = vunpack.c.l.b16 %v1340
  %v1532 = vunpack.c.h.b16 %v1340
  %v1533 = vunpack.c.l.b16 %v1341
  %v1534 = vunpack.c.h.b16 %v1341
  %v1535 = vunpack.c.l.b16 %v1342
  %v1536 = vunpack.c.h.b16 %v1342
  %v1537 = vunpack.c.l.b16 %v1343
  %v1538 = vunpack.c.h.b16 %v1343
  %v1539 = vunpack.c.l.b16 %v1344
  %v1540 = vunpack.c.h.b16 %v1344
  %v1541 = vunpack.c.l.b16 %v1345
  %v1542 = vunpack.c.h.b16 %v1345
  %v1543 = vunpack.c.l.b16 %v1346
  %v1544 = vunpack.c.h.b16 %v1346
  %v1545 = vunpack.c.l.b16 %v1347
  %v1546 = vunpack.c.h.b16 %v1347
  %v1547 = vunpack.c.l.b16 %v1348
  %v1548 = vunpack.c.h.b16 %v1348
  %v1549 = vpack.c.b16 %v1425, %v1421
  %v1550 = vpack.c.b16 %v1426, %v1422
  %v1551 = vpack.c.b16 %v1427, %v1423
  %v1552 = vpack.c.b16 %v1428, %v1424
  %v1553 = vpack.c.b16 %v1433, %v1429
  %v1554 = vpack.c.b16 %v1434, %v1430
  %v1555 = vpack.c.b16 %v1435, %v1431
  %v1556 = vpack.c.b16 %v1436, %v1432
  %v1557 = vpack.c.b16 %v1441, %v1437
  %v1558 = vpack.c.b16 %v1442, %v1438
  %v1559 = vpack.c.b16 %v1443, %v1439
  %v1560 = vpack.c.b16 %v1444, %v1440
  %v1561 = vpack.c.b16 %v1449, %v1445
  %v1562 = vpack.c.b16 %v1450, %v1446
  %v1563 = vpack.c.b16 %v1451, %v1447
  %v1564 = vpack.c.b16 %v1452, %v1448
  %v1565 = vpack.c.b16 %v1457, %v1453
  %v1566 = vpack.c.b16 %v1458, %v1454
  %v1567 = vpack.c.b16 %v1459, %v1455
  %v1568 = vpack.c.b16 %v1460, %v1456
  %v1569 = vpack.c.b16 %v1465, %v1461
  %v1570 = vpack.c.b16 %v1466, %v1462
  %v1571 = vpack.c.b16 %v1467, %v1463
  %v1572 = vpack.c.b16 %v1468, %v1464
  %v1573 = vpack.c.b16 %v1473, %v1469
  %v1574 = vpack.c.b16 %v1474, %v1470
  %v1575 = vpack.c.b16 %v1475, %v1471
  %v1576 = vpack.c.b16 %v1476, %v1472
  %v1577 = vpack.c.b16 %v1481, %v1477
  %v1578 = vpack.c.b16 %v1482, %v1478
  %v1579 = vpack.c.b16 %v1483, %v1479
  %v1580 = vpack.c.b16 %v1484, %v1480
  %v1581 = vpack.c.b16 %v1489, %v1485
  %v1582 = vpack.c.b16 %v1490, %v1486
  %v1583 = vpack.c.b16 %v1491, %v1487
  %v1584 = vpack.c.b16 %v1492, %v1488
  %v1585 = vpack.c.b16 %v1497, %v1493
  %v1586 = vpack.c.b16 %v1498, %v1494
  %v1587 = vpack.c.b16 %v1499, %v1495
  %v1588 = vpack.c.b16 %v1500, %v1496
  %v1589 = vpack.c.b16 %v1505, %v1501
  %v1590 = vpack.c.b16 %v1506, %v1502
  %v1591 = vpack.c.b16 %v1507, %v1503
  %v1592 = vpack.c.b16 %v1508, %v1504
  %v1593 = vpack.c.b16 %v1513, %v1509
  %v1594 = vpack.c.b16 %v1514, %v1510
  %v1595 = vpack.c.b16 %v1515, %v1511
  %v1596 = vpack.c.b16 %v1516, %v1512
  %v1597 = vpack.c.b16 %v1521, %v1517
  %v1598 = vpack.c.b16 %v1522, %v1518
  %v1599 = vpack.c.b16 %v1523, %v1519
  %v1600 = vpack.c.b16 %v1524, %v1520
  %v1601 = vpack.c.b16 %v1529, %v1525
  %v1602 = vpack.c.b16 %v1530, %v1526
  %v1603 = vpack.c.b16 %v1531, %v1527
  %v1604 = vpack.c.b16 %v1532, %v1528
  %v1605 = vpack.c.b16 %v1537, %v1533
  %v1606 = vpack.c.b16 %v1538, %v1534
  %v1607 = vpack.c.b16 %v1539, %v1535
  %v1608 = vpack.c.b16 %v1540, %v1536
  %v1609 = vpack.c.b16 %v1545, %v1541
  %v1610 = vpack.c.b16 %v1546, %v1542
  %v1611 = vpack.c.b16 %v1547, %v1543
  %v1612 = vpack.c.b16 %v1548, %v1544
  %1677 = vmatpush.bf16.msra.mxu0 %v1577
  %1678 = vmatpush.bf16.msra.mxu0 %v1573
  %1679 = vmatpush.bf16.msra.mxu0 %v1569
  %1680 = vmatpush.bf16.msra.mxu0 %v1565
  %1681 = vmatpush.bf16.msra.mxu0 %v1561
  %1682 = vmatpush.bf16.msra.mxu0 %v1557
  %1683 = vmatpush.bf16.msra.mxu0 %v1553
  %1684 = vmatpush.bf16.msra.mxu0 %v1549
  %1685 = vmatmul.bf16.gmra.mxu0 %v1353
  %v1686 = vpop.f32.mrf.mxu0
  %v1687 = vadd.f32 0.0, %v1686
  %v1688 = vpop.f32.mrf.mxu0
  %v1689 = vadd.f32 0.0, %v1688
  %1690 = vdwg.mxu0
  %1691 = vmatpush.bf16.msra.mxu0 %v1609
  %1692 = vmatpush.bf16.msra.mxu0 %v1605
  %1693 = vmatpush.bf16.msra.mxu0 %v1601
  %1694 = vmatpush.bf16.msra.mxu0 %v1597
  %1695 = vmatpush.bf16.msra.mxu0 %v1593
  %1696 = vmatpush.bf16.msra.mxu0 %v1589
  %1697 = vmatpush.bf16.msra.mxu0 %v1585
  %1698 = vmatpush.bf16.msra.mxu0 %v1581
  %1699 = vmatmul.bf16.gmra.mxu0 %v1354
  %v1700 = vpop.f32.mrf.mxu0
  %v1701 = vadd.f32 %v1687, %v1700
  %v1702 = vpop.f32.mrf.mxu0
  %v1703 = vadd.f32 %v1689, %v1702
  %1704 = vdwg.mxu0
  %1705 = vmatpush.bf16.msra.mxu0 %v1578
  %1706 = vmatpush.bf16.msra.mxu0 %v1574
  %1707 = vmatpush.bf16.msra.mxu0 %v1570
  %1708 = vmatpush.bf16.msra.mxu0 %v1566
  %1709 = vmatpush.bf16.msra.mxu0 %v1562
  %1710 = vmatpush.bf16.msra.mxu0 %v1558
  %1711 = vmatpush.bf16.msra.mxu0 %v1554
  %1712 = vmatpush.bf16.msra.mxu0 %v1550
  %1713 = vmatmul.bf16.gmra.mxu0 %v1353
  %v1714 = vpop.f32.mrf.mxu0
  %v1715 = vadd.f32 0.0, %v1714
  %v1716 = vpop.f32.mrf.mxu0
  %v1717 = vadd.f32 0.0, %v1716
  %1718 = vdwg.mxu0
  %1719 = vmatpush.bf16.msra.mxu0 %v1610
  %1720 = vmatpush.bf16.msra.mxu0 %v1606
  %1721 = vmatpush.bf16.msra.mxu0 %v1602
  %1722 = vmatpush.bf16.msra.mxu0 %v1598
  %1723 = vmatpush.bf16.msra.mxu0 %v1594
  %1724 = vmatpush.bf16.msra.mxu0 %v1590
  %1725 = vmatpush.bf16.msra.mxu0 %v1586
  %1726 = vmatpush.bf16.msra.mxu0 %v1582
  %1727 = vmatmul.bf16.gmra.mxu0 %v1354
  %v1728 = vpop.f32.mrf.mxu0
  %v1729 = vadd.f32 %v1715, %v1728
  %v1730 = vpop.f32.mrf.mxu0
  %v1731 = vadd.f32 %v1717, %v1730
  %1732 = vdwg.mxu0
  %1733 = vmatpush.bf16.msra.mxu0 %v1579
  %1734 = vmatpush.bf16.msra.mxu0 %v1575
  %1735 = vmatpush.bf16.msra.mxu0 %v1571
  %1736 = vmatpush.bf16.msra.mxu0 %v1567
  %1737 = vmatpush.bf16.msra.mxu0 %v1563
  %1738 = vmatpush.bf16.msra.mxu0 %v1559
  %1739 = vmatpush.bf16.msra.mxu0 %v1555
  %1740 = vmatpush.bf16.msra.mxu0 %v1551
  %1741 = vmatmul.bf16.gmra.mxu0 %v1353
  %v1742 = vpop.f32.mrf.mxu0
  %v1743 = vadd.f32 0.0, %v1742
  %v1744 = vpop.f32.mrf.mxu0
  %v1745 = vadd.f32 0.0, %v1744
  %1746 = vdwg.mxu0
  %1747 = vmatpush.bf16.msra.mxu0 %v1611
  %1748 = vmatpush.bf16.msra.mxu0 %v1607
  %1749 = vmatpush.bf16.msra.mxu0 %v1603
  %1750 = vmatpush.bf16.msra.mxu0 %v1599
  %1751 = vmatpush.bf16.msra.mxu0 %v1595
  %1752 = vmatpush.bf16.msra.mxu0 %v1591
  %1753 = vmatpush.bf16.msra.mxu0 %v1587
  %1754 = vmatpush.bf16.msra.mxu0 %v1583
  %1755 = vmatmul.bf16.gmra.mxu0 %v1354
  %v1756 = vpop.f32.mrf.mxu0
  %v1757 = vadd.f32 %v1743, %v1756
  %v1758 = vpop.f32.mrf.mxu0
  %v1759 = vadd.f32 %v1745, %v1758
  %1760 = vdwg.mxu0
  %1761 = vmatpush.bf16.msra.mxu0 %v1580
  %1762 = vmatpush.bf16.msra.mxu0 %v1576
  %1763 = vmatpush.bf16.msra.mxu0 %v1572
  %1764 = vmatpush.bf16.msra.mxu0 %v1568
  %1765 = vmatpush.bf16.msra.mxu0 %v1564
  %1766 = vmatpush.bf16.msra.mxu0 %v1560
  %1767 = vmatpush.bf16.msra.mxu0 %v1556
  %1768 = vmatpush.bf16.msra.mxu0 %v1552
  %1769 = vmatmul.bf16.gmra.mxu0 %v1353
  %v1770 = vpop.f32.mrf.mxu0
  %v1771 = vadd.f32 0.0, %v1770
  %v1772 = vpop.f32.mrf.mxu0
  %v1773 = vadd.f32 0.0, %v1772
  %1774 = vdwg.mxu0
  %1775 = vmatpush.bf16.msra.mxu0 %v1612
  %1776 = vmatpush.bf16.msra.mxu0 %v1608
  %1777 = vmatpush.bf16.msra.mxu0 %v1604
  %1778 = vmatpush.bf16.msra.mxu0 %v1600
  %1779 = vmatpush.bf16.msra.mxu0 %v1596
  %1780 = vmatpush.bf16.msra.mxu0 %v1592
  %1781 = vmatpush.bf16.msra.mxu0 %v1588
  %1782 = vmatpush.bf16.msra.mxu0 %v1584
  %1783 = vmatmul.bf16.gmra.mxu0 %v1354
  %v1784 = vpop.f32.mrf.mxu0
  %v1785 = vadd.f32 %v1771, %v1784
  %v1786 = vpop.f32.mrf.mxu0
  %v1787 = vadd.f32 %v1773, %v1786
  %1788 = vdwg.mxu0
  %v1789 = vadd.f32 %v1179, %v1701
  %v1790 = vadd.f32 %v1207, %v1729
  %v1791 = vadd.f32 %v1235, %v1757
  %v1792 = vadd.f32 %v1263, %v1785
  %v1793 = vadd.f32 %v1181, %v1703
  %v1794 = vadd.f32 %v1209, %v1731
  %v1795 = vadd.f32 %v1237, %v1759
  %v1796 = vadd.f32 %v1265, %v1787
  %v1797 = vadd.f32 %v1789, %v1793
  %v1798 = vrot.slane %v1797, 4
  %v1799 = vadd.f32 %v1797, %v1798
  %v1800 = vrot.slane %v1799, 2
  %v1801 = vadd.f32 %v1799, %v1800
  %v1802 = vrot.slane %v1801, 1
  %v1803 = vadd.f32 %v1801, %v1802
  %v1804 = vadd.f32 %v1790, %v1794
  %v1805 = vrot.slane %v1804, 4
  %v1806 = vadd.f32 %v1804, %v1805
  %v1807 = vrot.slane %v1806, 2
  %v1808 = vadd.f32 %v1806, %v1807
  %v1809 = vrot.slane %v1808, 1
  %v1810 = vadd.f32 %v1808, %v1809
  %v1811 = vadd.f32 %v1791, %v1795
  %v1812 = vrot.slane %v1811, 4
  %v1813 = vadd.f32 %v1811, %v1812
  %v1814 = vrot.slane %v1813, 2
  %v1815 = vadd.f32 %v1813, %v1814
  %v1816 = vrot.slane %v1815, 1
  %v1817 = vadd.f32 %v1815, %v1816
  %v1818 = vadd.f32 %v1792, %v1796
  %v1819 = vrot.slane %v1818, 4
  %v1820 = vadd.f32 %v1818, %v1819
  %v1821 = vrot.slane %v1820, 2
  %v1822 = vadd.f32 %v1820, %v1821
  %v1823 = vrot.slane %v1822, 1
  %v1824 = vadd.f32 %v1822, %v1823
  %v1825 = vmul.f32 %v1789, %v1789
  %v1826 = vmul.f32 %v1790, %v1790
  %v1827 = vmul.f32 %v1791, %v1791
  %v1828 = vmul.f32 %v1792, %v1792
  %v1829 = vmul.f32 %v1793, %v1793
  %v1830 = vmul.f32 %v1794, %v1794
  %v1831 = vmul.f32 %v1795, %v1795
  %v1832 = vmul.f32 %v1796, %v1796
  %v1833 = vadd.f32 %v1825, %v1829
  %v1834 = vrot.slane %v1833, 4
  %v1835 = vadd.f32 %v1833, %v1834
  %v1836 = vrot.slane %v1835, 2
  %v1837 = vadd.f32 %v1835, %v1836
  %v1838 = vrot.slane %v1837, 1
  %v1839 = vadd.f32 %v1837, %v1838
  %v1840 = vadd.f32 %v1826, %v1830
  %v1841 = vrot.slane %v1840, 4
  %v1842 = vadd.f32 %v1840, %v1841
  %v1843 = vrot.slane %v1842, 2
  %v1844 = vadd.f32 %v1842, %v1843
  %v1845 = vrot.slane %v1844, 1
  %v1846 = vadd.f32 %v1844, %v1845
  %v1847 = vadd.f32 %v1827, %v1831
  %v1848 = vrot.slane %v1847, 4
  %v1849 = vadd.f32 %v1847, %v1848
  %v1850 = vrot.slane %v1849, 2
  %v1851 = vadd.f32 %v1849, %v1850
  %v1852 = vrot.slane %v1851, 1
  %v1853 = vadd.f32 %v1851, %v1852
  %v1854 = vadd.f32 %v1828, %v1832
  %v1855 = vrot.slane %v1854, 4
  %v1856 = vadd.f32 %v1854, %v1855
  %v1857 = vrot.slane %v1856, 2
  %v1858 = vadd.f32 %v1856, %v1857
  %v1859 = vrot.slane %v1858, 1
  %v1860 = vadd.f32 %v1858, %v1859
  %vm1861 = vcmask 1040384
  %v1862 = vsel %vm1861, %v1803, %v1839
  %v1863 = vsel %vm1861, %v1810, %v1846
  %v1864 = vsel %vm1861, %v1817, %v1853
  %v1865 = vsel %vm1861, %v1824, %v1860
  %v1866 = vld [vmem:[%s2] sm:$0xff]
  %v1867 = vld [vmem:[%s2 + $0x8] sm:$0xff]
  %v1868 = vld [vmem:[%s2 + $0x10] sm:$0xff]
  %v1869 = vld [vmem:[%s2 + $0x18] sm:$0xff]
  %v1870 = vld [vmem:[%s2 + $0x20] sm:$0xff]
  %v1871 = vld [vmem:[%s2 + $0x28] sm:$0xff]
  %v1872 = vld [vmem:[%s2 + $0x30] sm:$0xff]
  %v1873 = vld [vmem:[%s2 + $0x38] sm:$0xff]
  %v1874 = vld [vmem:[%s2 + $0x40] sm:$0xff]
  %v1875 = vld [vmem:[%s2 + $0x48] sm:$0xff]
  %v1876 = vld [vmem:[%s2 + $0x50] sm:$0xff]
  %v1877 = vld [vmem:[%s2 + $0x58] sm:$0xff]
  %v1878 = vld [vmem:[%s2 + $0x60] sm:$0xff]
  %v1879 = vld [vmem:[%s2 + $0x68] sm:$0xff]
  %v1880 = vld [vmem:[%s2 + $0x70] sm:$0xff]
  %v1881 = vld [vmem:[%s2 + $0x78] sm:$0xff]
  %v1882 = vld [vmem:[%s2 + $0x80] sm:$0xff]
  %v1883 = vld [vmem:[%s2 + $0x88] sm:$0xff]
  %v1884 = vld [vmem:[%s2 + $0x90] sm:$0xff]
  %v1885 = vld [vmem:[%s2 + $0x98] sm:$0xff]
  %v1886 = vld [vmem:[%s2 + $0xa0] sm:$0xff]
  %v1887 = vld [vmem:[%s2 + $0xa8] sm:$0xff]
  %v1888 = vld [vmem:[%s2 + $0xb0] sm:$0xff]
  %v1889 = vld [vmem:[%s2 + $0xb8] sm:$0xff]
  %v1890 = vld [vmem:[%s2 + $0xc0] sm:$0xff]
  %v1891 = vld [vmem:[%s2 + $0xc8] sm:$0xff]
  %v1892 = vld [vmem:[%s2 + $0xd0] sm:$0xff]
  %v1893 = vld [vmem:[%s2 + $0xd8] sm:$0xff]
  %v1894 = vld [vmem:[%s2 + $0xe0] sm:$0xff]
  %v1895 = vld [vmem:[%s2 + $0xe8] sm:$0xff]
  %v1896 = vld [vmem:[%s2 + $0xf0] sm:$0xff]
  %v1897 = vld [vmem:[%s2 + $0xf8] sm:$0xff]
  %v1898 = vld [vmem:[%s2 + $0x100] sm:$0xff]
  %v1899 = vld [vmem:[%s2 + $0x108] sm:$0xff]
  %v1900 = vld [vmem:[%s2 + $0x110] sm:$0xff]
  %v1901 = vld [vmem:[%s2 + $0x118] sm:$0xff]
  %v1902 = vld [vmem:[%s2 + $0x120] sm:$0xff]
  %v1903 = vld [vmem:[%s2 + $0x128] sm:$0xff]
  %v1904 = vld [vmem:[%s2 + $0x130] sm:$0xff]
  %v1905 = vld [vmem:[%s2 + $0x138] sm:$0xff]
  %v1906 = vld [vmem:[%s2 + $0x140] sm:$0xff]
  %v1907 = vld [vmem:[%s2 + $0x148] sm:$0xff]
  %v1908 = vld [vmem:[%s2 + $0x150] sm:$0xff]
  %v1909 = vld [vmem:[%s2 + $0x158] sm:$0xff]
  %v1910 = vld [vmem:[%s2 + $0x160] sm:$0xff]
  %v1911 = vld [vmem:[%s2 + $0x168] sm:$0xff]
  %v1912 = vld [vmem:[%s2 + $0x170] sm:$0xff]
  %v1913 = vld [vmem:[%s2 + $0x178] sm:$0xff]
  %v1914 = vld [vmem:[%s2 + $0x180] sm:$0xff]
  %v1915 = vld [vmem:[%s2 + $0x188] sm:$0xff]
  %v1916 = vld [vmem:[%s2 + $0x190] sm:$0xff]
  %v1917 = vld [vmem:[%s2 + $0x198] sm:$0xff]
  %v1918 = vld [vmem:[%s2 + $0x1a0] sm:$0xff]
  %v1919 = vld [vmem:[%s2 + $0x1a8] sm:$0xff]
  %v1920 = vld [vmem:[%s2 + $0x1b0] sm:$0xff]
  %v1921 = vld [vmem:[%s2 + $0x1b8] sm:$0xff]
  %v1922 = vld [vmem:[%s2 + $0x1c0] sm:$0xff]
  %v1923 = vld [vmem:[%s2 + $0x1c8] sm:$0xff]
  %v1924 = vld [vmem:[%s2 + $0x1d0] sm:$0xff]
  %v1925 = vld [vmem:[%s2 + $0x1d8] sm:$0xff]
  %v1926 = vld [vmem:[%s2 + $0x1e0] sm:$0xff]
  %v1927 = vld [vmem:[%s2 + $0x1e8] sm:$0xff]
  %v1928 = vld [vmem:[%s2 + $0x1f0] sm:$0xff]
  %v1929 = vld [vmem:[%s2 + $0x1f8] sm:$0xff]
  %v1930 = vand.u32 %v1881, 4294901760
  %1931 = vmatpush.msra.mxu0 %v1930
  %v1932 = vand.u32 %v1880, 4294901760
  %1933 = vmatpush.msra.mxu0 %v1932
  %v1934 = vand.u32 %v1879, 4294901760
  %1935 = vmatpush.msra.mxu0 %v1934
  %v1936 = vand.u32 %v1878, 4294901760
  %1937 = vmatpush.msra.mxu0 %v1936
  %v1938 = vand.u32 %v1877, 4294901760
  %1939 = vmatpush.msra.mxu0 %v1938
  %v1940 = vand.u32 %v1876, 4294901760
  %1941 = vmatpush.msra.mxu0 %v1940
  %v1942 = vand.u32 %v1875, 4294901760
  %1943 = vmatpush.msra.mxu0 %v1942
  %v1944 = vand.u32 %v1874, 4294901760
  %1945 = vmatpush.msra.mxu0 %v1944
  %v1946 = vand.u32 %v1873, 4294901760
  %1947 = vmatpush.msra.mxu0 %v1946
  %v1948 = vand.u32 %v1872, 4294901760
  %1949 = vmatpush.msra.mxu0 %v1948
  %v1950 = vand.u32 %v1871, 4294901760
  %1951 = vmatpush.msra.mxu0 %v1950
  %v1952 = vand.u32 %v1870, 4294901760
  %1953 = vmatpush.msra.mxu0 %v1952
  %v1954 = vand.u32 %v1869, 4294901760
  %1955 = vmatpush.msra.mxu0 %v1954
  %v1956 = vand.u32 %v1868, 4294901760
  %1957 = vmatpush.msra.mxu0 %v1956
  %v1958 = vand.u32 %v1867, 4294901760
  %1959 = vmatpush.msra.mxu0 %v1958
  %v1960 = vand.u32 %v1866, 4294901760
  %1961 = vmatpush.msra.mxu0 %v1960
  %v1962 = vand.u32 %v1862, 4294901760
  %v1963 = vsub.f32 %v1862, %v1962
  %v1964 = vand.u32 %v1963, 4294901760
  %v1965 = vsub.f32 %v1963, %v1964
  %v1966 = vand.u32 %v1965, 4294901760
  %1967 = vmatmul.f32.gmra.mxu0 %v1966
  %v1968 = vpop.f32.mrf.mxu0
  %v1969 = vadd.f32 0.0, %v1968
  %1970 = vdwg.mxu0
  %v1971 = vand.u32 %v1881, 4294901760
  %v1972 = vsub.f32 %v1881, %v1971
  %v1973 = vand.u32 %v1972, 4294901760
  %v1974 = vsub.f32 %v1972, %v1973
  %v1975 = vand.u32 %v1974, 4294901760
  %1976 = vmatpush.msra.mxu0 %v1975
  %v1977 = vand.u32 %v1880, 4294901760
  %v1978 = vsub.f32 %v1880, %v1977
  %v1979 = vand.u32 %v1978, 4294901760
  %v1980 = vsub.f32 %v1978, %v1979
  %v1981 = vand.u32 %v1980, 4294901760
  %1982 = vmatpush.msra.mxu0 %v1981
  %v1983 = vand.u32 %v1879, 4294901760
  %v1984 = vsub.f32 %v1879, %v1983
  %v1985 = vand.u32 %v1984, 4294901760
  %v1986 = vsub.f32 %v1984, %v1985
  %v1987 = vand.u32 %v1986, 4294901760
  %1988 = vmatpush.msra.mxu0 %v1987
  %v1989 = vand.u32 %v1878, 4294901760
  %v1990 = vsub.f32 %v1878, %v1989
  %v1991 = vand.u32 %v1990, 4294901760
  %v1992 = vsub.f32 %v1990, %v1991
  %v1993 = vand.u32 %v1992, 4294901760
  %1994 = vmatpush.msra.mxu0 %v1993
  %v1995 = vand.u32 %v1877, 4294901760
  %v1996 = vsub.f32 %v1877, %v1995
  %v1997 = vand.u32 %v1996, 4294901760
  %v1998 = vsub.f32 %v1996, %v1997
  %v1999 = vand.u32 %v1998, 4294901760
  %2000 = vmatpush.msra.mxu0 %v1999
  %v2001 = vand.u32 %v1876, 4294901760
  %v2002 = vsub.f32 %v1876, %v2001
  %v2003 = vand.u32 %v2002, 4294901760
  %v2004 = vsub.f32 %v2002, %v2003
  %v2005 = vand.u32 %v2004, 4294901760
  %2006 = vmatpush.msra.mxu0 %v2005
  %v2007 = vand.u32 %v1875, 4294901760
  %v2008 = vsub.f32 %v1875, %v2007
  %v2009 = vand.u32 %v2008, 4294901760
  %v2010 = vsub.f32 %v2008, %v2009
  %v2011 = vand.u32 %v2010, 4294901760
  %2012 = vmatpush.msra.mxu0 %v2011
  %v2013 = vand.u32 %v1874, 4294901760
  %v2014 = vsub.f32 %v1874, %v2013
  %v2015 = vand.u32 %v2014, 4294901760
  %v2016 = vsub.f32 %v2014, %v2015
  %v2017 = vand.u32 %v2016, 4294901760
  %2018 = vmatpush.msra.mxu0 %v2017
  %v2019 = vand.u32 %v1873, 4294901760
  %v2020 = vsub.f32 %v1873, %v2019
  %v2021 = vand.u32 %v2020, 4294901760
  %v2022 = vsub.f32 %v2020, %v2021
  %v2023 = vand.u32 %v2022, 4294901760
  %2024 = vmatpush.msra.mxu0 %v2023
  %v2025 = vand.u32 %v1872, 4294901760
  %v2026 = vsub.f32 %v1872, %v2025
  %v2027 = vand.u32 %v2026, 4294901760
  %v2028 = vsub.f32 %v2026, %v2027
  %v2029 = vand.u32 %v2028, 4294901760
  %2030 = vmatpush.msra.mxu0 %v2029
  %v2031 = vand.u32 %v1871, 4294901760
  %v2032 = vsub.f32 %v1871, %v2031
  %v2033 = vand.u32 %v2032, 4294901760
  %v2034 = vsub.f32 %v2032, %v2033
  %v2035 = vand.u32 %v2034, 4294901760
  %2036 = vmatpush.msra.mxu0 %v2035
  %v2037 = vand.u32 %v1870, 4294901760
  %v2038 = vsub.f32 %v1870, %v2037
  %v2039 = vand.u32 %v2038, 4294901760
  %v2040 = vsub.f32 %v2038, %v2039
  %v2041 = vand.u32 %v2040, 4294901760
  %2042 = vmatpush.msra.mxu0 %v2041
  %v2043 = vand.u32 %v1869, 4294901760
  %v2044 = vsub.f32 %v1869, %v2043
  %v2045 = vand.u32 %v2044, 4294901760
  %v2046 = vsub.f32 %v2044, %v2045
  %v2047 = vand.u32 %v2046, 4294901760
  %2048 = vmatpush.msra.mxu0 %v2047
  %v2049 = vand.u32 %v1868, 4294901760
  %v2050 = vsub.f32 %v1868, %v2049
  %v2051 = vand.u32 %v2050, 4294901760
  %v2052 = vsub.f32 %v2050, %v2051
  %v2053 = vand.u32 %v2052, 4294901760
  %2054 = vmatpush.msra.mxu0 %v2053
  %v2055 = vand.u32 %v1867, 4294901760
  %v2056 = vsub.f32 %v1867, %v2055
  %v2057 = vand.u32 %v2056, 4294901760
  %v2058 = vsub.f32 %v2056, %v2057
  %v2059 = vand.u32 %v2058, 4294901760
  %2060 = vmatpush.msra.mxu0 %v2059
  %v2061 = vand.u32 %v1866, 4294901760
  %v2062 = vsub.f32 %v1866, %v2061
  %v2063 = vand.u32 %v2062, 4294901760
  %v2064 = vsub.f32 %v2062, %v2063
  %v2065 = vand.u32 %v2064, 4294901760
  %2066 = vmatpush.msra.mxu0 %v2065
  %v2067 = vand.u32 %v1862, 4294901760
  %2068 = vmatmul.f32.gmra.mxu0 %v2067
  %v2069 = vpop.f32.mrf.mxu0
  %v2070 = vadd.f32 %v1969, %v2069
  %2071 = vdwg.mxu0
  %v2072 = vand.u32 %v1881, 4294901760
  %v2073 = vsub.f32 %v1881, %v2072
  %2074 = vmatpush.msra.mxu0 %v2073
  %v2075 = vand.u32 %v1880, 4294901760
  %v2076 = vsub.f32 %v1880, %v2075
  %2077 = vmatpush.msra.mxu0 %v2076
  %v2078 = vand.u32 %v1879, 4294901760
  %v2079 = vsub.f32 %v1879, %v2078
  %2080 = vmatpush.msra.mxu0 %v2079
  %v2081 = vand.u32 %v1878, 4294901760
  %v2082 = vsub.f32 %v1878, %v2081
  %2083 = vmatpush.msra.mxu0 %v2082
  %v2084 = vand.u32 %v1877, 4294901760
  %v2085 = vsub.f32 %v1877, %v2084
  %2086 = vmatpush.msra.mxu0 %v2085
  %v2087 = vand.u32 %v1876, 4294901760
  %v2088 = vsub.f32 %v1876, %v2087
  %2089 = vmatpush.msra.mxu0 %v2088
  %v2090 = vand.u32 %v1875, 4294901760
  %v2091 = vsub.f32 %v1875, %v2090
  %2092 = vmatpush.msra.mxu0 %v2091
  %v2093 = vand.u32 %v1874, 4294901760
  %v2094 = vsub.f32 %v1874, %v2093
  %2095 = vmatpush.msra.mxu0 %v2094
  %v2096 = vand.u32 %v1873, 4294901760
  %v2097 = vsub.f32 %v1873, %v2096
  %2098 = vmatpush.msra.mxu0 %v2097
  %v2099 = vand.u32 %v1872, 4294901760
  %v2100 = vsub.f32 %v1872, %v2099
  %2101 = vmatpush.msra.mxu0 %v2100
  %v2102 = vand.u32 %v1871, 4294901760
  %v2103 = vsub.f32 %v1871, %v2102
  %2104 = vmatpush.msra.mxu0 %v2103
  %v2105 = vand.u32 %v1870, 4294901760
  %v2106 = vsub.f32 %v1870, %v2105
  %2107 = vmatpush.msra.mxu0 %v2106
  %v2108 = vand.u32 %v1869, 4294901760
  %v2109 = vsub.f32 %v1869, %v2108
  %2110 = vmatpush.msra.mxu0 %v2109
  %v2111 = vand.u32 %v1868, 4294901760
  %v2112 = vsub.f32 %v1868, %v2111
  %2113 = vmatpush.msra.mxu0 %v2112
  %v2114 = vand.u32 %v1867, 4294901760
  %v2115 = vsub.f32 %v1867, %v2114
  %2116 = vmatpush.msra.mxu0 %v2115
  %v2117 = vand.u32 %v1866, 4294901760
  %v2118 = vsub.f32 %v1866, %v2117
  %2119 = vmatpush.msra.mxu0 %v2118
  %v2120 = vand.u32 %v1862, 4294901760
  %v2121 = vsub.f32 %v1862, %v2120
  %2122 = vmatmul.f32.gmra.mxu0 %v2121
  %v2123 = vpop.f32.mrf.mxu0
  %v2124 = vadd.f32 %v2070, %v2123
  %2125 = vdwg.mxu0
  %v2126 = vand.u32 %v1881, 4294901760
  %2127 = vmatpush.msra.mxu0 %v2126
  %v2128 = vand.u32 %v1880, 4294901760
  %2129 = vmatpush.msra.mxu0 %v2128
  %v2130 = vand.u32 %v1879, 4294901760
  %2131 = vmatpush.msra.mxu0 %v2130
  %v2132 = vand.u32 %v1878, 4294901760
  %2133 = vmatpush.msra.mxu0 %v2132
  %v2134 = vand.u32 %v1877, 4294901760
  %2135 = vmatpush.msra.mxu0 %v2134
  %v2136 = vand.u32 %v1876, 4294901760
  %2137 = vmatpush.msra.mxu0 %v2136
  %v2138 = vand.u32 %v1875, 4294901760
  %2139 = vmatpush.msra.mxu0 %v2138
  %v2140 = vand.u32 %v1874, 4294901760
  %2141 = vmatpush.msra.mxu0 %v2140
  %v2142 = vand.u32 %v1873, 4294901760
  %2143 = vmatpush.msra.mxu0 %v2142
  %v2144 = vand.u32 %v1872, 4294901760
  %2145 = vmatpush.msra.mxu0 %v2144
  %v2146 = vand.u32 %v1871, 4294901760
  %2147 = vmatpush.msra.mxu0 %v2146
  %v2148 = vand.u32 %v1870, 4294901760
  %2149 = vmatpush.msra.mxu0 %v2148
  %v2150 = vand.u32 %v1869, 4294901760
  %2151 = vmatpush.msra.mxu0 %v2150
  %v2152 = vand.u32 %v1868, 4294901760
  %2153 = vmatpush.msra.mxu0 %v2152
  %v2154 = vand.u32 %v1867, 4294901760
  %2155 = vmatpush.msra.mxu0 %v2154
  %v2156 = vand.u32 %v1866, 4294901760
  %2157 = vmatpush.msra.mxu0 %v2156
  %v2158 = vand.u32 %v1862, 4294901760
  %v2159 = vsub.f32 %v1862, %v2158
  %v2160 = vand.u32 %v2159, 4294901760
  %2161 = vmatmul.f32.gmra.mxu0 %v2160
  %v2162 = vpop.f32.mrf.mxu0
  %v2163 = vadd.f32 %v2124, %v2162
  %2164 = vdwg.mxu0
  %v2165 = vand.u32 %v1881, 4294901760
  %v2166 = vsub.f32 %v1881, %v2165
  %v2167 = vand.u32 %v2166, 4294901760
  %2168 = vmatpush.msra.mxu0 %v2167
  %v2169 = vand.u32 %v1880, 4294901760
  %v2170 = vsub.f32 %v1880, %v2169
  %v2171 = vand.u32 %v2170, 4294901760
  %2172 = vmatpush.msra.mxu0 %v2171
  %v2173 = vand.u32 %v1879, 4294901760
  %v2174 = vsub.f32 %v1879, %v2173
  %v2175 = vand.u32 %v2174, 4294901760
  %2176 = vmatpush.msra.mxu0 %v2175
  %v2177 = vand.u32 %v1878, 4294901760
  %v2178 = vsub.f32 %v1878, %v2177
  %v2179 = vand.u32 %v2178, 4294901760
  %2180 = vmatpush.msra.mxu0 %v2179
  %v2181 = vand.u32 %v1877, 4294901760
  %v2182 = vsub.f32 %v1877, %v2181
  %v2183 = vand.u32 %v2182, 4294901760
  %2184 = vmatpush.msra.mxu0 %v2183
  %v2185 = vand.u32 %v1876, 4294901760
  %v2186 = vsub.f32 %v1876, %v2185
  %v2187 = vand.u32 %v2186, 4294901760
  %2188 = vmatpush.msra.mxu0 %v2187
  %v2189 = vand.u32 %v1875, 4294901760
  %v2190 = vsub.f32 %v1875, %v2189
  %v2191 = vand.u32 %v2190, 4294901760
  %2192 = vmatpush.msra.mxu0 %v2191
  %v2193 = vand.u32 %v1874, 4294901760
  %v2194 = vsub.f32 %v1874, %v2193
  %v2195 = vand.u32 %v2194, 4294901760
  %2196 = vmatpush.msra.mxu0 %v2195
  %v2197 = vand.u32 %v1873, 4294901760
  %v2198 = vsub.f32 %v1873, %v2197
  %v2199 = vand.u32 %v2198, 4294901760
  %2200 = vmatpush.msra.mxu0 %v2199
  %v2201 = vand.u32 %v1872, 4294901760
  %v2202 = vsub.f32 %v1872, %v2201
  %v2203 = vand.u32 %v2202, 4294901760
  %2204 = vmatpush.msra.mxu0 %v2203
  %v2205 = vand.u32 %v1871, 4294901760
  %v2206 = vsub.f32 %v1871, %v2205
  %v2207 = vand.u32 %v2206, 4294901760
  %2208 = vmatpush.msra.mxu0 %v2207
  %v2209 = vand.u32 %v1870, 4294901760
  %v2210 = vsub.f32 %v1870, %v2209
  %v2211 = vand.u32 %v2210, 4294901760
  %2212 = vmatpush.msra.mxu0 %v2211
  %v2213 = vand.u32 %v1869, 4294901760
  %v2214 = vsub.f32 %v1869, %v2213
  %v2215 = vand.u32 %v2214, 4294901760
  %2216 = vmatpush.msra.mxu0 %v2215
  %v2217 = vand.u32 %v1868, 4294901760
  %v2218 = vsub.f32 %v1868, %v2217
  %v2219 = vand.u32 %v2218, 4294901760
  %2220 = vmatpush.msra.mxu0 %v2219
  %v2221 = vand.u32 %v1867, 4294901760
  %v2222 = vsub.f32 %v1867, %v2221
  %v2223 = vand.u32 %v2222, 4294901760
  %2224 = vmatpush.msra.mxu0 %v2223
  %v2225 = vand.u32 %v1866, 4294901760
  %v2226 = vsub.f32 %v1866, %v2225
  %v2227 = vand.u32 %v2226, 4294901760
  %2228 = vmatpush.msra.mxu0 %v2227
  %v2229 = vand.u32 %v1862, 4294901760
  %2230 = vmatmul.f32.gmra.mxu0 %v2229
  %v2231 = vpop.f32.mrf.mxu0
  %v2232 = vadd.f32 %v2163, %v2231
  %2233 = vdwg.mxu0
  %v2234 = vand.u32 %v1881, 4294901760
  %2235 = vmatpush.msra.mxu0 %v2234
  %v2236 = vand.u32 %v1880, 4294901760
  %2237 = vmatpush.msra.mxu0 %v2236
  %v2238 = vand.u32 %v1879, 4294901760
  %2239 = vmatpush.msra.mxu0 %v2238
  %v2240 = vand.u32 %v1878, 4294901760
  %2241 = vmatpush.msra.mxu0 %v2240
  %v2242 = vand.u32 %v1877, 4294901760
  %2243 = vmatpush.msra.mxu0 %v2242
  %v2244 = vand.u32 %v1876, 4294901760
  %2245 = vmatpush.msra.mxu0 %v2244
  %v2246 = vand.u32 %v1875, 4294901760
  %2247 = vmatpush.msra.mxu0 %v2246
  %v2248 = vand.u32 %v1874, 4294901760
  %2249 = vmatpush.msra.mxu0 %v2248
  %v2250 = vand.u32 %v1873, 4294901760
  %2251 = vmatpush.msra.mxu0 %v2250
  %v2252 = vand.u32 %v1872, 4294901760
  %2253 = vmatpush.msra.mxu0 %v2252
  %v2254 = vand.u32 %v1871, 4294901760
  %2255 = vmatpush.msra.mxu0 %v2254
  %v2256 = vand.u32 %v1870, 4294901760
  %2257 = vmatpush.msra.mxu0 %v2256
  %v2258 = vand.u32 %v1869, 4294901760
  %2259 = vmatpush.msra.mxu0 %v2258
  %v2260 = vand.u32 %v1868, 4294901760
  %2261 = vmatpush.msra.mxu0 %v2260
  %v2262 = vand.u32 %v1867, 4294901760
  %2263 = vmatpush.msra.mxu0 %v2262
  %v2264 = vand.u32 %v1866, 4294901760
  %2265 = vmatpush.msra.mxu0 %v2264
  %v2266 = vand.u32 %v1862, 4294901760
  %2267 = vmatmul.f32.gmra.mxu0 %v2266
  %v2268 = vpop.f32.mrf.mxu0
  %v2269 = vadd.f32 %v2232, %v2268
  %2270 = vdwg.mxu0
  %v2271 = vand.u32 %v1897, 4294901760
  %2272 = vmatpush.msra.mxu0 %v2271
  %v2273 = vand.u32 %v1896, 4294901760
  %2274 = vmatpush.msra.mxu0 %v2273
  %v2275 = vand.u32 %v1895, 4294901760
  %2276 = vmatpush.msra.mxu0 %v2275
  %v2277 = vand.u32 %v1894, 4294901760
  %2278 = vmatpush.msra.mxu0 %v2277
  %v2279 = vand.u32 %v1893, 4294901760
  %2280 = vmatpush.msra.mxu0 %v2279
  %v2281 = vand.u32 %v1892, 4294901760
  %2282 = vmatpush.msra.mxu0 %v2281
  %v2283 = vand.u32 %v1891, 4294901760
  %2284 = vmatpush.msra.mxu0 %v2283
  %v2285 = vand.u32 %v1890, 4294901760
  %2286 = vmatpush.msra.mxu0 %v2285
  %v2287 = vand.u32 %v1889, 4294901760
  %2288 = vmatpush.msra.mxu0 %v2287
  %v2289 = vand.u32 %v1888, 4294901760
  %2290 = vmatpush.msra.mxu0 %v2289
  %v2291 = vand.u32 %v1887, 4294901760
  %2292 = vmatpush.msra.mxu0 %v2291
  %v2293 = vand.u32 %v1886, 4294901760
  %2294 = vmatpush.msra.mxu0 %v2293
  %v2295 = vand.u32 %v1885, 4294901760
  %2296 = vmatpush.msra.mxu0 %v2295
  %v2297 = vand.u32 %v1884, 4294901760
  %2298 = vmatpush.msra.mxu0 %v2297
  %v2299 = vand.u32 %v1883, 4294901760
  %2300 = vmatpush.msra.mxu0 %v2299
  %v2301 = vand.u32 %v1882, 4294901760
  %2302 = vmatpush.msra.mxu0 %v2301
  %v2303 = vand.u32 %v1863, 4294901760
  %v2304 = vsub.f32 %v1863, %v2303
  %v2305 = vand.u32 %v2304, 4294901760
  %v2306 = vsub.f32 %v2304, %v2305
  %v2307 = vand.u32 %v2306, 4294901760
  %2308 = vmatmul.f32.gmra.mxu0 %v2307
  %v2309 = vpop.f32.mrf.mxu0
  %v2310 = vadd.f32 %v2269, %v2309
  %2311 = vdwg.mxu0
  %v2312 = vand.u32 %v1897, 4294901760
  %v2313 = vsub.f32 %v1897, %v2312
  %v2314 = vand.u32 %v2313, 4294901760
  %v2315 = vsub.f32 %v2313, %v2314
  %v2316 = vand.u32 %v2315, 4294901760
  %2317 = vmatpush.msra.mxu0 %v2316
  %v2318 = vand.u32 %v1896, 4294901760
  %v2319 = vsub.f32 %v1896, %v2318
  %v2320 = vand.u32 %v2319, 4294901760
  %v2321 = vsub.f32 %v2319, %v2320
  %v2322 = vand.u32 %v2321, 4294901760
  %2323 = vmatpush.msra.mxu0 %v2322
  %v2324 = vand.u32 %v1895, 4294901760
  %v2325 = vsub.f32 %v1895, %v2324
  %v2326 = vand.u32 %v2325, 4294901760
  %v2327 = vsub.f32 %v2325, %v2326
  %v2328 = vand.u32 %v2327, 4294901760
  %2329 = vmatpush.msra.mxu0 %v2328
  %v2330 = vand.u32 %v1894, 4294901760
  %v2331 = vsub.f32 %v1894, %v2330
  %v2332 = vand.u32 %v2331, 4294901760
  %v2333 = vsub.f32 %v2331, %v2332
  %v2334 = vand.u32 %v2333, 4294901760
  %2335 = vmatpush.msra.mxu0 %v2334
  %v2336 = vand.u32 %v1893, 4294901760
  %v2337 = vsub.f32 %v1893, %v2336
  %v2338 = vand.u32 %v2337, 4294901760
  %v2339 = vsub.f32 %v2337, %v2338
  %v2340 = vand.u32 %v2339, 4294901760
  %2341 = vmatpush.msra.mxu0 %v2340
  %v2342 = vand.u32 %v1892, 4294901760
  %v2343 = vsub.f32 %v1892, %v2342
  %v2344 = vand.u32 %v2343, 4294901760
  %v2345 = vsub.f32 %v2343, %v2344
  %v2346 = vand.u32 %v2345, 4294901760
  %2347 = vmatpush.msra.mxu0 %v2346
  %v2348 = vand.u32 %v1891, 4294901760
  %v2349 = vsub.f32 %v1891, %v2348
  %v2350 = vand.u32 %v2349, 4294901760
  %v2351 = vsub.f32 %v2349, %v2350
  %v2352 = vand.u32 %v2351, 4294901760
  %2353 = vmatpush.msra.mxu0 %v2352
  %v2354 = vand.u32 %v1890, 4294901760
  %v2355 = vsub.f32 %v1890, %v2354
  %v2356 = vand.u32 %v2355, 4294901760
  %v2357 = vsub.f32 %v2355, %v2356
  %v2358 = vand.u32 %v2357, 4294901760
  %2359 = vmatpush.msra.mxu0 %v2358
  %v2360 = vand.u32 %v1889, 4294901760
  %v2361 = vsub.f32 %v1889, %v2360
  %v2362 = vand.u32 %v2361, 4294901760
  %v2363 = vsub.f32 %v2361, %v2362
  %v2364 = vand.u32 %v2363, 4294901760
  %2365 = vmatpush.msra.mxu0 %v2364
  %v2366 = vand.u32 %v1888, 4294901760
  %v2367 = vsub.f32 %v1888, %v2366
  %v2368 = vand.u32 %v2367, 4294901760
  %v2369 = vsub.f32 %v2367, %v2368
  %v2370 = vand.u32 %v2369, 4294901760
  %2371 = vmatpush.msra.mxu0 %v2370
  %v2372 = vand.u32 %v1887, 4294901760
  %v2373 = vsub.f32 %v1887, %v2372
  %v2374 = vand.u32 %v2373, 4294901760
  %v2375 = vsub.f32 %v2373, %v2374
  %v2376 = vand.u32 %v2375, 4294901760
  %2377 = vmatpush.msra.mxu0 %v2376
  %v2378 = vand.u32 %v1886, 4294901760
  %v2379 = vsub.f32 %v1886, %v2378
  %v2380 = vand.u32 %v2379, 4294901760
  %v2381 = vsub.f32 %v2379, %v2380
  %v2382 = vand.u32 %v2381, 4294901760
  %2383 = vmatpush.msra.mxu0 %v2382
  %v2384 = vand.u32 %v1885, 4294901760
  %v2385 = vsub.f32 %v1885, %v2384
  %v2386 = vand.u32 %v2385, 4294901760
  %v2387 = vsub.f32 %v2385, %v2386
  %v2388 = vand.u32 %v2387, 4294901760
  %2389 = vmatpush.msra.mxu0 %v2388
  %v2390 = vand.u32 %v1884, 4294901760
  %v2391 = vsub.f32 %v1884, %v2390
  %v2392 = vand.u32 %v2391, 4294901760
  %v2393 = vsub.f32 %v2391, %v2392
  %v2394 = vand.u32 %v2393, 4294901760
  %2395 = vmatpush.msra.mxu0 %v2394
  %v2396 = vand.u32 %v1883, 4294901760
  %v2397 = vsub.f32 %v1883, %v2396
  %v2398 = vand.u32 %v2397, 4294901760
  %v2399 = vsub.f32 %v2397, %v2398
  %v2400 = vand.u32 %v2399, 4294901760
  %2401 = vmatpush.msra.mxu0 %v2400
  %v2402 = vand.u32 %v1882, 4294901760
  %v2403 = vsub.f32 %v1882, %v2402
  %v2404 = vand.u32 %v2403, 4294901760
  %v2405 = vsub.f32 %v2403, %v2404
  %v2406 = vand.u32 %v2405, 4294901760
  %2407 = vmatpush.msra.mxu0 %v2406
  %v2408 = vand.u32 %v1863, 4294901760
  %2409 = vmatmul.f32.gmra.mxu0 %v2408
  %v2410 = vpop.f32.mrf.mxu0
  %v2411 = vadd.f32 %v2310, %v2410
  %2412 = vdwg.mxu0
  %v2413 = vand.u32 %v1897, 4294901760
  %v2414 = vsub.f32 %v1897, %v2413
  %2415 = vmatpush.msra.mxu0 %v2414
  %v2416 = vand.u32 %v1896, 4294901760
  %v2417 = vsub.f32 %v1896, %v2416
  %2418 = vmatpush.msra.mxu0 %v2417
  %v2419 = vand.u32 %v1895, 4294901760
  %v2420 = vsub.f32 %v1895, %v2419
  %2421 = vmatpush.msra.mxu0 %v2420
  %v2422 = vand.u32 %v1894, 4294901760
  %v2423 = vsub.f32 %v1894, %v2422
  %2424 = vmatpush.msra.mxu0 %v2423
  %v2425 = vand.u32 %v1893, 4294901760
  %v2426 = vsub.f32 %v1893, %v2425
  %2427 = vmatpush.msra.mxu0 %v2426
  %v2428 = vand.u32 %v1892, 4294901760
  %v2429 = vsub.f32 %v1892, %v2428
  %2430 = vmatpush.msra.mxu0 %v2429
  %v2431 = vand.u32 %v1891, 4294901760
  %v2432 = vsub.f32 %v1891, %v2431
  %2433 = vmatpush.msra.mxu0 %v2432
  %v2434 = vand.u32 %v1890, 4294901760
  %v2435 = vsub.f32 %v1890, %v2434
  %2436 = vmatpush.msra.mxu0 %v2435
  %v2437 = vand.u32 %v1889, 4294901760
  %v2438 = vsub.f32 %v1889, %v2437
  %2439 = vmatpush.msra.mxu0 %v2438
  %v2440 = vand.u32 %v1888, 4294901760
  %v2441 = vsub.f32 %v1888, %v2440
  %2442 = vmatpush.msra.mxu0 %v2441
  %v2443 = vand.u32 %v1887, 4294901760
  %v2444 = vsub.f32 %v1887, %v2443
  %2445 = vmatpush.msra.mxu0 %v2444
  %v2446 = vand.u32 %v1886, 4294901760
  %v2447 = vsub.f32 %v1886, %v2446
  %2448 = vmatpush.msra.mxu0 %v2447
  %v2449 = vand.u32 %v1885, 4294901760
  %v2450 = vsub.f32 %v1885, %v2449
  %2451 = vmatpush.msra.mxu0 %v2450
  %v2452 = vand.u32 %v1884, 4294901760
  %v2453 = vsub.f32 %v1884, %v2452
  %2454 = vmatpush.msra.mxu0 %v2453
  %v2455 = vand.u32 %v1883, 4294901760
  %v2456 = vsub.f32 %v1883, %v2455
  %2457 = vmatpush.msra.mxu0 %v2456
  %v2458 = vand.u32 %v1882, 4294901760
  %v2459 = vsub.f32 %v1882, %v2458
  %2460 = vmatpush.msra.mxu0 %v2459
  %v2461 = vand.u32 %v1863, 4294901760
  %v2462 = vsub.f32 %v1863, %v2461
  %2463 = vmatmul.f32.gmra.mxu0 %v2462
  %v2464 = vpop.f32.mrf.mxu0
  %v2465 = vadd.f32 %v2411, %v2464
  %2466 = vdwg.mxu0
  %v2467 = vand.u32 %v1897, 4294901760
  %2468 = vmatpush.msra.mxu0 %v2467
  %v2469 = vand.u32 %v1896, 4294901760
  %2470 = vmatpush.msra.mxu0 %v2469
  %v2471 = vand.u32 %v1895, 4294901760
  %2472 = vmatpush.msra.mxu0 %v2471
  %v2473 = vand.u32 %v1894, 4294901760
  %2474 = vmatpush.msra.mxu0 %v2473
  %v2475 = vand.u32 %v1893, 4294901760
  %2476 = vmatpush.msra.mxu0 %v2475
  %v2477 = vand.u32 %v1892, 4294901760
  %2478 = vmatpush.msra.mxu0 %v2477
  %v2479 = vand.u32 %v1891, 4294901760
  %2480 = vmatpush.msra.mxu0 %v2479
  %v2481 = vand.u32 %v1890, 4294901760
  %2482 = vmatpush.msra.mxu0 %v2481
  %v2483 = vand.u32 %v1889, 4294901760
  %2484 = vmatpush.msra.mxu0 %v2483
  %v2485 = vand.u32 %v1888, 4294901760
  %2486 = vmatpush.msra.mxu0 %v2485
  %v2487 = vand.u32 %v1887, 4294901760
  %2488 = vmatpush.msra.mxu0 %v2487
  %v2489 = vand.u32 %v1886, 4294901760
  %2490 = vmatpush.msra.mxu0 %v2489
  %v2491 = vand.u32 %v1885, 4294901760
  %2492 = vmatpush.msra.mxu0 %v2491
  %v2493 = vand.u32 %v1884, 4294901760
  %2494 = vmatpush.msra.mxu0 %v2493
  %v2495 = vand.u32 %v1883, 4294901760
  %2496 = vmatpush.msra.mxu0 %v2495
  %v2497 = vand.u32 %v1882, 4294901760
  %2498 = vmatpush.msra.mxu0 %v2497
  %v2499 = vand.u32 %v1863, 4294901760
  %v2500 = vsub.f32 %v1863, %v2499
  %v2501 = vand.u32 %v2500, 4294901760
  %2502 = vmatmul.f32.gmra.mxu0 %v2501
  %v2503 = vpop.f32.mrf.mxu0
  %v2504 = vadd.f32 %v2465, %v2503
  %2505 = vdwg.mxu0
  %v2506 = vand.u32 %v1897, 4294901760
  %v2507 = vsub.f32 %v1897, %v2506
  %v2508 = vand.u32 %v2507, 4294901760
  %2509 = vmatpush.msra.mxu0 %v2508
  %v2510 = vand.u32 %v1896, 4294901760
  %v2511 = vsub.f32 %v1896, %v2510
  %v2512 = vand.u32 %v2511, 4294901760
  %2513 = vmatpush.msra.mxu0 %v2512
  %v2514 = vand.u32 %v1895, 4294901760
  %v2515 = vsub.f32 %v1895, %v2514
  %v2516 = vand.u32 %v2515, 4294901760
  %2517 = vmatpush.msra.mxu0 %v2516
  %v2518 = vand.u32 %v1894, 4294901760
  %v2519 = vsub.f32 %v1894, %v2518
  %v2520 = vand.u32 %v2519, 4294901760
  %2521 = vmatpush.msra.mxu0 %v2520
  %v2522 = vand.u32 %v1893, 4294901760
  %v2523 = vsub.f32 %v1893, %v2522
  %v2524 = vand.u32 %v2523, 4294901760
  %2525 = vmatpush.msra.mxu0 %v2524
  %v2526 = vand.u32 %v1892, 4294901760
  %v2527 = vsub.f32 %v1892, %v2526
  %v2528 = vand.u32 %v2527, 4294901760
  %2529 = vmatpush.msra.mxu0 %v2528
  %v2530 = vand.u32 %v1891, 4294901760
  %v2531 = vsub.f32 %v1891, %v2530
  %v2532 = vand.u32 %v2531, 4294901760
  %2533 = vmatpush.msra.mxu0 %v2532
  %v2534 = vand.u32 %v1890, 4294901760
  %v2535 = vsub.f32 %v1890, %v2534
  %v2536 = vand.u32 %v2535, 4294901760
  %2537 = vmatpush.msra.mxu0 %v2536
  %v2538 = vand.u32 %v1889, 4294901760
  %v2539 = vsub.f32 %v1889, %v2538
  %v2540 = vand.u32 %v2539, 4294901760
  %2541 = vmatpush.msra.mxu0 %v2540
  %v2542 = vand.u32 %v1888, 4294901760
  %v2543 = vsub.f32 %v1888, %v2542
  %v2544 = vand.u32 %v2543, 4294901760
  %2545 = vmatpush.msra.mxu0 %v2544
  %v2546 = vand.u32 %v1887, 4294901760
  %v2547 = vsub.f32 %v1887, %v2546
  %v2548 = vand.u32 %v2547, 4294901760
  %2549 = vmatpush.msra.mxu0 %v2548
  %v2550 = vand.u32 %v1886, 4294901760
  %v2551 = vsub.f32 %v1886, %v2550
  %v2552 = vand.u32 %v2551, 4294901760
  %2553 = vmatpush.msra.mxu0 %v2552
  %v2554 = vand.u32 %v1885, 4294901760
  %v2555 = vsub.f32 %v1885, %v2554
  %v2556 = vand.u32 %v2555, 4294901760
  %2557 = vmatpush.msra.mxu0 %v2556
  %v2558 = vand.u32 %v1884, 4294901760
  %v2559 = vsub.f32 %v1884, %v2558
  %v2560 = vand.u32 %v2559, 4294901760
  %2561 = vmatpush.msra.mxu0 %v2560
  %v2562 = vand.u32 %v1883, 4294901760
  %v2563 = vsub.f32 %v1883, %v2562
  %v2564 = vand.u32 %v2563, 4294901760
  %2565 = vmatpush.msra.mxu0 %v2564
  %v2566 = vand.u32 %v1882, 4294901760
  %v2567 = vsub.f32 %v1882, %v2566
  %v2568 = vand.u32 %v2567, 4294901760
  %2569 = vmatpush.msra.mxu0 %v2568
  %v2570 = vand.u32 %v1863, 4294901760
  %2571 = vmatmul.f32.gmra.mxu0 %v2570
  %v2572 = vpop.f32.mrf.mxu0
  %v2573 = vadd.f32 %v2504, %v2572
  %2574 = vdwg.mxu0
  %v2575 = vand.u32 %v1897, 4294901760
  %2576 = vmatpush.msra.mxu0 %v2575
  %v2577 = vand.u32 %v1896, 4294901760
  %2578 = vmatpush.msra.mxu0 %v2577
  %v2579 = vand.u32 %v1895, 4294901760
  %2580 = vmatpush.msra.mxu0 %v2579
  %v2581 = vand.u32 %v1894, 4294901760
  %2582 = vmatpush.msra.mxu0 %v2581
  %v2583 = vand.u32 %v1893, 4294901760
  %2584 = vmatpush.msra.mxu0 %v2583
  %v2585 = vand.u32 %v1892, 4294901760
  %2586 = vmatpush.msra.mxu0 %v2585
  %v2587 = vand.u32 %v1891, 4294901760
  %2588 = vmatpush.msra.mxu0 %v2587
  %v2589 = vand.u32 %v1890, 4294901760
  %2590 = vmatpush.msra.mxu0 %v2589
  %v2591 = vand.u32 %v1889, 4294901760
  %2592 = vmatpush.msra.mxu0 %v2591
  %v2593 = vand.u32 %v1888, 4294901760
  %2594 = vmatpush.msra.mxu0 %v2593
  %v2595 = vand.u32 %v1887, 4294901760
  %2596 = vmatpush.msra.mxu0 %v2595
  %v2597 = vand.u32 %v1886, 4294901760
  %2598 = vmatpush.msra.mxu0 %v2597
  %v2599 = vand.u32 %v1885, 4294901760
  %2600 = vmatpush.msra.mxu0 %v2599
  %v2601 = vand.u32 %v1884, 4294901760
  %2602 = vmatpush.msra.mxu0 %v2601
  %v2603 = vand.u32 %v1883, 4294901760
  %2604 = vmatpush.msra.mxu0 %v2603
  %v2605 = vand.u32 %v1882, 4294901760
  %2606 = vmatpush.msra.mxu0 %v2605
  %v2607 = vand.u32 %v1863, 4294901760
  %2608 = vmatmul.f32.gmra.mxu0 %v2607
  %v2609 = vpop.f32.mrf.mxu0
  %v2610 = vadd.f32 %v2573, %v2609
  %2611 = vdwg.mxu0
  %v2612 = vand.u32 %v1913, 4294901760
  %2613 = vmatpush.msra.mxu0 %v2612
  %v2614 = vand.u32 %v1912, 4294901760
  %2615 = vmatpush.msra.mxu0 %v2614
  %v2616 = vand.u32 %v1911, 4294901760
  %2617 = vmatpush.msra.mxu0 %v2616
  %v2618 = vand.u32 %v1910, 4294901760
  %2619 = vmatpush.msra.mxu0 %v2618
  %v2620 = vand.u32 %v1909, 4294901760
  %2621 = vmatpush.msra.mxu0 %v2620
  %v2622 = vand.u32 %v1908, 4294901760
  %2623 = vmatpush.msra.mxu0 %v2622
  %v2624 = vand.u32 %v1907, 4294901760
  %2625 = vmatpush.msra.mxu0 %v2624
  %v2626 = vand.u32 %v1906, 4294901760
  %2627 = vmatpush.msra.mxu0 %v2626
  %v2628 = vand.u32 %v1905, 4294901760
  %2629 = vmatpush.msra.mxu0 %v2628
  %v2630 = vand.u32 %v1904, 4294901760
  %2631 = vmatpush.msra.mxu0 %v2630
  %v2632 = vand.u32 %v1903, 4294901760
  %2633 = vmatpush.msra.mxu0 %v2632
  %v2634 = vand.u32 %v1902, 4294901760
  %2635 = vmatpush.msra.mxu0 %v2634
  %v2636 = vand.u32 %v1901, 4294901760
  %2637 = vmatpush.msra.mxu0 %v2636
  %v2638 = vand.u32 %v1900, 4294901760
  %2639 = vmatpush.msra.mxu0 %v2638
  %v2640 = vand.u32 %v1899, 4294901760
  %2641 = vmatpush.msra.mxu0 %v2640
  %v2642 = vand.u32 %v1898, 4294901760
  %2643 = vmatpush.msra.mxu0 %v2642
  %v2644 = vand.u32 %v1864, 4294901760
  %v2645 = vsub.f32 %v1864, %v2644
  %v2646 = vand.u32 %v2645, 4294901760
  %v2647 = vsub.f32 %v2645, %v2646
  %v2648 = vand.u32 %v2647, 4294901760
  %2649 = vmatmul.f32.gmra.mxu0 %v2648
  %v2650 = vpop.f32.mrf.mxu0
  %v2651 = vadd.f32 %v2610, %v2650
  %2652 = vdwg.mxu0
  %v2653 = vand.u32 %v1913, 4294901760
  %v2654 = vsub.f32 %v1913, %v2653
  %v2655 = vand.u32 %v2654, 4294901760
  %v2656 = vsub.f32 %v2654, %v2655
  %v2657 = vand.u32 %v2656, 4294901760
  %2658 = vmatpush.msra.mxu0 %v2657
  %v2659 = vand.u32 %v1912, 4294901760
  %v2660 = vsub.f32 %v1912, %v2659
  %v2661 = vand.u32 %v2660, 4294901760
  %v2662 = vsub.f32 %v2660, %v2661
  %v2663 = vand.u32 %v2662, 4294901760
  %2664 = vmatpush.msra.mxu0 %v2663
  %v2665 = vand.u32 %v1911, 4294901760
  %v2666 = vsub.f32 %v1911, %v2665
  %v2667 = vand.u32 %v2666, 4294901760
  %v2668 = vsub.f32 %v2666, %v2667
  %v2669 = vand.u32 %v2668, 4294901760
  %2670 = vmatpush.msra.mxu0 %v2669
  %v2671 = vand.u32 %v1910, 4294901760
  %v2672 = vsub.f32 %v1910, %v2671
  %v2673 = vand.u32 %v2672, 4294901760
  %v2674 = vsub.f32 %v2672, %v2673
  %v2675 = vand.u32 %v2674, 4294901760
  %2676 = vmatpush.msra.mxu0 %v2675
  %v2677 = vand.u32 %v1909, 4294901760
  %v2678 = vsub.f32 %v1909, %v2677
  %v2679 = vand.u32 %v2678, 4294901760
  %v2680 = vsub.f32 %v2678, %v2679
  %v2681 = vand.u32 %v2680, 4294901760
  %2682 = vmatpush.msra.mxu0 %v2681
  %v2683 = vand.u32 %v1908, 4294901760
  %v2684 = vsub.f32 %v1908, %v2683
  %v2685 = vand.u32 %v2684, 4294901760
  %v2686 = vsub.f32 %v2684, %v2685
  %v2687 = vand.u32 %v2686, 4294901760
  %2688 = vmatpush.msra.mxu0 %v2687
  %v2689 = vand.u32 %v1907, 4294901760
  %v2690 = vsub.f32 %v1907, %v2689
  %v2691 = vand.u32 %v2690, 4294901760
  %v2692 = vsub.f32 %v2690, %v2691
  %v2693 = vand.u32 %v2692, 4294901760
  %2694 = vmatpush.msra.mxu0 %v2693
  %v2695 = vand.u32 %v1906, 4294901760
  %v2696 = vsub.f32 %v1906, %v2695
  %v2697 = vand.u32 %v2696, 4294901760
  %v2698 = vsub.f32 %v2696, %v2697
  %v2699 = vand.u32 %v2698, 4294901760
  %2700 = vmatpush.msra.mxu0 %v2699
  %v2701 = vand.u32 %v1905, 4294901760
  %v2702 = vsub.f32 %v1905, %v2701
  %v2703 = vand.u32 %v2702, 4294901760
  %v2704 = vsub.f32 %v2702, %v2703
  %v2705 = vand.u32 %v2704, 4294901760
  %2706 = vmatpush.msra.mxu0 %v2705
  %v2707 = vand.u32 %v1904, 4294901760
  %v2708 = vsub.f32 %v1904, %v2707
  %v2709 = vand.u32 %v2708, 4294901760
  %v2710 = vsub.f32 %v2708, %v2709
  %v2711 = vand.u32 %v2710, 4294901760
  %2712 = vmatpush.msra.mxu0 %v2711
  %v2713 = vand.u32 %v1903, 4294901760
  %v2714 = vsub.f32 %v1903, %v2713
  %v2715 = vand.u32 %v2714, 4294901760
  %v2716 = vsub.f32 %v2714, %v2715
  %v2717 = vand.u32 %v2716, 4294901760
  %2718 = vmatpush.msra.mxu0 %v2717
  %v2719 = vand.u32 %v1902, 4294901760
  %v2720 = vsub.f32 %v1902, %v2719
  %v2721 = vand.u32 %v2720, 4294901760
  %v2722 = vsub.f32 %v2720, %v2721
  %v2723 = vand.u32 %v2722, 4294901760
  %2724 = vmatpush.msra.mxu0 %v2723
  %v2725 = vand.u32 %v1901, 4294901760
  %v2726 = vsub.f32 %v1901, %v2725
  %v2727 = vand.u32 %v2726, 4294901760
  %v2728 = vsub.f32 %v2726, %v2727
  %v2729 = vand.u32 %v2728, 4294901760
  %2730 = vmatpush.msra.mxu0 %v2729
  %v2731 = vand.u32 %v1900, 4294901760
  %v2732 = vsub.f32 %v1900, %v2731
  %v2733 = vand.u32 %v2732, 4294901760
  %v2734 = vsub.f32 %v2732, %v2733
  %v2735 = vand.u32 %v2734, 4294901760
  %2736 = vmatpush.msra.mxu0 %v2735
  %v2737 = vand.u32 %v1899, 4294901760
  %v2738 = vsub.f32 %v1899, %v2737
  %v2739 = vand.u32 %v2738, 4294901760
  %v2740 = vsub.f32 %v2738, %v2739
  %v2741 = vand.u32 %v2740, 4294901760
  %2742 = vmatpush.msra.mxu0 %v2741
  %v2743 = vand.u32 %v1898, 4294901760
  %v2744 = vsub.f32 %v1898, %v2743
  %v2745 = vand.u32 %v2744, 4294901760
  %v2746 = vsub.f32 %v2744, %v2745
  %v2747 = vand.u32 %v2746, 4294901760
  %2748 = vmatpush.msra.mxu0 %v2747
  %v2749 = vand.u32 %v1864, 4294901760
  %2750 = vmatmul.f32.gmra.mxu0 %v2749
  %v2751 = vpop.f32.mrf.mxu0
  %v2752 = vadd.f32 %v2651, %v2751
  %2753 = vdwg.mxu0
  %v2754 = vand.u32 %v1913, 4294901760
  %v2755 = vsub.f32 %v1913, %v2754
  %2756 = vmatpush.msra.mxu0 %v2755
  %v2757 = vand.u32 %v1912, 4294901760
  %v2758 = vsub.f32 %v1912, %v2757
  %2759 = vmatpush.msra.mxu0 %v2758
  %v2760 = vand.u32 %v1911, 4294901760
  %v2761 = vsub.f32 %v1911, %v2760
  %2762 = vmatpush.msra.mxu0 %v2761
  %v2763 = vand.u32 %v1910, 4294901760
  %v2764 = vsub.f32 %v1910, %v2763
  %2765 = vmatpush.msra.mxu0 %v2764
  %v2766 = vand.u32 %v1909, 4294901760
  %v2767 = vsub.f32 %v1909, %v2766
  %2768 = vmatpush.msra.mxu0 %v2767
  %v2769 = vand.u32 %v1908, 4294901760
  %v2770 = vsub.f32 %v1908, %v2769
  %2771 = vmatpush.msra.mxu0 %v2770
  %v2772 = vand.u32 %v1907, 4294901760
  %v2773 = vsub.f32 %v1907, %v2772
  %2774 = vmatpush.msra.mxu0 %v2773
  %v2775 = vand.u32 %v1906, 4294901760
  %v2776 = vsub.f32 %v1906, %v2775
  %2777 = vmatpush.msra.mxu0 %v2776
  %v2778 = vand.u32 %v1905, 4294901760
  %v2779 = vsub.f32 %v1905, %v2778
  %2780 = vmatpush.msra.mxu0 %v2779
  %v2781 = vand.u32 %v1904, 4294901760
  %v2782 = vsub.f32 %v1904, %v2781
  %2783 = vmatpush.msra.mxu0 %v2782
  %v2784 = vand.u32 %v1903, 4294901760
  %v2785 = vsub.f32 %v1903, %v2784
  %2786 = vmatpush.msra.mxu0 %v2785
  %v2787 = vand.u32 %v1902, 4294901760
  %v2788 = vsub.f32 %v1902, %v2787
  %2789 = vmatpush.msra.mxu0 %v2788
  %v2790 = vand.u32 %v1901, 4294901760
  %v2791 = vsub.f32 %v1901, %v2790
  %2792 = vmatpush.msra.mxu0 %v2791
  %v2793 = vand.u32 %v1900, 4294901760
  %v2794 = vsub.f32 %v1900, %v2793
  %2795 = vmatpush.msra.mxu0 %v2794
  %v2796 = vand.u32 %v1899, 4294901760
  %v2797 = vsub.f32 %v1899, %v2796
  %2798 = vmatpush.msra.mxu0 %v2797
  %v2799 = vand.u32 %v1898, 4294901760
  %v2800 = vsub.f32 %v1898, %v2799
  %2801 = vmatpush.msra.mxu0 %v2800
  %v2802 = vand.u32 %v1864, 4294901760
  %v2803 = vsub.f32 %v1864, %v2802
  %2804 = vmatmul.f32.gmra.mxu0 %v2803
  %v2805 = vpop.f32.mrf.mxu0
  %v2806 = vadd.f32 %v2752, %v2805
  %2807 = vdwg.mxu0
  %v2808 = vand.u32 %v1913, 4294901760
  %2809 = vmatpush.msra.mxu0 %v2808
  %v2810 = vand.u32 %v1912, 4294901760
  %2811 = vmatpush.msra.mxu0 %v2810
  %v2812 = vand.u32 %v1911, 4294901760
  %2813 = vmatpush.msra.mxu0 %v2812
  %v2814 = vand.u32 %v1910, 4294901760
  %2815 = vmatpush.msra.mxu0 %v2814
  %v2816 = vand.u32 %v1909, 4294901760
  %2817 = vmatpush.msra.mxu0 %v2816
  %v2818 = vand.u32 %v1908, 4294901760
  %2819 = vmatpush.msra.mxu0 %v2818
  %v2820 = vand.u32 %v1907, 4294901760
  %2821 = vmatpush.msra.mxu0 %v2820
  %v2822 = vand.u32 %v1906, 4294901760
  %2823 = vmatpush.msra.mxu0 %v2822
  %v2824 = vand.u32 %v1905, 4294901760
  %2825 = vmatpush.msra.mxu0 %v2824
  %v2826 = vand.u32 %v1904, 4294901760
  %2827 = vmatpush.msra.mxu0 %v2826
  %v2828 = vand.u32 %v1903, 4294901760
  %2829 = vmatpush.msra.mxu0 %v2828
  %v2830 = vand.u32 %v1902, 4294901760
  %2831 = vmatpush.msra.mxu0 %v2830
  %v2832 = vand.u32 %v1901, 4294901760
  %2833 = vmatpush.msra.mxu0 %v2832
  %v2834 = vand.u32 %v1900, 4294901760
  %2835 = vmatpush.msra.mxu0 %v2834
  %v2836 = vand.u32 %v1899, 4294901760
  %2837 = vmatpush.msra.mxu0 %v2836
  %v2838 = vand.u32 %v1898, 4294901760
  %2839 = vmatpush.msra.mxu0 %v2838
  %v2840 = vand.u32 %v1864, 4294901760
  %v2841 = vsub.f32 %v1864, %v2840
  %v2842 = vand.u32 %v2841, 4294901760
  %2843 = vmatmul.f32.gmra.mxu0 %v2842
  %v2844 = vpop.f32.mrf.mxu0
  %v2845 = vadd.f32 %v2806, %v2844
  %2846 = vdwg.mxu0
  %v2847 = vand.u32 %v1913, 4294901760
  %v2848 = vsub.f32 %v1913, %v2847
  %v2849 = vand.u32 %v2848, 4294901760
  %2850 = vmatpush.msra.mxu0 %v2849
  %v2851 = vand.u32 %v1912, 4294901760
  %v2852 = vsub.f32 %v1912, %v2851
  %v2853 = vand.u32 %v2852, 4294901760
  %2854 = vmatpush.msra.mxu0 %v2853
  %v2855 = vand.u32 %v1911, 4294901760
  %v2856 = vsub.f32 %v1911, %v2855
  %v2857 = vand.u32 %v2856, 4294901760
  %2858 = vmatpush.msra.mxu0 %v2857
  %v2859 = vand.u32 %v1910, 4294901760
  %v2860 = vsub.f32 %v1910, %v2859
  %v2861 = vand.u32 %v2860, 4294901760
  %2862 = vmatpush.msra.mxu0 %v2861
  %v2863 = vand.u32 %v1909, 4294901760
  %v2864 = vsub.f32 %v1909, %v2863
  %v2865 = vand.u32 %v2864, 4294901760
  %2866 = vmatpush.msra.mxu0 %v2865
  %v2867 = vand.u32 %v1908, 4294901760
  %v2868 = vsub.f32 %v1908, %v2867
  %v2869 = vand.u32 %v2868, 4294901760
  %2870 = vmatpush.msra.mxu0 %v2869
  %v2871 = vand.u32 %v1907, 4294901760
  %v2872 = vsub.f32 %v1907, %v2871
  %v2873 = vand.u32 %v2872, 4294901760
  %2874 = vmatpush.msra.mxu0 %v2873
  %v2875 = vand.u32 %v1906, 4294901760
  %v2876 = vsub.f32 %v1906, %v2875
  %v2877 = vand.u32 %v2876, 4294901760
  %2878 = vmatpush.msra.mxu0 %v2877
  %v2879 = vand.u32 %v1905, 4294901760
  %v2880 = vsub.f32 %v1905, %v2879
  %v2881 = vand.u32 %v2880, 4294901760
  %2882 = vmatpush.msra.mxu0 %v2881
  %v2883 = vand.u32 %v1904, 4294901760
  %v2884 = vsub.f32 %v1904, %v2883
  %v2885 = vand.u32 %v2884, 4294901760
  %2886 = vmatpush.msra.mxu0 %v2885
  %v2887 = vand.u32 %v1903, 4294901760
  %v2888 = vsub.f32 %v1903, %v2887
  %v2889 = vand.u32 %v2888, 4294901760
  %2890 = vmatpush.msra.mxu0 %v2889
  %v2891 = vand.u32 %v1902, 4294901760
  %v2892 = vsub.f32 %v1902, %v2891
  %v2893 = vand.u32 %v2892, 4294901760
  %2894 = vmatpush.msra.mxu0 %v2893
  %v2895 = vand.u32 %v1901, 4294901760
  %v2896 = vsub.f32 %v1901, %v2895
  %v2897 = vand.u32 %v2896, 4294901760
  %2898 = vmatpush.msra.mxu0 %v2897
  %v2899 = vand.u32 %v1900, 4294901760
  %v2900 = vsub.f32 %v1900, %v2899
  %v2901 = vand.u32 %v2900, 4294901760
  %2902 = vmatpush.msra.mxu0 %v2901
  %v2903 = vand.u32 %v1899, 4294901760
  %v2904 = vsub.f32 %v1899, %v2903
  %v2905 = vand.u32 %v2904, 4294901760
  %2906 = vmatpush.msra.mxu0 %v2905
  %v2907 = vand.u32 %v1898, 4294901760
  %v2908 = vsub.f32 %v1898, %v2907
  %v2909 = vand.u32 %v2908, 4294901760
  %2910 = vmatpush.msra.mxu0 %v2909
  %v2911 = vand.u32 %v1864, 4294901760
  %2912 = vmatmul.f32.gmra.mxu0 %v2911
  %v2913 = vpop.f32.mrf.mxu0
  %v2914 = vadd.f32 %v2845, %v2913
  %2915 = vdwg.mxu0
  %v2916 = vand.u32 %v1913, 4294901760
  %2917 = vmatpush.msra.mxu0 %v2916
  %v2918 = vand.u32 %v1912, 4294901760
  %2919 = vmatpush.msra.mxu0 %v2918
  %v2920 = vand.u32 %v1911, 4294901760
  %2921 = vmatpush.msra.mxu0 %v2920
  %v2922 = vand.u32 %v1910, 4294901760
  %2923 = vmatpush.msra.mxu0 %v2922
  %v2924 = vand.u32 %v1909, 4294901760
  %2925 = vmatpush.msra.mxu0 %v2924
  %v2926 = vand.u32 %v1908, 4294901760
  %2927 = vmatpush.msra.mxu0 %v2926
  %v2928 = vand.u32 %v1907, 4294901760
  %2929 = vmatpush.msra.mxu0 %v2928
  %v2930 = vand.u32 %v1906, 4294901760
  %2931 = vmatpush.msra.mxu0 %v2930
  %v2932 = vand.u32 %v1905, 4294901760
  %2933 = vmatpush.msra.mxu0 %v2932
  %v2934 = vand.u32 %v1904, 4294901760
  %2935 = vmatpush.msra.mxu0 %v2934
  %v2936 = vand.u32 %v1903, 4294901760
  %2937 = vmatpush.msra.mxu0 %v2936
  %v2938 = vand.u32 %v1902, 4294901760
  %2939 = vmatpush.msra.mxu0 %v2938
  %v2940 = vand.u32 %v1901, 4294901760
  %2941 = vmatpush.msra.mxu0 %v2940
  %v2942 = vand.u32 %v1900, 4294901760
  %2943 = vmatpush.msra.mxu0 %v2942
  %v2944 = vand.u32 %v1899, 4294901760
  %2945 = vmatpush.msra.mxu0 %v2944
  %v2946 = vand.u32 %v1898, 4294901760
  %2947 = vmatpush.msra.mxu0 %v2946
  %v2948 = vand.u32 %v1864, 4294901760
  %2949 = vmatmul.f32.gmra.mxu0 %v2948
  %v2950 = vpop.f32.mrf.mxu0
  %v2951 = vadd.f32 %v2914, %v2950
  %2952 = vdwg.mxu0
  %v2953 = vand.u32 %v1929, 4294901760
  %2954 = vmatpush.msra.mxu0 %v2953
  %v2955 = vand.u32 %v1928, 4294901760
  %2956 = vmatpush.msra.mxu0 %v2955
  %v2957 = vand.u32 %v1927, 4294901760
  %2958 = vmatpush.msra.mxu0 %v2957
  %v2959 = vand.u32 %v1926, 4294901760
  %2960 = vmatpush.msra.mxu0 %v2959
  %v2961 = vand.u32 %v1925, 4294901760
  %2962 = vmatpush.msra.mxu0 %v2961
  %v2963 = vand.u32 %v1924, 4294901760
  %2964 = vmatpush.msra.mxu0 %v2963
  %v2965 = vand.u32 %v1923, 4294901760
  %2966 = vmatpush.msra.mxu0 %v2965
  %v2967 = vand.u32 %v1922, 4294901760
  %2968 = vmatpush.msra.mxu0 %v2967
  %v2969 = vand.u32 %v1921, 4294901760
  %2970 = vmatpush.msra.mxu0 %v2969
  %v2971 = vand.u32 %v1920, 4294901760
  %2972 = vmatpush.msra.mxu0 %v2971
  %v2973 = vand.u32 %v1919, 4294901760
  %2974 = vmatpush.msra.mxu0 %v2973
  %v2975 = vand.u32 %v1918, 4294901760
  %2976 = vmatpush.msra.mxu0 %v2975
  %v2977 = vand.u32 %v1917, 4294901760
  %2978 = vmatpush.msra.mxu0 %v2977
  %v2979 = vand.u32 %v1916, 4294901760
  %2980 = vmatpush.msra.mxu0 %v2979
  %v2981 = vand.u32 %v1915, 4294901760
  %2982 = vmatpush.msra.mxu0 %v2981
  %v2983 = vand.u32 %v1914, 4294901760
  %2984 = vmatpush.msra.mxu0 %v2983
  %v2985 = vand.u32 %v1865, 4294901760
  %v2986 = vsub.f32 %v1865, %v2985
  %v2987 = vand.u32 %v2986, 4294901760
  %v2988 = vsub.f32 %v2986, %v2987
  %v2989 = vand.u32 %v2988, 4294901760
  %2990 = vmatmul.f32.gmra.mxu0 %v2989
  %v2991 = vpop.f32.mrf.mxu0
  %v2992 = vadd.f32 %v2951, %v2991
  %2993 = vdwg.mxu0
  %v2994 = vand.u32 %v1929, 4294901760
  %v2995 = vsub.f32 %v1929, %v2994
  %v2996 = vand.u32 %v2995, 4294901760
  %v2997 = vsub.f32 %v2995, %v2996
  %v2998 = vand.u32 %v2997, 4294901760
  %2999 = vmatpush.msra.mxu0 %v2998
  %v3000 = vand.u32 %v1928, 4294901760
  %v3001 = vsub.f32 %v1928, %v3000
  %v3002 = vand.u32 %v3001, 4294901760
  %v3003 = vsub.f32 %v3001, %v3002
  %v3004 = vand.u32 %v3003, 4294901760
  %3005 = vmatpush.msra.mxu0 %v3004
  %v3006 = vand.u32 %v1927, 4294901760
  %v3007 = vsub.f32 %v1927, %v3006
  %v3008 = vand.u32 %v3007, 4294901760
  %v3009 = vsub.f32 %v3007, %v3008
  %v3010 = vand.u32 %v3009, 4294901760
  %3011 = vmatpush.msra.mxu0 %v3010
  %v3012 = vand.u32 %v1926, 4294901760
  %v3013 = vsub.f32 %v1926, %v3012
  %v3014 = vand.u32 %v3013, 4294901760
  %v3015 = vsub.f32 %v3013, %v3014
  %v3016 = vand.u32 %v3015, 4294901760
  %3017 = vmatpush.msra.mxu0 %v3016
  %v3018 = vand.u32 %v1925, 4294901760
  %v3019 = vsub.f32 %v1925, %v3018
  %v3020 = vand.u32 %v3019, 4294901760
  %v3021 = vsub.f32 %v3019, %v3020
  %v3022 = vand.u32 %v3021, 4294901760
  %3023 = vmatpush.msra.mxu0 %v3022
  %v3024 = vand.u32 %v1924, 4294901760
  %v3025 = vsub.f32 %v1924, %v3024
  %v3026 = vand.u32 %v3025, 4294901760
  %v3027 = vsub.f32 %v3025, %v3026
  %v3028 = vand.u32 %v3027, 4294901760
  %3029 = vmatpush.msra.mxu0 %v3028
  %v3030 = vand.u32 %v1923, 4294901760
  %v3031 = vsub.f32 %v1923, %v3030
  %v3032 = vand.u32 %v3031, 4294901760
  %v3033 = vsub.f32 %v3031, %v3032
  %v3034 = vand.u32 %v3033, 4294901760
  %3035 = vmatpush.msra.mxu0 %v3034
  %v3036 = vand.u32 %v1922, 4294901760
  %v3037 = vsub.f32 %v1922, %v3036
  %v3038 = vand.u32 %v3037, 4294901760
  %v3039 = vsub.f32 %v3037, %v3038
  %v3040 = vand.u32 %v3039, 4294901760
  %3041 = vmatpush.msra.mxu0 %v3040
  %v3042 = vand.u32 %v1921, 4294901760
  %v3043 = vsub.f32 %v1921, %v3042
  %v3044 = vand.u32 %v3043, 4294901760
  %v3045 = vsub.f32 %v3043, %v3044
  %v3046 = vand.u32 %v3045, 4294901760
  %3047 = vmatpush.msra.mxu0 %v3046
  %v3048 = vand.u32 %v1920, 4294901760
  %v3049 = vsub.f32 %v1920, %v3048
  %v3050 = vand.u32 %v3049, 4294901760
  %v3051 = vsub.f32 %v3049, %v3050
  %v3052 = vand.u32 %v3051, 4294901760
  %3053 = vmatpush.msra.mxu0 %v3052
  %v3054 = vand.u32 %v1919, 4294901760
  %v3055 = vsub.f32 %v1919, %v3054
  %v3056 = vand.u32 %v3055, 4294901760
  %v3057 = vsub.f32 %v3055, %v3056
  %v3058 = vand.u32 %v3057, 4294901760
  %3059 = vmatpush.msra.mxu0 %v3058
  %v3060 = vand.u32 %v1918, 4294901760
  %v3061 = vsub.f32 %v1918, %v3060
  %v3062 = vand.u32 %v3061, 4294901760
  %v3063 = vsub.f32 %v3061, %v3062
  %v3064 = vand.u32 %v3063, 4294901760
  %3065 = vmatpush.msra.mxu0 %v3064
  %v3066 = vand.u32 %v1917, 4294901760
  %v3067 = vsub.f32 %v1917, %v3066
  %v3068 = vand.u32 %v3067, 4294901760
  %v3069 = vsub.f32 %v3067, %v3068
  %v3070 = vand.u32 %v3069, 4294901760
  %3071 = vmatpush.msra.mxu0 %v3070
  %v3072 = vand.u32 %v1916, 4294901760
  %v3073 = vsub.f32 %v1916, %v3072
  %v3074 = vand.u32 %v3073, 4294901760
  %v3075 = vsub.f32 %v3073, %v3074
  %v3076 = vand.u32 %v3075, 4294901760
  %3077 = vmatpush.msra.mxu0 %v3076
  %v3078 = vand.u32 %v1915, 4294901760
  %v3079 = vsub.f32 %v1915, %v3078
  %v3080 = vand.u32 %v3079, 4294901760
  %v3081 = vsub.f32 %v3079, %v3080
  %v3082 = vand.u32 %v3081, 4294901760
  %3083 = vmatpush.msra.mxu0 %v3082
  %v3084 = vand.u32 %v1914, 4294901760
  %v3085 = vsub.f32 %v1914, %v3084
  %v3086 = vand.u32 %v3085, 4294901760
  %v3087 = vsub.f32 %v3085, %v3086
  %v3088 = vand.u32 %v3087, 4294901760
  %3089 = vmatpush.msra.mxu0 %v3088
  %v3090 = vand.u32 %v1865, 4294901760
  %3091 = vmatmul.f32.gmra.mxu0 %v3090
  %v3092 = vpop.f32.mrf.mxu0
  %v3093 = vadd.f32 %v2992, %v3092
  %3094 = vdwg.mxu0
  %v3095 = vand.u32 %v1929, 4294901760
  %v3096 = vsub.f32 %v1929, %v3095
  %3097 = vmatpush.msra.mxu0 %v3096
  %v3098 = vand.u32 %v1928, 4294901760
  %v3099 = vsub.f32 %v1928, %v3098
  %3100 = vmatpush.msra.mxu0 %v3099
  %v3101 = vand.u32 %v1927, 4294901760
  %v3102 = vsub.f32 %v1927, %v3101
  %3103 = vmatpush.msra.mxu0 %v3102
  %v3104 = vand.u32 %v1926, 4294901760
  %v3105 = vsub.f32 %v1926, %v3104
  %3106 = vmatpush.msra.mxu0 %v3105
  %v3107 = vand.u32 %v1925, 4294901760
  %v3108 = vsub.f32 %v1925, %v3107
  %3109 = vmatpush.msra.mxu0 %v3108
  %v3110 = vand.u32 %v1924, 4294901760
  %v3111 = vsub.f32 %v1924, %v3110
  %3112 = vmatpush.msra.mxu0 %v3111
  %v3113 = vand.u32 %v1923, 4294901760
  %v3114 = vsub.f32 %v1923, %v3113
  %3115 = vmatpush.msra.mxu0 %v3114
  %v3116 = vand.u32 %v1922, 4294901760
  %v3117 = vsub.f32 %v1922, %v3116
  %3118 = vmatpush.msra.mxu0 %v3117
  %v3119 = vand.u32 %v1921, 4294901760
  %v3120 = vsub.f32 %v1921, %v3119
  %3121 = vmatpush.msra.mxu0 %v3120
  %v3122 = vand.u32 %v1920, 4294901760
  %v3123 = vsub.f32 %v1920, %v3122
  %3124 = vmatpush.msra.mxu0 %v3123
  %v3125 = vand.u32 %v1919, 4294901760
  %v3126 = vsub.f32 %v1919, %v3125
  %3127 = vmatpush.msra.mxu0 %v3126
  %v3128 = vand.u32 %v1918, 4294901760
  %v3129 = vsub.f32 %v1918, %v3128
  %3130 = vmatpush.msra.mxu0 %v3129
  %v3131 = vand.u32 %v1917, 4294901760
  %v3132 = vsub.f32 %v1917, %v3131
  %3133 = vmatpush.msra.mxu0 %v3132
  %v3134 = vand.u32 %v1916, 4294901760
  %v3135 = vsub.f32 %v1916, %v3134
  %3136 = vmatpush.msra.mxu0 %v3135
  %v3137 = vand.u32 %v1915, 4294901760
  %v3138 = vsub.f32 %v1915, %v3137
  %3139 = vmatpush.msra.mxu0 %v3138
  %v3140 = vand.u32 %v1914, 4294901760
  %v3141 = vsub.f32 %v1914, %v3140
  %3142 = vmatpush.msra.mxu0 %v3141
  %v3143 = vand.u32 %v1865, 4294901760
  %v3144 = vsub.f32 %v1865, %v3143
  %3145 = vmatmul.f32.gmra.mxu0 %v3144
  %v3146 = vpop.f32.mrf.mxu0
  %v3147 = vadd.f32 %v3093, %v3146
  %3148 = vdwg.mxu0
  %v3149 = vand.u32 %v1929, 4294901760
  %3150 = vmatpush.msra.mxu0 %v3149
  %v3151 = vand.u32 %v1928, 4294901760
  %3152 = vmatpush.msra.mxu0 %v3151
  %v3153 = vand.u32 %v1927, 4294901760
  %3154 = vmatpush.msra.mxu0 %v3153
  %v3155 = vand.u32 %v1926, 4294901760
  %3156 = vmatpush.msra.mxu0 %v3155
  %v3157 = vand.u32 %v1925, 4294901760
  %3158 = vmatpush.msra.mxu0 %v3157
  %v3159 = vand.u32 %v1924, 4294901760
  %3160 = vmatpush.msra.mxu0 %v3159
  %v3161 = vand.u32 %v1923, 4294901760
  %3162 = vmatpush.msra.mxu0 %v3161
  %v3163 = vand.u32 %v1922, 4294901760
  %3164 = vmatpush.msra.mxu0 %v3163
  %v3165 = vand.u32 %v1921, 4294901760
  %3166 = vmatpush.msra.mxu0 %v3165
  %v3167 = vand.u32 %v1920, 4294901760
  %3168 = vmatpush.msra.mxu0 %v3167
  %v3169 = vand.u32 %v1919, 4294901760
  %3170 = vmatpush.msra.mxu0 %v3169
  %v3171 = vand.u32 %v1918, 4294901760
  %3172 = vmatpush.msra.mxu0 %v3171
  %v3173 = vand.u32 %v1917, 4294901760
  %3174 = vmatpush.msra.mxu0 %v3173
  %v3175 = vand.u32 %v1916, 4294901760
  %3176 = vmatpush.msra.mxu0 %v3175
  %v3177 = vand.u32 %v1915, 4294901760
  %3178 = vmatpush.msra.mxu0 %v3177
  %v3179 = vand.u32 %v1914, 4294901760
  %3180 = vmatpush.msra.mxu0 %v3179
  %v3181 = vand.u32 %v1865, 4294901760
  %v3182 = vsub.f32 %v1865, %v3181
  %v3183 = vand.u32 %v3182, 4294901760
  %3184 = vmatmul.f32.gmra.mxu0 %v3183
  %v3185 = vpop.f32.mrf.mxu0
  %v3186 = vadd.f32 %v3147, %v3185
  %3187 = vdwg.mxu0
  %v3188 = vand.u32 %v1929, 4294901760
  %v3189 = vsub.f32 %v1929, %v3188
  %v3190 = vand.u32 %v3189, 4294901760
  %3191 = vmatpush.msra.mxu0 %v3190
  %v3192 = vand.u32 %v1928, 4294901760
  %v3193 = vsub.f32 %v1928, %v3192
  %v3194 = vand.u32 %v3193, 4294901760
  %3195 = vmatpush.msra.mxu0 %v3194
  %v3196 = vand.u32 %v1927, 4294901760
  %v3197 = vsub.f32 %v1927, %v3196
  %v3198 = vand.u32 %v3197, 4294901760
  %3199 = vmatpush.msra.mxu0 %v3198
  %v3200 = vand.u32 %v1926, 4294901760
  %v3201 = vsub.f32 %v1926, %v3200
  %v3202 = vand.u32 %v3201, 4294901760
  %3203 = vmatpush.msra.mxu0 %v3202
  %v3204 = vand.u32 %v1925, 4294901760
  %v3205 = vsub.f32 %v1925, %v3204
  %v3206 = vand.u32 %v3205, 4294901760
  %3207 = vmatpush.msra.mxu0 %v3206
  %v3208 = vand.u32 %v1924, 4294901760
  %v3209 = vsub.f32 %v1924, %v3208
  %v3210 = vand.u32 %v3209, 4294901760
  %3211 = vmatpush.msra.mxu0 %v3210
  %v3212 = vand.u32 %v1923, 4294901760
  %v3213 = vsub.f32 %v1923, %v3212
  %v3214 = vand.u32 %v3213, 4294901760
  %3215 = vmatpush.msra.mxu0 %v3214
  %v3216 = vand.u32 %v1922, 4294901760
  %v3217 = vsub.f32 %v1922, %v3216
  %v3218 = vand.u32 %v3217, 4294901760
  %3219 = vmatpush.msra.mxu0 %v3218
  %v3220 = vand.u32 %v1921, 4294901760
  %v3221 = vsub.f32 %v1921, %v3220
  %v3222 = vand.u32 %v3221, 4294901760
  %3223 = vmatpush.msra.mxu0 %v3222
  %v3224 = vand.u32 %v1920, 4294901760
  %v3225 = vsub.f32 %v1920, %v3224
  %v3226 = vand.u32 %v3225, 4294901760
  %3227 = vmatpush.msra.mxu0 %v3226
  %v3228 = vand.u32 %v1919, 4294901760
  %v3229 = vsub.f32 %v1919, %v3228
  %v3230 = vand.u32 %v3229, 4294901760
  %3231 = vmatpush.msra.mxu0 %v3230
  %v3232 = vand.u32 %v1918, 4294901760
  %v3233 = vsub.f32 %v1918, %v3232
  %v3234 = vand.u32 %v3233, 4294901760
  %3235 = vmatpush.msra.mxu0 %v3234
  %v3236 = vand.u32 %v1917, 4294901760
  %v3237 = vsub.f32 %v1917, %v3236
  %v3238 = vand.u32 %v3237, 4294901760
  %3239 = vmatpush.msra.mxu0 %v3238
  %v3240 = vand.u32 %v1916, 4294901760
  %v3241 = vsub.f32 %v1916, %v3240
  %v3242 = vand.u32 %v3241, 4294901760
  %3243 = vmatpush.msra.mxu0 %v3242
  %v3244 = vand.u32 %v1915, 4294901760
  %v3245 = vsub.f32 %v1915, %v3244
  %v3246 = vand.u32 %v3245, 4294901760
  %3247 = vmatpush.msra.mxu0 %v3246
  %v3248 = vand.u32 %v1914, 4294901760
  %v3249 = vsub.f32 %v1914, %v3248
  %v3250 = vand.u32 %v3249, 4294901760
  %3251 = vmatpush.msra.mxu0 %v3250
  %v3252 = vand.u32 %v1865, 4294901760
  %3253 = vmatmul.f32.gmra.mxu0 %v3252
  %v3254 = vpop.f32.mrf.mxu0
  %v3255 = vadd.f32 %v3186, %v3254
  %3256 = vdwg.mxu0
  %v3257 = vand.u32 %v1929, 4294901760
  %3258 = vmatpush.msra.mxu0 %v3257
  %v3259 = vand.u32 %v1928, 4294901760
  %3260 = vmatpush.msra.mxu0 %v3259
  %v3261 = vand.u32 %v1927, 4294901760
  %3262 = vmatpush.msra.mxu0 %v3261
  %v3263 = vand.u32 %v1926, 4294901760
  %3264 = vmatpush.msra.mxu0 %v3263
  %v3265 = vand.u32 %v1925, 4294901760
  %3266 = vmatpush.msra.mxu0 %v3265
  %v3267 = vand.u32 %v1924, 4294901760
  %3268 = vmatpush.msra.mxu0 %v3267
  %v3269 = vand.u32 %v1923, 4294901760
  %3270 = vmatpush.msra.mxu0 %v3269
  %v3271 = vand.u32 %v1922, 4294901760
  %3272 = vmatpush.msra.mxu0 %v3271
  %v3273 = vand.u32 %v1921, 4294901760
  %3274 = vmatpush.msra.mxu0 %v3273
  %v3275 = vand.u32 %v1920, 4294901760
  %3276 = vmatpush.msra.mxu0 %v3275
  %v3277 = vand.u32 %v1919, 4294901760
  %3278 = vmatpush.msra.mxu0 %v3277
  %v3279 = vand.u32 %v1918, 4294901760
  %3280 = vmatpush.msra.mxu0 %v3279
  %v3281 = vand.u32 %v1917, 4294901760
  %3282 = vmatpush.msra.mxu0 %v3281
  %v3283 = vand.u32 %v1916, 4294901760
  %3284 = vmatpush.msra.mxu0 %v3283
  %v3285 = vand.u32 %v1915, 4294901760
  %3286 = vmatpush.msra.mxu0 %v3285
  %v3287 = vand.u32 %v1914, 4294901760
  %3288 = vmatpush.msra.mxu0 %v3287
  %v3289 = vand.u32 %v1865, 4294901760
  %3290 = vmatmul.f32.gmra.mxu0 %v3289
  %v3291 = vpop.f32.mrf.mxu0
  %v3292 = vadd.f32 %v3255, %v3291
  %3293 = vdwg.mxu0
  %v3294 = vrcp.pop 1024.0
  %v3295 = vmul.f32 1024.0, %v3294
  %v3296 = vsub.f32 1.0, %v3295
  %v3297 = vmul.f32 %v3294, %v3296
  %v3298 = vadd.f32 %v3294, %v3297
  %vm3299 = vweird.f32 %v3294
  %v3300 = vsel %vm3299, %v3294, %v3298
  %v3301 = vmul.f32 %v3292, %v3300
  %v3302 = vmul.f32 %v3301, %v3301
  %v3304 = vrot.slane %v3302, 7
  %v3306 = vsub.f32 %v3301, %v3304
  %v3307 = vmax.f32 %v3306, 0.0
  %v3308 = vld [vmem:[%s4] sm:$0x1]
  %v3309 = vadd.f32 %v3307, 1e-05
  %v3310 = vrsqrt.pop %v3309
  %v3311 = vmul.f32 %v3310, %v3309
  %v3312 = vmul.f32 %v3311, %v3310
  %v3313 = vmul.f32 0.5, %v3312
  %v3314 = vsub.f32 1.5, %v3313
  %v3315 = vmul.f32 %v3310, %v3314
  %vm3316 = vweird.f32 %v3309
  %vm3317 = vweird.f32 %v3310
  %vm3318 = vmor %vm3316, %vm3317
  %v3319 = vsel %vm3318, %v3310, %v3315
  %3321 = vst [vmem:[#allocation1] sm:$0xff] %v3319
  %s3322 = scalar_lea.vmem [#allocation1], 1
  %v3323 = vld [vmem:[%s3322] ss:$9 sm:$0xff]
  %v3325 = vmul.f32 %v3308, %v3323
  %v3326 = vld [vmem:[%s5] sm:$0x1]
  %v3327 = vmul.f32 %v3301, %v3325
  %v3328 = vsub.f32 %v3326, %v3327
  %v3330 = vperm.slane %v3328, 0
  %v3332 = vsel %vm1861, %v3325, %v3330
  %v3333 = vld [vmem:[%s3] sm:$0xff]
  %v3334 = vld [vmem:[%s3 + $0x8] sm:$0xff]
  %v3335 = vld [vmem:[%s3 + $0x10] sm:$0xff]
  %v3336 = vld [vmem:[%s3 + $0x18] sm:$0xff]
  %vm3337 = vcmask 64512
  %v3339 = vsel %vm3337, %v3332, 0
  %3341 = vmatpush.msra.mxu0 0.0
  %3342 = vmatpush.msra.mxu0 0.0
  %3343 = vmatpush.msra.mxu0 0.0
  %3344 = vmatpush.msra.mxu0 0.0
  %3345 = vmatpush.msra.mxu0 0.0
  %3346 = vmatpush.msra.mxu0 0.0
  %3347 = vmatpush.msra.mxu0 0.0
  %3348 = vmatpush.msra.mxu0 0.0
  %3349 = vmatpush.msra.mxu0 0.0
  %3350 = vmatpush.msra.mxu0 0.0
  %3351 = vmatpush.msra.mxu0 0.0
  %3352 = vmatpush.msra.mxu0 0.0
  %3353 = vmatpush.msra.mxu0 0.0
  %3354 = vmatpush.msra.mxu0 0.0
  %3355 = vmatpush.msra.mxu0 0.0
  %v3356 = vand.u32 %v3333, 4294901760
  %3357 = vmatpush.msra.mxu0 %v3356
  %v3358 = vand.u32 %v3339, 4294901760
  %v3359 = vsub.f32 %v3339, %v3358
  %v3360 = vand.u32 %v3359, 4294901760
  %v3361 = vsub.f32 %v3359, %v3360
  %v3362 = vand.u32 %v3361, 4294901760
  %3363 = vmatmul.f32.gmra.mxu0 %v3362
  %v3364 = vpop.f32.mrf.mxu0
  %v3365 = vadd.f32 0.0, %v3364
  %3366 = vdwg.mxu0
  %3367 = vmatpush.msra.mxu0 0.0
  %3368 = vmatpush.msra.mxu0 0.0
  %3369 = vmatpush.msra.mxu0 0.0
  %3370 = vmatpush.msra.mxu0 0.0
  %3371 = vmatpush.msra.mxu0 0.0
  %3372 = vmatpush.msra.mxu0 0.0
  %3373 = vmatpush.msra.mxu0 0.0
  %3374 = vmatpush.msra.mxu0 0.0
  %3375 = vmatpush.msra.mxu0 0.0
  %3376 = vmatpush.msra.mxu0 0.0
  %3377 = vmatpush.msra.mxu0 0.0
  %3378 = vmatpush.msra.mxu0 0.0
  %3379 = vmatpush.msra.mxu0 0.0
  %3380 = vmatpush.msra.mxu0 0.0
  %3381 = vmatpush.msra.mxu0 0.0
  %v3382 = vand.u32 %v3333, 4294901760
  %v3383 = vsub.f32 %v3333, %v3382
  %v3384 = vand.u32 %v3383, 4294901760
  %v3385 = vsub.f32 %v3383, %v3384
  %v3386 = vand.u32 %v3385, 4294901760
  %3387 = vmatpush.msra.mxu0 %v3386
  %v3388 = vand.u32 %v3339, 4294901760
  %3389 = vmatmul.f32.gmra.mxu0 %v3388
  %v3390 = vpop.f32.mrf.mxu0
  %v3391 = vadd.f32 %v3365, %v3390
  %3392 = vdwg.mxu0
  %3393 = vmatpush.msra.mxu0 0.0
  %3394 = vmatpush.msra.mxu0 0.0
  %3395 = vmatpush.msra.mxu0 0.0
  %3396 = vmatpush.msra.mxu0 0.0
  %3397 = vmatpush.msra.mxu0 0.0
  %3398 = vmatpush.msra.mxu0 0.0
  %3399 = vmatpush.msra.mxu0 0.0
  %3400 = vmatpush.msra.mxu0 0.0
  %3401 = vmatpush.msra.mxu0 0.0
  %3402 = vmatpush.msra.mxu0 0.0
  %3403 = vmatpush.msra.mxu0 0.0
  %3404 = vmatpush.msra.mxu0 0.0
  %3405 = vmatpush.msra.mxu0 0.0
  %3406 = vmatpush.msra.mxu0 0.0
  %3407 = vmatpush.msra.mxu0 0.0
  %v3408 = vand.u32 %v3333, 4294901760
  %v3409 = vsub.f32 %v3333, %v3408
  %3410 = vmatpush.msra.mxu0 %v3409
  %v3411 = vand.u32 %v3339, 4294901760
  %v3412 = vsub.f32 %v3339, %v3411
  %3413 = vmatmul.f32.gmra.mxu0 %v3412
  %v3414 = vpop.f32.mrf.mxu0
  %v3415 = vadd.f32 %v3391, %v3414
  %3416 = vdwg.mxu0
  %3417 = vmatpush.msra.mxu0 0.0
  %3418 = vmatpush.msra.mxu0 0.0
  %3419 = vmatpush.msra.mxu0 0.0
  %3420 = vmatpush.msra.mxu0 0.0
  %3421 = vmatpush.msra.mxu0 0.0
  %3422 = vmatpush.msra.mxu0 0.0
  %3423 = vmatpush.msra.mxu0 0.0
  %3424 = vmatpush.msra.mxu0 0.0
  %3425 = vmatpush.msra.mxu0 0.0
  %3426 = vmatpush.msra.mxu0 0.0
  %3427 = vmatpush.msra.mxu0 0.0
  %3428 = vmatpush.msra.mxu0 0.0
  %3429 = vmatpush.msra.mxu0 0.0
  %3430 = vmatpush.msra.mxu0 0.0
  %3431 = vmatpush.msra.mxu0 0.0
  %v3432 = vand.u32 %v3333, 4294901760
  %3433 = vmatpush.msra.mxu0 %v3432
  %v3434 = vand.u32 %v3339, 4294901760
  %v3435 = vsub.f32 %v3339, %v3434
  %v3436 = vand.u32 %v3435, 4294901760
  %3437 = vmatmul.f32.gmra.mxu0 %v3436
  %v3438 = vpop.f32.mrf.mxu0
  %v3439 = vadd.f32 %v3415, %v3438
  %3440 = vdwg.mxu0
  %3441 = vmatpush.msra.mxu0 0.0
  %3442 = vmatpush.msra.mxu0 0.0
  %3443 = vmatpush.msra.mxu0 0.0
  %3444 = vmatpush.msra.mxu0 0.0
  %3445 = vmatpush.msra.mxu0 0.0
  %3446 = vmatpush.msra.mxu0 0.0
  %3447 = vmatpush.msra.mxu0 0.0
  %3448 = vmatpush.msra.mxu0 0.0
  %3449 = vmatpush.msra.mxu0 0.0
  %3450 = vmatpush.msra.mxu0 0.0
  %3451 = vmatpush.msra.mxu0 0.0
  %3452 = vmatpush.msra.mxu0 0.0
  %3453 = vmatpush.msra.mxu0 0.0
  %3454 = vmatpush.msra.mxu0 0.0
  %3455 = vmatpush.msra.mxu0 0.0
  %v3456 = vand.u32 %v3333, 4294901760
  %v3457 = vsub.f32 %v3333, %v3456
  %v3458 = vand.u32 %v3457, 4294901760
  %3459 = vmatpush.msra.mxu0 %v3458
  %v3460 = vand.u32 %v3339, 4294901760
  %3461 = vmatmul.f32.gmra.mxu0 %v3460
  %v3462 = vpop.f32.mrf.mxu0
  %v3463 = vadd.f32 %v3439, %v3462
  %3464 = vdwg.mxu0
  %3465 = vmatpush.msra.mxu0 0.0
  %3466 = vmatpush.msra.mxu0 0.0
  %3467 = vmatpush.msra.mxu0 0.0
  %3468 = vmatpush.msra.mxu0 0.0
  %3469 = vmatpush.msra.mxu0 0.0
  %3470 = vmatpush.msra.mxu0 0.0
  %3471 = vmatpush.msra.mxu0 0.0
  %3472 = vmatpush.msra.mxu0 0.0
  %3473 = vmatpush.msra.mxu0 0.0
  %3474 = vmatpush.msra.mxu0 0.0
  %3475 = vmatpush.msra.mxu0 0.0
  %3476 = vmatpush.msra.mxu0 0.0
  %3477 = vmatpush.msra.mxu0 0.0
  %3478 = vmatpush.msra.mxu0 0.0
  %3479 = vmatpush.msra.mxu0 0.0
  %v3480 = vand.u32 %v3333, 4294901760
  %3481 = vmatpush.msra.mxu0 %v3480
  %v3482 = vand.u32 %v3339, 4294901760
  %3483 = vmatmul.f32.gmra.mxu0 %v3482
  %v3484 = vpop.f32.mrf.mxu0
  %v3485 = vadd.f32 %v3463, %v3484
  %3486 = vdwg.mxu0
  %3487 = vmatpush.msra.mxu0 0.0
  %3488 = vmatpush.msra.mxu0 0.0
  %3489 = vmatpush.msra.mxu0 0.0
  %3490 = vmatpush.msra.mxu0 0.0
  %3491 = vmatpush.msra.mxu0 0.0
  %3492 = vmatpush.msra.mxu0 0.0
  %3493 = vmatpush.msra.mxu0 0.0
  %3494 = vmatpush.msra.mxu0 0.0
  %3495 = vmatpush.msra.mxu0 0.0
  %3496 = vmatpush.msra.mxu0 0.0
  %3497 = vmatpush.msra.mxu0 0.0
  %3498 = vmatpush.msra.mxu0 0.0
  %3499 = vmatpush.msra.mxu0 0.0
  %3500 = vmatpush.msra.mxu0 0.0
  %3501 = vmatpush.msra.mxu0 0.0
  %v3502 = vand.u32 %v3334, 4294901760
  %3503 = vmatpush.msra.mxu0 %v3502
  %v3504 = vand.u32 %v3339, 4294901760
  %v3505 = vsub.f32 %v3339, %v3504
  %v3506 = vand.u32 %v3505, 4294901760
  %v3507 = vsub.f32 %v3505, %v3506
  %v3508 = vand.u32 %v3507, 4294901760
  %3509 = vmatmul.f32.gmra.mxu0 %v3508
  %v3510 = vpop.f32.mrf.mxu0
  %v3511 = vadd.f32 0.0, %v3510
  %3512 = vdwg.mxu0
  %3513 = vmatpush.msra.mxu0 0.0
  %3514 = vmatpush.msra.mxu0 0.0
  %3515 = vmatpush.msra.mxu0 0.0
  %3516 = vmatpush.msra.mxu0 0.0
  %3517 = vmatpush.msra.mxu0 0.0
  %3518 = vmatpush.msra.mxu0 0.0
  %3519 = vmatpush.msra.mxu0 0.0
  %3520 = vmatpush.msra.mxu0 0.0
  %3521 = vmatpush.msra.mxu0 0.0
  %3522 = vmatpush.msra.mxu0 0.0
  %3523 = vmatpush.msra.mxu0 0.0
  %3524 = vmatpush.msra.mxu0 0.0
  %3525 = vmatpush.msra.mxu0 0.0
  %3526 = vmatpush.msra.mxu0 0.0
  %3527 = vmatpush.msra.mxu0 0.0
  %v3528 = vand.u32 %v3334, 4294901760
  %v3529 = vsub.f32 %v3334, %v3528
  %v3530 = vand.u32 %v3529, 4294901760
  %v3531 = vsub.f32 %v3529, %v3530
  %v3532 = vand.u32 %v3531, 4294901760
  %3533 = vmatpush.msra.mxu0 %v3532
  %v3534 = vand.u32 %v3339, 4294901760
  %3535 = vmatmul.f32.gmra.mxu0 %v3534
  %v3536 = vpop.f32.mrf.mxu0
  %v3537 = vadd.f32 %v3511, %v3536
  %3538 = vdwg.mxu0
  %3539 = vmatpush.msra.mxu0 0.0
  %3540 = vmatpush.msra.mxu0 0.0
  %3541 = vmatpush.msra.mxu0 0.0
  %3542 = vmatpush.msra.mxu0 0.0
  %3543 = vmatpush.msra.mxu0 0.0
  %3544 = vmatpush.msra.mxu0 0.0
  %3545 = vmatpush.msra.mxu0 0.0
  %3546 = vmatpush.msra.mxu0 0.0
  %3547 = vmatpush.msra.mxu0 0.0
  %3548 = vmatpush.msra.mxu0 0.0
  %3549 = vmatpush.msra.mxu0 0.0
  %3550 = vmatpush.msra.mxu0 0.0
  %3551 = vmatpush.msra.mxu0 0.0
  %3552 = vmatpush.msra.mxu0 0.0
  %3553 = vmatpush.msra.mxu0 0.0
  %v3554 = vand.u32 %v3334, 4294901760
  %v3555 = vsub.f32 %v3334, %v3554
  %3556 = vmatpush.msra.mxu0 %v3555
  %v3557 = vand.u32 %v3339, 4294901760
  %v3558 = vsub.f32 %v3339, %v3557
  %3559 = vmatmul.f32.gmra.mxu0 %v3558
  %v3560 = vpop.f32.mrf.mxu0
  %v3561 = vadd.f32 %v3537, %v3560
  %3562 = vdwg.mxu0
  %3563 = vmatpush.msra.mxu0 0.0
  %3564 = vmatpush.msra.mxu0 0.0
  %3565 = vmatpush.msra.mxu0 0.0
  %3566 = vmatpush.msra.mxu0 0.0
  %3567 = vmatpush.msra.mxu0 0.0
  %3568 = vmatpush.msra.mxu0 0.0
  %3569 = vmatpush.msra.mxu0 0.0
  %3570 = vmatpush.msra.mxu0 0.0
  %3571 = vmatpush.msra.mxu0 0.0
  %3572 = vmatpush.msra.mxu0 0.0
  %3573 = vmatpush.msra.mxu0 0.0
  %3574 = vmatpush.msra.mxu0 0.0
  %3575 = vmatpush.msra.mxu0 0.0
  %3576 = vmatpush.msra.mxu0 0.0
  %3577 = vmatpush.msra.mxu0 0.0
  %v3578 = vand.u32 %v3334, 4294901760
  %3579 = vmatpush.msra.mxu0 %v3578
  %v3580 = vand.u32 %v3339, 4294901760
  %v3581 = vsub.f32 %v3339, %v3580
  %v3582 = vand.u32 %v3581, 4294901760
  %3583 = vmatmul.f32.gmra.mxu0 %v3582
  %v3584 = vpop.f32.mrf.mxu0
  %v3585 = vadd.f32 %v3561, %v3584
  %3586 = vdwg.mxu0
  %3587 = vmatpush.msra.mxu0 0.0
  %3588 = vmatpush.msra.mxu0 0.0
  %3589 = vmatpush.msra.mxu0 0.0
  %3590 = vmatpush.msra.mxu0 0.0
  %3591 = vmatpush.msra.mxu0 0.0
  %3592 = vmatpush.msra.mxu0 0.0
  %3593 = vmatpush.msra.mxu0 0.0
  %3594 = vmatpush.msra.mxu0 0.0
  %3595 = vmatpush.msra.mxu0 0.0
  %3596 = vmatpush.msra.mxu0 0.0
  %3597 = vmatpush.msra.mxu0 0.0
  %3598 = vmatpush.msra.mxu0 0.0
  %3599 = vmatpush.msra.mxu0 0.0
  %3600 = vmatpush.msra.mxu0 0.0
  %3601 = vmatpush.msra.mxu0 0.0
  %v3602 = vand.u32 %v3334, 4294901760
  %v3603 = vsub.f32 %v3334, %v3602
  %v3604 = vand.u32 %v3603, 4294901760
  %3605 = vmatpush.msra.mxu0 %v3604
  %v3606 = vand.u32 %v3339, 4294901760
  %3607 = vmatmul.f32.gmra.mxu0 %v3606
  %v3608 = vpop.f32.mrf.mxu0
  %v3609 = vadd.f32 %v3585, %v3608
  %3610 = vdwg.mxu0
  %3611 = vmatpush.msra.mxu0 0.0
  %3612 = vmatpush.msra.mxu0 0.0
  %3613 = vmatpush.msra.mxu0 0.0
  %3614 = vmatpush.msra.mxu0 0.0
  %3615 = vmatpush.msra.mxu0 0.0
  %3616 = vmatpush.msra.mxu0 0.0
  %3617 = vmatpush.msra.mxu0 0.0
  %3618 = vmatpush.msra.mxu0 0.0
  %3619 = vmatpush.msra.mxu0 0.0
  %3620 = vmatpush.msra.mxu0 0.0
  %3621 = vmatpush.msra.mxu0 0.0
  %3622 = vmatpush.msra.mxu0 0.0
  %3623 = vmatpush.msra.mxu0 0.0
  %3624 = vmatpush.msra.mxu0 0.0
  %3625 = vmatpush.msra.mxu0 0.0
  %v3626 = vand.u32 %v3334, 4294901760
  %3627 = vmatpush.msra.mxu0 %v3626
  %v3628 = vand.u32 %v3339, 4294901760
  %3629 = vmatmul.f32.gmra.mxu0 %v3628
  %v3630 = vpop.f32.mrf.mxu0
  %v3631 = vadd.f32 %v3609, %v3630
  %3632 = vdwg.mxu0
  %3633 = vmatpush.msra.mxu0 0.0
  %3634 = vmatpush.msra.mxu0 0.0
  %3635 = vmatpush.msra.mxu0 0.0
  %3636 = vmatpush.msra.mxu0 0.0
  %3637 = vmatpush.msra.mxu0 0.0
  %3638 = vmatpush.msra.mxu0 0.0
  %3639 = vmatpush.msra.mxu0 0.0
  %3640 = vmatpush.msra.mxu0 0.0
  %3641 = vmatpush.msra.mxu0 0.0
  %3642 = vmatpush.msra.mxu0 0.0
  %3643 = vmatpush.msra.mxu0 0.0
  %3644 = vmatpush.msra.mxu0 0.0
  %3645 = vmatpush.msra.mxu0 0.0
  %3646 = vmatpush.msra.mxu0 0.0
  %3647 = vmatpush.msra.mxu0 0.0
  %v3648 = vand.u32 %v3335, 4294901760
  %3649 = vmatpush.msra.mxu0 %v3648
  %v3650 = vand.u32 %v3339, 4294901760
  %v3651 = vsub.f32 %v3339, %v3650
  %v3652 = vand.u32 %v3651, 4294901760
  %v3653 = vsub.f32 %v3651, %v3652
  %v3654 = vand.u32 %v3653, 4294901760
  %3655 = vmatmul.f32.gmra.mxu0 %v3654
  %v3656 = vpop.f32.mrf.mxu0
  %v3657 = vadd.f32 0.0, %v3656
  %3658 = vdwg.mxu0
  %3659 = vmatpush.msra.mxu0 0.0
  %3660 = vmatpush.msra.mxu0 0.0
  %3661 = vmatpush.msra.mxu0 0.0
  %3662 = vmatpush.msra.mxu0 0.0
  %3663 = vmatpush.msra.mxu0 0.0
  %3664 = vmatpush.msra.mxu0 0.0
  %3665 = vmatpush.msra.mxu0 0.0
  %3666 = vmatpush.msra.mxu0 0.0
  %3667 = vmatpush.msra.mxu0 0.0
  %3668 = vmatpush.msra.mxu0 0.0
  %3669 = vmatpush.msra.mxu0 0.0
  %3670 = vmatpush.msra.mxu0 0.0
  %3671 = vmatpush.msra.mxu0 0.0
  %3672 = vmatpush.msra.mxu0 0.0
  %3673 = vmatpush.msra.mxu0 0.0
  %v3674 = vand.u32 %v3335, 4294901760
  %v3675 = vsub.f32 %v3335, %v3674
  %v3676 = vand.u32 %v3675, 4294901760
  %v3677 = vsub.f32 %v3675, %v3676
  %v3678 = vand.u32 %v3677, 4294901760
  %3679 = vmatpush.msra.mxu0 %v3678
  %v3680 = vand.u32 %v3339, 4294901760
  %3681 = vmatmul.f32.gmra.mxu0 %v3680
  %v3682 = vpop.f32.mrf.mxu0
  %v3683 = vadd.f32 %v3657, %v3682
  %3684 = vdwg.mxu0
  %3685 = vmatpush.msra.mxu0 0.0
  %3686 = vmatpush.msra.mxu0 0.0
  %3687 = vmatpush.msra.mxu0 0.0
  %3688 = vmatpush.msra.mxu0 0.0
  %3689 = vmatpush.msra.mxu0 0.0
  %3690 = vmatpush.msra.mxu0 0.0
  %3691 = vmatpush.msra.mxu0 0.0
  %3692 = vmatpush.msra.mxu0 0.0
  %3693 = vmatpush.msra.mxu0 0.0
  %3694 = vmatpush.msra.mxu0 0.0
  %3695 = vmatpush.msra.mxu0 0.0
  %3696 = vmatpush.msra.mxu0 0.0
  %3697 = vmatpush.msra.mxu0 0.0
  %3698 = vmatpush.msra.mxu0 0.0
  %3699 = vmatpush.msra.mxu0 0.0
  %v3700 = vand.u32 %v3335, 4294901760
  %v3701 = vsub.f32 %v3335, %v3700
  %3702 = vmatpush.msra.mxu0 %v3701
  %v3703 = vand.u32 %v3339, 4294901760
  %v3704 = vsub.f32 %v3339, %v3703
  %3705 = vmatmul.f32.gmra.mxu0 %v3704
  %v3706 = vpop.f32.mrf.mxu0
  %v3707 = vadd.f32 %v3683, %v3706
  %3708 = vdwg.mxu0
  %3709 = vmatpush.msra.mxu0 0.0
  %3710 = vmatpush.msra.mxu0 0.0
  %3711 = vmatpush.msra.mxu0 0.0
  %3712 = vmatpush.msra.mxu0 0.0
  %3713 = vmatpush.msra.mxu0 0.0
  %3714 = vmatpush.msra.mxu0 0.0
  %3715 = vmatpush.msra.mxu0 0.0
  %3716 = vmatpush.msra.mxu0 0.0
  %3717 = vmatpush.msra.mxu0 0.0
  %3718 = vmatpush.msra.mxu0 0.0
  %3719 = vmatpush.msra.mxu0 0.0
  %3720 = vmatpush.msra.mxu0 0.0
  %3721 = vmatpush.msra.mxu0 0.0
  %3722 = vmatpush.msra.mxu0 0.0
  %3723 = vmatpush.msra.mxu0 0.0
  %v3724 = vand.u32 %v3335, 4294901760
  %3725 = vmatpush.msra.mxu0 %v3724
  %v3726 = vand.u32 %v3339, 4294901760
  %v3727 = vsub.f32 %v3339, %v3726
  %v3728 = vand.u32 %v3727, 4294901760
  %3729 = vmatmul.f32.gmra.mxu0 %v3728
  %v3730 = vpop.f32.mrf.mxu0
  %v3731 = vadd.f32 %v3707, %v3730
  %3732 = vdwg.mxu0
  %3733 = vmatpush.msra.mxu0 0.0
  %3734 = vmatpush.msra.mxu0 0.0
  %3735 = vmatpush.msra.mxu0 0.0
  %3736 = vmatpush.msra.mxu0 0.0
  %3737 = vmatpush.msra.mxu0 0.0
  %3738 = vmatpush.msra.mxu0 0.0
  %3739 = vmatpush.msra.mxu0 0.0
  %3740 = vmatpush.msra.mxu0 0.0
  %3741 = vmatpush.msra.mxu0 0.0
  %3742 = vmatpush.msra.mxu0 0.0
  %3743 = vmatpush.msra.mxu0 0.0
  %3744 = vmatpush.msra.mxu0 0.0
  %3745 = vmatpush.msra.mxu0 0.0
  %3746 = vmatpush.msra.mxu0 0.0
  %3747 = vmatpush.msra.mxu0 0.0
  %v3748 = vand.u32 %v3335, 4294901760
  %v3749 = vsub.f32 %v3335, %v3748
  %v3750 = vand.u32 %v3749, 4294901760
  %3751 = vmatpush.msra.mxu0 %v3750
  %v3752 = vand.u32 %v3339, 4294901760
  %3753 = vmatmul.f32.gmra.mxu0 %v3752
  %v3754 = vpop.f32.mrf.mxu0
  %v3755 = vadd.f32 %v3731, %v3754
  %3756 = vdwg.mxu0
  %3757 = vmatpush.msra.mxu0 0.0
  %3758 = vmatpush.msra.mxu0 0.0
  %3759 = vmatpush.msra.mxu0 0.0
  %3760 = vmatpush.msra.mxu0 0.0
  %3761 = vmatpush.msra.mxu0 0.0
  %3762 = vmatpush.msra.mxu0 0.0
  %3763 = vmatpush.msra.mxu0 0.0
  %3764 = vmatpush.msra.mxu0 0.0
  %3765 = vmatpush.msra.mxu0 0.0
  %3766 = vmatpush.msra.mxu0 0.0
  %3767 = vmatpush.msra.mxu0 0.0
  %3768 = vmatpush.msra.mxu0 0.0
  %3769 = vmatpush.msra.mxu0 0.0
  %3770 = vmatpush.msra.mxu0 0.0
  %3771 = vmatpush.msra.mxu0 0.0
  %v3772 = vand.u32 %v3335, 4294901760
  %3773 = vmatpush.msra.mxu0 %v3772
  %v3774 = vand.u32 %v3339, 4294901760
  %3775 = vmatmul.f32.gmra.mxu0 %v3774
  %v3776 = vpop.f32.mrf.mxu0
  %v3777 = vadd.f32 %v3755, %v3776
  %3778 = vdwg.mxu0
  %3779 = vmatpush.msra.mxu0 0.0
  %3780 = vmatpush.msra.mxu0 0.0
  %3781 = vmatpush.msra.mxu0 0.0
  %3782 = vmatpush.msra.mxu0 0.0
  %3783 = vmatpush.msra.mxu0 0.0
  %3784 = vmatpush.msra.mxu0 0.0
  %3785 = vmatpush.msra.mxu0 0.0
  %3786 = vmatpush.msra.mxu0 0.0
  %3787 = vmatpush.msra.mxu0 0.0
  %3788 = vmatpush.msra.mxu0 0.0
  %3789 = vmatpush.msra.mxu0 0.0
  %3790 = vmatpush.msra.mxu0 0.0
  %3791 = vmatpush.msra.mxu0 0.0
  %3792 = vmatpush.msra.mxu0 0.0
  %3793 = vmatpush.msra.mxu0 0.0
  %v3794 = vand.u32 %v3336, 4294901760
  %3795 = vmatpush.msra.mxu0 %v3794
  %v3796 = vand.u32 %v3339, 4294901760
  %v3797 = vsub.f32 %v3339, %v3796
  %v3798 = vand.u32 %v3797, 4294901760
  %v3799 = vsub.f32 %v3797, %v3798
  %v3800 = vand.u32 %v3799, 4294901760
  %3801 = vmatmul.f32.gmra.mxu0 %v3800
  %v3802 = vpop.f32.mrf.mxu0
  %v3803 = vadd.f32 0.0, %v3802
  %3804 = vdwg.mxu0
  %3805 = vmatpush.msra.mxu0 0.0
  %3806 = vmatpush.msra.mxu0 0.0
  %3807 = vmatpush.msra.mxu0 0.0
  %3808 = vmatpush.msra.mxu0 0.0
  %3809 = vmatpush.msra.mxu0 0.0
  %3810 = vmatpush.msra.mxu0 0.0
  %3811 = vmatpush.msra.mxu0 0.0
  %3812 = vmatpush.msra.mxu0 0.0
  %3813 = vmatpush.msra.mxu0 0.0
  %3814 = vmatpush.msra.mxu0 0.0
  %3815 = vmatpush.msra.mxu0 0.0
  %3816 = vmatpush.msra.mxu0 0.0
  %3817 = vmatpush.msra.mxu0 0.0
  %3818 = vmatpush.msra.mxu0 0.0
  %3819 = vmatpush.msra.mxu0 0.0
  %v3820 = vand.u32 %v3336, 4294901760
  %v3821 = vsub.f32 %v3336, %v3820
  %v3822 = vand.u32 %v3821, 4294901760
  %v3823 = vsub.f32 %v3821, %v3822
  %v3824 = vand.u32 %v3823, 4294901760
  %3825 = vmatpush.msra.mxu0 %v3824
  %v3826 = vand.u32 %v3339, 4294901760
  %3827 = vmatmul.f32.gmra.mxu0 %v3826
  %v3828 = vpop.f32.mrf.mxu0
  %v3829 = vadd.f32 %v3803, %v3828
  %3830 = vdwg.mxu0
  %3831 = vmatpush.msra.mxu0 0.0
  %3832 = vmatpush.msra.mxu0 0.0
  %3833 = vmatpush.msra.mxu0 0.0
  %3834 = vmatpush.msra.mxu0 0.0
  %3835 = vmatpush.msra.mxu0 0.0
  %3836 = vmatpush.msra.mxu0 0.0
  %3837 = vmatpush.msra.mxu0 0.0
  %3838 = vmatpush.msra.mxu0 0.0
  %3839 = vmatpush.msra.mxu0 0.0
  %3840 = vmatpush.msra.mxu0 0.0
  %3841 = vmatpush.msra.mxu0 0.0
  %3842 = vmatpush.msra.mxu0 0.0
  %3843 = vmatpush.msra.mxu0 0.0
  %3844 = vmatpush.msra.mxu0 0.0
  %3845 = vmatpush.msra.mxu0 0.0
  %v3846 = vand.u32 %v3336, 4294901760
  %v3847 = vsub.f32 %v3336, %v3846
  %3848 = vmatpush.msra.mxu0 %v3847
  %v3849 = vand.u32 %v3339, 4294901760
  %v3850 = vsub.f32 %v3339, %v3849
  %3851 = vmatmul.f32.gmra.mxu0 %v3850
  %v3852 = vpop.f32.mrf.mxu0
  %v3853 = vadd.f32 %v3829, %v3852
  %3854 = vdwg.mxu0
  %3855 = vmatpush.msra.mxu0 0.0
  %3856 = vmatpush.msra.mxu0 0.0
  %3857 = vmatpush.msra.mxu0 0.0
  %3858 = vmatpush.msra.mxu0 0.0
  %3859 = vmatpush.msra.mxu0 0.0
  %3860 = vmatpush.msra.mxu0 0.0
  %3861 = vmatpush.msra.mxu0 0.0
  %3862 = vmatpush.msra.mxu0 0.0
  %3863 = vmatpush.msra.mxu0 0.0
  %3864 = vmatpush.msra.mxu0 0.0
  %3865 = vmatpush.msra.mxu0 0.0
  %3866 = vmatpush.msra.mxu0 0.0
  %3867 = vmatpush.msra.mxu0 0.0
  %3868 = vmatpush.msra.mxu0 0.0
  %3869 = vmatpush.msra.mxu0 0.0
  %v3870 = vand.u32 %v3336, 4294901760
  %3871 = vmatpush.msra.mxu0 %v3870
  %v3872 = vand.u32 %v3339, 4294901760
  %v3873 = vsub.f32 %v3339, %v3872
  %v3874 = vand.u32 %v3873, 4294901760
  %3875 = vmatmul.f32.gmra.mxu0 %v3874
  %v3876 = vpop.f32.mrf.mxu0
  %v3877 = vadd.f32 %v3853, %v3876
  %3878 = vdwg.mxu0
  %3879 = vmatpush.msra.mxu0 0.0
  %3880 = vmatpush.msra.mxu0 0.0
  %3881 = vmatpush.msra.mxu0 0.0
  %3882 = vmatpush.msra.mxu0 0.0
  %3883 = vmatpush.msra.mxu0 0.0
  %3884 = vmatpush.msra.mxu0 0.0
  %3885 = vmatpush.msra.mxu0 0.0
  %3886 = vmatpush.msra.mxu0 0.0
  %3887 = vmatpush.msra.mxu0 0.0
  %3888 = vmatpush.msra.mxu0 0.0
  %3889 = vmatpush.msra.mxu0 0.0
  %3890 = vmatpush.msra.mxu0 0.0
  %3891 = vmatpush.msra.mxu0 0.0
  %3892 = vmatpush.msra.mxu0 0.0
  %3893 = vmatpush.msra.mxu0 0.0
  %v3894 = vand.u32 %v3336, 4294901760
  %v3895 = vsub.f32 %v3336, %v3894
  %v3896 = vand.u32 %v3895, 4294901760
  %3897 = vmatpush.msra.mxu0 %v3896
  %v3898 = vand.u32 %v3339, 4294901760
  %3899 = vmatmul.f32.gmra.mxu0 %v3898
  %v3900 = vpop.f32.mrf.mxu0
  %v3901 = vadd.f32 %v3877, %v3900
  %3902 = vdwg.mxu0
  %3903 = vmatpush.msra.mxu0 0.0
  %3904 = vmatpush.msra.mxu0 0.0
  %3905 = vmatpush.msra.mxu0 0.0
  %3906 = vmatpush.msra.mxu0 0.0
  %3907 = vmatpush.msra.mxu0 0.0
  %3908 = vmatpush.msra.mxu0 0.0
  %3909 = vmatpush.msra.mxu0 0.0
  %3910 = vmatpush.msra.mxu0 0.0
  %3911 = vmatpush.msra.mxu0 0.0
  %3912 = vmatpush.msra.mxu0 0.0
  %3913 = vmatpush.msra.mxu0 0.0
  %3914 = vmatpush.msra.mxu0 0.0
  %3915 = vmatpush.msra.mxu0 0.0
  %3916 = vmatpush.msra.mxu0 0.0
  %3917 = vmatpush.msra.mxu0 0.0
  %v3918 = vand.u32 %v3336, 4294901760
  %3919 = vmatpush.msra.mxu0 %v3918
  %v3920 = vand.u32 %v3339, 4294901760
  %3921 = vmatmul.f32.gmra.mxu0 %v3920
  %v3922 = vpop.f32.mrf.mxu0
  %v3923 = vadd.f32 %v3901, %v3922
  %3924 = vdwg.mxu0
  %v3925 = vperm.slane %v3485, 0
  %v3926 = vperm.slane %v3631, 0
  %v3927 = vperm.slane %v3777, 0
  %v3928 = vperm.slane %v3923, 0
  %v3929 = vmul.f32 %v1789, %v3925
  %v3930 = vmul.f32 %v1790, %v3926
  %v3931 = vmul.f32 %v1791, %v3927
  %v3932 = vmul.f32 %v1792, %v3928
  %v3933 = vmul.f32 %v1793, %v3925
  %v3934 = vmul.f32 %v1794, %v3926
  %v3935 = vmul.f32 %v1795, %v3927
  %v3936 = vmul.f32 %v1796, %v3928
  %v3937 = vperm.slane %v3485, 1
  %v3938 = vperm.slane %v3631, 1
  %v3939 = vperm.slane %v3777, 1
  %v3940 = vperm.slane %v3923, 1
  %v3941 = vadd.f32 %v3929, %v3937
  %v3942 = vadd.f32 %v3930, %v3938
  %v3943 = vadd.f32 %v3931, %v3939
  %v3944 = vadd.f32 %v3932, %v3940
  %v3945 = vadd.f32 %v3933, %v3937
  %v3946 = vadd.f32 %v3934, %v3938
  %v3947 = vadd.f32 %v3935, %v3939
  %v3948 = vadd.f32 %v3936, %v3940
  %v3949 = vmax.f32 %v3941, 0.0
  %v3950 = vmax.f32 %v3942, 0.0
  %v3951 = vmax.f32 %v3943, 0.0
  %v3952 = vmax.f32 %v3944, 0.0
  %v3953 = vmax.f32 %v3945, 0.0
  %v3954 = vmax.f32 %v3946, 0.0
  %v3955 = vmax.f32 %v3947, 0.0
  %v3956 = vmax.f32 %v3948, 0.0
  %v3957 = vld [vmem:[#allocation3] sm:$0x11]
  %v3958 = vsel %vm166, 0, %v3957
  %3959 = vst [vmem:[#allocation3] sm:$0x11] %v3958
  %v3960 = vld [vmem:[#allocation3 + $0x8] sm:$0x11]
  %v3961 = vsel %vm166, 0, %v3960
  %3962 = vst [vmem:[#allocation3 + $0x8] sm:$0x11] %v3961
  %v3963 = vld [vmem:[#allocation3 + $0x20] sm:$0x11]
  %v3964 = vsel %vm166, 0, %v3963
  %3965 = vst [vmem:[#allocation3 + $0x20] sm:$0x11] %v3964
  %v3966 = vld [vmem:[#allocation3 + $0x28] sm:$0x11]
  %v3967 = vsel %vm166, 0, %v3966
  %3968 = vst [vmem:[#allocation3 + $0x28] sm:$0x11] %v3967
  %v3969 = vld [vmem:[#allocation3 + $0x10] sm:$0x11]
  %v3970 = vsel %vm177, 0, %v3969
  %3971 = vst [vmem:[#allocation3 + $0x10] sm:$0x11] %v3970
  %v3972 = vld [vmem:[#allocation3 + $0x18] sm:$0x11]
  %v3973 = vsel %vm177, 0, %v3972
  %3974 = vst [vmem:[#allocation3 + $0x18] sm:$0x11] %v3973
  %v3975 = vld [vmem:[#allocation3 + $0x30] sm:$0x11]
  %v3976 = vsel %vm177, 0, %v3975
  %3977 = vst [vmem:[#allocation3 + $0x30] sm:$0x11] %v3976
  %v3978 = vld [vmem:[#allocation3 + $0x38] sm:$0x11]
  %v3979 = vsel %vm177, 0, %v3978
  %3980 = vst [vmem:[#allocation3 + $0x38] sm:$0x11] %v3979
  %v3981 = vpack.c.bf16 %v3950, %v3949
  %v3982 = vpack.c.bf16 %v3952, %v3951
  %v3983 = vpack.c.bf16 %v3954, %v3953
  %v3984 = vpack.c.bf16 %v3956, %v3955
  %v3986 = vshrl.u32 %v3981, 16
  %v3988 = vrot.slane %v3986, 7
  %v3989 = vshll.u32 %v3981, 16
  %v3991 = vor.u32 %v3988, %v3989
  %v3993 = vshrl.u32 %v3982, 16
  %v3995 = vrot.slane %v3993, 7
  %v3996 = vshll.u32 %v3982, 16
  %v3998 = vor.u32 %v3995, %v3996
  %v3999 = vrot.slane %v3988, 4
  %v4000 = vrot.slane %v3995, 4
  %v4002 = vshrl.u32 %v3983, 16
  %v4004 = vrot.slane %v4002, 7
  %v4005 = vshll.u32 %v3983, 16
  %v4007 = vor.u32 %v4004, %v4005
  %v4009 = vshrl.u32 %v3984, 16
  %v4011 = vrot.slane %v4009, 7
  %v4012 = vshll.u32 %v3984, 16
  %v4014 = vor.u32 %v4011, %v4012
  %v4015 = vrot.slane %v4004, 4
  %v4016 = vrot.slane %v4011, 4
  %v4025 = vld [vmem:[#allocation3] sm:$0xff]
  %v4026 = vsel %vm208, %v3991, %v4025
  %4027 = vst [vmem:[#allocation3] sm:$0xff] %v4026
  %v4028 = vld [vmem:[#allocation3 + $0x8] sm:$0xff]
  %v4029 = vsel %vm208, %v3998, %v4028
  %4030 = vst [vmem:[#allocation3 + $0x8] sm:$0xff] %v4029
  %v4031 = vld [vmem:[#allocation3 + $0x10] sm:$0x11]
  %v4032 = vsel %vm166, %v3999, %v4031
  %4033 = vst [vmem:[#allocation3 + $0x10] sm:$0x11] %v4032
  %v4034 = vld [vmem:[#allocation3 + $0x18] sm:$0x11]
  %v4035 = vsel %vm166, %v4000, %v4034
  %4036 = vst [vmem:[#allocation3 + $0x18] sm:$0x11] %v4035
  %v4037 = vld [vmem:[#allocation3 + $0x20] sm:$0xff]
  %v4038 = vsel %vm208, %v4007, %v4037
  %4039 = vst [vmem:[#allocation3 + $0x20] sm:$0xff] %v4038
  %v4040 = vld [vmem:[#allocation3 + $0x28] sm:$0xff]
  %v4041 = vsel %vm208, %v4014, %v4040
  %4042 = vst [vmem:[#allocation3 + $0x28] sm:$0xff] %v4041
  %v4043 = vld [vmem:[#allocation3 + $0x30] sm:$0x11]
  %v4044 = vsel %vm166, %v4015, %v4043
  %4045 = vst [vmem:[#allocation3 + $0x30] sm:$0x11] %v4044
  %v4046 = vld [vmem:[#allocation3 + $0x38] sm:$0x11]
  %v4047 = vsel %vm166, %v4016, %v4046
  %4048 = vst [vmem:[#allocation3 + $0x38] sm:$0x11] %v4047
  %v4049 = vld [vmem:[#allocation3] sm:$0xff]
  %v4050 = vld [vmem:[#allocation3 + $0x8] sm:$0xff]
  %v4051 = vld [vmem:[#allocation3 + $0x20] sm:$0xff]
  %v4052 = vld [vmem:[#allocation3 + $0x28] sm:$0xff]
  %v4053 = vld [vmem:[%s6] sm:$0xff]
  %v4054 = vld [vmem:[%s6 + $0x8] sm:$0xff]
  %v4055 = vld [vmem:[%s6 + $0x10] sm:$0xff]
  %v4056 = vld [vmem:[%s6 + $0x18] sm:$0xff]
  %v4057 = vld [vmem:[%s6 + $0x20] sm:$0xff]
  %v4058 = vld [vmem:[%s6 + $0x28] sm:$0xff]
  %v4059 = vld [vmem:[%s6 + $0x30] sm:$0xff]
  %v4060 = vld [vmem:[%s6 + $0x38] sm:$0xff]
  %v4061 = vld [vmem:[%s6 + $0x40] sm:$0xff]
  %v4062 = vld [vmem:[%s6 + $0x48] sm:$0xff]
  %v4063 = vld [vmem:[%s6 + $0x50] sm:$0xff]
  %v4064 = vld [vmem:[%s6 + $0x58] sm:$0xff]
  %v4065 = vld [vmem:[%s6 + $0x60] sm:$0xff]
  %v4066 = vld [vmem:[%s6 + $0x68] sm:$0xff]
  %v4067 = vld [vmem:[%s6 + $0x70] sm:$0xff]
  %v4068 = vld [vmem:[%s6 + $0x78] sm:$0xff]
  %v4069 = vld [vmem:[%s6 + $0x80] sm:$0xff]
  %v4070 = vld [vmem:[%s6 + $0x88] sm:$0xff]
  %v4071 = vld [vmem:[%s6 + $0x90] sm:$0xff]
  %v4072 = vld [vmem:[%s6 + $0x98] sm:$0xff]
  %v4073 = vld [vmem:[%s6 + $0xa0] sm:$0xff]
  %v4074 = vld [vmem:[%s6 + $0xa8] sm:$0xff]
  %v4075 = vld [vmem:[%s6 + $0xb0] sm:$0xff]
  %v4076 = vld [vmem:[%s6 + $0xb8] sm:$0xff]
  %v4077 = vld [vmem:[%s6 + $0xc0] sm:$0xff]
  %v4078 = vld [vmem:[%s6 + $0xc8] sm:$0xff]
  %v4079 = vld [vmem:[%s6 + $0xd0] sm:$0xff]
  %v4080 = vld [vmem:[%s6 + $0xd8] sm:$0xff]
  %v4081 = vld [vmem:[%s6 + $0xe0] sm:$0xff]
  %v4082 = vld [vmem:[%s6 + $0xe8] sm:$0xff]
  %v4083 = vld [vmem:[%s6 + $0xf0] sm:$0xff]
  %v4084 = vld [vmem:[%s6 + $0xf8] sm:$0xff]
  %v4085 = vld [vmem:[%s6 + $0x100] sm:$0xff]
  %v4086 = vld [vmem:[%s6 + $0x108] sm:$0xff]
  %v4087 = vld [vmem:[%s6 + $0x110] sm:$0xff]
  %v4088 = vld [vmem:[%s6 + $0x118] sm:$0xff]
  %v4089 = vld [vmem:[%s6 + $0x120] sm:$0xff]
  %v4090 = vld [vmem:[%s6 + $0x128] sm:$0xff]
  %v4091 = vld [vmem:[%s6 + $0x130] sm:$0xff]
  %v4092 = vld [vmem:[%s6 + $0x138] sm:$0xff]
  %v4093 = vld [vmem:[%s6 + $0x140] sm:$0xff]
  %v4094 = vld [vmem:[%s6 + $0x148] sm:$0xff]
  %v4095 = vld [vmem:[%s6 + $0x150] sm:$0xff]
  %v4096 = vld [vmem:[%s6 + $0x158] sm:$0xff]
  %v4097 = vld [vmem:[%s6 + $0x160] sm:$0xff]
  %v4098 = vld [vmem:[%s6 + $0x168] sm:$0xff]
  %v4099 = vld [vmem:[%s6 + $0x170] sm:$0xff]
  %v4100 = vld [vmem:[%s6 + $0x178] sm:$0xff]
  %v4101 = vld [vmem:[%s6 + $0x180] sm:$0xff]
  %v4102 = vld [vmem:[%s6 + $0x188] sm:$0xff]
  %v4103 = vld [vmem:[%s6 + $0x190] sm:$0xff]
  %v4104 = vld [vmem:[%s6 + $0x198] sm:$0xff]
  %v4105 = vld [vmem:[%s6 + $0x1a0] sm:$0xff]
  %v4106 = vld [vmem:[%s6 + $0x1a8] sm:$0xff]
  %v4107 = vld [vmem:[%s6 + $0x1b0] sm:$0xff]
  %v4108 = vld [vmem:[%s6 + $0x1b8] sm:$0xff]
  %v4109 = vld [vmem:[%s6 + $0x1c0] sm:$0xff]
  %v4110 = vld [vmem:[%s6 + $0x1c8] sm:$0xff]
  %v4111 = vld [vmem:[%s6 + $0x1d0] sm:$0xff]
  %v4112 = vld [vmem:[%s6 + $0x1d8] sm:$0xff]
  %v4113 = vld [vmem:[%s6 + $0x1e0] sm:$0xff]
  %v4114 = vld [vmem:[%s6 + $0x1e8] sm:$0xff]
  %v4115 = vld [vmem:[%s6 + $0x1f0] sm:$0xff]
  %v4116 = vld [vmem:[%s6 + $0x1f8] sm:$0xff]
  %v4117 = vld [vmem:[%s6 + $0x200] sm:$0xff]
  %v4118 = vld [vmem:[%s6 + $0x208] sm:$0xff]
  %v4119 = vld [vmem:[%s6 + $0x210] sm:$0xff]
  %v4120 = vld [vmem:[%s6 + $0x218] sm:$0xff]
  %v4121 = vld [vmem:[%s6 + $0x220] sm:$0xff]
  %v4122 = vld [vmem:[%s6 + $0x228] sm:$0xff]
  %v4123 = vld [vmem:[%s6 + $0x230] sm:$0xff]
  %v4124 = vld [vmem:[%s6 + $0x238] sm:$0xff]
  %v4125 = vld [vmem:[%s6 + $0x240] sm:$0xff]
  %v4126 = vld [vmem:[%s6 + $0x248] sm:$0xff]
  %v4127 = vld [vmem:[%s6 + $0x250] sm:$0xff]
  %v4128 = vld [vmem:[%s6 + $0x258] sm:$0xff]
  %v4129 = vld [vmem:[%s6 + $0x260] sm:$0xff]
  %v4130 = vld [vmem:[%s6 + $0x268] sm:$0xff]
  %v4131 = vld [vmem:[%s6 + $0x270] sm:$0xff]
  %v4132 = vld [vmem:[%s6 + $0x278] sm:$0xff]
  %v4133 = vld [vmem:[%s6 + $0x280] sm:$0xff]
  %v4134 = vld [vmem:[%s6 + $0x288] sm:$0xff]
  %v4135 = vld [vmem:[%s6 + $0x290] sm:$0xff]
  %v4136 = vld [vmem:[%s6 + $0x298] sm:$0xff]
  %v4137 = vld [vmem:[%s6 + $0x2a0] sm:$0xff]
  %v4138 = vld [vmem:[%s6 + $0x2a8] sm:$0xff]
  %v4139 = vld [vmem:[%s6 + $0x2b0] sm:$0xff]
  %v4140 = vld [vmem:[%s6 + $0x2b8] sm:$0xff]
  %v4141 = vld [vmem:[%s6 + $0x2c0] sm:$0xff]
  %v4142 = vld [vmem:[%s6 + $0x2c8] sm:$0xff]
  %v4143 = vld [vmem:[%s6 + $0x2d0] sm:$0xff]
  %v4144 = vld [vmem:[%s6 + $0x2d8] sm:$0xff]
  %v4145 = vld [vmem:[%s6 + $0x2e0] sm:$0xff]
  %v4146 = vld [vmem:[%s6 + $0x2e8] sm:$0xff]
  %v4147 = vld [vmem:[%s6 + $0x2f0] sm:$0xff]
  %v4148 = vld [vmem:[%s6 + $0x2f8] sm:$0xff]
  %v4149 = vld [vmem:[%s6 + $0x300] sm:$0xff]
  %v4150 = vld [vmem:[%s6 + $0x308] sm:$0xff]
  %v4151 = vld [vmem:[%s6 + $0x310] sm:$0xff]
  %v4152 = vld [vmem:[%s6 + $0x318] sm:$0xff]
  %v4153 = vld [vmem:[%s6 + $0x320] sm:$0xff]
  %v4154 = vld [vmem:[%s6 + $0x328] sm:$0xff]
  %v4155 = vld [vmem:[%s6 + $0x330] sm:$0xff]
  %v4156 = vld [vmem:[%s6 + $0x338] sm:$0xff]
  %v4157 = vld [vmem:[%s6 + $0x340] sm:$0xff]
  %v4158 = vld [vmem:[%s6 + $0x348] sm:$0xff]
  %v4159 = vld [vmem:[%s6 + $0x350] sm:$0xff]
  %v4160 = vld [vmem:[%s6 + $0x358] sm:$0xff]
  %v4161 = vld [vmem:[%s6 + $0x360] sm:$0xff]
  %v4162 = vld [vmem:[%s6 + $0x368] sm:$0xff]
  %v4163 = vld [vmem:[%s6 + $0x370] sm:$0xff]
  %v4164 = vld [vmem:[%s6 + $0x378] sm:$0xff]
  %v4165 = vld [vmem:[%s6 + $0x380] sm:$0xff]
  %v4166 = vld [vmem:[%s6 + $0x388] sm:$0xff]
  %v4167 = vld [vmem:[%s6 + $0x390] sm:$0xff]
  %v4168 = vld [vmem:[%s6 + $0x398] sm:$0xff]
  %v4169 = vld [vmem:[%s6 + $0x3a0] sm:$0xff]
  %v4170 = vld [vmem:[%s6 + $0x3a8] sm:$0xff]
  %v4171 = vld [vmem:[%s6 + $0x3b0] sm:$0xff]
  %v4172 = vld [vmem:[%s6 + $0x3b8] sm:$0xff]
  %v4173 = vld [vmem:[%s6 + $0x3c0] sm:$0xff]
  %v4174 = vld [vmem:[%s6 + $0x3c8] sm:$0xff]
  %v4175 = vld [vmem:[%s6 + $0x3d0] sm:$0xff]
  %v4176 = vld [vmem:[%s6 + $0x3d8] sm:$0xff]
  %v4177 = vld [vmem:[%s6 + $0x3e0] sm:$0xff]
  %v4178 = vld [vmem:[%s6 + $0x3e8] sm:$0xff]
  %v4179 = vld [vmem:[%s6 + $0x3f0] sm:$0xff]
  %v4180 = vld [vmem:[%s6 + $0x3f8] sm:$0xff]
  %v4181 = vld [vmem:[#allocation3 + $0x10] sm:$0x11]
  %v4182 = vld [vmem:[#allocation3 + $0x18] sm:$0x11]
  %v4183 = vld [vmem:[#allocation3 + $0x30] sm:$0x11]
  %v4184 = vld [vmem:[#allocation3 + $0x38] sm:$0x11]
  %v4186 = vshrl.u32 %v4049, 16
  %v4188 = vrot.slane %v4186, 4
  %v4189 = vshll.u32 %v4049, 16
  %v4191 = vrot.slane %v4189, 5
  %v4192 = vor.u32 %v4188, %v4191
  %v4193 = vrot.slane %v4192, 4
  %v4195 = vshll.u32 %v4181, 16
  %v4197 = vrot.slane %v4195, 5
  %v4198 = vsel %vm291, %v4193, %v4197
  %v4200 = vshrl.u32 %v4050, 16
  %v4202 = vrot.slane %v4200, 4
  %v4203 = vshll.u32 %v4050, 16
  %v4205 = vrot.slane %v4203, 5
  %v4206 = vor.u32 %v4202, %v4205
  %v4207 = vrot.slane %v4206, 4
  %v4209 = vshll.u32 %v4182, 16
  %v4211 = vrot.slane %v4209, 5
  %v4212 = vsel %vm291, %v4207, %v4211
  %v4214 = vshrl.u32 %v4051, 16
  %v4216 = vrot.slane %v4214, 4
  %v4217 = vshll.u32 %v4051, 16
  %v4219 = vrot.slane %v4217, 5
  %v4220 = vor.u32 %v4216, %v4219
  %v4221 = vrot.slane %v4220, 4
  %v4223 = vshll.u32 %v4183, 16
  %v4225 = vrot.slane %v4223, 5
  %v4226 = vsel %vm291, %v4221, %v4225
  %v4228 = vshrl.u32 %v4052, 16
  %v4230 = vrot.slane %v4228, 4
  %v4231 = vshll.u32 %v4052, 16
  %v4233 = vrot.slane %v4231, 5
  %v4234 = vor.u32 %v4230, %v4233
  %v4235 = vrot.slane %v4234, 4
  %v4237 = vshll.u32 %v4184, 16
  %v4239 = vrot.slane %v4237, 5
  %v4240 = vsel %vm291, %v4235, %v4239
  %s4241 = scalar_lea.vmem %s6, 1024
  %v4242 = vld [vmem:[%s4241] sm:$0xff]
  %v4243 = vld [vmem:[%s4241 + $0x8] sm:$0xff]
  %v4244 = vld [vmem:[%s4241 + $0x10] sm:$0xff]
  %v4245 = vld [vmem:[%s4241 + $0x18] sm:$0xff]
  %v4246 = vld [vmem:[%s4241 + $0x20] sm:$0xff]
  %v4247 = vld [vmem:[%s4241 + $0x28] sm:$0xff]
  %v4248 = vld [vmem:[%s4241 + $0x30] sm:$0xff]
  %v4249 = vld [vmem:[%s4241 + $0x38] sm:$0xff]
  %v4250 = vld [vmem:[%s4241 + $0x40] sm:$0xff]
  %v4251 = vld [vmem:[%s4241 + $0x48] sm:$0xff]
  %v4252 = vld [vmem:[%s4241 + $0x50] sm:$0xff]
  %v4253 = vld [vmem:[%s4241 + $0x58] sm:$0xff]
  %v4254 = vld [vmem:[%s4241 + $0x60] sm:$0xff]
  %v4255 = vld [vmem:[%s4241 + $0x68] sm:$0xff]
  %v4256 = vld [vmem:[%s4241 + $0x70] sm:$0xff]
  %v4257 = vld [vmem:[%s4241 + $0x78] sm:$0xff]
  %v4258 = vld [vmem:[%s4241 + $0x80] sm:$0xff]
  %v4259 = vld [vmem:[%s4241 + $0x88] sm:$0xff]
  %v4260 = vld [vmem:[%s4241 + $0x90] sm:$0xff]
  %v4261 = vld [vmem:[%s4241 + $0x98] sm:$0xff]
  %v4262 = vld [vmem:[%s4241 + $0xa0] sm:$0xff]
  %v4263 = vld [vmem:[%s4241 + $0xa8] sm:$0xff]
  %v4264 = vld [vmem:[%s4241 + $0xb0] sm:$0xff]
  %v4265 = vld [vmem:[%s4241 + $0xb8] sm:$0xff]
  %v4266 = vld [vmem:[%s4241 + $0xc0] sm:$0xff]
  %v4267 = vld [vmem:[%s4241 + $0xc8] sm:$0xff]
  %v4268 = vld [vmem:[%s4241 + $0xd0] sm:$0xff]
  %v4269 = vld [vmem:[%s4241 + $0xd8] sm:$0xff]
  %v4270 = vld [vmem:[%s4241 + $0xe0] sm:$0xff]
  %v4271 = vld [vmem:[%s4241 + $0xe8] sm:$0xff]
  %v4272 = vld [vmem:[%s4241 + $0xf0] sm:$0xff]
  %v4273 = vld [vmem:[%s4241 + $0xf8] sm:$0xff]
  %v4274 = vld [vmem:[%s4241 + $0x100] sm:$0xff]
  %v4275 = vld [vmem:[%s4241 + $0x108] sm:$0xff]
  %v4276 = vld [vmem:[%s4241 + $0x110] sm:$0xff]
  %v4277 = vld [vmem:[%s4241 + $0x118] sm:$0xff]
  %v4278 = vld [vmem:[%s4241 + $0x120] sm:$0xff]
  %v4279 = vld [vmem:[%s4241 + $0x128] sm:$0xff]
  %v4280 = vld [vmem:[%s4241 + $0x130] sm:$0xff]
  %v4281 = vld [vmem:[%s4241 + $0x138] sm:$0xff]
  %v4282 = vld [vmem:[%s4241 + $0x140] sm:$0xff]
  %v4283 = vld [vmem:[%s4241 + $0x148] sm:$0xff]
  %v4284 = vld [vmem:[%s4241 + $0x150] sm:$0xff]
  %v4285 = vld [vmem:[%s4241 + $0x158] sm:$0xff]
  %v4286 = vld [vmem:[%s4241 + $0x160] sm:$0xff]
  %v4287 = vld [vmem:[%s4241 + $0x168] sm:$0xff]
  %v4288 = vld [vmem:[%s4241 + $0x170] sm:$0xff]
  %v4289 = vld [vmem:[%s4241 + $0x178] sm:$0xff]
  %v4290 = vld [vmem:[%s4241 + $0x180] sm:$0xff]
  %v4291 = vld [vmem:[%s4241 + $0x188] sm:$0xff]
  %v4292 = vld [vmem:[%s4241 + $0x190] sm:$0xff]
  %v4293 = vld [vmem:[%s4241 + $0x198] sm:$0xff]
  %v4294 = vld [vmem:[%s4241 + $0x1a0] sm:$0xff]
  %v4295 = vld [vmem:[%s4241 + $0x1a8] sm:$0xff]
  %v4296 = vld [vmem:[%s4241 + $0x1b0] sm:$0xff]
  %v4297 = vld [vmem:[%s4241 + $0x1b8] sm:$0xff]
  %v4298 = vld [vmem:[%s4241 + $0x1c0] sm:$0xff]
  %v4299 = vld [vmem:[%s4241 + $0x1c8] sm:$0xff]
  %v4300 = vld [vmem:[%s4241 + $0x1d0] sm:$0xff]
  %v4301 = vld [vmem:[%s4241 + $0x1d8] sm:$0xff]
  %v4302 = vld [vmem:[%s4241 + $0x1e0] sm:$0xff]
  %v4303 = vld [vmem:[%s4241 + $0x1e8] sm:$0xff]
  %v4304 = vld [vmem:[%s4241 + $0x1f0] sm:$0xff]
  %v4305 = vld [vmem:[%s4241 + $0x1f8] sm:$0xff]
  %v4306 = vld [vmem:[%s4241 + $0x200] sm:$0xff]
  %v4307 = vld [vmem:[%s4241 + $0x208] sm:$0xff]
  %v4308 = vld [vmem:[%s4241 + $0x210] sm:$0xff]
  %v4309 = vld [vmem:[%s4241 + $0x218] sm:$0xff]
  %v4310 = vld [vmem:[%s4241 + $0x220] sm:$0xff]
  %v4311 = vld [vmem:[%s4241 + $0x228] sm:$0xff]
  %v4312 = vld [vmem:[%s4241 + $0x230] sm:$0xff]
  %v4313 = vld [vmem:[%s4241 + $0x238] sm:$0xff]
  %v4314 = vld [vmem:[%s4241 + $0x240] sm:$0xff]
  %v4315 = vld [vmem:[%s4241 + $0x248] sm:$0xff]
  %v4316 = vld [vmem:[%s4241 + $0x250] sm:$0xff]
  %v4317 = vld [vmem:[%s4241 + $0x258] sm:$0xff]
  %v4318 = vld [vmem:[%s4241 + $0x260] sm:$0xff]
  %v4319 = vld [vmem:[%s4241 + $0x268] sm:$0xff]
  %v4320 = vld [vmem:[%s4241 + $0x270] sm:$0xff]
  %v4321 = vld [vmem:[%s4241 + $0x278] sm:$0xff]
  %v4322 = vld [vmem:[%s4241 + $0x280] sm:$0xff]
  %v4323 = vld [vmem:[%s4241 + $0x288] sm:$0xff]
  %v4324 = vld [vmem:[%s4241 + $0x290] sm:$0xff]
  %v4325 = vld [vmem:[%s4241 + $0x298] sm:$0xff]
  %v4326 = vld [vmem:[%s4241 + $0x2a0] sm:$0xff]
  %v4327 = vld [vmem:[%s4241 + $0x2a8] sm:$0xff]
  %v4328 = vld [vmem:[%s4241 + $0x2b0] sm:$0xff]
  %v4329 = vld [vmem:[%s4241 + $0x2b8] sm:$0xff]
  %v4330 = vld [vmem:[%s4241 + $0x2c0] sm:$0xff]
  %v4331 = vld [vmem:[%s4241 + $0x2c8] sm:$0xff]
  %v4332 = vld [vmem:[%s4241 + $0x2d0] sm:$0xff]
  %v4333 = vld [vmem:[%s4241 + $0x2d8] sm:$0xff]
  %v4334 = vld [vmem:[%s4241 + $0x2e0] sm:$0xff]
  %v4335 = vld [vmem:[%s4241 + $0x2e8] sm:$0xff]
  %v4336 = vld [vmem:[%s4241 + $0x2f0] sm:$0xff]
  %v4337 = vld [vmem:[%s4241 + $0x2f8] sm:$0xff]
  %v4338 = vld [vmem:[%s4241 + $0x300] sm:$0xff]
  %v4339 = vld [vmem:[%s4241 + $0x308] sm:$0xff]
  %v4340 = vld [vmem:[%s4241 + $0x310] sm:$0xff]
  %v4341 = vld [vmem:[%s4241 + $0x318] sm:$0xff]
  %v4342 = vld [vmem:[%s4241 + $0x320] sm:$0xff]
  %v4343 = vld [vmem:[%s4241 + $0x328] sm:$0xff]
  %v4344 = vld [vmem:[%s4241 + $0x330] sm:$0xff]
  %v4345 = vld [vmem:[%s4241 + $0x338] sm:$0xff]
  %v4346 = vld [vmem:[%s4241 + $0x340] sm:$0xff]
  %v4347 = vld [vmem:[%s4241 + $0x348] sm:$0xff]
  %v4348 = vld [vmem:[%s4241 + $0x350] sm:$0xff]
  %v4349 = vld [vmem:[%s4241 + $0x358] sm:$0xff]
  %v4350 = vld [vmem:[%s4241 + $0x360] sm:$0xff]
  %v4351 = vld [vmem:[%s4241 + $0x368] sm:$0xff]
  %v4352 = vld [vmem:[%s4241 + $0x370] sm:$0xff]
  %v4353 = vld [vmem:[%s4241 + $0x378] sm:$0xff]
  %v4354 = vld [vmem:[%s4241 + $0x380] sm:$0xff]
  %v4355 = vld [vmem:[%s4241 + $0x388] sm:$0xff]
  %v4356 = vld [vmem:[%s4241 + $0x390] sm:$0xff]
  %v4357 = vld [vmem:[%s4241 + $0x398] sm:$0xff]
  %v4358 = vld [vmem:[%s4241 + $0x3a0] sm:$0xff]
  %v4359 = vld [vmem:[%s4241 + $0x3a8] sm:$0xff]
  %v4360 = vld [vmem:[%s4241 + $0x3b0] sm:$0xff]
  %v4361 = vld [vmem:[%s4241 + $0x3b8] sm:$0xff]
  %v4362 = vld [vmem:[%s4241 + $0x3c0] sm:$0xff]
  %v4363 = vld [vmem:[%s4241 + $0x3c8] sm:$0xff]
  %v4364 = vld [vmem:[%s4241 + $0x3d0] sm:$0xff]
  %v4365 = vld [vmem:[%s4241 + $0x3d8] sm:$0xff]
  %v4366 = vld [vmem:[%s4241 + $0x3e0] sm:$0xff]
  %v4367 = vld [vmem:[%s4241 + $0x3e8] sm:$0xff]
  %v4368 = vld [vmem:[%s4241 + $0x3f0] sm:$0xff]
  %v4369 = vld [vmem:[%s4241 + $0x3f8] sm:$0xff]
  %v4370 = vunpack.c.l.b16 %v4198
  %v4371 = vunpack.c.h.b16 %v4198
  %v4372 = vunpack.c.l.b16 %v4212
  %v4373 = vunpack.c.h.b16 %v4212
  %v4374 = vunpack.c.l.b16 %v4226
  %v4375 = vunpack.c.h.b16 %v4226
  %v4376 = vunpack.c.l.b16 %v4240
  %v4377 = vunpack.c.h.b16 %v4240
  %v4378 = vpack.c.b16 %v4374, %v4370
  %v4379 = vpack.c.b16 %v4375, %v4371
  %v4380 = vpack.c.b16 %v4376, %v4372
  %v4381 = vpack.c.b16 %v4377, %v4373
  %v4514 = vunpack.c.l.b16 %v4242
  %v4515 = vunpack.c.h.b16 %v4242
  %v4516 = vunpack.c.l.b16 %v4243
  %v4517 = vunpack.c.h.b16 %v4243
  %v4518 = vunpack.c.l.b16 %v4244
  %v4519 = vunpack.c.h.b16 %v4244
  %v4520 = vunpack.c.l.b16 %v4245
  %v4521 = vunpack.c.h.b16 %v4245
  %v4522 = vunpack.c.l.b16 %v4246
  %v4523 = vunpack.c.h.b16 %v4246
  %v4524 = vunpack.c.l.b16 %v4247
  %v4525 = vunpack.c.h.b16 %v4247
  %v4526 = vunpack.c.l.b16 %v4248
  %v4527 = vunpack.c.h.b16 %v4248
  %v4528 = vunpack.c.l.b16 %v4249
  %v4529 = vunpack.c.h.b16 %v4249
  %v4530 = vunpack.c.l.b16 %v4250
  %v4531 = vunpack.c.h.b16 %v4250
  %v4532 = vunpack.c.l.b16 %v4251
  %v4533 = vunpack.c.h.b16 %v4251
  %v4534 = vunpack.c.l.b16 %v4252
  %v4535 = vunpack.c.h.b16 %v4252
  %v4536 = vunpack.c.l.b16 %v4253
  %v4537 = vunpack.c.h.b16 %v4253
  %v4538 = vunpack.c.l.b16 %v4254
  %v4539 = vunpack.c.h.b16 %v4254
  %v4540 = vunpack.c.l.b16 %v4255
  %v4541 = vunpack.c.h.b16 %v4255
  %v4542 = vunpack.c.l.b16 %v4256
  %v4543 = vunpack.c.h.b16 %v4256
  %v4544 = vunpack.c.l.b16 %v4257
  %v4545 = vunpack.c.h.b16 %v4257
  %v4546 = vunpack.c.l.b16 %v4258
  %v4547 = vunpack.c.h.b16 %v4258
  %v4548 = vunpack.c.l.b16 %v4259
  %v4549 = vunpack.c.h.b16 %v4259
  %v4550 = vunpack.c.l.b16 %v4260
  %v4551 = vunpack.c.h.b16 %v4260
  %v4552 = vunpack.c.l.b16 %v4261
  %v4553 = vunpack.c.h.b16 %v4261
  %v4554 = vunpack.c.l.b16 %v4262
  %v4555 = vunpack.c.h.b16 %v4262
  %v4556 = vunpack.c.l.b16 %v4263
  %v4557 = vunpack.c.h.b16 %v4263
  %v4558 = vunpack.c.l.b16 %v4264
  %v4559 = vunpack.c.h.b16 %v4264
  %v4560 = vunpack.c.l.b16 %v4265
  %v4561 = vunpack.c.h.b16 %v4265
  %v4562 = vunpack.c.l.b16 %v4266
  %v4563 = vunpack.c.h.b16 %v4266
  %v4564 = vunpack.c.l.b16 %v4267
  %v4565 = vunpack.c.h.b16 %v4267
  %v4566 = vunpack.c.l.b16 %v4268
  %v4567 = vunpack.c.h.b16 %v4268
  %v4568 = vunpack.c.l.b16 %v4269
  %v4569 = vunpack.c.h.b16 %v4269
  %v4570 = vunpack.c.l.b16 %v4270
  %v4571 = vunpack.c.h.b16 %v4270
  %v4572 = vunpack.c.l.b16 %v4271
  %v4573 = vunpack.c.h.b16 %v4271
  %v4574 = vunpack.c.l.b16 %v4272
  %v4575 = vunpack.c.h.b16 %v4272
  %v4576 = vunpack.c.l.b16 %v4273
  %v4577 = vunpack.c.h.b16 %v4273
  %v4578 = vunpack.c.l.b16 %v4274
  %v4579 = vunpack.c.h.b16 %v4274
  %v4580 = vunpack.c.l.b16 %v4275
  %v4581 = vunpack.c.h.b16 %v4275
  %v4582 = vunpack.c.l.b16 %v4276
  %v4583 = vunpack.c.h.b16 %v4276
  %v4584 = vunpack.c.l.b16 %v4277
  %v4585 = vunpack.c.h.b16 %v4277
  %v4586 = vunpack.c.l.b16 %v4278
  %v4587 = vunpack.c.h.b16 %v4278
  %v4588 = vunpack.c.l.b16 %v4279
  %v4589 = vunpack.c.h.b16 %v4279
  %v4590 = vunpack.c.l.b16 %v4280
  %v4591 = vunpack.c.h.b16 %v4280
  %v4592 = vunpack.c.l.b16 %v4281
  %v4593 = vunpack.c.h.b16 %v4281
  %v4594 = vunpack.c.l.b16 %v4282
  %v4595 = vunpack.c.h.b16 %v4282
  %v4596 = vunpack.c.l.b16 %v4283
  %v4597 = vunpack.c.h.b16 %v4283
  %v4598 = vunpack.c.l.b16 %v4284
  %v4599 = vunpack.c.h.b16 %v4284
  %v4600 = vunpack.c.l.b16 %v4285
  %v4601 = vunpack.c.h.b16 %v4285
  %v4602 = vunpack.c.l.b16 %v4286
  %v4603 = vunpack.c.h.b16 %v4286
  %v4604 = vunpack.c.l.b16 %v4287
  %v4605 = vunpack.c.h.b16 %v4287
  %v4606 = vunpack.c.l.b16 %v4288
  %v4607 = vunpack.c.h.b16 %v4288
  %v4608 = vunpack.c.l.b16 %v4289
  %v4609 = vunpack.c.h.b16 %v4289
  %v4610 = vunpack.c.l.b16 %v4290
  %v4611 = vunpack.c.h.b16 %v4290
  %v4612 = vunpack.c.l.b16 %v4291
  %v4613 = vunpack.c.h.b16 %v4291
  %v4614 = vunpack.c.l.b16 %v4292
  %v4615 = vunpack.c.h.b16 %v4292
  %v4616 = vunpack.c.l.b16 %v4293
  %v4617 = vunpack.c.h.b16 %v4293
  %v4618 = vunpack.c.l.b16 %v4294
  %v4619 = vunpack.c.h.b16 %v4294
  %v4620 = vunpack.c.l.b16 %v4295
  %v4621 = vunpack.c.h.b16 %v4295
  %v4622 = vunpack.c.l.b16 %v4296
  %v4623 = vunpack.c.h.b16 %v4296
  %v4624 = vunpack.c.l.b16 %v4297
  %v4625 = vunpack.c.h.b16 %v4297
  %v4626 = vunpack.c.l.b16 %v4298
  %v4627 = vunpack.c.h.b16 %v4298
  %v4628 = vunpack.c.l.b16 %v4299
  %v4629 = vunpack.c.h.b16 %v4299
  %v4630 = vunpack.c.l.b16 %v4300
  %v4631 = vunpack.c.h.b16 %v4300
  %v4632 = vunpack.c.l.b16 %v4301
  %v4633 = vunpack.c.h.b16 %v4301
  %v4634 = vunpack.c.l.b16 %v4302
  %v4635 = vunpack.c.h.b16 %v4302
  %v4636 = vunpack.c.l.b16 %v4303
  %v4637 = vunpack.c.h.b16 %v4303
  %v4638 = vunpack.c.l.b16 %v4304
  %v4639 = vunpack.c.h.b16 %v4304
  %v4640 = vunpack.c.l.b16 %v4305
  %v4641 = vunpack.c.h.b16 %v4305
  %v4642 = vunpack.c.l.b16 %v4306
  %v4643 = vunpack.c.h.b16 %v4306
  %v4644 = vunpack.c.l.b16 %v4307
  %v4645 = vunpack.c.h.b16 %v4307
  %v4646 = vunpack.c.l.b16 %v4308
  %v4647 = vunpack.c.h.b16 %v4308
  %v4648 = vunpack.c.l.b16 %v4309
  %v4649 = vunpack.c.h.b16 %v4309
  %v4650 = vunpack.c.l.b16 %v4310
  %v4651 = vunpack.c.h.b16 %v4310
  %v4652 = vunpack.c.l.b16 %v4311
  %v4653 = vunpack.c.h.b16 %v4311
  %v4654 = vunpack.c.l.b16 %v4312
  %v4655 = vunpack.c.h.b16 %v4312
  %v4656 = vunpack.c.l.b16 %v4313
  %v4657 = vunpack.c.h.b16 %v4313
  %v4658 = vunpack.c.l.b16 %v4314
  %v4659 = vunpack.c.h.b16 %v4314
  %v4660 = vunpack.c.l.b16 %v4315
  %v4661 = vunpack.c.h.b16 %v4315
  %v4662 = vunpack.c.l.b16 %v4316
  %v4663 = vunpack.c.h.b16 %v4316
  %v4664 = vunpack.c.l.b16 %v4317
  %v4665 = vunpack.c.h.b16 %v4317
  %v4666 = vunpack.c.l.b16 %v4318
  %v4667 = vunpack.c.h.b16 %v4318
  %v4668 = vunpack.c.l.b16 %v4319
  %v4669 = vunpack.c.h.b16 %v4319
  %v4670 = vunpack.c.l.b16 %v4320
  %v4671 = vunpack.c.h.b16 %v4320
  %v4672 = vunpack.c.l.b16 %v4321
  %v4673 = vunpack.c.h.b16 %v4321
  %v4674 = vunpack.c.l.b16 %v4322
  %v4675 = vunpack.c.h.b16 %v4322
  %v4676 = vunpack.c.l.b16 %v4323
  %v4677 = vunpack.c.h.b16 %v4323
  %v4678 = vunpack.c.l.b16 %v4324
  %v4679 = vunpack.c.h.b16 %v4324
  %v4680 = vunpack.c.l.b16 %v4325
  %v4681 = vunpack.c.h.b16 %v4325
  %v4682 = vunpack.c.l.b16 %v4326
  %v4683 = vunpack.c.h.b16 %v4326
  %v4684 = vunpack.c.l.b16 %v4327
  %v4685 = vunpack.c.h.b16 %v4327
  %v4686 = vunpack.c.l.b16 %v4328
  %v4687 = vunpack.c.h.b16 %v4328
  %v4688 = vunpack.c.l.b16 %v4329
  %v4689 = vunpack.c.h.b16 %v4329
  %v4690 = vunpack.c.l.b16 %v4330
  %v4691 = vunpack.c.h.b16 %v4330
  %v4692 = vunpack.c.l.b16 %v4331
  %v4693 = vunpack.c.h.b16 %v4331
  %v4694 = vunpack.c.l.b16 %v4332
  %v4695 = vunpack.c.h.b16 %v4332
  %v4696 = vunpack.c.l.b16 %v4333
  %v4697 = vunpack.c.h.b16 %v4333
  %v4698 = vunpack.c.l.b16 %v4334
  %v4699 = vunpack.c.h.b16 %v4334
  %v4700 = vunpack.c.l.b16 %v4335
  %v4701 = vunpack.c.h.b16 %v4335
  %v4702 = vunpack.c.l.b16 %v4336
  %v4703 = vunpack.c.h.b16 %v4336
  %v4704 = vunpack.c.l.b16 %v4337
  %v4705 = vunpack.c.h.b16 %v4337
  %v4706 = vunpack.c.l.b16 %v4338
  %v4707 = vunpack.c.h.b16 %v4338
  %v4708 = vunpack.c.l.b16 %v4339
  %v4709 = vunpack.c.h.b16 %v4339
  %v4710 = vunpack.c.l.b16 %v4340
  %v4711 = vunpack.c.h.b16 %v4340
  %v4712 = vunpack.c.l.b16 %v4341
  %v4713 = vunpack.c.h.b16 %v4341
  %v4714 = vunpack.c.l.b16 %v4342
  %v4715 = vunpack.c.h.b16 %v4342
  %v4716 = vunpack.c.l.b16 %v4343
  %v4717 = vunpack.c.h.b16 %v4343
  %v4718 = vunpack.c.l.b16 %v4344
  %v4719 = vunpack.c.h.b16 %v4344
  %v4720 = vunpack.c.l.b16 %v4345
  %v4721 = vunpack.c.h.b16 %v4345
  %v4722 = vunpack.c.l.b16 %v4346
  %v4723 = vunpack.c.h.b16 %v4346
  %v4724 = vunpack.c.l.b16 %v4347
  %v4725 = vunpack.c.h.b16 %v4347
  %v4726 = vunpack.c.l.b16 %v4348
  %v4727 = vunpack.c.h.b16 %v4348
  %v4728 = vunpack.c.l.b16 %v4349
  %v4729 = vunpack.c.h.b16 %v4349
  %v4730 = vunpack.c.l.b16 %v4350
  %v4731 = vunpack.c.h.b16 %v4350
  %v4732 = vunpack.c.l.b16 %v4351
  %v4733 = vunpack.c.h.b16 %v4351
  %v4734 = vunpack.c.l.b16 %v4352
  %v4735 = vunpack.c.h.b16 %v4352
  %v4736 = vunpack.c.l.b16 %v4353
  %v4737 = vunpack.c.h.b16 %v4353
  %v4738 = vunpack.c.l.b16 %v4354
  %v4739 = vunpack.c.h.b16 %v4354
  %v4740 = vunpack.c.l.b16 %v4355
  %v4741 = vunpack.c.h.b16 %v4355
  %v4742 = vunpack.c.l.b16 %v4356
  %v4743 = vunpack.c.h.b16 %v4356
  %v4744 = vunpack.c.l.b16 %v4357
  %v4745 = vunpack.c.h.b16 %v4357
  %v4746 = vunpack.c.l.b16 %v4358
  %v4747 = vunpack.c.h.b16 %v4358
  %v4748 = vunpack.c.l.b16 %v4359
  %v4749 = vunpack.c.h.b16 %v4359
  %v4750 = vunpack.c.l.b16 %v4360
  %v4751 = vunpack.c.h.b16 %v4360
  %v4752 = vunpack.c.l.b16 %v4361
  %v4753 = vunpack.c.h.b16 %v4361
  %v4754 = vunpack.c.l.b16 %v4362
  %v4755 = vunpack.c.h.b16 %v4362
  %v4756 = vunpack.c.l.b16 %v4363
  %v4757 = vunpack.c.h.b16 %v4363
  %v4758 = vunpack.c.l.b16 %v4364
  %v4759 = vunpack.c.h.b16 %v4364
  %v4760 = vunpack.c.l.b16 %v4365
  %v4761 = vunpack.c.h.b16 %v4365
  %v4762 = vunpack.c.l.b16 %v4366
  %v4763 = vunpack.c.h.b16 %v4366
  %v4764 = vunpack.c.l.b16 %v4367
  %v4765 = vunpack.c.h.b16 %v4367
  %v4766 = vunpack.c.l.b16 %v4368
  %v4767 = vunpack.c.h.b16 %v4368
  %v4768 = vunpack.c.l.b16 %v4369
  %v4769 = vunpack.c.h.b16 %v4369
  %v4770 = vpack.c.b16 %v4518, %v4514
  %v4771 = vpack.c.b16 %v4519, %v4515
  %v4772 = vpack.c.b16 %v4520, %v4516
  %v4773 = vpack.c.b16 %v4521, %v4517
  %v4774 = vpack.c.b16 %v4526, %v4522
  %v4775 = vpack.c.b16 %v4527, %v4523
  %v4776 = vpack.c.b16 %v4528, %v4524
  %v4777 = vpack.c.b16 %v4529, %v4525
  %v4778 = vpack.c.b16 %v4534, %v4530
  %v4779 = vpack.c.b16 %v4535, %v4531
  %v4780 = vpack.c.b16 %v4536, %v4532
  %v4781 = vpack.c.b16 %v4537, %v4533
  %v4782 = vpack.c.b16 %v4542, %v4538
  %v4783 = vpack.c.b16 %v4543, %v4539
  %v4784 = vpack.c.b16 %v4544, %v4540
  %v4785 = vpack.c.b16 %v4545, %v4541
  %v4786 = vpack.c.b16 %v4550, %v4546
  %v4787 = vpack.c.b16 %v4551, %v4547
  %v4788 = vpack.c.b16 %v4552, %v4548
  %v4789 = vpack.c.b16 %v4553, %v4549
  %v4790 = vpack.c.b16 %v4558, %v4554
  %v4791 = vpack.c.b16 %v4559, %v4555
  %v4792 = vpack.c.b16 %v4560, %v4556
  %v4793 = vpack.c.b16 %v4561, %v4557
  %v4794 = vpack.c.b16 %v4566, %v4562
  %v4795 = vpack.c.b16 %v4567, %v4563
  %v4796 = vpack.c.b16 %v4568, %v4564
  %v4797 = vpack.c.b16 %v4569, %v4565
  %v4798 = vpack.c.b16 %v4574, %v4570
  %v4799 = vpack.c.b16 %v4575, %v4571
  %v4800 = vpack.c.b16 %v4576, %v4572
  %v4801 = vpack.c.b16 %v4577, %v4573
  %v4802 = vpack.c.b16 %v4582, %v4578
  %v4803 = vpack.c.b16 %v4583, %v4579
  %v4804 = vpack.c.b16 %v4584, %v4580
  %v4805 = vpack.c.b16 %v4585, %v4581
  %v4806 = vpack.c.b16 %v4590, %v4586
  %v4807 = vpack.c.b16 %v4591, %v4587
  %v4808 = vpack.c.b16 %v4592, %v4588
  %v4809 = vpack.c.b16 %v4593, %v4589
  %v4810 = vpack.c.b16 %v4598, %v4594
  %v4811 = vpack.c.b16 %v4599, %v4595
  %v4812 = vpack.c.b16 %v4600, %v4596
  %v4813 = vpack.c.b16 %v4601, %v4597
  %v4814 = vpack.c.b16 %v4606, %v4602
  %v4815 = vpack.c.b16 %v4607, %v4603
  %v4816 = vpack.c.b16 %v4608, %v4604
  %v4817 = vpack.c.b16 %v4609, %v4605
  %v4818 = vpack.c.b16 %v4614, %v4610
  %v4819 = vpack.c.b16 %v4615, %v4611
  %v4820 = vpack.c.b16 %v4616, %v4612
  %v4821 = vpack.c.b16 %v4617, %v4613
  %v4822 = vpack.c.b16 %v4622, %v4618
  %v4823 = vpack.c.b16 %v4623, %v4619
  %v4824 = vpack.c.b16 %v4624, %v4620
  %v4825 = vpack.c.b16 %v4625, %v4621
  %v4826 = vpack.c.b16 %v4630, %v4626
  %v4827 = vpack.c.b16 %v4631, %v4627
  %v4828 = vpack.c.b16 %v4632, %v4628
  %v4829 = vpack.c.b16 %v4633, %v4629
  %v4830 = vpack.c.b16 %v4638, %v4634
  %v4831 = vpack.c.b16 %v4639, %v4635
  %v4832 = vpack.c.b16 %v4640, %v4636
  %v4833 = vpack.c.b16 %v4641, %v4637
  %v4834 = vpack.c.b16 %v4646, %v4642
  %v4835 = vpack.c.b16 %v4647, %v4643
  %v4836 = vpack.c.b16 %v4648, %v4644
  %v4837 = vpack.c.b16 %v4649, %v4645
  %v4838 = vpack.c.b16 %v4654, %v4650
  %v4839 = vpack.c.b16 %v4655, %v4651
  %v4840 = vpack.c.b16 %v4656, %v4652
  %v4841 = vpack.c.b16 %v4657, %v4653
  %v4842 = vpack.c.b16 %v4662, %v4658
  %v4843 = vpack.c.b16 %v4663, %v4659
  %v4844 = vpack.c.b16 %v4664, %v4660
  %v4845 = vpack.c.b16 %v4665, %v4661
  %v4846 = vpack.c.b16 %v4670, %v4666
  %v4847 = vpack.c.b16 %v4671, %v4667
  %v4848 = vpack.c.b16 %v4672, %v4668
  %v4849 = vpack.c.b16 %v4673, %v4669
  %v4850 = vpack.c.b16 %v4678, %v4674
  %v4851 = vpack.c.b16 %v4679, %v4675
  %v4852 = vpack.c.b16 %v4680, %v4676
  %v4853 = vpack.c.b16 %v4681, %v4677
  %v4854 = vpack.c.b16 %v4686, %v4682
  %v4855 = vpack.c.b16 %v4687, %v4683
  %v4856 = vpack.c.b16 %v4688, %v4684
  %v4857 = vpack.c.b16 %v4689, %v4685
  %v4858 = vpack.c.b16 %v4694, %v4690
  %v4859 = vpack.c.b16 %v4695, %v4691
  %v4860 = vpack.c.b16 %v4696, %v4692
  %v4861 = vpack.c.b16 %v4697, %v4693
  %v4862 = vpack.c.b16 %v4702, %v4698
  %v4863 = vpack.c.b16 %v4703, %v4699
  %v4864 = vpack.c.b16 %v4704, %v4700
  %v4865 = vpack.c.b16 %v4705, %v4701
  %v4866 = vpack.c.b16 %v4710, %v4706
  %v4867 = vpack.c.b16 %v4711, %v4707
  %v4868 = vpack.c.b16 %v4712, %v4708
  %v4869 = vpack.c.b16 %v4713, %v4709
  %v4870 = vpack.c.b16 %v4718, %v4714
  %v4871 = vpack.c.b16 %v4719, %v4715
  %v4872 = vpack.c.b16 %v4720, %v4716
  %v4873 = vpack.c.b16 %v4721, %v4717
  %v4874 = vpack.c.b16 %v4726, %v4722
  %v4875 = vpack.c.b16 %v4727, %v4723
  %v4876 = vpack.c.b16 %v4728, %v4724
  %v4877 = vpack.c.b16 %v4729, %v4725
  %v4878 = vpack.c.b16 %v4734, %v4730
  %v4879 = vpack.c.b16 %v4735, %v4731
  %v4880 = vpack.c.b16 %v4736, %v4732
  %v4881 = vpack.c.b16 %v4737, %v4733
  %v4882 = vpack.c.b16 %v4742, %v4738
  %v4883 = vpack.c.b16 %v4743, %v4739
  %v4884 = vpack.c.b16 %v4744, %v4740
  %v4885 = vpack.c.b16 %v4745, %v4741
  %v4886 = vpack.c.b16 %v4750, %v4746
  %v4887 = vpack.c.b16 %v4751, %v4747
  %v4888 = vpack.c.b16 %v4752, %v4748
  %v4889 = vpack.c.b16 %v4753, %v4749
  %v4890 = vpack.c.b16 %v4758, %v4754
  %v4891 = vpack.c.b16 %v4759, %v4755
  %v4892 = vpack.c.b16 %v4760, %v4756
  %v4893 = vpack.c.b16 %v4761, %v4757
  %v4894 = vpack.c.b16 %v4766, %v4762
  %v4895 = vpack.c.b16 %v4767, %v4763
  %v4896 = vpack.c.b16 %v4768, %v4764
  %v4897 = vpack.c.b16 %v4769, %v4765
  %5026 = vmatpush.bf16.msra.mxu0 %v4798
  %5027 = vmatpush.bf16.msra.mxu0 %v4794
  %5028 = vmatpush.bf16.msra.mxu0 %v4790
  %5029 = vmatpush.bf16.msra.mxu0 %v4786
  %5030 = vmatpush.bf16.msra.mxu0 %v4782
  %5031 = vmatpush.bf16.msra.mxu0 %v4778
  %5032 = vmatpush.bf16.msra.mxu0 %v4774
  %5033 = vmatpush.bf16.msra.mxu0 %v4770
  %5034 = vmatmul.bf16.gmra.mxu0 %v4378
  %v5035 = vpop.f32.mrf.mxu0
  %v5036 = vadd.f32 0.0, %v5035
  %v5037 = vpop.f32.mrf.mxu0
  %v5038 = vadd.f32 0.0, %v5037
  %5039 = vdwg.mxu0
  %5040 = vmatpush.bf16.msra.mxu0 %v4830
  %5041 = vmatpush.bf16.msra.mxu0 %v4826
  %5042 = vmatpush.bf16.msra.mxu0 %v4822
  %5043 = vmatpush.bf16.msra.mxu0 %v4818
  %5044 = vmatpush.bf16.msra.mxu0 %v4814
  %5045 = vmatpush.bf16.msra.mxu0 %v4810
  %5046 = vmatpush.bf16.msra.mxu0 %v4806
  %5047 = vmatpush.bf16.msra.mxu0 %v4802
  %5048 = vmatmul.bf16.gmra.mxu0 %v4379
  %v5049 = vpop.f32.mrf.mxu0
  %v5050 = vadd.f32 %v5036, %v5049
  %v5051 = vpop.f32.mrf.mxu0
  %v5052 = vadd.f32 %v5038, %v5051
  %5053 = vdwg.mxu0
  %5054 = vmatpush.bf16.msra.mxu0 %v4862
  %5055 = vmatpush.bf16.msra.mxu0 %v4858
  %5056 = vmatpush.bf16.msra.mxu0 %v4854
  %5057 = vmatpush.bf16.msra.mxu0 %v4850
  %5058 = vmatpush.bf16.msra.mxu0 %v4846
  %5059 = vmatpush.bf16.msra.mxu0 %v4842
  %5060 = vmatpush.bf16.msra.mxu0 %v4838
  %5061 = vmatpush.bf16.msra.mxu0 %v4834
  %5062 = vmatmul.bf16.gmra.mxu0 %v4380
  %v5063 = vpop.f32.mrf.mxu0
  %v5064 = vadd.f32 %v5050, %v5063
  %v5065 = vpop.f32.mrf.mxu0
  %v5066 = vadd.f32 %v5052, %v5065
  %5067 = vdwg.mxu0
  %5068 = vmatpush.bf16.msra.mxu0 %v4894
  %5069 = vmatpush.bf16.msra.mxu0 %v4890
  %5070 = vmatpush.bf16.msra.mxu0 %v4886
  %5071 = vmatpush.bf16.msra.mxu0 %v4882
  %5072 = vmatpush.bf16.msra.mxu0 %v4878
  %5073 = vmatpush.bf16.msra.mxu0 %v4874
  %5074 = vmatpush.bf16.msra.mxu0 %v4870
  %5075 = vmatpush.bf16.msra.mxu0 %v4866
  %5076 = vmatmul.bf16.gmra.mxu0 %v4381
  %v5077 = vpop.f32.mrf.mxu0
  %v5078 = vadd.f32 %v5064, %v5077
  %v5079 = vpop.f32.mrf.mxu0
  %v5080 = vadd.f32 %v5066, %v5079
  %5081 = vdwg.mxu0
  %5082 = vmatpush.bf16.msra.mxu0 %v4799
  %5083 = vmatpush.bf16.msra.mxu0 %v4795
  %5084 = vmatpush.bf16.msra.mxu0 %v4791
  %5085 = vmatpush.bf16.msra.mxu0 %v4787
  %5086 = vmatpush.bf16.msra.mxu0 %v4783
  %5087 = vmatpush.bf16.msra.mxu0 %v4779
  %5088 = vmatpush.bf16.msra.mxu0 %v4775
  %5089 = vmatpush.bf16.msra.mxu0 %v4771
  %5090 = vmatmul.bf16.gmra.mxu0 %v4378
  %v5091 = vpop.f32.mrf.mxu0
  %v5092 = vadd.f32 0.0, %v5091
  %v5093 = vpop.f32.mrf.mxu0
  %v5094 = vadd.f32 0.0, %v5093
  %5095 = vdwg.mxu0
  %5096 = vmatpush.bf16.msra.mxu0 %v4831
  %5097 = vmatpush.bf16.msra.mxu0 %v4827
  %5098 = vmatpush.bf16.msra.mxu0 %v4823
  %5099 = vmatpush.bf16.msra.mxu0 %v4819
  %5100 = vmatpush.bf16.msra.mxu0 %v4815
  %5101 = vmatpush.bf16.msra.mxu0 %v4811
  %5102 = vmatpush.bf16.msra.mxu0 %v4807
  %5103 = vmatpush.bf16.msra.mxu0 %v4803
  %5104 = vmatmul.bf16.gmra.mxu0 %v4379
  %v5105 = vpop.f32.mrf.mxu0
  %v5106 = vadd.f32 %v5092, %v5105
  %v5107 = vpop.f32.mrf.mxu0
  %v5108 = vadd.f32 %v5094, %v5107
  %5109 = vdwg.mxu0
  %5110 = vmatpush.bf16.msra.mxu0 %v4863
  %5111 = vmatpush.bf16.msra.mxu0 %v4859
  %5112 = vmatpush.bf16.msra.mxu0 %v4855
  %5113 = vmatpush.bf16.msra.mxu0 %v4851
  %5114 = vmatpush.bf16.msra.mxu0 %v4847
  %5115 = vmatpush.bf16.msra.mxu0 %v4843
  %5116 = vmatpush.bf16.msra.mxu0 %v4839
  %5117 = vmatpush.bf16.msra.mxu0 %v4835
  %5118 = vmatmul.bf16.gmra.mxu0 %v4380
  %v5119 = vpop.f32.mrf.mxu0
  %v5120 = vadd.f32 %v5106, %v5119
  %v5121 = vpop.f32.mrf.mxu0
  %v5122 = vadd.f32 %v5108, %v5121
  %5123 = vdwg.mxu0
  %5124 = vmatpush.bf16.msra.mxu0 %v4895
  %5125 = vmatpush.bf16.msra.mxu0 %v4891
  %5126 = vmatpush.bf16.msra.mxu0 %v4887
  %5127 = vmatpush.bf16.msra.mxu0 %v4883
  %5128 = vmatpush.bf16.msra.mxu0 %v4879
  %5129 = vmatpush.bf16.msra.mxu0 %v4875
  %5130 = vmatpush.bf16.msra.mxu0 %v4871
  %5131 = vmatpush.bf16.msra.mxu0 %v4867
  %5132 = vmatmul.bf16.gmra.mxu0 %v4381
  %v5133 = vpop.f32.mrf.mxu0
  %v5134 = vadd.f32 %v5120, %v5133
  %v5135 = vpop.f32.mrf.mxu0
  %v5136 = vadd.f32 %v5122, %v5135
  %5137 = vdwg.mxu0
  %5138 = vmatpush.bf16.msra.mxu0 %v4800
  %5139 = vmatpush.bf16.msra.mxu0 %v4796
  %5140 = vmatpush.bf16.msra.mxu0 %v4792
  %5141 = vmatpush.bf16.msra.mxu0 %v4788
  %5142 = vmatpush.bf16.msra.mxu0 %v4784
  %5143 = vmatpush.bf16.msra.mxu0 %v4780
  %5144 = vmatpush.bf16.msra.mxu0 %v4776
  %5145 = vmatpush.bf16.msra.mxu0 %v4772
  %5146 = vmatmul.bf16.gmra.mxu0 %v4378
  %v5147 = vpop.f32.mrf.mxu0
  %v5148 = vadd.f32 0.0, %v5147
  %v5149 = vpop.f32.mrf.mxu0
  %v5150 = vadd.f32 0.0, %v5149
  %5151 = vdwg.mxu0
  %5152 = vmatpush.bf16.msra.mxu0 %v4832
  %5153 = vmatpush.bf16.msra.mxu0 %v4828
  %5154 = vmatpush.bf16.msra.mxu0 %v4824
  %5155 = vmatpush.bf16.msra.mxu0 %v4820
  %5156 = vmatpush.bf16.msra.mxu0 %v4816
  %5157 = vmatpush.bf16.msra.mxu0 %v4812
  %5158 = vmatpush.bf16.msra.mxu0 %v4808
  %5159 = vmatpush.bf16.msra.mxu0 %v4804
  %5160 = vmatmul.bf16.gmra.mxu0 %v4379
  %v5161 = vpop.f32.mrf.mxu0
  %v5162 = vadd.f32 %v5148, %v5161
  %v5163 = vpop.f32.mrf.mxu0
  %v5164 = vadd.f32 %v5150, %v5163
  %5165 = vdwg.mxu0
  %5166 = vmatpush.bf16.msra.mxu0 %v4864
  %5167 = vmatpush.bf16.msra.mxu0 %v4860
  %5168 = vmatpush.bf16.msra.mxu0 %v4856
  %5169 = vmatpush.bf16.msra.mxu0 %v4852
  %5170 = vmatpush.bf16.msra.mxu0 %v4848
  %5171 = vmatpush.bf16.msra.mxu0 %v4844
  %5172 = vmatpush.bf16.msra.mxu0 %v4840
  %5173 = vmatpush.bf16.msra.mxu0 %v4836
  %5174 = vmatmul.bf16.gmra.mxu0 %v4380
  %v5175 = vpop.f32.mrf.mxu0
  %v5176 = vadd.f32 %v5162, %v5175
  %v5177 = vpop.f32.mrf.mxu0
  %v5178 = vadd.f32 %v5164, %v5177
  %5179 = vdwg.mxu0
  %5180 = vmatpush.bf16.msra.mxu0 %v4896
  %5181 = vmatpush.bf16.msra.mxu0 %v4892
  %5182 = vmatpush.bf16.msra.mxu0 %v4888
  %5183 = vmatpush.bf16.msra.mxu0 %v4884
  %5184 = vmatpush.bf16.msra.mxu0 %v4880
  %5185 = vmatpush.bf16.msra.mxu0 %v4876
  %5186 = vmatpush.bf16.msra.mxu0 %v4872
  %5187 = vmatpush.bf16.msra.mxu0 %v4868
  %5188 = vmatmul.bf16.gmra.mxu0 %v4381
  %v5189 = vpop.f32.mrf.mxu0
  %v5190 = vadd.f32 %v5176, %v5189
  %v5191 = vpop.f32.mrf.mxu0
  %v5192 = vadd.f32 %v5178, %v5191
  %5193 = vdwg.mxu0
  %5194 = vmatpush.bf16.msra.mxu0 %v4801
  %5195 = vmatpush.bf16.msra.mxu0 %v4797
  %5196 = vmatpush.bf16.msra.mxu0 %v4793
  %5197 = vmatpush.bf16.msra.mxu0 %v4789
  %5198 = vmatpush.bf16.msra.mxu0 %v4785
  %5199 = vmatpush.bf16.msra.mxu0 %v4781
  %5200 = vmatpush.bf16.msra.mxu0 %v4777
  %5201 = vmatpush.bf16.msra.mxu0 %v4773
  %5202 = vmatmul.bf16.gmra.mxu0 %v4378
  %v5203 = vpop.f32.mrf.mxu0
  %v5204 = vadd.f32 0.0, %v5203
  %v5205 = vpop.f32.mrf.mxu0
  %v5206 = vadd.f32 0.0, %v5205
  %5207 = vdwg.mxu0
  %5208 = vmatpush.bf16.msra.mxu0 %v4833
  %5209 = vmatpush.bf16.msra.mxu0 %v4829
  %5210 = vmatpush.bf16.msra.mxu0 %v4825
  %5211 = vmatpush.bf16.msra.mxu0 %v4821
  %5212 = vmatpush.bf16.msra.mxu0 %v4817
  %5213 = vmatpush.bf16.msra.mxu0 %v4813
  %5214 = vmatpush.bf16.msra.mxu0 %v4809
  %5215 = vmatpush.bf16.msra.mxu0 %v4805
  %5216 = vmatmul.bf16.gmra.mxu0 %v4379
  %v5217 = vpop.f32.mrf.mxu0
  %v5218 = vadd.f32 %v5204, %v5217
  %v5219 = vpop.f32.mrf.mxu0
  %v5220 = vadd.f32 %v5206, %v5219
  %5221 = vdwg.mxu0
  %5222 = vmatpush.bf16.msra.mxu0 %v4865
  %5223 = vmatpush.bf16.msra.mxu0 %v4861
  %5224 = vmatpush.bf16.msra.mxu0 %v4857
  %5225 = vmatpush.bf16.msra.mxu0 %v4853
  %5226 = vmatpush.bf16.msra.mxu0 %v4849
  %5227 = vmatpush.bf16.msra.mxu0 %v4845
  %5228 = vmatpush.bf16.msra.mxu0 %v4841
  %5229 = vmatpush.bf16.msra.mxu0 %v4837
  %5230 = vmatmul.bf16.gmra.mxu0 %v4380
  %v5231 = vpop.f32.mrf.mxu0
  %v5232 = vadd.f32 %v5218, %v5231
  %v5233 = vpop.f32.mrf.mxu0
  %v5234 = vadd.f32 %v5220, %v5233
  %5235 = vdwg.mxu0
  %5236 = vmatpush.bf16.msra.mxu0 %v4897
  %5237 = vmatpush.bf16.msra.mxu0 %v4893
  %5238 = vmatpush.bf16.msra.mxu0 %v4889
  %5239 = vmatpush.bf16.msra.mxu0 %v4885
  %5240 = vmatpush.bf16.msra.mxu0 %v4881
  %5241 = vmatpush.bf16.msra.mxu0 %v4877
  %5242 = vmatpush.bf16.msra.mxu0 %v4873
  %5243 = vmatpush.bf16.msra.mxu0 %v4869
  %5244 = vmatmul.bf16.gmra.mxu0 %v4381
  %v5245 = vpop.f32.mrf.mxu0
  %v5246 = vadd.f32 %v5232, %v5245
  %v5247 = vpop.f32.mrf.mxu0
  %v5248 = vadd.f32 %v5234, %v5247
  %5249 = vdwg.mxu0
  %v5254 = vunpack.c.l.b16 %v4049
  %v5255 = vunpack.c.h.b16 %v4049
  %v5256 = vunpack.c.l.b16 %v4050
  %v5257 = vunpack.c.h.b16 %v4050
  %v5258 = vunpack.c.l.b16 %v4051
  %v5259 = vunpack.c.h.b16 %v4051
  %v5260 = vunpack.c.l.b16 %v4052
  %v5261 = vunpack.c.h.b16 %v4052
  %v5262 = vpack.c.b16 %v5258, %v5254
  %v5263 = vpack.c.b16 %v5259, %v5255
  %v5264 = vpack.c.b16 %v5260, %v5256
  %v5265 = vpack.c.b16 %v5261, %v5257
  %v5398 = vunpack.c.l.b16 %v4053
  %v5399 = vunpack.c.h.b16 %v4053
  %v5400 = vunpack.c.l.b16 %v4054
  %v5401 = vunpack.c.h.b16 %v4054
  %v5402 = vunpack.c.l.b16 %v4055
  %v5403 = vunpack.c.h.b16 %v4055
  %v5404 = vunpack.c.l.b16 %v4056
  %v5405 = vunpack.c.h.b16 %v4056
  %v5406 = vunpack.c.l.b16 %v4057
  %v5407 = vunpack.c.h.b16 %v4057
  %v5408 = vunpack.c.l.b16 %v4058
  %v5409 = vunpack.c.h.b16 %v4058
  %v5410 = vunpack.c.l.b16 %v4059
  %v5411 = vunpack.c.h.b16 %v4059
  %v5412 = vunpack.c.l.b16 %v4060
  %v5413 = vunpack.c.h.b16 %v4060
  %v5414 = vunpack.c.l.b16 %v4061
  %v5415 = vunpack.c.h.b16 %v4061
  %v5416 = vunpack.c.l.b16 %v4062
  %v5417 = vunpack.c.h.b16 %v4062
  %v5418 = vunpack.c.l.b16 %v4063
  %v5419 = vunpack.c.h.b16 %v4063
  %v5420 = vunpack.c.l.b16 %v4064
  %v5421 = vunpack.c.h.b16 %v4064
  %v5422 = vunpack.c.l.b16 %v4065
  %v5423 = vunpack.c.h.b16 %v4065
  %v5424 = vunpack.c.l.b16 %v4066
  %v5425 = vunpack.c.h.b16 %v4066
  %v5426 = vunpack.c.l.b16 %v4067
  %v5427 = vunpack.c.h.b16 %v4067
  %v5428 = vunpack.c.l.b16 %v4068
  %v5429 = vunpack.c.h.b16 %v4068
  %v5430 = vunpack.c.l.b16 %v4069
  %v5431 = vunpack.c.h.b16 %v4069
  %v5432 = vunpack.c.l.b16 %v4070
  %v5433 = vunpack.c.h.b16 %v4070
  %v5434 = vunpack.c.l.b16 %v4071
  %v5435 = vunpack.c.h.b16 %v4071
  %v5436 = vunpack.c.l.b16 %v4072
  %v5437 = vunpack.c.h.b16 %v4072
  %v5438 = vunpack.c.l.b16 %v4073
  %v5439 = vunpack.c.h.b16 %v4073
  %v5440 = vunpack.c.l.b16 %v4074
  %v5441 = vunpack.c.h.b16 %v4074
  %v5442 = vunpack.c.l.b16 %v4075
  %v5443 = vunpack.c.h.b16 %v4075
  %v5444 = vunpack.c.l.b16 %v4076
  %v5445 = vunpack.c.h.b16 %v4076
  %v5446 = vunpack.c.l.b16 %v4077
  %v5447 = vunpack.c.h.b16 %v4077
  %v5448 = vunpack.c.l.b16 %v4078
  %v5449 = vunpack.c.h.b16 %v4078
  %v5450 = vunpack.c.l.b16 %v4079
  %v5451 = vunpack.c.h.b16 %v4079
  %v5452 = vunpack.c.l.b16 %v4080
  %v5453 = vunpack.c.h.b16 %v4080
  %v5454 = vunpack.c.l.b16 %v4081
  %v5455 = vunpack.c.h.b16 %v4081
  %v5456 = vunpack.c.l.b16 %v4082
  %v5457 = vunpack.c.h.b16 %v4082
  %v5458 = vunpack.c.l.b16 %v4083
  %v5459 = vunpack.c.h.b16 %v4083
  %v5460 = vunpack.c.l.b16 %v4084
  %v5461 = vunpack.c.h.b16 %v4084
  %v5462 = vunpack.c.l.b16 %v4085
  %v5463 = vunpack.c.h.b16 %v4085
  %v5464 = vunpack.c.l.b16 %v4086
  %v5465 = vunpack.c.h.b16 %v4086
  %v5466 = vunpack.c.l.b16 %v4087
  %v5467 = vunpack.c.h.b16 %v4087
  %v5468 = vunpack.c.l.b16 %v4088
  %v5469 = vunpack.c.h.b16 %v4088
  %v5470 = vunpack.c.l.b16 %v4089
  %v5471 = vunpack.c.h.b16 %v4089
  %v5472 = vunpack.c.l.b16 %v4090
  %v5473 = vunpack.c.h.b16 %v4090
  %v5474 = vunpack.c.l.b16 %v4091
  %v5475 = vunpack.c.h.b16 %v4091
  %v5476 = vunpack.c.l.b16 %v4092
  %v5477 = vunpack.c.h.b16 %v4092
  %v5478 = vunpack.c.l.b16 %v4093
  %v5479 = vunpack.c.h.b16 %v4093
  %v5480 = vunpack.c.l.b16 %v4094
  %v5481 = vunpack.c.h.b16 %v4094
  %v5482 = vunpack.c.l.b16 %v4095
  %v5483 = vunpack.c.h.b16 %v4095
  %v5484 = vunpack.c.l.b16 %v4096
  %v5485 = vunpack.c.h.b16 %v4096
  %v5486 = vunpack.c.l.b16 %v4097
  %v5487 = vunpack.c.h.b16 %v4097
  %v5488 = vunpack.c.l.b16 %v4098
  %v5489 = vunpack.c.h.b16 %v4098
  %v5490 = vunpack.c.l.b16 %v4099
  %v5491 = vunpack.c.h.b16 %v4099
  %v5492 = vunpack.c.l.b16 %v4100
  %v5493 = vunpack.c.h.b16 %v4100
  %v5494 = vunpack.c.l.b16 %v4101
  %v5495 = vunpack.c.h.b16 %v4101
  %v5496 = vunpack.c.l.b16 %v4102
  %v5497 = vunpack.c.h.b16 %v4102
  %v5498 = vunpack.c.l.b16 %v4103
  %v5499 = vunpack.c.h.b16 %v4103
  %v5500 = vunpack.c.l.b16 %v4104
  %v5501 = vunpack.c.h.b16 %v4104
  %v5502 = vunpack.c.l.b16 %v4105
  %v5503 = vunpack.c.h.b16 %v4105
  %v5504 = vunpack.c.l.b16 %v4106
  %v5505 = vunpack.c.h.b16 %v4106
  %v5506 = vunpack.c.l.b16 %v4107
  %v5507 = vunpack.c.h.b16 %v4107
  %v5508 = vunpack.c.l.b16 %v4108
  %v5509 = vunpack.c.h.b16 %v4108
  %v5510 = vunpack.c.l.b16 %v4109
  %v5511 = vunpack.c.h.b16 %v4109
  %v5512 = vunpack.c.l.b16 %v4110
  %v5513 = vunpack.c.h.b16 %v4110
  %v5514 = vunpack.c.l.b16 %v4111
  %v5515 = vunpack.c.h.b16 %v4111
  %v5516 = vunpack.c.l.b16 %v4112
  %v5517 = vunpack.c.h.b16 %v4112
  %v5518 = vunpack.c.l.b16 %v4113
  %v5519 = vunpack.c.h.b16 %v4113
  %v5520 = vunpack.c.l.b16 %v4114
  %v5521 = vunpack.c.h.b16 %v4114
  %v5522 = vunpack.c.l.b16 %v4115
  %v5523 = vunpack.c.h.b16 %v4115
  %v5524 = vunpack.c.l.b16 %v4116
  %v5525 = vunpack.c.h.b16 %v4116
  %v5526 = vunpack.c.l.b16 %v4117
  %v5527 = vunpack.c.h.b16 %v4117
  %v5528 = vunpack.c.l.b16 %v4118
  %v5529 = vunpack.c.h.b16 %v4118
  %v5530 = vunpack.c.l.b16 %v4119
  %v5531 = vunpack.c.h.b16 %v4119
  %v5532 = vunpack.c.l.b16 %v4120
  %v5533 = vunpack.c.h.b16 %v4120
  %v5534 = vunpack.c.l.b16 %v4121
  %v5535 = vunpack.c.h.b16 %v4121
  %v5536 = vunpack.c.l.b16 %v4122
  %v5537 = vunpack.c.h.b16 %v4122
  %v5538 = vunpack.c.l.b16 %v4123
  %v5539 = vunpack.c.h.b16 %v4123
  %v5540 = vunpack.c.l.b16 %v4124
  %v5541 = vunpack.c.h.b16 %v4124
  %v5542 = vunpack.c.l.b16 %v4125
  %v5543 = vunpack.c.h.b16 %v4125
  %v5544 = vunpack.c.l.b16 %v4126
  %v5545 = vunpack.c.h.b16 %v4126
  %v5546 = vunpack.c.l.b16 %v4127
  %v5547 = vunpack.c.h.b16 %v4127
  %v5548 = vunpack.c.l.b16 %v4128
  %v5549 = vunpack.c.h.b16 %v4128
  %v5550 = vunpack.c.l.b16 %v4129
  %v5551 = vunpack.c.h.b16 %v4129
  %v5552 = vunpack.c.l.b16 %v4130
  %v5553 = vunpack.c.h.b16 %v4130
  %v5554 = vunpack.c.l.b16 %v4131
  %v5555 = vunpack.c.h.b16 %v4131
  %v5556 = vunpack.c.l.b16 %v4132
  %v5557 = vunpack.c.h.b16 %v4132
  %v5558 = vunpack.c.l.b16 %v4133
  %v5559 = vunpack.c.h.b16 %v4133
  %v5560 = vunpack.c.l.b16 %v4134
  %v5561 = vunpack.c.h.b16 %v4134
  %v5562 = vunpack.c.l.b16 %v4135
  %v5563 = vunpack.c.h.b16 %v4135
  %v5564 = vunpack.c.l.b16 %v4136
  %v5565 = vunpack.c.h.b16 %v4136
  %v5566 = vunpack.c.l.b16 %v4137
  %v5567 = vunpack.c.h.b16 %v4137
  %v5568 = vunpack.c.l.b16 %v4138
  %v5569 = vunpack.c.h.b16 %v4138
  %v5570 = vunpack.c.l.b16 %v4139
  %v5571 = vunpack.c.h.b16 %v4139
  %v5572 = vunpack.c.l.b16 %v4140
  %v5573 = vunpack.c.h.b16 %v4140
  %v5574 = vunpack.c.l.b16 %v4141
  %v5575 = vunpack.c.h.b16 %v4141
  %v5576 = vunpack.c.l.b16 %v4142
  %v5577 = vunpack.c.h.b16 %v4142
  %v5578 = vunpack.c.l.b16 %v4143
  %v5579 = vunpack.c.h.b16 %v4143
  %v5580 = vunpack.c.l.b16 %v4144
  %v5581 = vunpack.c.h.b16 %v4144
  %v5582 = vunpack.c.l.b16 %v4145
  %v5583 = vunpack.c.h.b16 %v4145
  %v5584 = vunpack.c.l.b16 %v4146
  %v5585 = vunpack.c.h.b16 %v4146
  %v5586 = vunpack.c.l.b16 %v4147
  %v5587 = vunpack.c.h.b16 %v4147
  %v5588 = vunpack.c.l.b16 %v4148
  %v5589 = vunpack.c.h.b16 %v4148
  %v5590 = vunpack.c.l.b16 %v4149
  %v5591 = vunpack.c.h.b16 %v4149
  %v5592 = vunpack.c.l.b16 %v4150
  %v5593 = vunpack.c.h.b16 %v4150
  %v5594 = vunpack.c.l.b16 %v4151
  %v5595 = vunpack.c.h.b16 %v4151
  %v5596 = vunpack.c.l.b16 %v4152
  %v5597 = vunpack.c.h.b16 %v4152
  %v5598 = vunpack.c.l.b16 %v4153
  %v5599 = vunpack.c.h.b16 %v4153
  %v5600 = vunpack.c.l.b16 %v4154
  %v5601 = vunpack.c.h.b16 %v4154
  %v5602 = vunpack.c.l.b16 %v4155
  %v5603 = vunpack.c.h.b16 %v4155
  %v5604 = vunpack.c.l.b16 %v4156
  %v5605 = vunpack.c.h.b16 %v4156
  %v5606 = vunpack.c.l.b16 %v4157
  %v5607 = vunpack.c.h.b16 %v4157
  %v5608 = vunpack.c.l.b16 %v4158
  %v5609 = vunpack.c.h.b16 %v4158
  %v5610 = vunpack.c.l.b16 %v4159
  %v5611 = vunpack.c.h.b16 %v4159
  %v5612 = vunpack.c.l.b16 %v4160
  %v5613 = vunpack.c.h.b16 %v4160
  %v5614 = vunpack.c.l.b16 %v4161
  %v5615 = vunpack.c.h.b16 %v4161
  %v5616 = vunpack.c.l.b16 %v4162
  %v5617 = vunpack.c.h.b16 %v4162
  %v5618 = vunpack.c.l.b16 %v4163
  %v5619 = vunpack.c.h.b16 %v4163
  %v5620 = vunpack.c.l.b16 %v4164
  %v5621 = vunpack.c.h.b16 %v4164
  %v5622 = vunpack.c.l.b16 %v4165
  %v5623 = vunpack.c.h.b16 %v4165
  %v5624 = vunpack.c.l.b16 %v4166
  %v5625 = vunpack.c.h.b16 %v4166
  %v5626 = vunpack.c.l.b16 %v4167
  %v5627 = vunpack.c.h.b16 %v4167
  %v5628 = vunpack.c.l.b16 %v4168
  %v5629 = vunpack.c.h.b16 %v4168
  %v5630 = vunpack.c.l.b16 %v4169
  %v5631 = vunpack.c.h.b16 %v4169
  %v5632 = vunpack.c.l.b16 %v4170
  %v5633 = vunpack.c.h.b16 %v4170
  %v5634 = vunpack.c.l.b16 %v4171
  %v5635 = vunpack.c.h.b16 %v4171
  %v5636 = vunpack.c.l.b16 %v4172
  %v5637 = vunpack.c.h.b16 %v4172
  %v5638 = vunpack.c.l.b16 %v4173
  %v5639 = vunpack.c.h.b16 %v4173
  %v5640 = vunpack.c.l.b16 %v4174
  %v5641 = vunpack.c.h.b16 %v4174
  %v5642 = vunpack.c.l.b16 %v4175
  %v5643 = vunpack.c.h.b16 %v4175
  %v5644 = vunpack.c.l.b16 %v4176
  %v5645 = vunpack.c.h.b16 %v4176
  %v5646 = vunpack.c.l.b16 %v4177
  %v5647 = vunpack.c.h.b16 %v4177
  %v5648 = vunpack.c.l.b16 %v4178
  %v5649 = vunpack.c.h.b16 %v4178
  %v5650 = vunpack.c.l.b16 %v4179
  %v5651 = vunpack.c.h.b16 %v4179
  %v5652 = vunpack.c.l.b16 %v4180
  %v5653 = vunpack.c.h.b16 %v4180
  %v5654 = vpack.c.b16 %v5402, %v5398
  %v5655 = vpack.c.b16 %v5403, %v5399
  %v5656 = vpack.c.b16 %v5404, %v5400
  %v5657 = vpack.c.b16 %v5405, %v5401
  %v5658 = vpack.c.b16 %v5410, %v5406
  %v5659 = vpack.c.b16 %v5411, %v5407
  %v5660 = vpack.c.b16 %v5412, %v5408
  %v5661 = vpack.c.b16 %v5413, %v5409
  %v5662 = vpack.c.b16 %v5418, %v5414
  %v5663 = vpack.c.b16 %v5419, %v5415
  %v5664 = vpack.c.b16 %v5420, %v5416
  %v5665 = vpack.c.b16 %v5421, %v5417
  %v5666 = vpack.c.b16 %v5426, %v5422
  %v5667 = vpack.c.b16 %v5427, %v5423
  %v5668 = vpack.c.b16 %v5428, %v5424
  %v5669 = vpack.c.b16 %v5429, %v5425
  %v5670 = vpack.c.b16 %v5434, %v5430
  %v5671 = vpack.c.b16 %v5435, %v5431
  %v5672 = vpack.c.b16 %v5436, %v5432
  %v5673 = vpack.c.b16 %v5437, %v5433
  %v5674 = vpack.c.b16 %v5442, %v5438
  %v5675 = vpack.c.b16 %v5443, %v5439
  %v5676 = vpack.c.b16 %v5444, %v5440
  %v5677 = vpack.c.b16 %v5445, %v5441
  %v5678 = vpack.c.b16 %v5450, %v5446
  %v5679 = vpack.c.b16 %v5451, %v5447
  %v5680 = vpack.c.b16 %v5452, %v5448
  %v5681 = vpack.c.b16 %v5453, %v5449
  %v5682 = vpack.c.b16 %v5458, %v5454
  %v5683 = vpack.c.b16 %v5459, %v5455
  %v5684 = vpack.c.b16 %v5460, %v5456
  %v5685 = vpack.c.b16 %v5461, %v5457
  %v5686 = vpack.c.b16 %v5466, %v5462
  %v5687 = vpack.c.b16 %v5467, %v5463
  %v5688 = vpack.c.b16 %v5468, %v5464
  %v5689 = vpack.c.b16 %v5469, %v5465
  %v5690 = vpack.c.b16 %v5474, %v5470
  %v5691 = vpack.c.b16 %v5475, %v5471
  %v5692 = vpack.c.b16 %v5476, %v5472
  %v5693 = vpack.c.b16 %v5477, %v5473
  %v5694 = vpack.c.b16 %v5482, %v5478
  %v5695 = vpack.c.b16 %v5483, %v5479
  %v5696 = vpack.c.b16 %v5484, %v5480
  %v5697 = vpack.c.b16 %v5485, %v5481
  %v5698 = vpack.c.b16 %v5490, %v5486
  %v5699 = vpack.c.b16 %v5491, %v5487
  %v5700 = vpack.c.b16 %v5492, %v5488
  %v5701 = vpack.c.b16 %v5493, %v5489
  %v5702 = vpack.c.b16 %v5498, %v5494
  %v5703 = vpack.c.b16 %v5499, %v5495
  %v5704 = vpack.c.b16 %v5500, %v5496
  %v5705 = vpack.c.b16 %v5501, %v5497
  %v5706 = vpack.c.b16 %v5506, %v5502
  %v5707 = vpack.c.b16 %v5507, %v5503
  %v5708 = vpack.c.b16 %v5508, %v5504
  %v5709 = vpack.c.b16 %v5509, %v5505
  %v5710 = vpack.c.b16 %v5514, %v5510
  %v5711 = vpack.c.b16 %v5515, %v5511
  %v5712 = vpack.c.b16 %v5516, %v5512
  %v5713 = vpack.c.b16 %v5517, %v5513
  %v5714 = vpack.c.b16 %v5522, %v5518
  %v5715 = vpack.c.b16 %v5523, %v5519
  %v5716 = vpack.c.b16 %v5524, %v5520
  %v5717 = vpack.c.b16 %v5525, %v5521
  %v5718 = vpack.c.b16 %v5530, %v5526
  %v5719 = vpack.c.b16 %v5531, %v5527
  %v5720 = vpack.c.b16 %v5532, %v5528
  %v5721 = vpack.c.b16 %v5533, %v5529
  %v5722 = vpack.c.b16 %v5538, %v5534
  %v5723 = vpack.c.b16 %v5539, %v5535
  %v5724 = vpack.c.b16 %v5540, %v5536
  %v5725 = vpack.c.b16 %v5541, %v5537
  %v5726 = vpack.c.b16 %v5546, %v5542
  %v5727 = vpack.c.b16 %v5547, %v5543
  %v5728 = vpack.c.b16 %v5548, %v5544
  %v5729 = vpack.c.b16 %v5549, %v5545
  %v5730 = vpack.c.b16 %v5554, %v5550
  %v5731 = vpack.c.b16 %v5555, %v5551
  %v5732 = vpack.c.b16 %v5556, %v5552
  %v5733 = vpack.c.b16 %v5557, %v5553
  %v5734 = vpack.c.b16 %v5562, %v5558
  %v5735 = vpack.c.b16 %v5563, %v5559
  %v5736 = vpack.c.b16 %v5564, %v5560
  %v5737 = vpack.c.b16 %v5565, %v5561
  %v5738 = vpack.c.b16 %v5570, %v5566
  %v5739 = vpack.c.b16 %v5571, %v5567
  %v5740 = vpack.c.b16 %v5572, %v5568
  %v5741 = vpack.c.b16 %v5573, %v5569
  %v5742 = vpack.c.b16 %v5578, %v5574
  %v5743 = vpack.c.b16 %v5579, %v5575
  %v5744 = vpack.c.b16 %v5580, %v5576
  %v5745 = vpack.c.b16 %v5581, %v5577
  %v5746 = vpack.c.b16 %v5586, %v5582
  %v5747 = vpack.c.b16 %v5587, %v5583
  %v5748 = vpack.c.b16 %v5588, %v5584
  %v5749 = vpack.c.b16 %v5589, %v5585
  %v5750 = vpack.c.b16 %v5594, %v5590
  %v5751 = vpack.c.b16 %v5595, %v5591
  %v5752 = vpack.c.b16 %v5596, %v5592
  %v5753 = vpack.c.b16 %v5597, %v5593
  %v5754 = vpack.c.b16 %v5602, %v5598
  %v5755 = vpack.c.b16 %v5603, %v5599
  %v5756 = vpack.c.b16 %v5604, %v5600
  %v5757 = vpack.c.b16 %v5605, %v5601
  %v5758 = vpack.c.b16 %v5610, %v5606
  %v5759 = vpack.c.b16 %v5611, %v5607
  %v5760 = vpack.c.b16 %v5612, %v5608
  %v5761 = vpack.c.b16 %v5613, %v5609
  %v5762 = vpack.c.b16 %v5618, %v5614
  %v5763 = vpack.c.b16 %v5619, %v5615
  %v5764 = vpack.c.b16 %v5620, %v5616
  %v5765 = vpack.c.b16 %v5621, %v5617
  %v5766 = vpack.c.b16 %v5626, %v5622
  %v5767 = vpack.c.b16 %v5627, %v5623
  %v5768 = vpack.c.b16 %v5628, %v5624
  %v5769 = vpack.c.b16 %v5629, %v5625
  %v5770 = vpack.c.b16 %v5634, %v5630
  %v5771 = vpack.c.b16 %v5635, %v5631
  %v5772 = vpack.c.b16 %v5636, %v5632
  %v5773 = vpack.c.b16 %v5637, %v5633
  %v5774 = vpack.c.b16 %v5642, %v5638
  %v5775 = vpack.c.b16 %v5643, %v5639
  %v5776 = vpack.c.b16 %v5644, %v5640
  %v5777 = vpack.c.b16 %v5645, %v5641
  %v5778 = vpack.c.b16 %v5650, %v5646
  %v5779 = vpack.c.b16 %v5651, %v5647
  %v5780 = vpack.c.b16 %v5652, %v5648
  %v5781 = vpack.c.b16 %v5653, %v5649
  %5910 = vmatpush.bf16.msra.mxu0 %v5682
  %5911 = vmatpush.bf16.msra.mxu0 %v5678
  %5912 = vmatpush.bf16.msra.mxu0 %v5674
  %5913 = vmatpush.bf16.msra.mxu0 %v5670
  %5914 = vmatpush.bf16.msra.mxu0 %v5666
  %5915 = vmatpush.bf16.msra.mxu0 %v5662
  %5916 = vmatpush.bf16.msra.mxu0 %v5658
  %5917 = vmatpush.bf16.msra.mxu0 %v5654
  %5918 = vmatmul.bf16.gmra.mxu0 %v5262
  %v5919 = vpop.f32.mrf.mxu0
  %v5920 = vadd.f32 %v5078, %v5919
  %v5921 = vpop.f32.mrf.mxu0
  %v5922 = vadd.f32 %v5080, %v5921
  %5923 = vdwg.mxu0
  %5924 = vmatpush.bf16.msra.mxu0 %v5714
  %5925 = vmatpush.bf16.msra.mxu0 %v5710
  %5926 = vmatpush.bf16.msra.mxu0 %v5706
  %5927 = vmatpush.bf16.msra.mxu0 %v5702
  %5928 = vmatpush.bf16.msra.mxu0 %v5698
  %5929 = vmatpush.bf16.msra.mxu0 %v5694
  %5930 = vmatpush.bf16.msra.mxu0 %v5690
  %5931 = vmatpush.bf16.msra.mxu0 %v5686
  %5932 = vmatmul.bf16.gmra.mxu0 %v5263
  %v5933 = vpop.f32.mrf.mxu0
  %v5934 = vadd.f32 %v5920, %v5933
  %v5935 = vpop.f32.mrf.mxu0
  %v5936 = vadd.f32 %v5922, %v5935
  %5937 = vdwg.mxu0
  %5938 = vmatpush.bf16.msra.mxu0 %v5746
  %5939 = vmatpush.bf16.msra.mxu0 %v5742
  %5940 = vmatpush.bf16.msra.mxu0 %v5738
  %5941 = vmatpush.bf16.msra.mxu0 %v5734
  %5942 = vmatpush.bf16.msra.mxu0 %v5730
  %5943 = vmatpush.bf16.msra.mxu0 %v5726
  %5944 = vmatpush.bf16.msra.mxu0 %v5722
  %5945 = vmatpush.bf16.msra.mxu0 %v5718
  %5946 = vmatmul.bf16.gmra.mxu0 %v5264
  %v5947 = vpop.f32.mrf.mxu0
  %v5948 = vadd.f32 %v5934, %v5947
  %v5949 = vpop.f32.mrf.mxu0
  %v5950 = vadd.f32 %v5936, %v5949
  %5951 = vdwg.mxu0
  %5952 = vmatpush.bf16.msra.mxu0 %v5778
  %5953 = vmatpush.bf16.msra.mxu0 %v5774
  %5954 = vmatpush.bf16.msra.mxu0 %v5770
  %5955 = vmatpush.bf16.msra.mxu0 %v5766
  %5956 = vmatpush.bf16.msra.mxu0 %v5762
  %5957 = vmatpush.bf16.msra.mxu0 %v5758
  %5958 = vmatpush.bf16.msra.mxu0 %v5754
  %5959 = vmatpush.bf16.msra.mxu0 %v5750
  %5960 = vmatmul.bf16.gmra.mxu0 %v5265
  %v5961 = vpop.f32.mrf.mxu0
  %v5962 = vadd.f32 %v5948, %v5961
  %v5963 = vpop.f32.mrf.mxu0
  %v5964 = vadd.f32 %v5950, %v5963
  %5965 = vdwg.mxu0
  %5966 = vmatpush.bf16.msra.mxu0 %v5683
  %5967 = vmatpush.bf16.msra.mxu0 %v5679
  %5968 = vmatpush.bf16.msra.mxu0 %v5675
  %5969 = vmatpush.bf16.msra.mxu0 %v5671
  %5970 = vmatpush.bf16.msra.mxu0 %v5667
  %5971 = vmatpush.bf16.msra.mxu0 %v5663
  %5972 = vmatpush.bf16.msra.mxu0 %v5659
  %5973 = vmatpush.bf16.msra.mxu0 %v5655
  %5974 = vmatmul.bf16.gmra.mxu0 %v5262
  %v5975 = vpop.f32.mrf.mxu0
  %v5976 = vadd.f32 %v5134, %v5975
  %v5977 = vpop.f32.mrf.mxu0
  %v5978 = vadd.f32 %v5136, %v5977
  %5979 = vdwg.mxu0
  %5980 = vmatpush.bf16.msra.mxu0 %v5715
  %5981 = vmatpush.bf16.msra.mxu0 %v5711
  %5982 = vmatpush.bf16.msra.mxu0 %v5707
  %5983 = vmatpush.bf16.msra.mxu0 %v5703
  %5984 = vmatpush.bf16.msra.mxu0 %v5699
  %5985 = vmatpush.bf16.msra.mxu0 %v5695
  %5986 = vmatpush.bf16.msra.mxu0 %v5691
  %5987 = vmatpush.bf16.msra.mxu0 %v5687
  %5988 = vmatmul.bf16.gmra.mxu0 %v5263
  %v5989 = vpop.f32.mrf.mxu0
  %v5990 = vadd.f32 %v5976, %v5989
  %v5991 = vpop.f32.mrf.mxu0
  %v5992 = vadd.f32 %v5978, %v5991
  %5993 = vdwg.mxu0
  %5994 = vmatpush.bf16.msra.mxu0 %v5747
  %5995 = vmatpush.bf16.msra.mxu0 %v5743
  %5996 = vmatpush.bf16.msra.mxu0 %v5739
  %5997 = vmatpush.bf16.msra.mxu0 %v5735
  %5998 = vmatpush.bf16.msra.mxu0 %v5731
  %5999 = vmatpush.bf16.msra.mxu0 %v5727
  %6000 = vmatpush.bf16.msra.mxu0 %v5723
  %6001 = vmatpush.bf16.msra.mxu0 %v5719
  %6002 = vmatmul.bf16.gmra.mxu0 %v5264
  %v6003 = vpop.f32.mrf.mxu0
  %v6004 = vadd.f32 %v5990, %v6003
  %v6005 = vpop.f32.mrf.mxu0
  %v6006 = vadd.f32 %v5992, %v6005
  %6007 = vdwg.mxu0
  %6008 = vmatpush.bf16.msra.mxu0 %v5779
  %6009 = vmatpush.bf16.msra.mxu0 %v5775
  %6010 = vmatpush.bf16.msra.mxu0 %v5771
  %6011 = vmatpush.bf16.msra.mxu0 %v5767
  %6012 = vmatpush.bf16.msra.mxu0 %v5763
  %6013 = vmatpush.bf16.msra.mxu0 %v5759
  %6014 = vmatpush.bf16.msra.mxu0 %v5755
  %6015 = vmatpush.bf16.msra.mxu0 %v5751
  %6016 = vmatmul.bf16.gmra.mxu0 %v5265
  %v6017 = vpop.f32.mrf.mxu0
  %v6018 = vadd.f32 %v6004, %v6017
  %v6019 = vpop.f32.mrf.mxu0
  %v6020 = vadd.f32 %v6006, %v6019
  %6021 = vdwg.mxu0
  %6022 = vmatpush.bf16.msra.mxu0 %v5684
  %6023 = vmatpush.bf16.msra.mxu0 %v5680
  %6024 = vmatpush.bf16.msra.mxu0 %v5676
  %6025 = vmatpush.bf16.msra.mxu0 %v5672
  %6026 = vmatpush.bf16.msra.mxu0 %v5668
  %6027 = vmatpush.bf16.msra.mxu0 %v5664
  %6028 = vmatpush.bf16.msra.mxu0 %v5660
  %6029 = vmatpush.bf16.msra.mxu0 %v5656
  %6030 = vmatmul.bf16.gmra.mxu0 %v5262
  %v6031 = vpop.f32.mrf.mxu0
  %v6032 = vadd.f32 %v5190, %v6031
  %v6033 = vpop.f32.mrf.mxu0
  %v6034 = vadd.f32 %v5192, %v6033
  %6035 = vdwg.mxu0
  %6036 = vmatpush.bf16.msra.mxu0 %v5716
  %6037 = vmatpush.bf16.msra.mxu0 %v5712
  %6038 = vmatpush.bf16.msra.mxu0 %v5708
  %6039 = vmatpush.bf16.msra.mxu0 %v5704
  %6040 = vmatpush.bf16.msra.mxu0 %v5700
  %6041 = vmatpush.bf16.msra.mxu0 %v5696
  %6042 = vmatpush.bf16.msra.mxu0 %v5692
  %6043 = vmatpush.bf16.msra.mxu0 %v5688
  %6044 = vmatmul.bf16.gmra.mxu0 %v5263
  %v6045 = vpop.f32.mrf.mxu0
  %v6046 = vadd.f32 %v6032, %v6045
  %v6047 = vpop.f32.mrf.mxu0
  %v6048 = vadd.f32 %v6034, %v6047
  %6049 = vdwg.mxu0
  %6050 = vmatpush.bf16.msra.mxu0 %v5748
  %6051 = vmatpush.bf16.msra.mxu0 %v5744
  %6052 = vmatpush.bf16.msra.mxu0 %v5740
  %6053 = vmatpush.bf16.msra.mxu0 %v5736
  %6054 = vmatpush.bf16.msra.mxu0 %v5732
  %6055 = vmatpush.bf16.msra.mxu0 %v5728
  %6056 = vmatpush.bf16.msra.mxu0 %v5724
  %6057 = vmatpush.bf16.msra.mxu0 %v5720
  %6058 = vmatmul.bf16.gmra.mxu0 %v5264
  %v6059 = vpop.f32.mrf.mxu0
  %v6060 = vadd.f32 %v6046, %v6059
  %v6061 = vpop.f32.mrf.mxu0
  %v6062 = vadd.f32 %v6048, %v6061
  %6063 = vdwg.mxu0
  %6064 = vmatpush.bf16.msra.mxu0 %v5780
  %6065 = vmatpush.bf16.msra.mxu0 %v5776
  %6066 = vmatpush.bf16.msra.mxu0 %v5772
  %6067 = vmatpush.bf16.msra.mxu0 %v5768
  %6068 = vmatpush.bf16.msra.mxu0 %v5764
  %6069 = vmatpush.bf16.msra.mxu0 %v5760
  %6070 = vmatpush.bf16.msra.mxu0 %v5756
  %6071 = vmatpush.bf16.msra.mxu0 %v5752
  %6072 = vmatmul.bf16.gmra.mxu0 %v5265
  %v6073 = vpop.f32.mrf.mxu0
  %v6074 = vadd.f32 %v6060, %v6073
  %v6075 = vpop.f32.mrf.mxu0
  %v6076 = vadd.f32 %v6062, %v6075
  %6077 = vdwg.mxu0
  %6078 = vmatpush.bf16.msra.mxu0 %v5685
  %6079 = vmatpush.bf16.msra.mxu0 %v5681
  %6080 = vmatpush.bf16.msra.mxu0 %v5677
  %6081 = vmatpush.bf16.msra.mxu0 %v5673
  %6082 = vmatpush.bf16.msra.mxu0 %v5669
  %6083 = vmatpush.bf16.msra.mxu0 %v5665
  %6084 = vmatpush.bf16.msra.mxu0 %v5661
  %6085 = vmatpush.bf16.msra.mxu0 %v5657
  %6086 = vmatmul.bf16.gmra.mxu0 %v5262
  %v6087 = vpop.f32.mrf.mxu0
  %v6088 = vadd.f32 %v5246, %v6087
  %v6089 = vpop.f32.mrf.mxu0
  %v6090 = vadd.f32 %v5248, %v6089
  %6091 = vdwg.mxu0
  %6092 = vmatpush.bf16.msra.mxu0 %v5717
  %6093 = vmatpush.bf16.msra.mxu0 %v5713
  %6094 = vmatpush.bf16.msra.mxu0 %v5709
  %6095 = vmatpush.bf16.msra.mxu0 %v5705
  %6096 = vmatpush.bf16.msra.mxu0 %v5701
  %6097 = vmatpush.bf16.msra.mxu0 %v5697
  %6098 = vmatpush.bf16.msra.mxu0 %v5693
  %6099 = vmatpush.bf16.msra.mxu0 %v5689
  %6100 = vmatmul.bf16.gmra.mxu0 %v5263
  %v6101 = vpop.f32.mrf.mxu0
  %v6102 = vadd.f32 %v6088, %v6101
  %v6103 = vpop.f32.mrf.mxu0
  %v6104 = vadd.f32 %v6090, %v6103
  %6105 = vdwg.mxu0
  %6106 = vmatpush.bf16.msra.mxu0 %v5749
  %6107 = vmatpush.bf16.msra.mxu0 %v5745
  %6108 = vmatpush.bf16.msra.mxu0 %v5741
  %6109 = vmatpush.bf16.msra.mxu0 %v5737
  %6110 = vmatpush.bf16.msra.mxu0 %v5733
  %6111 = vmatpush.bf16.msra.mxu0 %v5729
  %6112 = vmatpush.bf16.msra.mxu0 %v5725
  %6113 = vmatpush.bf16.msra.mxu0 %v5721
  %6114 = vmatmul.bf16.gmra.mxu0 %v5264
  %v6115 = vpop.f32.mrf.mxu0
  %v6116 = vadd.f32 %v6102, %v6115
  %v6117 = vpop.f32.mrf.mxu0
  %v6118 = vadd.f32 %v6104, %v6117
  %6119 = vdwg.mxu0
  %6120 = vmatpush.bf16.msra.mxu0 %v5781
  %6121 = vmatpush.bf16.msra.mxu0 %v5777
  %6122 = vmatpush.bf16.msra.mxu0 %v5773
  %6123 = vmatpush.bf16.msra.mxu0 %v5769
  %6124 = vmatpush.bf16.msra.mxu0 %v5765
  %6125 = vmatpush.bf16.msra.mxu0 %v5761
  %6126 = vmatpush.bf16.msra.mxu0 %v5757
  %6127 = vmatpush.bf16.msra.mxu0 %v5753
  %6128 = vmatmul.bf16.gmra.mxu0 %v5265
  %v6129 = vpop.f32.mrf.mxu0
  %v6130 = vadd.f32 %v6116, %v6129
  %v6131 = vpop.f32.mrf.mxu0
  %v6132 = vadd.f32 %v6118, %v6131
  %6133 = vdwg.mxu0
  %v6134 = vld [vmem:[#allocation3] sm:$0xee]
  %v6135 = vld [vmem:[#allocation3 + $0x8] sm:$0xee]
  %v6136 = vld [vmem:[#allocation3 + $0x20] sm:$0xee]
  %v6137 = vld [vmem:[#allocation3 + $0x28] sm:$0xee]
  %v6146 = vrot.slane %v6134, 5
  %v6147 = vrot.slane %v6146, 4
  %v6148 = vrot.slane %v4181, 5
  %v6149 = vsel %vm1275, %v6147, %v6148
  %v6150 = vrot.slane %v6135, 5
  %v6151 = vrot.slane %v6150, 4
  %v6152 = vrot.slane %v4182, 5
  %v6153 = vsel %vm1275, %v6151, %v6152
  %v6154 = vrot.slane %v6136, 5
  %v6155 = vrot.slane %v6154, 4
  %v6156 = vrot.slane %v4183, 5
  %v6157 = vsel %vm1275, %v6155, %v6156
  %v6158 = vrot.slane %v6137, 5
  %v6159 = vrot.slane %v6158, 4
  %v6160 = vrot.slane %v4184, 5
  %v6161 = vsel %vm1275, %v6159, %v6160
  %s6162 = scalar_lea.vmem %s6, 2048
  %v6163 = vld [vmem:[%s6162] sm:$0xff]
  %v6164 = vld [vmem:[%s6162 + $0x8] sm:$0xff]
  %v6165 = vld [vmem:[%s6162 + $0x10] sm:$0xff]
  %v6166 = vld [vmem:[%s6162 + $0x18] sm:$0xff]
  %v6167 = vld [vmem:[%s6162 + $0x20] sm:$0xff]
  %v6168 = vld [vmem:[%s6162 + $0x28] sm:$0xff]
  %v6169 = vld [vmem:[%s6162 + $0x30] sm:$0xff]
  %v6170 = vld [vmem:[%s6162 + $0x38] sm:$0xff]
  %v6171 = vld [vmem:[%s6162 + $0x40] sm:$0xff]
  %v6172 = vld [vmem:[%s6162 + $0x48] sm:$0xff]
  %v6173 = vld [vmem:[%s6162 + $0x50] sm:$0xff]
  %v6174 = vld [vmem:[%s6162 + $0x58] sm:$0xff]
  %v6175 = vld [vmem:[%s6162 + $0x60] sm:$0xff]
  %v6176 = vld [vmem:[%s6162 + $0x68] sm:$0xff]
  %v6177 = vld [vmem:[%s6162 + $0x70] sm:$0xff]
  %v6178 = vld [vmem:[%s6162 + $0x78] sm:$0xff]
  %v6179 = vld [vmem:[%s6162 + $0x80] sm:$0xff]
  %v6180 = vld [vmem:[%s6162 + $0x88] sm:$0xff]
  %v6181 = vld [vmem:[%s6162 + $0x90] sm:$0xff]
  %v6182 = vld [vmem:[%s6162 + $0x98] sm:$0xff]
  %v6183 = vld [vmem:[%s6162 + $0xa0] sm:$0xff]
  %v6184 = vld [vmem:[%s6162 + $0xa8] sm:$0xff]
  %v6185 = vld [vmem:[%s6162 + $0xb0] sm:$0xff]
  %v6186 = vld [vmem:[%s6162 + $0xb8] sm:$0xff]
  %v6187 = vld [vmem:[%s6162 + $0xc0] sm:$0xff]
  %v6188 = vld [vmem:[%s6162 + $0xc8] sm:$0xff]
  %v6189 = vld [vmem:[%s6162 + $0xd0] sm:$0xff]
  %v6190 = vld [vmem:[%s6162 + $0xd8] sm:$0xff]
  %v6191 = vld [vmem:[%s6162 + $0xe0] sm:$0xff]
  %v6192 = vld [vmem:[%s6162 + $0xe8] sm:$0xff]
  %v6193 = vld [vmem:[%s6162 + $0xf0] sm:$0xff]
  %v6194 = vld [vmem:[%s6162 + $0xf8] sm:$0xff]
  %v6195 = vld [vmem:[%s6162 + $0x100] sm:$0xff]
  %v6196 = vld [vmem:[%s6162 + $0x108] sm:$0xff]
  %v6197 = vld [vmem:[%s6162 + $0x110] sm:$0xff]
  %v6198 = vld [vmem:[%s6162 + $0x118] sm:$0xff]
  %v6199 = vld [vmem:[%s6162 + $0x120] sm:$0xff]
  %v6200 = vld [vmem:[%s6162 + $0x128] sm:$0xff]
  %v6201 = vld [vmem:[%s6162 + $0x130] sm:$0xff]
  %v6202 = vld [vmem:[%s6162 + $0x138] sm:$0xff]
  %v6203 = vld [vmem:[%s6162 + $0x140] sm:$0xff]
  %v6204 = vld [vmem:[%s6162 + $0x148] sm:$0xff]
  %v6205 = vld [vmem:[%s6162 + $0x150] sm:$0xff]
  %v6206 = vld [vmem:[%s6162 + $0x158] sm:$0xff]
  %v6207 = vld [vmem:[%s6162 + $0x160] sm:$0xff]
  %v6208 = vld [vmem:[%s6162 + $0x168] sm:$0xff]
  %v6209 = vld [vmem:[%s6162 + $0x170] sm:$0xff]
  %v6210 = vld [vmem:[%s6162 + $0x178] sm:$0xff]
  %v6211 = vld [vmem:[%s6162 + $0x180] sm:$0xff]
  %v6212 = vld [vmem:[%s6162 + $0x188] sm:$0xff]
  %v6213 = vld [vmem:[%s6162 + $0x190] sm:$0xff]
  %v6214 = vld [vmem:[%s6162 + $0x198] sm:$0xff]
  %v6215 = vld [vmem:[%s6162 + $0x1a0] sm:$0xff]
  %v6216 = vld [vmem:[%s6162 + $0x1a8] sm:$0xff]
  %v6217 = vld [vmem:[%s6162 + $0x1b0] sm:$0xff]
  %v6218 = vld [vmem:[%s6162 + $0x1b8] sm:$0xff]
  %v6219 = vld [vmem:[%s6162 + $0x1c0] sm:$0xff]
  %v6220 = vld [vmem:[%s6162 + $0x1c8] sm:$0xff]
  %v6221 = vld [vmem:[%s6162 + $0x1d0] sm:$0xff]
  %v6222 = vld [vmem:[%s6162 + $0x1d8] sm:$0xff]
  %v6223 = vld [vmem:[%s6162 + $0x1e0] sm:$0xff]
  %v6224 = vld [vmem:[%s6162 + $0x1e8] sm:$0xff]
  %v6225 = vld [vmem:[%s6162 + $0x1f0] sm:$0xff]
  %v6226 = vld [vmem:[%s6162 + $0x1f8] sm:$0xff]
  %v6227 = vld [vmem:[%s6162 + $0x200] sm:$0xff]
  %v6228 = vld [vmem:[%s6162 + $0x208] sm:$0xff]
  %v6229 = vld [vmem:[%s6162 + $0x210] sm:$0xff]
  %v6230 = vld [vmem:[%s6162 + $0x218] sm:$0xff]
  %v6231 = vld [vmem:[%s6162 + $0x220] sm:$0xff]
  %v6232 = vld [vmem:[%s6162 + $0x228] sm:$0xff]
  %v6233 = vld [vmem:[%s6162 + $0x230] sm:$0xff]
  %v6234 = vld [vmem:[%s6162 + $0x238] sm:$0xff]
  %v6235 = vld [vmem:[%s6162 + $0x240] sm:$0xff]
  %v6236 = vld [vmem:[%s6162 + $0x248] sm:$0xff]
  %v6237 = vld [vmem:[%s6162 + $0x250] sm:$0xff]
  %v6238 = vld [vmem:[%s6162 + $0x258] sm:$0xff]
  %v6239 = vld [vmem:[%s6162 + $0x260] sm:$0xff]
  %v6240 = vld [vmem:[%s6162 + $0x268] sm:$0xff]
  %v6241 = vld [vmem:[%s6162 + $0x270] sm:$0xff]
  %v6242 = vld [vmem:[%s6162 + $0x278] sm:$0xff]
  %v6243 = vld [vmem:[%s6162 + $0x280] sm:$0xff]
  %v6244 = vld [vmem:[%s6162 + $0x288] sm:$0xff]
  %v6245 = vld [vmem:[%s6162 + $0x290] sm:$0xff]
  %v6246 = vld [vmem:[%s6162 + $0x298] sm:$0xff]
  %v6247 = vld [vmem:[%s6162 + $0x2a0] sm:$0xff]
  %v6248 = vld [vmem:[%s6162 + $0x2a8] sm:$0xff]
  %v6249 = vld [vmem:[%s6162 + $0x2b0] sm:$0xff]
  %v6250 = vld [vmem:[%s6162 + $0x2b8] sm:$0xff]
  %v6251 = vld [vmem:[%s6162 + $0x2c0] sm:$0xff]
  %v6252 = vld [vmem:[%s6162 + $0x2c8] sm:$0xff]
  %v6253 = vld [vmem:[%s6162 + $0x2d0] sm:$0xff]
  %v6254 = vld [vmem:[%s6162 + $0x2d8] sm:$0xff]
  %v6255 = vld [vmem:[%s6162 + $0x2e0] sm:$0xff]
  %v6256 = vld [vmem:[%s6162 + $0x2e8] sm:$0xff]
  %v6257 = vld [vmem:[%s6162 + $0x2f0] sm:$0xff]
  %v6258 = vld [vmem:[%s6162 + $0x2f8] sm:$0xff]
  %v6259 = vld [vmem:[%s6162 + $0x300] sm:$0xff]
  %v6260 = vld [vmem:[%s6162 + $0x308] sm:$0xff]
  %v6261 = vld [vmem:[%s6162 + $0x310] sm:$0xff]
  %v6262 = vld [vmem:[%s6162 + $0x318] sm:$0xff]
  %v6263 = vld [vmem:[%s6162 + $0x320] sm:$0xff]
  %v6264 = vld [vmem:[%s6162 + $0x328] sm:$0xff]
  %v6265 = vld [vmem:[%s6162 + $0x330] sm:$0xff]
  %v6266 = vld [vmem:[%s6162 + $0x338] sm:$0xff]
  %v6267 = vld [vmem:[%s6162 + $0x340] sm:$0xff]
  %v6268 = vld [vmem:[%s6162 + $0x348] sm:$0xff]
  %v6269 = vld [vmem:[%s6162 + $0x350] sm:$0xff]
  %v6270 = vld [vmem:[%s6162 + $0x358] sm:$0xff]
  %v6271 = vld [vmem:[%s6162 + $0x360] sm:$0xff]
  %v6272 = vld [vmem:[%s6162 + $0x368] sm:$0xff]
  %v6273 = vld [vmem:[%s6162 + $0x370] sm:$0xff]
  %v6274 = vld [vmem:[%s6162 + $0x378] sm:$0xff]
  %v6275 = vld [vmem:[%s6162 + $0x380] sm:$0xff]
  %v6276 = vld [vmem:[%s6162 + $0x388] sm:$0xff]
  %v6277 = vld [vmem:[%s6162 + $0x390] sm:$0xff]
  %v6278 = vld [vmem:[%s6162 + $0x398] sm:$0xff]
  %v6279 = vld [vmem:[%s6162 + $0x3a0] sm:$0xff]
  %v6280 = vld [vmem:[%s6162 + $0x3a8] sm:$0xff]
  %v6281 = vld [vmem:[%s6162 + $0x3b0] sm:$0xff]
  %v6282 = vld [vmem:[%s6162 + $0x3b8] sm:$0xff]
  %v6283 = vld [vmem:[%s6162 + $0x3c0] sm:$0xff]
  %v6284 = vld [vmem:[%s6162 + $0x3c8] sm:$0xff]
  %v6285 = vld [vmem:[%s6162 + $0x3d0] sm:$0xff]
  %v6286 = vld [vmem:[%s6162 + $0x3d8] sm:$0xff]
  %v6287 = vld [vmem:[%s6162 + $0x3e0] sm:$0xff]
  %v6288 = vld [vmem:[%s6162 + $0x3e8] sm:$0xff]
  %v6289 = vld [vmem:[%s6162 + $0x3f0] sm:$0xff]
  %v6290 = vld [vmem:[%s6162 + $0x3f8] sm:$0xff]
  %v6291 = vunpack.c.l.b16 %v6149
  %v6292 = vunpack.c.h.b16 %v6149
  %v6293 = vunpack.c.l.b16 %v6153
  %v6294 = vunpack.c.h.b16 %v6153
  %v6295 = vunpack.c.l.b16 %v6157
  %v6296 = vunpack.c.h.b16 %v6157
  %v6297 = vunpack.c.l.b16 %v6161
  %v6298 = vunpack.c.h.b16 %v6161
  %v6299 = vpack.c.b16 %v6295, %v6291
  %v6300 = vpack.c.b16 %v6296, %v6292
  %v6301 = vpack.c.b16 %v6297, %v6293
  %v6302 = vpack.c.b16 %v6298, %v6294
  %v6435 = vunpack.c.l.b16 %v6163
  %v6436 = vunpack.c.h.b16 %v6163
  %v6437 = vunpack.c.l.b16 %v6164
  %v6438 = vunpack.c.h.b16 %v6164
  %v6439 = vunpack.c.l.b16 %v6165
  %v6440 = vunpack.c.h.b16 %v6165
  %v6441 = vunpack.c.l.b16 %v6166
  %v6442 = vunpack.c.h.b16 %v6166
  %v6443 = vunpack.c.l.b16 %v6167
  %v6444 = vunpack.c.h.b16 %v6167
  %v6445 = vunpack.c.l.b16 %v6168
  %v6446 = vunpack.c.h.b16 %v6168
  %v6447 = vunpack.c.l.b16 %v6169
  %v6448 = vunpack.c.h.b16 %v6169
  %v6449 = vunpack.c.l.b16 %v6170
  %v6450 = vunpack.c.h.b16 %v6170
  %v6451 = vunpack.c.l.b16 %v6171
  %v6452 = vunpack.c.h.b16 %v6171
  %v6453 = vunpack.c.l.b16 %v6172
  %v6454 = vunpack.c.h.b16 %v6172
  %v6455 = vunpack.c.l.b16 %v6173
  %v6456 = vunpack.c.h.b16 %v6173
  %v6457 = vunpack.c.l.b16 %v6174
  %v6458 = vunpack.c.h.b16 %v6174
  %v6459 = vunpack.c.l.b16 %v6175
  %v6460 = vunpack.c.h.b16 %v6175
  %v6461 = vunpack.c.l.b16 %v6176
  %v6462 = vunpack.c.h.b16 %v6176
  %v6463 = vunpack.c.l.b16 %v6177
  %v6464 = vunpack.c.h.b16 %v6177
  %v6465 = vunpack.c.l.b16 %v6178
  %v6466 = vunpack.c.h.b16 %v6178
  %v6467 = vunpack.c.l.b16 %v6179
  %v6468 = vunpack.c.h.b16 %v6179
  %v6469 = vunpack.c.l.b16 %v6180
  %v6470 = vunpack.c.h.b16 %v6180
  %v6471 = vunpack.c.l.b16 %v6181
  %v6472 = vunpack.c.h.b16 %v6181
  %v6473 = vunpack.c.l.b16 %v6182
  %v6474 = vunpack.c.h.b16 %v6182
  %v6475 = vunpack.c.l.b16 %v6183
  %v6476 = vunpack.c.h.b16 %v6183
  %v6477 = vunpack.c.l.b16 %v6184
  %v6478 = vunpack.c.h.b16 %v6184
  %v6479 = vunpack.c.l.b16 %v6185
  %v6480 = vunpack.c.h.b16 %v6185
  %v6481 = vunpack.c.l.b16 %v6186
  %v6482 = vunpack.c.h.b16 %v6186
  %v6483 = vunpack.c.l.b16 %v6187
  %v6484 = vunpack.c.h.b16 %v6187
  %v6485 = vunpack.c.l.b16 %v6188
  %v6486 = vunpack.c.h.b16 %v6188
  %v6487 = vunpack.c.l.b16 %v6189
  %v6488 = vunpack.c.h.b16 %v6189
  %v6489 = vunpack.c.l.b16 %v6190
  %v6490 = vunpack.c.h.b16 %v6190
  %v6491 = vunpack.c.l.b16 %v6191
  %v6492 = vunpack.c.h.b16 %v6191
  %v6493 = vunpack.c.l.b16 %v6192
  %v6494 = vunpack.c.h.b16 %v6192
  %v6495 = vunpack.c.l.b16 %v6193
  %v6496 = vunpack.c.h.b16 %v6193
  %v6497 = vunpack.c.l.b16 %v6194
  %v6498 = vunpack.c.h.b16 %v6194
  %v6499 = vunpack.c.l.b16 %v6195
  %v6500 = vunpack.c.h.b16 %v6195
  %v6501 = vunpack.c.l.b16 %v6196
  %v6502 = vunpack.c.h.b16 %v6196
  %v6503 = vunpack.c.l.b16 %v6197
  %v6504 = vunpack.c.h.b16 %v6197
  %v6505 = vunpack.c.l.b16 %v6198
  %v6506 = vunpack.c.h.b16 %v6198
  %v6507 = vunpack.c.l.b16 %v6199
  %v6508 = vunpack.c.h.b16 %v6199
  %v6509 = vunpack.c.l.b16 %v6200
  %v6510 = vunpack.c.h.b16 %v6200
  %v6511 = vunpack.c.l.b16 %v6201
  %v6512 = vunpack.c.h.b16 %v6201
  %v6513 = vunpack.c.l.b16 %v6202
  %v6514 = vunpack.c.h.b16 %v6202
  %v6515 = vunpack.c.l.b16 %v6203
  %v6516 = vunpack.c.h.b16 %v6203
  %v6517 = vunpack.c.l.b16 %v6204
  %v6518 = vunpack.c.h.b16 %v6204
  %v6519 = vunpack.c.l.b16 %v6205
  %v6520 = vunpack.c.h.b16 %v6205
  %v6521 = vunpack.c.l.b16 %v6206
  %v6522 = vunpack.c.h.b16 %v6206
  %v6523 = vunpack.c.l.b16 %v6207
  %v6524 = vunpack.c.h.b16 %v6207
  %v6525 = vunpack.c.l.b16 %v6208
  %v6526 = vunpack.c.h.b16 %v6208
  %v6527 = vunpack.c.l.b16 %v6209
  %v6528 = vunpack.c.h.b16 %v6209
  %v6529 = vunpack.c.l.b16 %v6210
  %v6530 = vunpack.c.h.b16 %v6210
  %v6531 = vunpack.c.l.b16 %v6211
  %v6532 = vunpack.c.h.b16 %v6211
  %v6533 = vunpack.c.l.b16 %v6212
  %v6534 = vunpack.c.h.b16 %v6212
  %v6535 = vunpack.c.l.b16 %v6213
  %v6536 = vunpack.c.h.b16 %v6213
  %v6537 = vunpack.c.l.b16 %v6214
  %v6538 = vunpack.c.h.b16 %v6214
  %v6539 = vunpack.c.l.b16 %v6215
  %v6540 = vunpack.c.h.b16 %v6215
  %v6541 = vunpack.c.l.b16 %v6216
  %v6542 = vunpack.c.h.b16 %v6216
  %v6543 = vunpack.c.l.b16 %v6217
  %v6544 = vunpack.c.h.b16 %v6217
  %v6545 = vunpack.c.l.b16 %v6218
  %v6546 = vunpack.c.h.b16 %v6218
  %v6547 = vunpack.c.l.b16 %v6219
  %v6548 = vunpack.c.h.b16 %v6219
  %v6549 = vunpack.c.l.b16 %v6220
  %v6550 = vunpack.c.h.b16 %v6220
  %v6551 = vunpack.c.l.b16 %v6221
  %v6552 = vunpack.c.h.b16 %v6221
  %v6553 = vunpack.c.l.b16 %v6222
  %v6554 = vunpack.c.h.b16 %v6222
  %v6555 = vunpack.c.l.b16 %v6223
  %v6556 = vunpack.c.h.b16 %v6223
  %v6557 = vunpack.c.l.b16 %v6224
  %v6558 = vunpack.c.h.b16 %v6224
  %v6559 = vunpack.c.l.b16 %v6225
  %v6560 = vunpack.c.h.b16 %v6225
  %v6561 = vunpack.c.l.b16 %v6226
  %v6562 = vunpack.c.h.b16 %v6226
  %v6563 = vunpack.c.l.b16 %v6227
  %v6564 = vunpack.c.h.b16 %v6227
  %v6565 = vunpack.c.l.b16 %v6228
  %v6566 = vunpack.c.h.b16 %v6228
  %v6567 = vunpack.c.l.b16 %v6229
  %v6568 = vunpack.c.h.b16 %v6229
  %v6569 = vunpack.c.l.b16 %v6230
  %v6570 = vunpack.c.h.b16 %v6230
  %v6571 = vunpack.c.l.b16 %v6231
  %v6572 = vunpack.c.h.b16 %v6231
  %v6573 = vunpack.c.l.b16 %v6232
  %v6574 = vunpack.c.h.b16 %v6232
  %v6575 = vunpack.c.l.b16 %v6233
  %v6576 = vunpack.c.h.b16 %v6233
  %v6577 = vunpack.c.l.b16 %v6234
  %v6578 = vunpack.c.h.b16 %v6234
  %v6579 = vunpack.c.l.b16 %v6235
  %v6580 = vunpack.c.h.b16 %v6235
  %v6581 = vunpack.c.l.b16 %v6236
  %v6582 = vunpack.c.h.b16 %v6236
  %v6583 = vunpack.c.l.b16 %v6237
  %v6584 = vunpack.c.h.b16 %v6237
  %v6585 = vunpack.c.l.b16 %v6238
  %v6586 = vunpack.c.h.b16 %v6238
  %v6587 = vunpack.c.l.b16 %v6239
  %v6588 = vunpack.c.h.b16 %v6239
  %v6589 = vunpack.c.l.b16 %v6240
  %v6590 = vunpack.c.h.b16 %v6240
  %v6591 = vunpack.c.l.b16 %v6241
  %v6592 = vunpack.c.h.b16 %v6241
  %v6593 = vunpack.c.l.b16 %v6242
  %v6594 = vunpack.c.h.b16 %v6242
  %v6595 = vunpack.c.l.b16 %v6243
  %v6596 = vunpack.c.h.b16 %v6243
  %v6597 = vunpack.c.l.b16 %v6244
  %v6598 = vunpack.c.h.b16 %v6244
  %v6599 = vunpack.c.l.b16 %v6245
  %v6600 = vunpack.c.h.b16 %v6245
  %v6601 = vunpack.c.l.b16 %v6246
  %v6602 = vunpack.c.h.b16 %v6246
  %v6603 = vunpack.c.l.b16 %v6247
  %v6604 = vunpack.c.h.b16 %v6247
  %v6605 = vunpack.c.l.b16 %v6248
  %v6606 = vunpack.c.h.b16 %v6248
  %v6607 = vunpack.c.l.b16 %v6249
  %v6608 = vunpack.c.h.b16 %v6249
  %v6609 = vunpack.c.l.b16 %v6250
  %v6610 = vunpack.c.h.b16 %v6250
  %v6611 = vunpack.c.l.b16 %v6251
  %v6612 = vunpack.c.h.b16 %v6251
  %v6613 = vunpack.c.l.b16 %v6252
  %v6614 = vunpack.c.h.b16 %v6252
  %v6615 = vunpack.c.l.b16 %v6253
  %v6616 = vunpack.c.h.b16 %v6253
  %v6617 = vunpack.c.l.b16 %v6254
  %v6618 = vunpack.c.h.b16 %v6254
  %v6619 = vunpack.c.l.b16 %v6255
  %v6620 = vunpack.c.h.b16 %v6255
  %v6621 = vunpack.c.l.b16 %v6256
  %v6622 = vunpack.c.h.b16 %v6256
  %v6623 = vunpack.c.l.b16 %v6257
  %v6624 = vunpack.c.h.b16 %v6257
  %v6625 = vunpack.c.l.b16 %v6258
  %v6626 = vunpack.c.h.b16 %v6258
  %v6627 = vunpack.c.l.b16 %v6259
  %v6628 = vunpack.c.h.b16 %v6259
  %v6629 = vunpack.c.l.b16 %v6260
  %v6630 = vunpack.c.h.b16 %v6260
  %v6631 = vunpack.c.l.b16 %v6261
  %v6632 = vunpack.c.h.b16 %v6261
  %v6633 = vunpack.c.l.b16 %v6262
  %v6634 = vunpack.c.h.b16 %v6262
  %v6635 = vunpack.c.l.b16 %v6263
  %v6636 = vunpack.c.h.b16 %v6263
  %v6637 = vunpack.c.l.b16 %v6264
  %v6638 = vunpack.c.h.b16 %v6264
  %v6639 = vunpack.c.l.b16 %v6265
  %v6640 = vunpack.c.h.b16 %v6265
  %v6641 = vunpack.c.l.b16 %v6266
  %v6642 = vunpack.c.h.b16 %v6266
  %v6643 = vunpack.c.l.b16 %v6267
  %v6644 = vunpack.c.h.b16 %v6267
  %v6645 = vunpack.c.l.b16 %v6268
  %v6646 = vunpack.c.h.b16 %v6268
  %v6647 = vunpack.c.l.b16 %v6269
  %v6648 = vunpack.c.h.b16 %v6269
  %v6649 = vunpack.c.l.b16 %v6270
  %v6650 = vunpack.c.h.b16 %v6270
  %v6651 = vunpack.c.l.b16 %v6271
  %v6652 = vunpack.c.h.b16 %v6271
  %v6653 = vunpack.c.l.b16 %v6272
  %v6654 = vunpack.c.h.b16 %v6272
  %v6655 = vunpack.c.l.b16 %v6273
  %v6656 = vunpack.c.h.b16 %v6273
  %v6657 = vunpack.c.l.b16 %v6274
  %v6658 = vunpack.c.h.b16 %v6274
  %v6659 = vunpack.c.l.b16 %v6275
  %v6660 = vunpack.c.h.b16 %v6275
  %v6661 = vunpack.c.l.b16 %v6276
  %v6662 = vunpack.c.h.b16 %v6276
  %v6663 = vunpack.c.l.b16 %v6277
  %v6664 = vunpack.c.h.b16 %v6277
  %v6665 = vunpack.c.l.b16 %v6278
  %v6666 = vunpack.c.h.b16 %v6278
  %v6667 = vunpack.c.l.b16 %v6279
  %v6668 = vunpack.c.h.b16 %v6279
  %v6669 = vunpack.c.l.b16 %v6280
  %v6670 = vunpack.c.h.b16 %v6280
  %v6671 = vunpack.c.l.b16 %v6281
  %v6672 = vunpack.c.h.b16 %v6281
  %v6673 = vunpack.c.l.b16 %v6282
  %v6674 = vunpack.c.h.b16 %v6282
  %v6675 = vunpack.c.l.b16 %v6283
  %v6676 = vunpack.c.h.b16 %v6283
  %v6677 = vunpack.c.l.b16 %v6284
  %v6678 = vunpack.c.h.b16 %v6284
  %v6679 = vunpack.c.l.b16 %v6285
  %v6680 = vunpack.c.h.b16 %v6285
  %v6681 = vunpack.c.l.b16 %v6286
  %v6682 = vunpack.c.h.b16 %v6286
  %v6683 = vunpack.c.l.b16 %v6287
  %v6684 = vunpack.c.h.b16 %v6287
  %v6685 = vunpack.c.l.b16 %v6288
  %v6686 = vunpack.c.h.b16 %v6288
  %v6687 = vunpack.c.l.b16 %v6289
  %v6688 = vunpack.c.h.b16 %v6289
  %v6689 = vunpack.c.l.b16 %v6290
  %v6690 = vunpack.c.h.b16 %v6290
  %v6691 = vpack.c.b16 %v6439, %v6435
  %v6692 = vpack.c.b16 %v6440, %v6436
  %v6693 = vpack.c.b16 %v6441, %v6437
  %v6694 = vpack.c.b16 %v6442, %v6438
  %v6695 = vpack.c.b16 %v6447, %v6443
  %v6696 = vpack.c.b16 %v6448, %v6444
  %v6697 = vpack.c.b16 %v6449, %v6445
  %v6698 = vpack.c.b16 %v6450, %v6446
  %v6699 = vpack.c.b16 %v6455, %v6451
  %v6700 = vpack.c.b16 %v6456, %v6452
  %v6701 = vpack.c.b16 %v6457, %v6453
  %v6702 = vpack.c.b16 %v6458, %v6454
  %v6703 = vpack.c.b16 %v6463, %v6459
  %v6704 = vpack.c.b16 %v6464, %v6460
  %v6705 = vpack.c.b16 %v6465, %v6461
  %v6706 = vpack.c.b16 %v6466, %v6462
  %v6707 = vpack.c.b16 %v6471, %v6467
  %v6708 = vpack.c.b16 %v6472, %v6468
  %v6709 = vpack.c.b16 %v6473, %v6469
  %v6710 = vpack.c.b16 %v6474, %v6470
  %v6711 = vpack.c.b16 %v6479, %v6475
  %v6712 = vpack.c.b16 %v6480, %v6476
  %v6713 = vpack.c.b16 %v6481, %v6477
  %v6714 = vpack.c.b16 %v6482, %v6478
  %v6715 = vpack.c.b16 %v6487, %v6483
  %v6716 = vpack.c.b16 %v6488, %v6484
  %v6717 = vpack.c.b16 %v6489, %v6485
  %v6718 = vpack.c.b16 %v6490, %v6486
  %v6719 = vpack.c.b16 %v6495, %v6491
  %v6720 = vpack.c.b16 %v6496, %v6492
  %v6721 = vpack.c.b16 %v6497, %v6493
  %v6722 = vpack.c.b16 %v6498, %v6494
  %v6723 = vpack.c.b16 %v6503, %v6499
  %v6724 = vpack.c.b16 %v6504, %v6500
  %v6725 = vpack.c.b16 %v6505, %v6501
  %v6726 = vpack.c.b16 %v6506, %v6502
  %v6727 = vpack.c.b16 %v6511, %v6507
  %v6728 = vpack.c.b16 %v6512, %v6508
  %v6729 = vpack.c.b16 %v6513, %v6509
  %v6730 = vpack.c.b16 %v6514, %v6510
  %v6731 = vpack.c.b16 %v6519, %v6515
  %v6732 = vpack.c.b16 %v6520, %v6516
  %v6733 = vpack.c.b16 %v6521, %v6517
  %v6734 = vpack.c.b16 %v6522, %v6518
  %v6735 = vpack.c.b16 %v6527, %v6523
  %v6736 = vpack.c.b16 %v6528, %v6524
  %v6737 = vpack.c.b16 %v6529, %v6525
  %v6738 = vpack.c.b16 %v6530, %v6526
  %v6739 = vpack.c.b16 %v6535, %v6531
  %v6740 = vpack.c.b16 %v6536, %v6532
  %v6741 = vpack.c.b16 %v6537, %v6533
  %v6742 = vpack.c.b16 %v6538, %v6534
  %v6743 = vpack.c.b16 %v6543, %v6539
  %v6744 = vpack.c.b16 %v6544, %v6540
  %v6745 = vpack.c.b16 %v6545, %v6541
  %v6746 = vpack.c.b16 %v6546, %v6542
  %v6747 = vpack.c.b16 %v6551, %v6547
  %v6748 = vpack.c.b16 %v6552, %v6548
  %v6749 = vpack.c.b16 %v6553, %v6549
  %v6750 = vpack.c.b16 %v6554, %v6550
  %v6751 = vpack.c.b16 %v6559, %v6555
  %v6752 = vpack.c.b16 %v6560, %v6556
  %v6753 = vpack.c.b16 %v6561, %v6557
  %v6754 = vpack.c.b16 %v6562, %v6558
  %v6755 = vpack.c.b16 %v6567, %v6563
  %v6756 = vpack.c.b16 %v6568, %v6564
  %v6757 = vpack.c.b16 %v6569, %v6565
  %v6758 = vpack.c.b16 %v6570, %v6566
  %v6759 = vpack.c.b16 %v6575, %v6571
  %v6760 = vpack.c.b16 %v6576, %v6572
  %v6761 = vpack.c.b16 %v6577, %v6573
  %v6762 = vpack.c.b16 %v6578, %v6574
  %v6763 = vpack.c.b16 %v6583, %v6579
  %v6764 = vpack.c.b16 %v6584, %v6580
  %v6765 = vpack.c.b16 %v6585, %v6581
  %v6766 = vpack.c.b16 %v6586, %v6582
  %v6767 = vpack.c.b16 %v6591, %v6587
  %v6768 = vpack.c.b16 %v6592, %v6588
  %v6769 = vpack.c.b16 %v6593, %v6589
  %v6770 = vpack.c.b16 %v6594, %v6590
  %v6771 = vpack.c.b16 %v6599, %v6595
  %v6772 = vpack.c.b16 %v6600, %v6596
  %v6773 = vpack.c.b16 %v6601, %v6597
  %v6774 = vpack.c.b16 %v6602, %v6598
  %v6775 = vpack.c.b16 %v6607, %v6603
  %v6776 = vpack.c.b16 %v6608, %v6604
  %v6777 = vpack.c.b16 %v6609, %v6605
  %v6778 = vpack.c.b16 %v6610, %v6606
  %v6779 = vpack.c.b16 %v6615, %v6611
  %v6780 = vpack.c.b16 %v6616, %v6612
  %v6781 = vpack.c.b16 %v6617, %v6613
  %v6782 = vpack.c.b16 %v6618, %v6614
  %v6783 = vpack.c.b16 %v6623, %v6619
  %v6784 = vpack.c.b16 %v6624, %v6620
  %v6785 = vpack.c.b16 %v6625, %v6621
  %v6786 = vpack.c.b16 %v6626, %v6622
  %v6787 = vpack.c.b16 %v6631, %v6627
  %v6788 = vpack.c.b16 %v6632, %v6628
  %v6789 = vpack.c.b16 %v6633, %v6629
  %v6790 = vpack.c.b16 %v6634, %v6630
  %v6791 = vpack.c.b16 %v6639, %v6635
  %v6792 = vpack.c.b16 %v6640, %v6636
  %v6793 = vpack.c.b16 %v6641, %v6637
  %v6794 = vpack.c.b16 %v6642, %v6638
  %v6795 = vpack.c.b16 %v6647, %v6643
  %v6796 = vpack.c.b16 %v6648, %v6644
  %v6797 = vpack.c.b16 %v6649, %v6645
  %v6798 = vpack.c.b16 %v6650, %v6646
  %v6799 = vpack.c.b16 %v6655, %v6651
  %v6800 = vpack.c.b16 %v6656, %v6652
  %v6801 = vpack.c.b16 %v6657, %v6653
  %v6802 = vpack.c.b16 %v6658, %v6654
  %v6803 = vpack.c.b16 %v6663, %v6659
  %v6804 = vpack.c.b16 %v6664, %v6660
  %v6805 = vpack.c.b16 %v6665, %v6661
  %v6806 = vpack.c.b16 %v6666, %v6662
  %v6807 = vpack.c.b16 %v6671, %v6667
  %v6808 = vpack.c.b16 %v6672, %v6668
  %v6809 = vpack.c.b16 %v6673, %v6669
  %v6810 = vpack.c.b16 %v6674, %v6670
  %v6811 = vpack.c.b16 %v6679, %v6675
  %v6812 = vpack.c.b16 %v6680, %v6676
  %v6813 = vpack.c.b16 %v6681, %v6677
  %v6814 = vpack.c.b16 %v6682, %v6678
  %v6815 = vpack.c.b16 %v6687, %v6683
  %v6816 = vpack.c.b16 %v6688, %v6684
  %v6817 = vpack.c.b16 %v6689, %v6685
  %v6818 = vpack.c.b16 %v6690, %v6686
  %6947 = vmatpush.bf16.msra.mxu0 %v6719
  %6948 = vmatpush.bf16.msra.mxu0 %v6715
  %6949 = vmatpush.bf16.msra.mxu0 %v6711
  %6950 = vmatpush.bf16.msra.mxu0 %v6707
  %6951 = vmatpush.bf16.msra.mxu0 %v6703
  %6952 = vmatpush.bf16.msra.mxu0 %v6699
  %6953 = vmatpush.bf16.msra.mxu0 %v6695
  %6954 = vmatpush.bf16.msra.mxu0 %v6691
  %6955 = vmatmul.bf16.gmra.mxu0 %v6299
  %v6956 = vpop.f32.mrf.mxu0
  %v6957 = vadd.f32 0.0, %v6956
  %v6958 = vpop.f32.mrf.mxu0
  %v6959 = vadd.f32 0.0, %v6958
  %6960 = vdwg.mxu0
  %6961 = vmatpush.bf16.msra.mxu0 %v6751
  %6962 = vmatpush.bf16.msra.mxu0 %v6747
  %6963 = vmatpush.bf16.msra.mxu0 %v6743
  %6964 = vmatpush.bf16.msra.mxu0 %v6739
  %6965 = vmatpush.bf16.msra.mxu0 %v6735
  %6966 = vmatpush.bf16.msra.mxu0 %v6731
  %6967 = vmatpush.bf16.msra.mxu0 %v6727
  %6968 = vmatpush.bf16.msra.mxu0 %v6723
  %6969 = vmatmul.bf16.gmra.mxu0 %v6300
  %v6970 = vpop.f32.mrf.mxu0
  %v6971 = vadd.f32 %v6957, %v6970
  %v6972 = vpop.f32.mrf.mxu0
  %v6973 = vadd.f32 %v6959, %v6972
  %6974 = vdwg.mxu0
  %6975 = vmatpush.bf16.msra.mxu0 %v6783
  %6976 = vmatpush.bf16.msra.mxu0 %v6779
  %6977 = vmatpush.bf16.msra.mxu0 %v6775
  %6978 = vmatpush.bf16.msra.mxu0 %v6771
  %6979 = vmatpush.bf16.msra.mxu0 %v6767
  %6980 = vmatpush.bf16.msra.mxu0 %v6763
  %6981 = vmatpush.bf16.msra.mxu0 %v6759
  %6982 = vmatpush.bf16.msra.mxu0 %v6755
  %6983 = vmatmul.bf16.gmra.mxu0 %v6301
  %v6984 = vpop.f32.mrf.mxu0
  %v6985 = vadd.f32 %v6971, %v6984
  %v6986 = vpop.f32.mrf.mxu0
  %v6987 = vadd.f32 %v6973, %v6986
  %6988 = vdwg.mxu0
  %6989 = vmatpush.bf16.msra.mxu0 %v6815
  %6990 = vmatpush.bf16.msra.mxu0 %v6811
  %6991 = vmatpush.bf16.msra.mxu0 %v6807
  %6992 = vmatpush.bf16.msra.mxu0 %v6803
  %6993 = vmatpush.bf16.msra.mxu0 %v6799
  %6994 = vmatpush.bf16.msra.mxu0 %v6795
  %6995 = vmatpush.bf16.msra.mxu0 %v6791
  %6996 = vmatpush.bf16.msra.mxu0 %v6787
  %6997 = vmatmul.bf16.gmra.mxu0 %v6302
  %v6998 = vpop.f32.mrf.mxu0
  %v6999 = vadd.f32 %v6985, %v6998
  %v7000 = vpop.f32.mrf.mxu0
  %v7001 = vadd.f32 %v6987, %v7000
  %7002 = vdwg.mxu0
  %7003 = vmatpush.bf16.msra.mxu0 %v6720
  %7004 = vmatpush.bf16.msra.mxu0 %v6716
  %7005 = vmatpush.bf16.msra.mxu0 %v6712
  %7006 = vmatpush.bf16.msra.mxu0 %v6708
  %7007 = vmatpush.bf16.msra.mxu0 %v6704
  %7008 = vmatpush.bf16.msra.mxu0 %v6700
  %7009 = vmatpush.bf16.msra.mxu0 %v6696
  %7010 = vmatpush.bf16.msra.mxu0 %v6692
  %7011 = vmatmul.bf16.gmra.mxu0 %v6299
  %v7012 = vpop.f32.mrf.mxu0
  %v7013 = vadd.f32 0.0, %v7012
  %v7014 = vpop.f32.mrf.mxu0
  %v7015 = vadd.f32 0.0, %v7014
  %7016 = vdwg.mxu0
  %7017 = vmatpush.bf16.msra.mxu0 %v6752
  %7018 = vmatpush.bf16.msra.mxu0 %v6748
  %7019 = vmatpush.bf16.msra.mxu0 %v6744
  %7020 = vmatpush.bf16.msra.mxu0 %v6740
  %7021 = vmatpush.bf16.msra.mxu0 %v6736
  %7022 = vmatpush.bf16.msra.mxu0 %v6732
  %7023 = vmatpush.bf16.msra.mxu0 %v6728
  %7024 = vmatpush.bf16.msra.mxu0 %v6724
  %7025 = vmatmul.bf16.gmra.mxu0 %v6300
  %v7026 = vpop.f32.mrf.mxu0
  %v7027 = vadd.f32 %v7013, %v7026
  %v7028 = vpop.f32.mrf.mxu0
  %v7029 = vadd.f32 %v7015, %v7028
  %7030 = vdwg.mxu0
  %7031 = vmatpush.bf16.msra.mxu0 %v6784
  %7032 = vmatpush.bf16.msra.mxu0 %v6780
  %7033 = vmatpush.bf16.msra.mxu0 %v6776
  %7034 = vmatpush.bf16.msra.mxu0 %v6772
  %7035 = vmatpush.bf16.msra.mxu0 %v6768
  %7036 = vmatpush.bf16.msra.mxu0 %v6764
  %7037 = vmatpush.bf16.msra.mxu0 %v6760
  %7038 = vmatpush.bf16.msra.mxu0 %v6756
  %7039 = vmatmul.bf16.gmra.mxu0 %v6301
  %v7040 = vpop.f32.mrf.mxu0
  %v7041 = vadd.f32 %v7027, %v7040
  %v7042 = vpop.f32.mrf.mxu0
  %v7043 = vadd.f32 %v7029, %v7042
  %7044 = vdwg.mxu0
  %7045 = vmatpush.bf16.msra.mxu0 %v6816
  %7046 = vmatpush.bf16.msra.mxu0 %v6812
  %7047 = vmatpush.bf16.msra.mxu0 %v6808
  %7048 = vmatpush.bf16.msra.mxu0 %v6804
  %7049 = vmatpush.bf16.msra.mxu0 %v6800
  %7050 = vmatpush.bf16.msra.mxu0 %v6796
  %7051 = vmatpush.bf16.msra.mxu0 %v6792
  %7052 = vmatpush.bf16.msra.mxu0 %v6788
  %7053 = vmatmul.bf16.gmra.mxu0 %v6302
  %v7054 = vpop.f32.mrf.mxu0
  %v7055 = vadd.f32 %v7041, %v7054
  %v7056 = vpop.f32.mrf.mxu0
  %v7057 = vadd.f32 %v7043, %v7056
  %7058 = vdwg.mxu0
  %7059 = vmatpush.bf16.msra.mxu0 %v6721
  %7060 = vmatpush.bf16.msra.mxu0 %v6717
  %7061 = vmatpush.bf16.msra.mxu0 %v6713
  %7062 = vmatpush.bf16.msra.mxu0 %v6709
  %7063 = vmatpush.bf16.msra.mxu0 %v6705
  %7064 = vmatpush.bf16.msra.mxu0 %v6701
  %7065 = vmatpush.bf16.msra.mxu0 %v6697
  %7066 = vmatpush.bf16.msra.mxu0 %v6693
  %7067 = vmatmul.bf16.gmra.mxu0 %v6299
  %v7068 = vpop.f32.mrf.mxu0
  %v7069 = vadd.f32 0.0, %v7068
  %v7070 = vpop.f32.mrf.mxu0
  %v7071 = vadd.f32 0.0, %v7070
  %7072 = vdwg.mxu0
  %7073 = vmatpush.bf16.msra.mxu0 %v6753
  %7074 = vmatpush.bf16.msra.mxu0 %v6749
  %7075 = vmatpush.bf16.msra.mxu0 %v6745
  %7076 = vmatpush.bf16.msra.mxu0 %v6741
  %7077 = vmatpush.bf16.msra.mxu0 %v6737
  %7078 = vmatpush.bf16.msra.mxu0 %v6733
  %7079 = vmatpush.bf16.msra.mxu0 %v6729
  %7080 = vmatpush.bf16.msra.mxu0 %v6725
  %7081 = vmatmul.bf16.gmra.mxu0 %v6300
  %v7082 = vpop.f32.mrf.mxu0
  %v7083 = vadd.f32 %v7069, %v7082
  %v7084 = vpop.f32.mrf.mxu0
  %v7085 = vadd.f32 %v7071, %v7084
  %7086 = vdwg.mxu0
  %7087 = vmatpush.bf16.msra.mxu0 %v6785
  %7088 = vmatpush.bf16.msra.mxu0 %v6781
  %7089 = vmatpush.bf16.msra.mxu0 %v6777
  %7090 = vmatpush.bf16.msra.mxu0 %v6773
  %7091 = vmatpush.bf16.msra.mxu0 %v6769
  %7092 = vmatpush.bf16.msra.mxu0 %v6765
  %7093 = vmatpush.bf16.msra.mxu0 %v6761
  %7094 = vmatpush.bf16.msra.mxu0 %v6757
  %7095 = vmatmul.bf16.gmra.mxu0 %v6301
  %v7096 = vpop.f32.mrf.mxu0
  %v7097 = vadd.f32 %v7083, %v7096
  %v7098 = vpop.f32.mrf.mxu0
  %v7099 = vadd.f32 %v7085, %v7098
  %7100 = vdwg.mxu0
  %7101 = vmatpush.bf16.msra.mxu0 %v6817
  %7102 = vmatpush.bf16.msra.mxu0 %v6813
  %7103 = vmatpush.bf16.msra.mxu0 %v6809
  %7104 = vmatpush.bf16.msra.mxu0 %v6805
  %7105 = vmatpush.bf16.msra.mxu0 %v6801
  %7106 = vmatpush.bf16.msra.mxu0 %v6797
  %7107 = vmatpush.bf16.msra.mxu0 %v6793
  %7108 = vmatpush.bf16.msra.mxu0 %v6789
  %7109 = vmatmul.bf16.gmra.mxu0 %v6302
  %v7110 = vpop.f32.mrf.mxu0
  %v7111 = vadd.f32 %v7097, %v7110
  %v7112 = vpop.f32.mrf.mxu0
  %v7113 = vadd.f32 %v7099, %v7112
  %7114 = vdwg.mxu0
  %7115 = vmatpush.bf16.msra.mxu0 %v6722
  %7116 = vmatpush.bf16.msra.mxu0 %v6718
  %7117 = vmatpush.bf16.msra.mxu0 %v6714
  %7118 = vmatpush.bf16.msra.mxu0 %v6710
  %7119 = vmatpush.bf16.msra.mxu0 %v6706
  %7120 = vmatpush.bf16.msra.mxu0 %v6702
  %7121 = vmatpush.bf16.msra.mxu0 %v6698
  %7122 = vmatpush.bf16.msra.mxu0 %v6694
  %7123 = vmatmul.bf16.gmra.mxu0 %v6299
  %v7124 = vpop.f32.mrf.mxu0
  %v7125 = vadd.f32 0.0, %v7124
  %v7126 = vpop.f32.mrf.mxu0
  %v7127 = vadd.f32 0.0, %v7126
  %7128 = vdwg.mxu0
  %7129 = vmatpush.bf16.msra.mxu0 %v6754
  %7130 = vmatpush.bf16.msra.mxu0 %v6750
  %7131 = vmatpush.bf16.msra.mxu0 %v6746
  %7132 = vmatpush.bf16.msra.mxu0 %v6742
  %7133 = vmatpush.bf16.msra.mxu0 %v6738
  %7134 = vmatpush.bf16.msra.mxu0 %v6734
  %7135 = vmatpush.bf16.msra.mxu0 %v6730
  %7136 = vmatpush.bf16.msra.mxu0 %v6726
  %7137 = vmatmul.bf16.gmra.mxu0 %v6300
  %v7138 = vpop.f32.mrf.mxu0
  %v7139 = vadd.f32 %v7125, %v7138
  %v7140 = vpop.f32.mrf.mxu0
  %v7141 = vadd.f32 %v7127, %v7140
  %7142 = vdwg.mxu0
  %7143 = vmatpush.bf16.msra.mxu0 %v6786
  %7144 = vmatpush.bf16.msra.mxu0 %v6782
  %7145 = vmatpush.bf16.msra.mxu0 %v6778
  %7146 = vmatpush.bf16.msra.mxu0 %v6774
  %7147 = vmatpush.bf16.msra.mxu0 %v6770
  %7148 = vmatpush.bf16.msra.mxu0 %v6766
  %7149 = vmatpush.bf16.msra.mxu0 %v6762
  %7150 = vmatpush.bf16.msra.mxu0 %v6758
  %7151 = vmatmul.bf16.gmra.mxu0 %v6301
  %v7152 = vpop.f32.mrf.mxu0
  %v7153 = vadd.f32 %v7139, %v7152
  %v7154 = vpop.f32.mrf.mxu0
  %v7155 = vadd.f32 %v7141, %v7154
  %7156 = vdwg.mxu0
  %7157 = vmatpush.bf16.msra.mxu0 %v6818
  %7158 = vmatpush.bf16.msra.mxu0 %v6814
  %7159 = vmatpush.bf16.msra.mxu0 %v6810
  %7160 = vmatpush.bf16.msra.mxu0 %v6806
  %7161 = vmatpush.bf16.msra.mxu0 %v6802
  %7162 = vmatpush.bf16.msra.mxu0 %v6798
  %7163 = vmatpush.bf16.msra.mxu0 %v6794
  %7164 = vmatpush.bf16.msra.mxu0 %v6790
  %7165 = vmatmul.bf16.gmra.mxu0 %v6302
  %v7166 = vpop.f32.mrf.mxu0
  %v7167 = vadd.f32 %v7153, %v7166
  %v7168 = vpop.f32.mrf.mxu0
  %v7169 = vadd.f32 %v7155, %v7168
  %7170 = vdwg.mxu0
  %v7171 = vadd.f32 %v5962, %v6999
  %v7172 = vadd.f32 %v6018, %v7055
  %v7173 = vadd.f32 %v6074, %v7111
  %v7174 = vadd.f32 %v6130, %v7167
  %v7175 = vadd.f32 %v5964, %v7001
  %v7176 = vadd.f32 %v6020, %v7057
  %v7177 = vadd.f32 %v6076, %v7113
  %v7178 = vadd.f32 %v6132, %v7169
  %v7179 = vadd.f32 %v7171, %v7175
  %v7180 = vrot.slane %v7179, 4
  %v7181 = vadd.f32 %v7179, %v7180
  %v7182 = vrot.slane %v7181, 2
  %v7183 = vadd.f32 %v7181, %v7182
  %v7184 = vrot.slane %v7183, 1
  %v7185 = vadd.f32 %v7183, %v7184
  %v7186 = vadd.f32 %v7172, %v7176
  %v7187 = vrot.slane %v7186, 4
  %v7188 = vadd.f32 %v7186, %v7187
  %v7189 = vrot.slane %v7188, 2
  %v7190 = vadd.f32 %v7188, %v7189
  %v7191 = vrot.slane %v7190, 1
  %v7192 = vadd.f32 %v7190, %v7191
  %v7193 = vadd.f32 %v7173, %v7177
  %v7194 = vrot.slane %v7193, 4
  %v7195 = vadd.f32 %v7193, %v7194
  %v7196 = vrot.slane %v7195, 2
  %v7197 = vadd.f32 %v7195, %v7196
  %v7198 = vrot.slane %v7197, 1
  %v7199 = vadd.f32 %v7197, %v7198
  %v7200 = vadd.f32 %v7174, %v7178
  %v7201 = vrot.slane %v7200, 4
  %v7202 = vadd.f32 %v7200, %v7201
  %v7203 = vrot.slane %v7202, 2
  %v7204 = vadd.f32 %v7202, %v7203
  %v7205 = vrot.slane %v7204, 1
  %v7206 = vadd.f32 %v7204, %v7205
  %v7207 = vmul.f32 %v7171, %v7171
  %v7208 = vmul.f32 %v7172, %v7172
  %v7209 = vmul.f32 %v7173, %v7173
  %v7210 = vmul.f32 %v7174, %v7174
  %v7211 = vmul.f32 %v7175, %v7175
  %v7212 = vmul.f32 %v7176, %v7176
  %v7213 = vmul.f32 %v7177, %v7177
  %v7214 = vmul.f32 %v7178, %v7178
  %v7215 = vadd.f32 %v7207, %v7211
  %v7216 = vrot.slane %v7215, 4
  %v7217 = vadd.f32 %v7215, %v7216
  %v7218 = vrot.slane %v7217, 2
  %v7219 = vadd.f32 %v7217, %v7218
  %v7220 = vrot.slane %v7219, 1
  %v7221 = vadd.f32 %v7219, %v7220
  %v7222 = vadd.f32 %v7208, %v7212
  %v7223 = vrot.slane %v7222, 4
  %v7224 = vadd.f32 %v7222, %v7223
  %v7225 = vrot.slane %v7224, 2
  %v7226 = vadd.f32 %v7224, %v7225
  %v7227 = vrot.slane %v7226, 1
  %v7228 = vadd.f32 %v7226, %v7227
  %v7229 = vadd.f32 %v7209, %v7213
  %v7230 = vrot.slane %v7229, 4
  %v7231 = vadd.f32 %v7229, %v7230
  %v7232 = vrot.slane %v7231, 2
  %v7233 = vadd.f32 %v7231, %v7232
  %v7234 = vrot.slane %v7233, 1
  %v7235 = vadd.f32 %v7233, %v7234
  %v7236 = vadd.f32 %v7210, %v7214
  %v7237 = vrot.slane %v7236, 4
  %v7238 = vadd.f32 %v7236, %v7237
  %v7239 = vrot.slane %v7238, 2
  %v7240 = vadd.f32 %v7238, %v7239
  %v7241 = vrot.slane %v7240, 1
  %v7242 = vadd.f32 %v7240, %v7241
  %v7243 = vsel %vm1861, %v7185, %v7221
  %v7244 = vsel %vm1861, %v7192, %v7228
  %v7245 = vsel %vm1861, %v7199, %v7235
  %v7246 = vsel %vm1861, %v7206, %v7242
  %v7247 = vld [vmem:[%s7] sm:$0xff]
  %v7248 = vld [vmem:[%s7 + $0x8] sm:$0xff]
  %v7249 = vld [vmem:[%s7 + $0x10] sm:$0xff]
  %v7250 = vld [vmem:[%s7 + $0x18] sm:$0xff]
  %v7251 = vld [vmem:[%s7 + $0x20] sm:$0xff]
  %v7252 = vld [vmem:[%s7 + $0x28] sm:$0xff]
  %v7253 = vld [vmem:[%s7 + $0x30] sm:$0xff]
  %v7254 = vld [vmem:[%s7 + $0x38] sm:$0xff]
  %v7255 = vld [vmem:[%s7 + $0x40] sm:$0xff]
  %v7256 = vld [vmem:[%s7 + $0x48] sm:$0xff]
  %v7257 = vld [vmem:[%s7 + $0x50] sm:$0xff]
  %v7258 = vld [vmem:[%s7 + $0x58] sm:$0xff]
  %v7259 = vld [vmem:[%s7 + $0x60] sm:$0xff]
  %v7260 = vld [vmem:[%s7 + $0x68] sm:$0xff]
  %v7261 = vld [vmem:[%s7 + $0x70] sm:$0xff]
  %v7262 = vld [vmem:[%s7 + $0x78] sm:$0xff]
  %v7263 = vld [vmem:[%s7 + $0x80] sm:$0xff]
  %v7264 = vld [vmem:[%s7 + $0x88] sm:$0xff]
  %v7265 = vld [vmem:[%s7 + $0x90] sm:$0xff]
  %v7266 = vld [vmem:[%s7 + $0x98] sm:$0xff]
  %v7267 = vld [vmem:[%s7 + $0xa0] sm:$0xff]
  %v7268 = vld [vmem:[%s7 + $0xa8] sm:$0xff]
  %v7269 = vld [vmem:[%s7 + $0xb0] sm:$0xff]
  %v7270 = vld [vmem:[%s7 + $0xb8] sm:$0xff]
  %v7271 = vld [vmem:[%s7 + $0xc0] sm:$0xff]
  %v7272 = vld [vmem:[%s7 + $0xc8] sm:$0xff]
  %v7273 = vld [vmem:[%s7 + $0xd0] sm:$0xff]
  %v7274 = vld [vmem:[%s7 + $0xd8] sm:$0xff]
  %v7275 = vld [vmem:[%s7 + $0xe0] sm:$0xff]
  %v7276 = vld [vmem:[%s7 + $0xe8] sm:$0xff]
  %v7277 = vld [vmem:[%s7 + $0xf0] sm:$0xff]
  %v7278 = vld [vmem:[%s7 + $0xf8] sm:$0xff]
  %v7279 = vld [vmem:[%s7 + $0x100] sm:$0xff]
  %v7280 = vld [vmem:[%s7 + $0x108] sm:$0xff]
  %v7281 = vld [vmem:[%s7 + $0x110] sm:$0xff]
  %v7282 = vld [vmem:[%s7 + $0x118] sm:$0xff]
  %v7283 = vld [vmem:[%s7 + $0x120] sm:$0xff]
  %v7284 = vld [vmem:[%s7 + $0x128] sm:$0xff]
  %v7285 = vld [vmem:[%s7 + $0x130] sm:$0xff]
  %v7286 = vld [vmem:[%s7 + $0x138] sm:$0xff]
  %v7287 = vld [vmem:[%s7 + $0x140] sm:$0xff]
  %v7288 = vld [vmem:[%s7 + $0x148] sm:$0xff]
  %v7289 = vld [vmem:[%s7 + $0x150] sm:$0xff]
  %v7290 = vld [vmem:[%s7 + $0x158] sm:$0xff]
  %v7291 = vld [vmem:[%s7 + $0x160] sm:$0xff]
  %v7292 = vld [vmem:[%s7 + $0x168] sm:$0xff]
  %v7293 = vld [vmem:[%s7 + $0x170] sm:$0xff]
  %v7294 = vld [vmem:[%s7 + $0x178] sm:$0xff]
  %v7295 = vld [vmem:[%s7 + $0x180] sm:$0xff]
  %v7296 = vld [vmem:[%s7 + $0x188] sm:$0xff]
  %v7297 = vld [vmem:[%s7 + $0x190] sm:$0xff]
  %v7298 = vld [vmem:[%s7 + $0x198] sm:$0xff]
  %v7299 = vld [vmem:[%s7 + $0x1a0] sm:$0xff]
  %v7300 = vld [vmem:[%s7 + $0x1a8] sm:$0xff]
  %v7301 = vld [vmem:[%s7 + $0x1b0] sm:$0xff]
  %v7302 = vld [vmem:[%s7 + $0x1b8] sm:$0xff]
  %v7303 = vld [vmem:[%s7 + $0x1c0] sm:$0xff]
  %v7304 = vld [vmem:[%s7 + $0x1c8] sm:$0xff]
  %v7305 = vld [vmem:[%s7 + $0x1d0] sm:$0xff]
  %v7306 = vld [vmem:[%s7 + $0x1d8] sm:$0xff]
  %v7307 = vld [vmem:[%s7 + $0x1e0] sm:$0xff]
  %v7308 = vld [vmem:[%s7 + $0x1e8] sm:$0xff]
  %v7309 = vld [vmem:[%s7 + $0x1f0] sm:$0xff]
  %v7310 = vld [vmem:[%s7 + $0x1f8] sm:$0xff]
  %v7311 = vand.u32 %v7262, 4294901760
  %7312 = vmatpush.msra.mxu0 %v7311
  %v7313 = vand.u32 %v7261, 4294901760
  %7314 = vmatpush.msra.mxu0 %v7313
  %v7315 = vand.u32 %v7260, 4294901760
  %7316 = vmatpush.msra.mxu0 %v7315
  %v7317 = vand.u32 %v7259, 4294901760
  %7318 = vmatpush.msra.mxu0 %v7317
  %v7319 = vand.u32 %v7258, 4294901760
  %7320 = vmatpush.msra.mxu0 %v7319
  %v7321 = vand.u32 %v7257, 4294901760
  %7322 = vmatpush.msra.mxu0 %v7321
  %v7323 = vand.u32 %v7256, 4294901760
  %7324 = vmatpush.msra.mxu0 %v7323
  %v7325 = vand.u32 %v7255, 4294901760
  %7326 = vmatpush.msra.mxu0 %v7325
  %v7327 = vand.u32 %v7254, 4294901760
  %7328 = vmatpush.msra.mxu0 %v7327
  %v7329 = vand.u32 %v7253, 4294901760
  %7330 = vmatpush.msra.mxu0 %v7329
  %v7331 = vand.u32 %v7252, 4294901760
  %7332 = vmatpush.msra.mxu0 %v7331
  %v7333 = vand.u32 %v7251, 4294901760
  %7334 = vmatpush.msra.mxu0 %v7333
  %v7335 = vand.u32 %v7250, 4294901760
  %7336 = vmatpush.msra.mxu0 %v7335
  %v7337 = vand.u32 %v7249, 4294901760
  %7338 = vmatpush.msra.mxu0 %v7337
  %v7339 = vand.u32 %v7248, 4294901760
  %7340 = vmatpush.msra.mxu0 %v7339
  %v7341 = vand.u32 %v7247, 4294901760
  %7342 = vmatpush.msra.mxu0 %v7341
  %v7343 = vand.u32 %v7243, 4294901760
  %v7344 = vsub.f32 %v7243, %v7343
  %v7345 = vand.u32 %v7344, 4294901760
  %v7346 = vsub.f32 %v7344, %v7345
  %v7347 = vand.u32 %v7346, 4294901760
  %7348 = vmatmul.f32.gmra.mxu0 %v7347
  %v7349 = vpop.f32.mrf.mxu0
  %v7350 = vadd.f32 0.0, %v7349
  %7351 = vdwg.mxu0
  %v7352 = vand.u32 %v7262, 4294901760
  %v7353 = vsub.f32 %v7262, %v7352
  %v7354 = vand.u32 %v7353, 4294901760
  %v7355 = vsub.f32 %v7353, %v7354
  %v7356 = vand.u32 %v7355, 4294901760
  %7357 = vmatpush.msra.mxu0 %v7356
  %v7358 = vand.u32 %v7261, 4294901760
  %v7359 = vsub.f32 %v7261, %v7358
  %v7360 = vand.u32 %v7359, 4294901760
  %v7361 = vsub.f32 %v7359, %v7360
  %v7362 = vand.u32 %v7361, 4294901760
  %7363 = vmatpush.msra.mxu0 %v7362
  %v7364 = vand.u32 %v7260, 4294901760
  %v7365 = vsub.f32 %v7260, %v7364
  %v7366 = vand.u32 %v7365, 4294901760
  %v7367 = vsub.f32 %v7365, %v7366
  %v7368 = vand.u32 %v7367, 4294901760
  %7369 = vmatpush.msra.mxu0 %v7368
  %v7370 = vand.u32 %v7259, 4294901760
  %v7371 = vsub.f32 %v7259, %v7370
  %v7372 = vand.u32 %v7371, 4294901760
  %v7373 = vsub.f32 %v7371, %v7372
  %v7374 = vand.u32 %v7373, 4294901760
  %7375 = vmatpush.msra.mxu0 %v7374
  %v7376 = vand.u32 %v7258, 4294901760
  %v7377 = vsub.f32 %v7258, %v7376
  %v7378 = vand.u32 %v7377, 4294901760
  %v7379 = vsub.f32 %v7377, %v7378
  %v7380 = vand.u32 %v7379, 4294901760
  %7381 = vmatpush.msra.mxu0 %v7380
  %v7382 = vand.u32 %v7257, 4294901760
  %v7383 = vsub.f32 %v7257, %v7382
  %v7384 = vand.u32 %v7383, 4294901760
  %v7385 = vsub.f32 %v7383, %v7384
  %v7386 = vand.u32 %v7385, 4294901760
  %7387 = vmatpush.msra.mxu0 %v7386
  %v7388 = vand.u32 %v7256, 4294901760
  %v7389 = vsub.f32 %v7256, %v7388
  %v7390 = vand.u32 %v7389, 4294901760
  %v7391 = vsub.f32 %v7389, %v7390
  %v7392 = vand.u32 %v7391, 4294901760
  %7393 = vmatpush.msra.mxu0 %v7392
  %v7394 = vand.u32 %v7255, 4294901760
  %v7395 = vsub.f32 %v7255, %v7394
  %v7396 = vand.u32 %v7395, 4294901760
  %v7397 = vsub.f32 %v7395, %v7396
  %v7398 = vand.u32 %v7397, 4294901760
  %7399 = vmatpush.msra.mxu0 %v7398
  %v7400 = vand.u32 %v7254, 4294901760
  %v7401 = vsub.f32 %v7254, %v7400
  %v7402 = vand.u32 %v7401, 4294901760
  %v7403 = vsub.f32 %v7401, %v7402
  %v7404 = vand.u32 %v7403, 4294901760
  %7405 = vmatpush.msra.mxu0 %v7404
  %v7406 = vand.u32 %v7253, 4294901760
  %v7407 = vsub.f32 %v7253, %v7406
  %v7408 = vand.u32 %v7407, 4294901760
  %v7409 = vsub.f32 %v7407, %v7408
  %v7410 = vand.u32 %v7409, 4294901760
  %7411 = vmatpush.msra.mxu0 %v7410
  %v7412 = vand.u32 %v7252, 4294901760
  %v7413 = vsub.f32 %v7252, %v7412
  %v7414 = vand.u32 %v7413, 4294901760
  %v7415 = vsub.f32 %v7413, %v7414
  %v7416 = vand.u32 %v7415, 4294901760
  %7417 = vmatpush.msra.mxu0 %v7416
  %v7418 = vand.u32 %v7251, 4294901760
  %v7419 = vsub.f32 %v7251, %v7418
  %v7420 = vand.u32 %v7419, 4294901760
  %v7421 = vsub.f32 %v7419, %v7420
  %v7422 = vand.u32 %v7421, 4294901760
  %7423 = vmatpush.msra.mxu0 %v7422
  %v7424 = vand.u32 %v7250, 4294901760
  %v7425 = vsub.f32 %v7250, %v7424
  %v7426 = vand.u32 %v7425, 4294901760
  %v7427 = vsub.f32 %v7425, %v7426
  %v7428 = vand.u32 %v7427, 4294901760
  %7429 = vmatpush.msra.mxu0 %v7428
  %v7430 = vand.u32 %v7249, 4294901760
  %v7431 = vsub.f32 %v7249, %v7430
  %v7432 = vand.u32 %v7431, 4294901760
  %v7433 = vsub.f32 %v7431, %v7432
  %v7434 = vand.u32 %v7433, 4294901760
  %7435 = vmatpush.msra.mxu0 %v7434
  %v7436 = vand.u32 %v7248, 4294901760
  %v7437 = vsub.f32 %v7248, %v7436
  %v7438 = vand.u32 %v7437, 4294901760
  %v7439 = vsub.f32 %v7437, %v7438
  %v7440 = vand.u32 %v7439, 4294901760
  %7441 = vmatpush.msra.mxu0 %v7440
  %v7442 = vand.u32 %v7247, 4294901760
  %v7443 = vsub.f32 %v7247, %v7442
  %v7444 = vand.u32 %v7443, 4294901760
  %v7445 = vsub.f32 %v7443, %v7444
  %v7446 = vand.u32 %v7445, 4294901760
  %7447 = vmatpush.msra.mxu0 %v7446
  %v7448 = vand.u32 %v7243, 4294901760
  %7449 = vmatmul.f32.gmra.mxu0 %v7448
  %v7450 = vpop.f32.mrf.mxu0
  %v7451 = vadd.f32 %v7350, %v7450
  %7452 = vdwg.mxu0
  %v7453 = vand.u32 %v7262, 4294901760
  %v7454 = vsub.f32 %v7262, %v7453
  %7455 = vmatpush.msra.mxu0 %v7454
  %v7456 = vand.u32 %v7261, 4294901760
  %v7457 = vsub.f32 %v7261, %v7456
  %7458 = vmatpush.msra.mxu0 %v7457
  %v7459 = vand.u32 %v7260, 4294901760
  %v7460 = vsub.f32 %v7260, %v7459
  %7461 = vmatpush.msra.mxu0 %v7460
  %v7462 = vand.u32 %v7259, 4294901760
  %v7463 = vsub.f32 %v7259, %v7462
  %7464 = vmatpush.msra.mxu0 %v7463
  %v7465 = vand.u32 %v7258, 4294901760
  %v7466 = vsub.f32 %v7258, %v7465
  %7467 = vmatpush.msra.mxu0 %v7466
  %v7468 = vand.u32 %v7257, 4294901760
  %v7469 = vsub.f32 %v7257, %v7468
  %7470 = vmatpush.msra.mxu0 %v7469
  %v7471 = vand.u32 %v7256, 4294901760
  %v7472 = vsub.f32 %v7256, %v7471
  %7473 = vmatpush.msra.mxu0 %v7472
  %v7474 = vand.u32 %v7255, 4294901760
  %v7475 = vsub.f32 %v7255, %v7474
  %7476 = vmatpush.msra.mxu0 %v7475
  %v7477 = vand.u32 %v7254, 4294901760
  %v7478 = vsub.f32 %v7254, %v7477
  %7479 = vmatpush.msra.mxu0 %v7478
  %v7480 = vand.u32 %v7253, 4294901760
  %v7481 = vsub.f32 %v7253, %v7480
  %7482 = vmatpush.msra.mxu0 %v7481
  %v7483 = vand.u32 %v7252, 4294901760
  %v7484 = vsub.f32 %v7252, %v7483
  %7485 = vmatpush.msra.mxu0 %v7484
  %v7486 = vand.u32 %v7251, 4294901760
  %v7487 = vsub.f32 %v7251, %v7486
  %7488 = vmatpush.msra.mxu0 %v7487
  %v7489 = vand.u32 %v7250, 4294901760
  %v7490 = vsub.f32 %v7250, %v7489
  %7491 = vmatpush.msra.mxu0 %v7490
  %v7492 = vand.u32 %v7249, 4294901760
  %v7493 = vsub.f32 %v7249, %v7492
  %7494 = vmatpush.msra.mxu0 %v7493
  %v7495 = vand.u32 %v7248, 4294901760
  %v7496 = vsub.f32 %v7248, %v7495
  %7497 = vmatpush.msra.mxu0 %v7496
  %v7498 = vand.u32 %v7247, 4294901760
  %v7499 = vsub.f32 %v7247, %v7498
  %7500 = vmatpush.msra.mxu0 %v7499
  %v7501 = vand.u32 %v7243, 4294901760
  %v7502 = vsub.f32 %v7243, %v7501
  %7503 = vmatmul.f32.gmra.mxu0 %v7502
  %v7504 = vpop.f32.mrf.mxu0
  %v7505 = vadd.f32 %v7451, %v7504
  %7506 = vdwg.mxu0
  %v7507 = vand.u32 %v7262, 4294901760
  %7508 = vmatpush.msra.mxu0 %v7507
  %v7509 = vand.u32 %v7261, 4294901760
  %7510 = vmatpush.msra.mxu0 %v7509
  %v7511 = vand.u32 %v7260, 4294901760
  %7512 = vmatpush.msra.mxu0 %v7511
  %v7513 = vand.u32 %v7259, 4294901760
  %7514 = vmatpush.msra.mxu0 %v7513
  %v7515 = vand.u32 %v7258, 4294901760
  %7516 = vmatpush.msra.mxu0 %v7515
  %v7517 = vand.u32 %v7257, 4294901760
  %7518 = vmatpush.msra.mxu0 %v7517
  %v7519 = vand.u32 %v7256, 4294901760
  %7520 = vmatpush.msra.mxu0 %v7519
  %v7521 = vand.u32 %v7255, 4294901760
  %7522 = vmatpush.msra.mxu0 %v7521
  %v7523 = vand.u32 %v7254, 4294901760
  %7524 = vmatpush.msra.mxu0 %v7523
  %v7525 = vand.u32 %v7253, 4294901760
  %7526 = vmatpush.msra.mxu0 %v7525
  %v7527 = vand.u32 %v7252, 4294901760
  %7528 = vmatpush.msra.mxu0 %v7527
  %v7529 = vand.u32 %v7251, 4294901760
  %7530 = vmatpush.msra.mxu0 %v7529
  %v7531 = vand.u32 %v7250, 4294901760
  %7532 = vmatpush.msra.mxu0 %v7531
  %v7533 = vand.u32 %v7249, 4294901760
  %7534 = vmatpush.msra.mxu0 %v7533
  %v7535 = vand.u32 %v7248, 4294901760
  %7536 = vmatpush.msra.mxu0 %v7535
  %v7537 = vand.u32 %v7247, 4294901760
  %7538 = vmatpush.msra.mxu0 %v7537
  %v7539 = vand.u32 %v7243, 4294901760
  %v7540 = vsub.f32 %v7243, %v7539
  %v7541 = vand.u32 %v7540, 4294901760
  %7542 = vmatmul.f32.gmra.mxu0 %v7541
  %v7543 = vpop.f32.mrf.mxu0
  %v7544 = vadd.f32 %v7505, %v7543
  %7545 = vdwg.mxu0
  %v7546 = vand.u32 %v7262, 4294901760
  %v7547 = vsub.f32 %v7262, %v7546
  %v7548 = vand.u32 %v7547, 4294901760
  %7549 = vmatpush.msra.mxu0 %v7548
  %v7550 = vand.u32 %v7261, 4294901760
  %v7551 = vsub.f32 %v7261, %v7550
  %v7552 = vand.u32 %v7551, 4294901760
  %7553 = vmatpush.msra.mxu0 %v7552
  %v7554 = vand.u32 %v7260, 4294901760
  %v7555 = vsub.f32 %v7260, %v7554
  %v7556 = vand.u32 %v7555, 4294901760
  %7557 = vmatpush.msra.mxu0 %v7556
  %v7558 = vand.u32 %v7259, 4294901760
  %v7559 = vsub.f32 %v7259, %v7558
  %v7560 = vand.u32 %v7559, 4294901760
  %7561 = vmatpush.msra.mxu0 %v7560
  %v7562 = vand.u32 %v7258, 4294901760
  %v7563 = vsub.f32 %v7258, %v7562
  %v7564 = vand.u32 %v7563, 4294901760
  %7565 = vmatpush.msra.mxu0 %v7564
  %v7566 = vand.u32 %v7257, 4294901760
  %v7567 = vsub.f32 %v7257, %v7566
  %v7568 = vand.u32 %v7567, 4294901760
  %7569 = vmatpush.msra.mxu0 %v7568
  %v7570 = vand.u32 %v7256, 4294901760
  %v7571 = vsub.f32 %v7256, %v7570
  %v7572 = vand.u32 %v7571, 4294901760
  %7573 = vmatpush.msra.mxu0 %v7572
  %v7574 = vand.u32 %v7255, 4294901760
  %v7575 = vsub.f32 %v7255, %v7574
  %v7576 = vand.u32 %v7575, 4294901760
  %7577 = vmatpush.msra.mxu0 %v7576
  %v7578 = vand.u32 %v7254, 4294901760
  %v7579 = vsub.f32 %v7254, %v7578
  %v7580 = vand.u32 %v7579, 4294901760
  %7581 = vmatpush.msra.mxu0 %v7580
  %v7582 = vand.u32 %v7253, 4294901760
  %v7583 = vsub.f32 %v7253, %v7582
  %v7584 = vand.u32 %v7583, 4294901760
  %7585 = vmatpush.msra.mxu0 %v7584
  %v7586 = vand.u32 %v7252, 4294901760
  %v7587 = vsub.f32 %v7252, %v7586
  %v7588 = vand.u32 %v7587, 4294901760
  %7589 = vmatpush.msra.mxu0 %v7588
  %v7590 = vand.u32 %v7251, 4294901760
  %v7591 = vsub.f32 %v7251, %v7590
  %v7592 = vand.u32 %v7591, 4294901760
  %7593 = vmatpush.msra.mxu0 %v7592
  %v7594 = vand.u32 %v7250, 4294901760
  %v7595 = vsub.f32 %v7250, %v7594
  %v7596 = vand.u32 %v7595, 4294901760
  %7597 = vmatpush.msra.mxu0 %v7596
  %v7598 = vand.u32 %v7249, 4294901760
  %v7599 = vsub.f32 %v7249, %v7598
  %v7600 = vand.u32 %v7599, 4294901760
  %7601 = vmatpush.msra.mxu0 %v7600
  %v7602 = vand.u32 %v7248, 4294901760
  %v7603 = vsub.f32 %v7248, %v7602
  %v7604 = vand.u32 %v7603, 4294901760
  %7605 = vmatpush.msra.mxu0 %v7604
  %v7606 = vand.u32 %v7247, 4294901760
  %v7607 = vsub.f32 %v7247, %v7606
  %v7608 = vand.u32 %v7607, 4294901760
  %7609 = vmatpush.msra.mxu0 %v7608
  %v7610 = vand.u32 %v7243, 4294901760
  %7611 = vmatmul.f32.gmra.mxu0 %v7610
  %v7612 = vpop.f32.mrf.mxu0
  %v7613 = vadd.f32 %v7544, %v7612
  %7614 = vdwg.mxu0
  %v7615 = vand.u32 %v7262, 4294901760
  %7616 = vmatpush.msra.mxu0 %v7615
  %v7617 = vand.u32 %v7261, 4294901760
  %7618 = vmatpush.msra.mxu0 %v7617
  %v7619 = vand.u32 %v7260, 4294901760
  %7620 = vmatpush.msra.mxu0 %v7619
  %v7621 = vand.u32 %v7259, 4294901760
  %7622 = vmatpush.msra.mxu0 %v7621
  %v7623 = vand.u32 %v7258, 4294901760
  %7624 = vmatpush.msra.mxu0 %v7623
  %v7625 = vand.u32 %v7257, 4294901760
  %7626 = vmatpush.msra.mxu0 %v7625
  %v7627 = vand.u32 %v7256, 4294901760
  %7628 = vmatpush.msra.mxu0 %v7627
  %v7629 = vand.u32 %v7255, 4294901760
  %7630 = vmatpush.msra.mxu0 %v7629
  %v7631 = vand.u32 %v7254, 4294901760
  %7632 = vmatpush.msra.mxu0 %v7631
  %v7633 = vand.u32 %v7253, 4294901760
  %7634 = vmatpush.msra.mxu0 %v7633
  %v7635 = vand.u32 %v7252, 4294901760
  %7636 = vmatpush.msra.mxu0 %v7635
  %v7637 = vand.u32 %v7251, 4294901760
  %7638 = vmatpush.msra.mxu0 %v7637
  %v7639 = vand.u32 %v7250, 4294901760
  %7640 = vmatpush.msra.mxu0 %v7639
  %v7641 = vand.u32 %v7249, 4294901760
  %7642 = vmatpush.msra.mxu0 %v7641
  %v7643 = vand.u32 %v7248, 4294901760
  %7644 = vmatpush.msra.mxu0 %v7643
  %v7645 = vand.u32 %v7247, 4294901760
  %7646 = vmatpush.msra.mxu0 %v7645
  %v7647 = vand.u32 %v7243, 4294901760
  %7648 = vmatmul.f32.gmra.mxu0 %v7647
  %v7649 = vpop.f32.mrf.mxu0
  %v7650 = vadd.f32 %v7613, %v7649
  %7651 = vdwg.mxu0
  %v7652 = vand.u32 %v7278, 4294901760
  %7653 = vmatpush.msra.mxu0 %v7652
  %v7654 = vand.u32 %v7277, 4294901760
  %7655 = vmatpush.msra.mxu0 %v7654
  %v7656 = vand.u32 %v7276, 4294901760
  %7657 = vmatpush.msra.mxu0 %v7656
  %v7658 = vand.u32 %v7275, 4294901760
  %7659 = vmatpush.msra.mxu0 %v7658
  %v7660 = vand.u32 %v7274, 4294901760
  %7661 = vmatpush.msra.mxu0 %v7660
  %v7662 = vand.u32 %v7273, 4294901760
  %7663 = vmatpush.msra.mxu0 %v7662
  %v7664 = vand.u32 %v7272, 4294901760
  %7665 = vmatpush.msra.mxu0 %v7664
  %v7666 = vand.u32 %v7271, 4294901760
  %7667 = vmatpush.msra.mxu0 %v7666
  %v7668 = vand.u32 %v7270, 4294901760
  %7669 = vmatpush.msra.mxu0 %v7668
  %v7670 = vand.u32 %v7269, 4294901760
  %7671 = vmatpush.msra.mxu0 %v7670
  %v7672 = vand.u32 %v7268, 4294901760
  %7673 = vmatpush.msra.mxu0 %v7672
  %v7674 = vand.u32 %v7267, 4294901760
  %7675 = vmatpush.msra.mxu0 %v7674
  %v7676 = vand.u32 %v7266, 4294901760
  %7677 = vmatpush.msra.mxu0 %v7676
  %v7678 = vand.u32 %v7265, 4294901760
  %7679 = vmatpush.msra.mxu0 %v7678
  %v7680 = vand.u32 %v7264, 4294901760
  %7681 = vmatpush.msra.mxu0 %v7680
  %v7682 = vand.u32 %v7263, 4294901760
  %7683 = vmatpush.msra.mxu0 %v7682
  %v7684 = vand.u32 %v7244, 4294901760
  %v7685 = vsub.f32 %v7244, %v7684
  %v7686 = vand.u32 %v7685, 4294901760
  %v7687 = vsub.f32 %v7685, %v7686
  %v7688 = vand.u32 %v7687, 4294901760
  %7689 = vmatmul.f32.gmra.mxu0 %v7688
  %v7690 = vpop.f32.mrf.mxu0
  %v7691 = vadd.f32 %v7650, %v7690
  %7692 = vdwg.mxu0
  %v7693 = vand.u32 %v7278, 4294901760
  %v7694 = vsub.f32 %v7278, %v7693
  %v7695 = vand.u32 %v7694, 4294901760
  %v7696 = vsub.f32 %v7694, %v7695
  %v7697 = vand.u32 %v7696, 4294901760
  %7698 = vmatpush.msra.mxu0 %v7697
  %v7699 = vand.u32 %v7277, 4294901760
  %v7700 = vsub.f32 %v7277, %v7699
  %v7701 = vand.u32 %v7700, 4294901760
  %v7702 = vsub.f32 %v7700, %v7701
  %v7703 = vand.u32 %v7702, 4294901760
  %7704 = vmatpush.msra.mxu0 %v7703
  %v7705 = vand.u32 %v7276, 4294901760
  %v7706 = vsub.f32 %v7276, %v7705
  %v7707 = vand.u32 %v7706, 4294901760
  %v7708 = vsub.f32 %v7706, %v7707
  %v7709 = vand.u32 %v7708, 4294901760
  %7710 = vmatpush.msra.mxu0 %v7709
  %v7711 = vand.u32 %v7275, 4294901760
  %v7712 = vsub.f32 %v7275, %v7711
  %v7713 = vand.u32 %v7712, 4294901760
  %v7714 = vsub.f32 %v7712, %v7713
  %v7715 = vand.u32 %v7714, 4294901760
  %7716 = vmatpush.msra.mxu0 %v7715
  %v7717 = vand.u32 %v7274, 4294901760
  %v7718 = vsub.f32 %v7274, %v7717
  %v7719 = vand.u32 %v7718, 4294901760
  %v7720 = vsub.f32 %v7718, %v7719
  %v7721 = vand.u32 %v7720, 4294901760
  %7722 = vmatpush.msra.mxu0 %v7721
  %v7723 = vand.u32 %v7273, 4294901760
  %v7724 = vsub.f32 %v7273, %v7723
  %v7725 = vand.u32 %v7724, 4294901760
  %v7726 = vsub.f32 %v7724, %v7725
  %v7727 = vand.u32 %v7726, 4294901760
  %7728 = vmatpush.msra.mxu0 %v7727
  %v7729 = vand.u32 %v7272, 4294901760
  %v7730 = vsub.f32 %v7272, %v7729
  %v7731 = vand.u32 %v7730, 4294901760
  %v7732 = vsub.f32 %v7730, %v7731
  %v7733 = vand.u32 %v7732, 4294901760
  %7734 = vmatpush.msra.mxu0 %v7733
  %v7735 = vand.u32 %v7271, 4294901760
  %v7736 = vsub.f32 %v7271, %v7735
  %v7737 = vand.u32 %v7736, 4294901760
  %v7738 = vsub.f32 %v7736, %v7737
  %v7739 = vand.u32 %v7738, 4294901760
  %7740 = vmatpush.msra.mxu0 %v7739
  %v7741 = vand.u32 %v7270, 4294901760
  %v7742 = vsub.f32 %v7270, %v7741
  %v7743 = vand.u32 %v7742, 4294901760
  %v7744 = vsub.f32 %v7742, %v7743
  %v7745 = vand.u32 %v7744, 4294901760
  %7746 = vmatpush.msra.mxu0 %v7745
  %v7747 = vand.u32 %v7269, 4294901760
  %v7748 = vsub.f32 %v7269, %v7747
  %v7749 = vand.u32 %v7748, 4294901760
  %v7750 = vsub.f32 %v7748, %v7749
  %v7751 = vand.u32 %v7750, 4294901760
  %7752 = vmatpush.msra.mxu0 %v7751
  %v7753 = vand.u32 %v7268, 4294901760
  %v7754 = vsub.f32 %v7268, %v7753
  %v7755 = vand.u32 %v7754, 4294901760
  %v7756 = vsub.f32 %v7754, %v7755
  %v7757 = vand.u32 %v7756, 4294901760
  %7758 = vmatpush.msra.mxu0 %v7757
  %v7759 = vand.u32 %v7267, 4294901760
  %v7760 = vsub.f32 %v7267, %v7759
  %v7761 = vand.u32 %v7760, 4294901760
  %v7762 = vsub.f32 %v7760, %v7761
  %v7763 = vand.u32 %v7762, 4294901760
  %7764 = vmatpush.msra.mxu0 %v7763
  %v7765 = vand.u32 %v7266, 4294901760
  %v7766 = vsub.f32 %v7266, %v7765
  %v7767 = vand.u32 %v7766, 4294901760
  %v7768 = vsub.f32 %v7766, %v7767
  %v7769 = vand.u32 %v7768, 4294901760
  %7770 = vmatpush.msra.mxu0 %v7769
  %v7771 = vand.u32 %v7265, 4294901760
  %v7772 = vsub.f32 %v7265, %v7771
  %v7773 = vand.u32 %v7772, 4294901760
  %v7774 = vsub.f32 %v7772, %v7773
  %v7775 = vand.u32 %v7774, 4294901760
  %7776 = vmatpush.msra.mxu0 %v7775
  %v7777 = vand.u32 %v7264, 4294901760
  %v7778 = vsub.f32 %v7264, %v7777
  %v7779 = vand.u32 %v7778, 4294901760
  %v7780 = vsub.f32 %v7778, %v7779
  %v7781 = vand.u32 %v7780, 4294901760
  %7782 = vmatpush.msra.mxu0 %v7781
  %v7783 = vand.u32 %v7263, 4294901760
  %v7784 = vsub.f32 %v7263, %v7783
  %v7785 = vand.u32 %v7784, 4294901760
  %v7786 = vsub.f32 %v7784, %v7785
  %v7787 = vand.u32 %v7786, 4294901760
  %7788 = vmatpush.msra.mxu0 %v7787
  %v7789 = vand.u32 %v7244, 4294901760
  %7790 = vmatmul.f32.gmra.mxu0 %v7789
  %v7791 = vpop.f32.mrf.mxu0
  %v7792 = vadd.f32 %v7691, %v7791
  %7793 = vdwg.mxu0
  %v7794 = vand.u32 %v7278, 4294901760
  %v7795 = vsub.f32 %v7278, %v7794
  %7796 = vmatpush.msra.mxu0 %v7795
  %v7797 = vand.u32 %v7277, 4294901760
  %v7798 = vsub.f32 %v7277, %v7797
  %7799 = vmatpush.msra.mxu0 %v7798
  %v7800 = vand.u32 %v7276, 4294901760
  %v7801 = vsub.f32 %v7276, %v7800
  %7802 = vmatpush.msra.mxu0 %v7801
  %v7803 = vand.u32 %v7275, 4294901760
  %v7804 = vsub.f32 %v7275, %v7803
  %7805 = vmatpush.msra.mxu0 %v7804
  %v7806 = vand.u32 %v7274, 4294901760
  %v7807 = vsub.f32 %v7274, %v7806
  %7808 = vmatpush.msra.mxu0 %v7807
  %v7809 = vand.u32 %v7273, 4294901760
  %v7810 = vsub.f32 %v7273, %v7809
  %7811 = vmatpush.msra.mxu0 %v7810
  %v7812 = vand.u32 %v7272, 4294901760
  %v7813 = vsub.f32 %v7272, %v7812
  %7814 = vmatpush.msra.mxu0 %v7813
  %v7815 = vand.u32 %v7271, 4294901760
  %v7816 = vsub.f32 %v7271, %v7815
  %7817 = vmatpush.msra.mxu0 %v7816
  %v7818 = vand.u32 %v7270, 4294901760
  %v7819 = vsub.f32 %v7270, %v7818
  %7820 = vmatpush.msra.mxu0 %v7819
  %v7821 = vand.u32 %v7269, 4294901760
  %v7822 = vsub.f32 %v7269, %v7821
  %7823 = vmatpush.msra.mxu0 %v7822
  %v7824 = vand.u32 %v7268, 4294901760
  %v7825 = vsub.f32 %v7268, %v7824
  %7826 = vmatpush.msra.mxu0 %v7825
  %v7827 = vand.u32 %v7267, 4294901760
  %v7828 = vsub.f32 %v7267, %v7827
  %7829 = vmatpush.msra.mxu0 %v7828
  %v7830 = vand.u32 %v7266, 4294901760
  %v7831 = vsub.f32 %v7266, %v7830
  %7832 = vmatpush.msra.mxu0 %v7831
  %v7833 = vand.u32 %v7265, 4294901760
  %v7834 = vsub.f32 %v7265, %v7833
  %7835 = vmatpush.msra.mxu0 %v7834
  %v7836 = vand.u32 %v7264, 4294901760
  %v7837 = vsub.f32 %v7264, %v7836
  %7838 = vmatpush.msra.mxu0 %v7837
  %v7839 = vand.u32 %v7263, 4294901760
  %v7840 = vsub.f32 %v7263, %v7839
  %7841 = vmatpush.msra.mxu0 %v7840
  %v7842 = vand.u32 %v7244, 4294901760
  %v7843 = vsub.f32 %v7244, %v7842
  %7844 = vmatmul.f32.gmra.mxu0 %v7843
  %v7845 = vpop.f32.mrf.mxu0
  %v7846 = vadd.f32 %v7792, %v7845
  %7847 = vdwg.mxu0
  %v7848 = vand.u32 %v7278, 4294901760
  %7849 = vmatpush.msra.mxu0 %v7848
  %v7850 = vand.u32 %v7277, 4294901760
  %7851 = vmatpush.msra.mxu0 %v7850
  %v7852 = vand.u32 %v7276, 4294901760
  %7853 = vmatpush.msra.mxu0 %v7852
  %v7854 = vand.u32 %v7275, 4294901760
  %7855 = vmatpush.msra.mxu0 %v7854
  %v7856 = vand.u32 %v7274, 4294901760
  %7857 = vmatpush.msra.mxu0 %v7856
  %v7858 = vand.u32 %v7273, 4294901760
  %7859 = vmatpush.msra.mxu0 %v7858
  %v7860 = vand.u32 %v7272, 4294901760
  %7861 = vmatpush.msra.mxu0 %v7860
  %v7862 = vand.u32 %v7271, 4294901760
  %7863 = vmatpush.msra.mxu0 %v7862
  %v7864 = vand.u32 %v7270, 4294901760
  %7865 = vmatpush.msra.mxu0 %v7864
  %v7866 = vand.u32 %v7269, 4294901760
  %7867 = vmatpush.msra.mxu0 %v7866
  %v7868 = vand.u32 %v7268, 4294901760
  %7869 = vmatpush.msra.mxu0 %v7868
  %v7870 = vand.u32 %v7267, 4294901760
  %7871 = vmatpush.msra.mxu0 %v7870
  %v7872 = vand.u32 %v7266, 4294901760
  %7873 = vmatpush.msra.mxu0 %v7872
  %v7874 = vand.u32 %v7265, 4294901760
  %7875 = vmatpush.msra.mxu0 %v7874
  %v7876 = vand.u32 %v7264, 4294901760
  %7877 = vmatpush.msra.mxu0 %v7876
  %v7878 = vand.u32 %v7263, 4294901760
  %7879 = vmatpush.msra.mxu0 %v7878
  %v7880 = vand.u32 %v7244, 4294901760
  %v7881 = vsub.f32 %v7244, %v7880
  %v7882 = vand.u32 %v7881, 4294901760
  %7883 = vmatmul.f32.gmra.mxu0 %v7882
  %v7884 = vpop.f32.mrf.mxu0
  %v7885 = vadd.f32 %v7846, %v7884
  %7886 = vdwg.mxu0
  %v7887 = vand.u32 %v7278, 4294901760
  %v7888 = vsub.f32 %v7278, %v7887
  %v7889 = vand.u32 %v7888, 4294901760
  %7890 = vmatpush.msra.mxu0 %v7889
  %v7891 = vand.u32 %v7277, 4294901760
  %v7892 = vsub.f32 %v7277, %v7891
  %v7893 = vand.u32 %v7892, 4294901760
  %7894 = vmatpush.msra.mxu0 %v7893
  %v7895 = vand.u32 %v7276, 4294901760
  %v7896 = vsub.f32 %v7276, %v7895
  %v7897 = vand.u32 %v7896, 4294901760
  %7898 = vmatpush.msra.mxu0 %v7897
  %v7899 = vand.u32 %v7275, 4294901760
  %v7900 = vsub.f32 %v7275, %v7899
  %v7901 = vand.u32 %v7900, 4294901760
  %7902 = vmatpush.msra.mxu0 %v7901
  %v7903 = vand.u32 %v7274, 4294901760
  %v7904 = vsub.f32 %v7274, %v7903
  %v7905 = vand.u32 %v7904, 4294901760
  %7906 = vmatpush.msra.mxu0 %v7905
  %v7907 = vand.u32 %v7273, 4294901760
  %v7908 = vsub.f32 %v7273, %v7907
  %v7909 = vand.u32 %v7908, 4294901760
  %7910 = vmatpush.msra.mxu0 %v7909
  %v7911 = vand.u32 %v7272, 4294901760
  %v7912 = vsub.f32 %v7272, %v7911
  %v7913 = vand.u32 %v7912, 4294901760
  %7914 = vmatpush.msra.mxu0 %v7913
  %v7915 = vand.u32 %v7271, 4294901760
  %v7916 = vsub.f32 %v7271, %v7915
  %v7917 = vand.u32 %v7916, 4294901760
  %7918 = vmatpush.msra.mxu0 %v7917
  %v7919 = vand.u32 %v7270, 4294901760
  %v7920 = vsub.f32 %v7270, %v7919
  %v7921 = vand.u32 %v7920, 4294901760
  %7922 = vmatpush.msra.mxu0 %v7921
  %v7923 = vand.u32 %v7269, 4294901760
  %v7924 = vsub.f32 %v7269, %v7923
  %v7925 = vand.u32 %v7924, 4294901760
  %7926 = vmatpush.msra.mxu0 %v7925
  %v7927 = vand.u32 %v7268, 4294901760
  %v7928 = vsub.f32 %v7268, %v7927
  %v7929 = vand.u32 %v7928, 4294901760
  %7930 = vmatpush.msra.mxu0 %v7929
  %v7931 = vand.u32 %v7267, 4294901760
  %v7932 = vsub.f32 %v7267, %v7931
  %v7933 = vand.u32 %v7932, 4294901760
  %7934 = vmatpush.msra.mxu0 %v7933
  %v7935 = vand.u32 %v7266, 4294901760
  %v7936 = vsub.f32 %v7266, %v7935
  %v7937 = vand.u32 %v7936, 4294901760
  %7938 = vmatpush.msra.mxu0 %v7937
  %v7939 = vand.u32 %v7265, 4294901760
  %v7940 = vsub.f32 %v7265, %v7939
  %v7941 = vand.u32 %v7940, 4294901760
  %7942 = vmatpush.msra.mxu0 %v7941
  %v7943 = vand.u32 %v7264, 4294901760
  %v7944 = vsub.f32 %v7264, %v7943
  %v7945 = vand.u32 %v7944, 4294901760
  %7946 = vmatpush.msra.mxu0 %v7945
  %v7947 = vand.u32 %v7263, 4294901760
  %v7948 = vsub.f32 %v7263, %v7947
  %v7949 = vand.u32 %v7948, 4294901760
  %7950 = vmatpush.msra.mxu0 %v7949
  %v7951 = vand.u32 %v7244, 4294901760
  %7952 = vmatmul.f32.gmra.mxu0 %v7951
  %v7953 = vpop.f32.mrf.mxu0
  %v7954 = vadd.f32 %v7885, %v7953
  %7955 = vdwg.mxu0
  %v7956 = vand.u32 %v7278, 4294901760
  %7957 = vmatpush.msra.mxu0 %v7956
  %v7958 = vand.u32 %v7277, 4294901760
  %7959 = vmatpush.msra.mxu0 %v7958
  %v7960 = vand.u32 %v7276, 4294901760
  %7961 = vmatpush.msra.mxu0 %v7960
  %v7962 = vand.u32 %v7275, 4294901760
  %7963 = vmatpush.msra.mxu0 %v7962
  %v7964 = vand.u32 %v7274, 4294901760
  %7965 = vmatpush.msra.mxu0 %v7964
  %v7966 = vand.u32 %v7273, 4294901760
  %7967 = vmatpush.msra.mxu0 %v7966
  %v7968 = vand.u32 %v7272, 4294901760
  %7969 = vmatpush.msra.mxu0 %v7968
  %v7970 = vand.u32 %v7271, 4294901760
  %7971 = vmatpush.msra.mxu0 %v7970
  %v7972 = vand.u32 %v7270, 4294901760
  %7973 = vmatpush.msra.mxu0 %v7972
  %v7974 = vand.u32 %v7269, 4294901760
  %7975 = vmatpush.msra.mxu0 %v7974
  %v7976 = vand.u32 %v7268, 4294901760
  %7977 = vmatpush.msra.mxu0 %v7976
  %v7978 = vand.u32 %v7267, 4294901760
  %7979 = vmatpush.msra.mxu0 %v7978
  %v7980 = vand.u32 %v7266, 4294901760
  %7981 = vmatpush.msra.mxu0 %v7980
  %v7982 = vand.u32 %v7265, 4294901760
  %7983 = vmatpush.msra.mxu0 %v7982
  %v7984 = vand.u32 %v7264, 4294901760
  %7985 = vmatpush.msra.mxu0 %v7984
  %v7986 = vand.u32 %v7263, 4294901760
  %7987 = vmatpush.msra.mxu0 %v7986
  %v7988 = vand.u32 %v7244, 4294901760
  %7989 = vmatmul.f32.gmra.mxu0 %v7988
  %v7990 = vpop.f32.mrf.mxu0
  %v7991 = vadd.f32 %v7954, %v7990
  %7992 = vdwg.mxu0
  %v7993 = vand.u32 %v7294, 4294901760
  %7994 = vmatpush.msra.mxu0 %v7993
  %v7995 = vand.u32 %v7293, 4294901760
  %7996 = vmatpush.msra.mxu0 %v7995
  %v7997 = vand.u32 %v7292, 4294901760
  %7998 = vmatpush.msra.mxu0 %v7997
  %v7999 = vand.u32 %v7291, 4294901760
  %8000 = vmatpush.msra.mxu0 %v7999
  %v8001 = vand.u32 %v7290, 4294901760
  %8002 = vmatpush.msra.mxu0 %v8001
  %v8003 = vand.u32 %v7289, 4294901760
  %8004 = vmatpush.msra.mxu0 %v8003
  %v8005 = vand.u32 %v7288, 4294901760
  %8006 = vmatpush.msra.mxu0 %v8005
  %v8007 = vand.u32 %v7287, 4294901760
  %8008 = vmatpush.msra.mxu0 %v8007
  %v8009 = vand.u32 %v7286, 4294901760
  %8010 = vmatpush.msra.mxu0 %v8009
  %v8011 = vand.u32 %v7285, 4294901760
  %8012 = vmatpush.msra.mxu0 %v8011
  %v8013 = vand.u32 %v7284, 4294901760
  %8014 = vmatpush.msra.mxu0 %v8013
  %v8015 = vand.u32 %v7283, 4294901760
  %8016 = vmatpush.msra.mxu0 %v8015
  %v8017 = vand.u32 %v7282, 4294901760
  %8018 = vmatpush.msra.mxu0 %v8017
  %v8019 = vand.u32 %v7281, 4294901760
  %8020 = vmatpush.msra.mxu0 %v8019
  %v8021 = vand.u32 %v7280, 4294901760
  %8022 = vmatpush.msra.mxu0 %v8021
  %v8023 = vand.u32 %v7279, 4294901760
  %8024 = vmatpush.msra.mxu0 %v8023
  %v8025 = vand.u32 %v7245, 4294901760
  %v8026 = vsub.f32 %v7245, %v8025
  %v8027 = vand.u32 %v8026, 4294901760
  %v8028 = vsub.f32 %v8026, %v8027
  %v8029 = vand.u32 %v8028, 4294901760
  %8030 = vmatmul.f32.gmra.mxu0 %v8029
  %v8031 = vpop.f32.mrf.mxu0
  %v8032 = vadd.f32 %v7991, %v8031
  %8033 = vdwg.mxu0
  %v8034 = vand.u32 %v7294, 4294901760
  %v8035 = vsub.f32 %v7294, %v8034
  %v8036 = vand.u32 %v8035, 4294901760
  %v8037 = vsub.f32 %v8035, %v8036
  %v8038 = vand.u32 %v8037, 4294901760
  %8039 = vmatpush.msra.mxu0 %v8038
  %v8040 = vand.u32 %v7293, 4294901760
  %v8041 = vsub.f32 %v7293, %v8040
  %v8042 = vand.u32 %v8041, 4294901760
  %v8043 = vsub.f32 %v8041, %v8042
  %v8044 = vand.u32 %v8043, 4294901760
  %8045 = vmatpush.msra.mxu0 %v8044
  %v8046 = vand.u32 %v7292, 4294901760
  %v8047 = vsub.f32 %v7292, %v8046
  %v8048 = vand.u32 %v8047, 4294901760
  %v8049 = vsub.f32 %v8047, %v8048
  %v8050 = vand.u32 %v8049, 4294901760
  %8051 = vmatpush.msra.mxu0 %v8050
  %v8052 = vand.u32 %v7291, 4294901760
  %v8053 = vsub.f32 %v7291, %v8052
  %v8054 = vand.u32 %v8053, 4294901760
  %v8055 = vsub.f32 %v8053, %v8054
  %v8056 = vand.u32 %v8055, 4294901760
  %8057 = vmatpush.msra.mxu0 %v8056
  %v8058 = vand.u32 %v7290, 4294901760
  %v8059 = vsub.f32 %v7290, %v8058
  %v8060 = vand.u32 %v8059, 4294901760
  %v8061 = vsub.f32 %v8059, %v8060
  %v8062 = vand.u32 %v8061, 4294901760
  %8063 = vmatpush.msra.mxu0 %v8062
  %v8064 = vand.u32 %v7289, 4294901760
  %v8065 = vsub.f32 %v7289, %v8064
  %v8066 = vand.u32 %v8065, 4294901760
  %v8067 = vsub.f32 %v8065, %v8066
  %v8068 = vand.u32 %v8067, 4294901760
  %8069 = vmatpush.msra.mxu0 %v8068
  %v8070 = vand.u32 %v7288, 4294901760
  %v8071 = vsub.f32 %v7288, %v8070
  %v8072 = vand.u32 %v8071, 4294901760
  %v8073 = vsub.f32 %v8071, %v8072
  %v8074 = vand.u32 %v8073, 4294901760
  %8075 = vmatpush.msra.mxu0 %v8074
  %v8076 = vand.u32 %v7287, 4294901760
  %v8077 = vsub.f32 %v7287, %v8076
  %v8078 = vand.u32 %v8077, 4294901760
  %v8079 = vsub.f32 %v8077, %v8078
  %v8080 = vand.u32 %v8079, 4294901760
  %8081 = vmatpush.msra.mxu0 %v8080
  %v8082 = vand.u32 %v7286, 4294901760
  %v8083 = vsub.f32 %v7286, %v8082
  %v8084 = vand.u32 %v8083, 4294901760
  %v8085 = vsub.f32 %v8083, %v8084
  %v8086 = vand.u32 %v8085, 4294901760
  %8087 = vmatpush.msra.mxu0 %v8086
  %v8088 = vand.u32 %v7285, 4294901760
  %v8089 = vsub.f32 %v7285, %v8088
  %v8090 = vand.u32 %v8089, 4294901760
  %v8091 = vsub.f32 %v8089, %v8090
  %v8092 = vand.u32 %v8091, 4294901760
  %8093 = vmatpush.msra.mxu0 %v8092
  %v8094 = vand.u32 %v7284, 4294901760
  %v8095 = vsub.f32 %v7284, %v8094
  %v8096 = vand.u32 %v8095, 4294901760
  %v8097 = vsub.f32 %v8095, %v8096
  %v8098 = vand.u32 %v8097, 4294901760
  %8099 = vmatpush.msra.mxu0 %v8098
  %v8100 = vand.u32 %v7283, 4294901760
  %v8101 = vsub.f32 %v7283, %v8100
  %v8102 = vand.u32 %v8101, 4294901760
  %v8103 = vsub.f32 %v8101, %v8102
  %v8104 = vand.u32 %v8103, 4294901760
  %8105 = vmatpush.msra.mxu0 %v8104
  %v8106 = vand.u32 %v7282, 4294901760
  %v8107 = vsub.f32 %v7282, %v8106
  %v8108 = vand.u32 %v8107, 4294901760
  %v8109 = vsub.f32 %v8107, %v8108
  %v8110 = vand.u32 %v8109, 4294901760
  %8111 = vmatpush.msra.mxu0 %v8110
  %v8112 = vand.u32 %v7281, 4294901760
  %v8113 = vsub.f32 %v7281, %v8112
  %v8114 = vand.u32 %v8113, 4294901760
  %v8115 = vsub.f32 %v8113, %v8114
  %v8116 = vand.u32 %v8115, 4294901760
  %8117 = vmatpush.msra.mxu0 %v8116
  %v8118 = vand.u32 %v7280, 4294901760
  %v8119 = vsub.f32 %v7280, %v8118
  %v8120 = vand.u32 %v8119, 4294901760
  %v8121 = vsub.f32 %v8119, %v8120
  %v8122 = vand.u32 %v8121, 4294901760
  %8123 = vmatpush.msra.mxu0 %v8122
  %v8124 = vand.u32 %v7279, 4294901760
  %v8125 = vsub.f32 %v7279, %v8124
  %v8126 = vand.u32 %v8125, 4294901760
  %v8127 = vsub.f32 %v8125, %v8126
  %v8128 = vand.u32 %v8127, 4294901760
  %8129 = vmatpush.msra.mxu0 %v8128
  %v8130 = vand.u32 %v7245, 4294901760
  %8131 = vmatmul.f32.gmra.mxu0 %v8130
  %v8132 = vpop.f32.mrf.mxu0
  %v8133 = vadd.f32 %v8032, %v8132
  %8134 = vdwg.mxu0
  %v8135 = vand.u32 %v7294, 4294901760
  %v8136 = vsub.f32 %v7294, %v8135
  %8137 = vmatpush.msra.mxu0 %v8136
  %v8138 = vand.u32 %v7293, 4294901760
  %v8139 = vsub.f32 %v7293, %v8138
  %8140 = vmatpush.msra.mxu0 %v8139
  %v8141 = vand.u32 %v7292, 4294901760
  %v8142 = vsub.f32 %v7292, %v8141
  %8143 = vmatpush.msra.mxu0 %v8142
  %v8144 = vand.u32 %v7291, 4294901760
  %v8145 = vsub.f32 %v7291, %v8144
  %8146 = vmatpush.msra.mxu0 %v8145
  %v8147 = vand.u32 %v7290, 4294901760
  %v8148 = vsub.f32 %v7290, %v8147
  %8149 = vmatpush.msra.mxu0 %v8148
  %v8150 = vand.u32 %v7289, 4294901760
  %v8151 = vsub.f32 %v7289, %v8150
  %8152 = vmatpush.msra.mxu0 %v8151
  %v8153 = vand.u32 %v7288, 4294901760
  %v8154 = vsub.f32 %v7288, %v8153
  %8155 = vmatpush.msra.mxu0 %v8154
  %v8156 = vand.u32 %v7287, 4294901760
  %v8157 = vsub.f32 %v7287, %v8156
  %8158 = vmatpush.msra.mxu0 %v8157
  %v8159 = vand.u32 %v7286, 4294901760
  %v8160 = vsub.f32 %v7286, %v8159
  %8161 = vmatpush.msra.mxu0 %v8160
  %v8162 = vand.u32 %v7285, 4294901760
  %v8163 = vsub.f32 %v7285, %v8162
  %8164 = vmatpush.msra.mxu0 %v8163
  %v8165 = vand.u32 %v7284, 4294901760
  %v8166 = vsub.f32 %v7284, %v8165
  %8167 = vmatpush.msra.mxu0 %v8166
  %v8168 = vand.u32 %v7283, 4294901760
  %v8169 = vsub.f32 %v7283, %v8168
  %8170 = vmatpush.msra.mxu0 %v8169
  %v8171 = vand.u32 %v7282, 4294901760
  %v8172 = vsub.f32 %v7282, %v8171
  %8173 = vmatpush.msra.mxu0 %v8172
  %v8174 = vand.u32 %v7281, 4294901760
  %v8175 = vsub.f32 %v7281, %v8174
  %8176 = vmatpush.msra.mxu0 %v8175
  %v8177 = vand.u32 %v7280, 4294901760
  %v8178 = vsub.f32 %v7280, %v8177
  %8179 = vmatpush.msra.mxu0 %v8178
  %v8180 = vand.u32 %v7279, 4294901760
  %v8181 = vsub.f32 %v7279, %v8180
  %8182 = vmatpush.msra.mxu0 %v8181
  %v8183 = vand.u32 %v7245, 4294901760
  %v8184 = vsub.f32 %v7245, %v8183
  %8185 = vmatmul.f32.gmra.mxu0 %v8184
  %v8186 = vpop.f32.mrf.mxu0
  %v8187 = vadd.f32 %v8133, %v8186
  %8188 = vdwg.mxu0
  %v8189 = vand.u32 %v7294, 4294901760
  %8190 = vmatpush.msra.mxu0 %v8189
  %v8191 = vand.u32 %v7293, 4294901760
  %8192 = vmatpush.msra.mxu0 %v8191
  %v8193 = vand.u32 %v7292, 4294901760
  %8194 = vmatpush.msra.mxu0 %v8193
  %v8195 = vand.u32 %v7291, 4294901760
  %8196 = vmatpush.msra.mxu0 %v8195
  %v8197 = vand.u32 %v7290, 4294901760
  %8198 = vmatpush.msra.mxu0 %v8197
  %v8199 = vand.u32 %v7289, 4294901760
  %8200 = vmatpush.msra.mxu0 %v8199
  %v8201 = vand.u32 %v7288, 4294901760
  %8202 = vmatpush.msra.mxu0 %v8201
  %v8203 = vand.u32 %v7287, 4294901760
  %8204 = vmatpush.msra.mxu0 %v8203
  %v8205 = vand.u32 %v7286, 4294901760
  %8206 = vmatpush.msra.mxu0 %v8205
  %v8207 = vand.u32 %v7285, 4294901760
  %8208 = vmatpush.msra.mxu0 %v8207
  %v8209 = vand.u32 %v7284, 4294901760
  %8210 = vmatpush.msra.mxu0 %v8209
  %v8211 = vand.u32 %v7283, 4294901760
  %8212 = vmatpush.msra.mxu0 %v8211
  %v8213 = vand.u32 %v7282, 4294901760
  %8214 = vmatpush.msra.mxu0 %v8213
  %v8215 = vand.u32 %v7281, 4294901760
  %8216 = vmatpush.msra.mxu0 %v8215
  %v8217 = vand.u32 %v7280, 4294901760
  %8218 = vmatpush.msra.mxu0 %v8217
  %v8219 = vand.u32 %v7279, 4294901760
  %8220 = vmatpush.msra.mxu0 %v8219
  %v8221 = vand.u32 %v7245, 4294901760
  %v8222 = vsub.f32 %v7245, %v8221
  %v8223 = vand.u32 %v8222, 4294901760
  %8224 = vmatmul.f32.gmra.mxu0 %v8223
  %v8225 = vpop.f32.mrf.mxu0
  %v8226 = vadd.f32 %v8187, %v8225
  %8227 = vdwg.mxu0
  %v8228 = vand.u32 %v7294, 4294901760
  %v8229 = vsub.f32 %v7294, %v8228
  %v8230 = vand.u32 %v8229, 4294901760
  %8231 = vmatpush.msra.mxu0 %v8230
  %v8232 = vand.u32 %v7293, 4294901760
  %v8233 = vsub.f32 %v7293, %v8232
  %v8234 = vand.u32 %v8233, 4294901760
  %8235 = vmatpush.msra.mxu0 %v8234
  %v8236 = vand.u32 %v7292, 4294901760
  %v8237 = vsub.f32 %v7292, %v8236
  %v8238 = vand.u32 %v8237, 4294901760
  %8239 = vmatpush.msra.mxu0 %v8238
  %v8240 = vand.u32 %v7291, 4294901760
  %v8241 = vsub.f32 %v7291, %v8240
  %v8242 = vand.u32 %v8241, 4294901760
  %8243 = vmatpush.msra.mxu0 %v8242
  %v8244 = vand.u32 %v7290, 4294901760
  %v8245 = vsub.f32 %v7290, %v8244
  %v8246 = vand.u32 %v8245, 4294901760
  %8247 = vmatpush.msra.mxu0 %v8246
  %v8248 = vand.u32 %v7289, 4294901760
  %v8249 = vsub.f32 %v7289, %v8248
  %v8250 = vand.u32 %v8249, 4294901760
  %8251 = vmatpush.msra.mxu0 %v8250
  %v8252 = vand.u32 %v7288, 4294901760
  %v8253 = vsub.f32 %v7288, %v8252
  %v8254 = vand.u32 %v8253, 4294901760
  %8255 = vmatpush.msra.mxu0 %v8254
  %v8256 = vand.u32 %v7287, 4294901760
  %v8257 = vsub.f32 %v7287, %v8256
  %v8258 = vand.u32 %v8257, 4294901760
  %8259 = vmatpush.msra.mxu0 %v8258
  %v8260 = vand.u32 %v7286, 4294901760
  %v8261 = vsub.f32 %v7286, %v8260
  %v8262 = vand.u32 %v8261, 4294901760
  %8263 = vmatpush.msra.mxu0 %v8262
  %v8264 = vand.u32 %v7285, 4294901760
  %v8265 = vsub.f32 %v7285, %v8264
  %v8266 = vand.u32 %v8265, 4294901760
  %8267 = vmatpush.msra.mxu0 %v8266
  %v8268 = vand.u32 %v7284, 4294901760
  %v8269 = vsub.f32 %v7284, %v8268
  %v8270 = vand.u32 %v8269, 4294901760
  %8271 = vmatpush.msra.mxu0 %v8270
  %v8272 = vand.u32 %v7283, 4294901760
  %v8273 = vsub.f32 %v7283, %v8272
  %v8274 = vand.u32 %v8273, 4294901760
  %8275 = vmatpush.msra.mxu0 %v8274
  %v8276 = vand.u32 %v7282, 4294901760
  %v8277 = vsub.f32 %v7282, %v8276
  %v8278 = vand.u32 %v8277, 4294901760
  %8279 = vmatpush.msra.mxu0 %v8278
  %v8280 = vand.u32 %v7281, 4294901760
  %v8281 = vsub.f32 %v7281, %v8280
  %v8282 = vand.u32 %v8281, 4294901760
  %8283 = vmatpush.msra.mxu0 %v8282
  %v8284 = vand.u32 %v7280, 4294901760
  %v8285 = vsub.f32 %v7280, %v8284
  %v8286 = vand.u32 %v8285, 4294901760
  %8287 = vmatpush.msra.mxu0 %v8286
  %v8288 = vand.u32 %v7279, 4294901760
  %v8289 = vsub.f32 %v7279, %v8288
  %v8290 = vand.u32 %v8289, 4294901760
  %8291 = vmatpush.msra.mxu0 %v8290
  %v8292 = vand.u32 %v7245, 4294901760
  %8293 = vmatmul.f32.gmra.mxu0 %v8292
  %v8294 = vpop.f32.mrf.mxu0
  %v8295 = vadd.f32 %v8226, %v8294
  %8296 = vdwg.mxu0
  %v8297 = vand.u32 %v7294, 4294901760
  %8298 = vmatpush.msra.mxu0 %v8297
  %v8299 = vand.u32 %v7293, 4294901760
  %8300 = vmatpush.msra.mxu0 %v8299
  %v8301 = vand.u32 %v7292, 4294901760
  %8302 = vmatpush.msra.mxu0 %v8301
  %v8303 = vand.u32 %v7291, 4294901760
  %8304 = vmatpush.msra.mxu0 %v8303
  %v8305 = vand.u32 %v7290, 4294901760
  %8306 = vmatpush.msra.mxu0 %v8305
  %v8307 = vand.u32 %v7289, 4294901760
  %8308 = vmatpush.msra.mxu0 %v8307
  %v8309 = vand.u32 %v7288, 4294901760
  %8310 = vmatpush.msra.mxu0 %v8309
  %v8311 = vand.u32 %v7287, 4294901760
  %8312 = vmatpush.msra.mxu0 %v8311
  %v8313 = vand.u32 %v7286, 4294901760
  %8314 = vmatpush.msra.mxu0 %v8313
  %v8315 = vand.u32 %v7285, 4294901760
  %8316 = vmatpush.msra.mxu0 %v8315
  %v8317 = vand.u32 %v7284, 4294901760
  %8318 = vmatpush.msra.mxu0 %v8317
  %v8319 = vand.u32 %v7283, 4294901760
  %8320 = vmatpush.msra.mxu0 %v8319
  %v8321 = vand.u32 %v7282, 4294901760
  %8322 = vmatpush.msra.mxu0 %v8321
  %v8323 = vand.u32 %v7281, 4294901760
  %8324 = vmatpush.msra.mxu0 %v8323
  %v8325 = vand.u32 %v7280, 4294901760
  %8326 = vmatpush.msra.mxu0 %v8325
  %v8327 = vand.u32 %v7279, 4294901760
  %8328 = vmatpush.msra.mxu0 %v8327
  %v8329 = vand.u32 %v7245, 4294901760
  %8330 = vmatmul.f32.gmra.mxu0 %v8329
  %v8331 = vpop.f32.mrf.mxu0
  %v8332 = vadd.f32 %v8295, %v8331
  %8333 = vdwg.mxu0
  %v8334 = vand.u32 %v7310, 4294901760
  %8335 = vmatpush.msra.mxu0 %v8334
  %v8336 = vand.u32 %v7309, 4294901760
  %8337 = vmatpush.msra.mxu0 %v8336
  %v8338 = vand.u32 %v7308, 4294901760
  %8339 = vmatpush.msra.mxu0 %v8338
  %v8340 = vand.u32 %v7307, 4294901760
  %8341 = vmatpush.msra.mxu0 %v8340
  %v8342 = vand.u32 %v7306, 4294901760
  %8343 = vmatpush.msra.mxu0 %v8342
  %v8344 = vand.u32 %v7305, 4294901760
  %8345 = vmatpush.msra.mxu0 %v8344
  %v8346 = vand.u32 %v7304, 4294901760
  %8347 = vmatpush.msra.mxu0 %v8346
  %v8348 = vand.u32 %v7303, 4294901760
  %8349 = vmatpush.msra.mxu0 %v8348
  %v8350 = vand.u32 %v7302, 4294901760
  %8351 = vmatpush.msra.mxu0 %v8350
  %v8352 = vand.u32 %v7301, 4294901760
  %8353 = vmatpush.msra.mxu0 %v8352
  %v8354 = vand.u32 %v7300, 4294901760
  %8355 = vmatpush.msra.mxu0 %v8354
  %v8356 = vand.u32 %v7299, 4294901760
  %8357 = vmatpush.msra.mxu0 %v8356
  %v8358 = vand.u32 %v7298, 4294901760
  %8359 = vmatpush.msra.mxu0 %v8358
  %v8360 = vand.u32 %v7297, 4294901760
  %8361 = vmatpush.msra.mxu0 %v8360
  %v8362 = vand.u32 %v7296, 4294901760
  %8363 = vmatpush.msra.mxu0 %v8362
  %v8364 = vand.u32 %v7295, 4294901760
  %8365 = vmatpush.msra.mxu0 %v8364
  %v8366 = vand.u32 %v7246, 4294901760
  %v8367 = vsub.f32 %v7246, %v8366
  %v8368 = vand.u32 %v8367, 4294901760
  %v8369 = vsub.f32 %v8367, %v8368
  %v8370 = vand.u32 %v8369, 4294901760
  %8371 = vmatmul.f32.gmra.mxu0 %v8370
  %v8372 = vpop.f32.mrf.mxu0
  %v8373 = vadd.f32 %v8332, %v8372
  %8374 = vdwg.mxu0
  %v8375 = vand.u32 %v7310, 4294901760
  %v8376 = vsub.f32 %v7310, %v8375
  %v8377 = vand.u32 %v8376, 4294901760
  %v8378 = vsub.f32 %v8376, %v8377
  %v8379 = vand.u32 %v8378, 4294901760
  %8380 = vmatpush.msra.mxu0 %v8379
  %v8381 = vand.u32 %v7309, 4294901760
  %v8382 = vsub.f32 %v7309, %v8381
  %v8383 = vand.u32 %v8382, 4294901760
  %v8384 = vsub.f32 %v8382, %v8383
  %v8385 = vand.u32 %v8384, 4294901760
  %8386 = vmatpush.msra.mxu0 %v8385
  %v8387 = vand.u32 %v7308, 4294901760
  %v8388 = vsub.f32 %v7308, %v8387
  %v8389 = vand.u32 %v8388, 4294901760
  %v8390 = vsub.f32 %v8388, %v8389
  %v8391 = vand.u32 %v8390, 4294901760
  %8392 = vmatpush.msra.mxu0 %v8391
  %v8393 = vand.u32 %v7307, 4294901760
  %v8394 = vsub.f32 %v7307, %v8393
  %v8395 = vand.u32 %v8394, 4294901760
  %v8396 = vsub.f32 %v8394, %v8395
  %v8397 = vand.u32 %v8396, 4294901760
  %8398 = vmatpush.msra.mxu0 %v8397
  %v8399 = vand.u32 %v7306, 4294901760
  %v8400 = vsub.f32 %v7306, %v8399
  %v8401 = vand.u32 %v8400, 4294901760
  %v8402 = vsub.f32 %v8400, %v8401
  %v8403 = vand.u32 %v8402, 4294901760
  %8404 = vmatpush.msra.mxu0 %v8403
  %v8405 = vand.u32 %v7305, 4294901760
  %v8406 = vsub.f32 %v7305, %v8405
  %v8407 = vand.u32 %v8406, 4294901760
  %v8408 = vsub.f32 %v8406, %v8407
  %v8409 = vand.u32 %v8408, 4294901760
  %8410 = vmatpush.msra.mxu0 %v8409
  %v8411 = vand.u32 %v7304, 4294901760
  %v8412 = vsub.f32 %v7304, %v8411
  %v8413 = vand.u32 %v8412, 4294901760
  %v8414 = vsub.f32 %v8412, %v8413
  %v8415 = vand.u32 %v8414, 4294901760
  %8416 = vmatpush.msra.mxu0 %v8415
  %v8417 = vand.u32 %v7303, 4294901760
  %v8418 = vsub.f32 %v7303, %v8417
  %v8419 = vand.u32 %v8418, 4294901760
  %v8420 = vsub.f32 %v8418, %v8419
  %v8421 = vand.u32 %v8420, 4294901760
  %8422 = vmatpush.msra.mxu0 %v8421
  %v8423 = vand.u32 %v7302, 4294901760
  %v8424 = vsub.f32 %v7302, %v8423
  %v8425 = vand.u32 %v8424, 4294901760
  %v8426 = vsub.f32 %v8424, %v8425
  %v8427 = vand.u32 %v8426, 4294901760
  %8428 = vmatpush.msra.mxu0 %v8427
  %v8429 = vand.u32 %v7301, 4294901760
  %v8430 = vsub.f32 %v7301, %v8429
  %v8431 = vand.u32 %v8430, 4294901760
  %v8432 = vsub.f32 %v8430, %v8431
  %v8433 = vand.u32 %v8432, 4294901760
  %8434 = vmatpush.msra.mxu0 %v8433
  %v8435 = vand.u32 %v7300, 4294901760
  %v8436 = vsub.f32 %v7300, %v8435
  %v8437 = vand.u32 %v8436, 4294901760
  %v8438 = vsub.f32 %v8436, %v8437
  %v8439 = vand.u32 %v8438, 4294901760
  %8440 = vmatpush.msra.mxu0 %v8439
  %v8441 = vand.u32 %v7299, 4294901760
  %v8442 = vsub.f32 %v7299, %v8441
  %v8443 = vand.u32 %v8442, 4294901760
  %v8444 = vsub.f32 %v8442, %v8443
  %v8445 = vand.u32 %v8444, 4294901760
  %8446 = vmatpush.msra.mxu0 %v8445
  %v8447 = vand.u32 %v7298, 4294901760
  %v8448 = vsub.f32 %v7298, %v8447
  %v8449 = vand.u32 %v8448, 4294901760
  %v8450 = vsub.f32 %v8448, %v8449
  %v8451 = vand.u32 %v8450, 4294901760
  %8452 = vmatpush.msra.mxu0 %v8451
  %v8453 = vand.u32 %v7297, 4294901760
  %v8454 = vsub.f32 %v7297, %v8453
  %v8455 = vand.u32 %v8454, 4294901760
  %v8456 = vsub.f32 %v8454, %v8455
  %v8457 = vand.u32 %v8456, 4294901760
  %8458 = vmatpush.msra.mxu0 %v8457
  %v8459 = vand.u32 %v7296, 4294901760
  %v8460 = vsub.f32 %v7296, %v8459
  %v8461 = vand.u32 %v8460, 4294901760
  %v8462 = vsub.f32 %v8460, %v8461
  %v8463 = vand.u32 %v8462, 4294901760
  %8464 = vmatpush.msra.mxu0 %v8463
  %v8465 = vand.u32 %v7295, 4294901760
  %v8466 = vsub.f32 %v7295, %v8465
  %v8467 = vand.u32 %v8466, 4294901760
  %v8468 = vsub.f32 %v8466, %v8467
  %v8469 = vand.u32 %v8468, 4294901760
  %8470 = vmatpush.msra.mxu0 %v8469
  %v8471 = vand.u32 %v7246, 4294901760
  %8472 = vmatmul.f32.gmra.mxu0 %v8471
  %v8473 = vpop.f32.mrf.mxu0
  %v8474 = vadd.f32 %v8373, %v8473
  %8475 = vdwg.mxu0
  %v8476 = vand.u32 %v7310, 4294901760
  %v8477 = vsub.f32 %v7310, %v8476
  %8478 = vmatpush.msra.mxu0 %v8477
  %v8479 = vand.u32 %v7309, 4294901760
  %v8480 = vsub.f32 %v7309, %v8479
  %8481 = vmatpush.msra.mxu0 %v8480
  %v8482 = vand.u32 %v7308, 4294901760
  %v8483 = vsub.f32 %v7308, %v8482
  %8484 = vmatpush.msra.mxu0 %v8483
  %v8485 = vand.u32 %v7307, 4294901760
  %v8486 = vsub.f32 %v7307, %v8485
  %8487 = vmatpush.msra.mxu0 %v8486
  %v8488 = vand.u32 %v7306, 4294901760
  %v8489 = vsub.f32 %v7306, %v8488
  %8490 = vmatpush.msra.mxu0 %v8489
  %v8491 = vand.u32 %v7305, 4294901760
  %v8492 = vsub.f32 %v7305, %v8491
  %8493 = vmatpush.msra.mxu0 %v8492
  %v8494 = vand.u32 %v7304, 4294901760
  %v8495 = vsub.f32 %v7304, %v8494
  %8496 = vmatpush.msra.mxu0 %v8495
  %v8497 = vand.u32 %v7303, 4294901760
  %v8498 = vsub.f32 %v7303, %v8497
  %8499 = vmatpush.msra.mxu0 %v8498
  %v8500 = vand.u32 %v7302, 4294901760
  %v8501 = vsub.f32 %v7302, %v8500
  %8502 = vmatpush.msra.mxu0 %v8501
  %v8503 = vand.u32 %v7301, 4294901760
  %v8504 = vsub.f32 %v7301, %v8503
  %8505 = vmatpush.msra.mxu0 %v8504
  %v8506 = vand.u32 %v7300, 4294901760
  %v8507 = vsub.f32 %v7300, %v8506
  %8508 = vmatpush.msra.mxu0 %v8507
  %v8509 = vand.u32 %v7299, 4294901760
  %v8510 = vsub.f32 %v7299, %v8509
  %8511 = vmatpush.msra.mxu0 %v8510
  %v8512 = vand.u32 %v7298, 4294901760
  %v8513 = vsub.f32 %v7298, %v8512
  %8514 = vmatpush.msra.mxu0 %v8513
  %v8515 = vand.u32 %v7297, 4294901760
  %v8516 = vsub.f32 %v7297, %v8515
  %8517 = vmatpush.msra.mxu0 %v8516
  %v8518 = vand.u32 %v7296, 4294901760
  %v8519 = vsub.f32 %v7296, %v8518
  %8520 = vmatpush.msra.mxu0 %v8519
  %v8521 = vand.u32 %v7295, 4294901760
  %v8522 = vsub.f32 %v7295, %v8521
  %8523 = vmatpush.msra.mxu0 %v8522
  %v8524 = vand.u32 %v7246, 4294901760
  %v8525 = vsub.f32 %v7246, %v8524
  %8526 = vmatmul.f32.gmra.mxu0 %v8525
  %v8527 = vpop.f32.mrf.mxu0
  %v8528 = vadd.f32 %v8474, %v8527
  %8529 = vdwg.mxu0
  %v8530 = vand.u32 %v7310, 4294901760
  %8531 = vmatpush.msra.mxu0 %v8530
  %v8532 = vand.u32 %v7309, 4294901760
  %8533 = vmatpush.msra.mxu0 %v8532
  %v8534 = vand.u32 %v7308, 4294901760
  %8535 = vmatpush.msra.mxu0 %v8534
  %v8536 = vand.u32 %v7307, 4294901760
  %8537 = vmatpush.msra.mxu0 %v8536
  %v8538 = vand.u32 %v7306, 4294901760
  %8539 = vmatpush.msra.mxu0 %v8538
  %v8540 = vand.u32 %v7305, 4294901760
  %8541 = vmatpush.msra.mxu0 %v8540
  %v8542 = vand.u32 %v7304, 4294901760
  %8543 = vmatpush.msra.mxu0 %v8542
  %v8544 = vand.u32 %v7303, 4294901760
  %8545 = vmatpush.msra.mxu0 %v8544
  %v8546 = vand.u32 %v7302, 4294901760
  %8547 = vmatpush.msra.mxu0 %v8546
  %v8548 = vand.u32 %v7301, 4294901760
  %8549 = vmatpush.msra.mxu0 %v8548
  %v8550 = vand.u32 %v7300, 4294901760
  %8551 = vmatpush.msra.mxu0 %v8550
  %v8552 = vand.u32 %v7299, 4294901760
  %8553 = vmatpush.msra.mxu0 %v8552
  %v8554 = vand.u32 %v7298, 4294901760
  %8555 = vmatpush.msra.mxu0 %v8554
  %v8556 = vand.u32 %v7297, 4294901760
  %8557 = vmatpush.msra.mxu0 %v8556
  %v8558 = vand.u32 %v7296, 4294901760
  %8559 = vmatpush.msra.mxu0 %v8558
  %v8560 = vand.u32 %v7295, 4294901760
  %8561 = vmatpush.msra.mxu0 %v8560
  %v8562 = vand.u32 %v7246, 4294901760
  %v8563 = vsub.f32 %v7246, %v8562
  %v8564 = vand.u32 %v8563, 4294901760
  %8565 = vmatmul.f32.gmra.mxu0 %v8564
  %v8566 = vpop.f32.mrf.mxu0
  %v8567 = vadd.f32 %v8528, %v8566
  %8568 = vdwg.mxu0
  %v8569 = vand.u32 %v7310, 4294901760
  %v8570 = vsub.f32 %v7310, %v8569
  %v8571 = vand.u32 %v8570, 4294901760
  %8572 = vmatpush.msra.mxu0 %v8571
  %v8573 = vand.u32 %v7309, 4294901760
  %v8574 = vsub.f32 %v7309, %v8573
  %v8575 = vand.u32 %v8574, 4294901760
  %8576 = vmatpush.msra.mxu0 %v8575
  %v8577 = vand.u32 %v7308, 4294901760
  %v8578 = vsub.f32 %v7308, %v8577
  %v8579 = vand.u32 %v8578, 4294901760
  %8580 = vmatpush.msra.mxu0 %v8579
  %v8581 = vand.u32 %v7307, 4294901760
  %v8582 = vsub.f32 %v7307, %v8581
  %v8583 = vand.u32 %v8582, 4294901760
  %8584 = vmatpush.msra.mxu0 %v8583
  %v8585 = vand.u32 %v7306, 4294901760
  %v8586 = vsub.f32 %v7306, %v8585
  %v8587 = vand.u32 %v8586, 4294901760
  %8588 = vmatpush.msra.mxu0 %v8587
  %v8589 = vand.u32 %v7305, 4294901760
  %v8590 = vsub.f32 %v7305, %v8589
  %v8591 = vand.u32 %v8590, 4294901760
  %8592 = vmatpush.msra.mxu0 %v8591
  %v8593 = vand.u32 %v7304, 4294901760
  %v8594 = vsub.f32 %v7304, %v8593
  %v8595 = vand.u32 %v8594, 4294901760
  %8596 = vmatpush.msra.mxu0 %v8595
  %v8597 = vand.u32 %v7303, 4294901760
  %v8598 = vsub.f32 %v7303, %v8597
  %v8599 = vand.u32 %v8598, 4294901760
  %8600 = vmatpush.msra.mxu0 %v8599
  %v8601 = vand.u32 %v7302, 4294901760
  %v8602 = vsub.f32 %v7302, %v8601
  %v8603 = vand.u32 %v8602, 4294901760
  %8604 = vmatpush.msra.mxu0 %v8603
  %v8605 = vand.u32 %v7301, 4294901760
  %v8606 = vsub.f32 %v7301, %v8605
  %v8607 = vand.u32 %v8606, 4294901760
  %8608 = vmatpush.msra.mxu0 %v8607
  %v8609 = vand.u32 %v7300, 4294901760
  %v8610 = vsub.f32 %v7300, %v8609
  %v8611 = vand.u32 %v8610, 4294901760
  %8612 = vmatpush.msra.mxu0 %v8611
  %v8613 = vand.u32 %v7299, 4294901760
  %v8614 = vsub.f32 %v7299, %v8613
  %v8615 = vand.u32 %v8614, 4294901760
  %8616 = vmatpush.msra.mxu0 %v8615
  %v8617 = vand.u32 %v7298, 4294901760
  %v8618 = vsub.f32 %v7298, %v8617
  %v8619 = vand.u32 %v8618, 4294901760
  %8620 = vmatpush.msra.mxu0 %v8619
  %v8621 = vand.u32 %v7297, 4294901760
  %v8622 = vsub.f32 %v7297, %v8621
  %v8623 = vand.u32 %v8622, 4294901760
  %8624 = vmatpush.msra.mxu0 %v8623
  %v8625 = vand.u32 %v7296, 4294901760
  %v8626 = vsub.f32 %v7296, %v8625
  %v8627 = vand.u32 %v8626, 4294901760
  %8628 = vmatpush.msra.mxu0 %v8627
  %v8629 = vand.u32 %v7295, 4294901760
  %v8630 = vsub.f32 %v7295, %v8629
  %v8631 = vand.u32 %v8630, 4294901760
  %8632 = vmatpush.msra.mxu0 %v8631
  %v8633 = vand.u32 %v7246, 4294901760
  %8634 = vmatmul.f32.gmra.mxu0 %v8633
  %v8635 = vpop.f32.mrf.mxu0
  %v8636 = vadd.f32 %v8567, %v8635
  %8637 = vdwg.mxu0
  %v8638 = vand.u32 %v7310, 4294901760
  %8639 = vmatpush.msra.mxu0 %v8638
  %v8640 = vand.u32 %v7309, 4294901760
  %8641 = vmatpush.msra.mxu0 %v8640
  %v8642 = vand.u32 %v7308, 4294901760
  %8643 = vmatpush.msra.mxu0 %v8642
  %v8644 = vand.u32 %v7307, 4294901760
  %8645 = vmatpush.msra.mxu0 %v8644
  %v8646 = vand.u32 %v7306, 4294901760
  %8647 = vmatpush.msra.mxu0 %v8646
  %v8648 = vand.u32 %v7305, 4294901760
  %8649 = vmatpush.msra.mxu0 %v8648
  %v8650 = vand.u32 %v7304, 4294901760
  %8651 = vmatpush.msra.mxu0 %v8650
  %v8652 = vand.u32 %v7303, 4294901760
  %8653 = vmatpush.msra.mxu0 %v8652
  %v8654 = vand.u32 %v7302, 4294901760
  %8655 = vmatpush.msra.mxu0 %v8654
  %v8656 = vand.u32 %v7301, 4294901760
  %8657 = vmatpush.msra.mxu0 %v8656
  %v8658 = vand.u32 %v7300, 4294901760
  %8659 = vmatpush.msra.mxu0 %v8658
  %v8660 = vand.u32 %v7299, 4294901760
  %8661 = vmatpush.msra.mxu0 %v8660
  %v8662 = vand.u32 %v7298, 4294901760
  %8663 = vmatpush.msra.mxu0 %v8662
  %v8664 = vand.u32 %v7297, 4294901760
  %8665 = vmatpush.msra.mxu0 %v8664
  %v8666 = vand.u32 %v7296, 4294901760
  %8667 = vmatpush.msra.mxu0 %v8666
  %v8668 = vand.u32 %v7295, 4294901760
  %8669 = vmatpush.msra.mxu0 %v8668
  %v8670 = vand.u32 %v7246, 4294901760
  %8671 = vmatmul.f32.gmra.mxu0 %v8670
  %v8672 = vpop.f32.mrf.mxu0
  %v8673 = vadd.f32 %v8636, %v8672
  %8674 = vdwg.mxu0
  %v8675 = vmul.f32 %v8673, %v3300
  %v8676 = vmul.f32 %v8675, %v8675
  %v8678 = vrot.slane %v8676, 7
  %v8680 = vsub.f32 %v8675, %v8678
  %v8681 = vmax.f32 %v8680, 0.0
  %v8682 = vld [vmem:[%s9] sm:$0x1]
  %v8683 = vadd.f32 %v8681, 1e-05
  %v8684 = vrsqrt.pop %v8683
  %v8685 = vmul.f32 %v8684, %v8683
  %v8686 = vmul.f32 %v8685, %v8684
  %v8687 = vmul.f32 0.5, %v8686
  %v8688 = vsub.f32 1.5, %v8687
  %v8689 = vmul.f32 %v8684, %v8688
  %vm8690 = vweird.f32 %v8683
  %vm8691 = vweird.f32 %v8684
  %vm8692 = vmor %vm8690, %vm8691
  %v8693 = vsel %vm8692, %v8684, %v8689
  %8695 = vst [vmem:[#allocation1] sm:$0xff] %v8693
  %s8696 = scalar_lea.vmem [#allocation1], 1
  %v8697 = vld [vmem:[%s8696] ss:$9 sm:$0xff]
  %v8699 = vmul.f32 %v8682, %v8697
  %v8700 = vld [vmem:[%s10] sm:$0x1]
  %v8701 = vmul.f32 %v8675, %v8699
  %v8702 = vsub.f32 %v8700, %v8701
  %v8704 = vperm.slane %v8702, 0
  %v8706 = vsel %vm1861, %v8699, %v8704
  %v8707 = vld [vmem:[%s8] sm:$0xff]
  %v8708 = vld [vmem:[%s8 + $0x8] sm:$0xff]
  %v8709 = vld [vmem:[%s8 + $0x10] sm:$0xff]
  %v8710 = vld [vmem:[%s8 + $0x18] sm:$0xff]
  %v8712 = vsel %vm3337, %v8706, 0
  %8714 = vmatpush.msra.mxu0 0.0
  %8715 = vmatpush.msra.mxu0 0.0
  %8716 = vmatpush.msra.mxu0 0.0
  %8717 = vmatpush.msra.mxu0 0.0
  %8718 = vmatpush.msra.mxu0 0.0
  %8719 = vmatpush.msra.mxu0 0.0
  %8720 = vmatpush.msra.mxu0 0.0
  %8721 = vmatpush.msra.mxu0 0.0
  %8722 = vmatpush.msra.mxu0 0.0
  %8723 = vmatpush.msra.mxu0 0.0
  %8724 = vmatpush.msra.mxu0 0.0
  %8725 = vmatpush.msra.mxu0 0.0
  %8726 = vmatpush.msra.mxu0 0.0
  %8727 = vmatpush.msra.mxu0 0.0
  %8728 = vmatpush.msra.mxu0 0.0
  %v8729 = vand.u32 %v8707, 4294901760
  %8730 = vmatpush.msra.mxu0 %v8729
  %v8731 = vand.u32 %v8712, 4294901760
  %v8732 = vsub.f32 %v8712, %v8731
  %v8733 = vand.u32 %v8732, 4294901760
  %v8734 = vsub.f32 %v8732, %v8733
  %v8735 = vand.u32 %v8734, 4294901760
  %8736 = vmatmul.f32.gmra.mxu0 %v8735
  %v8737 = vpop.f32.mrf.mxu0
  %v8738 = vadd.f32 0.0, %v8737
  %8739 = vdwg.mxu0
  %8740 = vmatpush.msra.mxu0 0.0
  %8741 = vmatpush.msra.mxu0 0.0
  %8742 = vmatpush.msra.mxu0 0.0
  %8743 = vmatpush.msra.mxu0 0.0
  %8744 = vmatpush.msra.mxu0 0.0
  %8745 = vmatpush.msra.mxu0 0.0
  %8746 = vmatpush.msra.mxu0 0.0
  %8747 = vmatpush.msra.mxu0 0.0
  %8748 = vmatpush.msra.mxu0 0.0
  %8749 = vmatpush.msra.mxu0 0.0
  %8750 = vmatpush.msra.mxu0 0.0
  %8751 = vmatpush.msra.mxu0 0.0
  %8752 = vmatpush.msra.mxu0 0.0
  %8753 = vmatpush.msra.mxu0 0.0
  %8754 = vmatpush.msra.mxu0 0.0
  %v8755 = vand.u32 %v8707, 4294901760
  %v8756 = vsub.f32 %v8707, %v8755
  %v8757 = vand.u32 %v8756, 4294901760
  %v8758 = vsub.f32 %v8756, %v8757
  %v8759 = vand.u32 %v8758, 4294901760
  %8760 = vmatpush.msra.mxu0 %v8759
  %v8761 = vand.u32 %v8712, 4294901760
  %8762 = vmatmul.f32.gmra.mxu0 %v8761
  %v8763 = vpop.f32.mrf.mxu0
  %v8764 = vadd.f32 %v8738, %v8763
  %8765 = vdwg.mxu0
  %8766 = vmatpush.msra.mxu0 0.0
  %8767 = vmatpush.msra.mxu0 0.0
  %8768 = vmatpush.msra.mxu0 0.0
  %8769 = vmatpush.msra.mxu0 0.0
  %8770 = vmatpush.msra.mxu0 0.0
  %8771 = vmatpush.msra.mxu0 0.0
  %8772 = vmatpush.msra.mxu0 0.0
  %8773 = vmatpush.msra.mxu0 0.0
  %8774 = vmatpush.msra.mxu0 0.0
  %8775 = vmatpush.msra.mxu0 0.0
  %8776 = vmatpush.msra.mxu0 0.0
  %8777 = vmatpush.msra.mxu0 0.0
  %8778 = vmatpush.msra.mxu0 0.0
  %8779 = vmatpush.msra.mxu0 0.0
  %8780 = vmatpush.msra.mxu0 0.0
  %v8781 = vand.u32 %v8707, 4294901760
  %v8782 = vsub.f32 %v8707, %v8781
  %8783 = vmatpush.msra.mxu0 %v8782
  %v8784 = vand.u32 %v8712, 4294901760
  %v8785 = vsub.f32 %v8712, %v8784
  %8786 = vmatmul.f32.gmra.mxu0 %v8785
  %v8787 = vpop.f32.mrf.mxu0
  %v8788 = vadd.f32 %v8764, %v8787
  %8789 = vdwg.mxu0
  %8790 = vmatpush.msra.mxu0 0.0
  %8791 = vmatpush.msra.mxu0 0.0
  %8792 = vmatpush.msra.mxu0 0.0
  %8793 = vmatpush.msra.mxu0 0.0
  %8794 = vmatpush.msra.mxu0 0.0
  %8795 = vmatpush.msra.mxu0 0.0
  %8796 = vmatpush.msra.mxu0 0.0
  %8797 = vmatpush.msra.mxu0 0.0
  %8798 = vmatpush.msra.mxu0 0.0
  %8799 = vmatpush.msra.mxu0 0.0
  %8800 = vmatpush.msra.mxu0 0.0
  %8801 = vmatpush.msra.mxu0 0.0
  %8802 = vmatpush.msra.mxu0 0.0
  %8803 = vmatpush.msra.mxu0 0.0
  %8804 = vmatpush.msra.mxu0 0.0
  %v8805 = vand.u32 %v8707, 4294901760
  %8806 = vmatpush.msra.mxu0 %v8805
  %v8807 = vand.u32 %v8712, 4294901760
  %v8808 = vsub.f32 %v8712, %v8807
  %v8809 = vand.u32 %v8808, 4294901760
  %8810 = vmatmul.f32.gmra.mxu0 %v8809
  %v8811 = vpop.f32.mrf.mxu0
  %v8812 = vadd.f32 %v8788, %v8811
  %8813 = vdwg.mxu0
  %8814 = vmatpush.msra.mxu0 0.0
  %8815 = vmatpush.msra.mxu0 0.0
  %8816 = vmatpush.msra.mxu0 0.0
  %8817 = vmatpush.msra.mxu0 0.0
  %8818 = vmatpush.msra.mxu0 0.0
  %8819 = vmatpush.msra.mxu0 0.0
  %8820 = vmatpush.msra.mxu0 0.0
  %8821 = vmatpush.msra.mxu0 0.0
  %8822 = vmatpush.msra.mxu0 0.0
  %8823 = vmatpush.msra.mxu0 0.0
  %8824 = vmatpush.msra.mxu0 0.0
  %8825 = vmatpush.msra.mxu0 0.0
  %8826 = vmatpush.msra.mxu0 0.0
  %8827 = vmatpush.msra.mxu0 0.0
  %8828 = vmatpush.msra.mxu0 0.0
  %v8829 = vand.u32 %v8707, 4294901760
  %v8830 = vsub.f32 %v8707, %v8829
  %v8831 = vand.u32 %v8830, 4294901760
  %8832 = vmatpush.msra.mxu0 %v8831
  %v8833 = vand.u32 %v8712, 4294901760
  %8834 = vmatmul.f32.gmra.mxu0 %v8833
  %v8835 = vpop.f32.mrf.mxu0
  %v8836 = vadd.f32 %v8812, %v8835
  %8837 = vdwg.mxu0
  %8838 = vmatpush.msra.mxu0 0.0
  %8839 = vmatpush.msra.mxu0 0.0
  %8840 = vmatpush.msra.mxu0 0.0
  %8841 = vmatpush.msra.mxu0 0.0
  %8842 = vmatpush.msra.mxu0 0.0
  %8843 = vmatpush.msra.mxu0 0.0
  %8844 = vmatpush.msra.mxu0 0.0
  %8845 = vmatpush.msra.mxu0 0.0
  %8846 = vmatpush.msra.mxu0 0.0
  %8847 = vmatpush.msra.mxu0 0.0
  %8848 = vmatpush.msra.mxu0 0.0
  %8849 = vmatpush.msra.mxu0 0.0
  %8850 = vmatpush.msra.mxu0 0.0
  %8851 = vmatpush.msra.mxu0 0.0
  %8852 = vmatpush.msra.mxu0 0.0
  %v8853 = vand.u32 %v8707, 4294901760
  %8854 = vmatpush.msra.mxu0 %v8853
  %v8855 = vand.u32 %v8712, 4294901760
  %8856 = vmatmul.f32.gmra.mxu0 %v8855
  %v8857 = vpop.f32.mrf.mxu0
  %v8858 = vadd.f32 %v8836, %v8857
  %8859 = vdwg.mxu0
  %8860 = vmatpush.msra.mxu0 0.0
  %8861 = vmatpush.msra.mxu0 0.0
  %8862 = vmatpush.msra.mxu0 0.0
  %8863 = vmatpush.msra.mxu0 0.0
  %8864 = vmatpush.msra.mxu0 0.0
  %8865 = vmatpush.msra.mxu0 0.0
  %8866 = vmatpush.msra.mxu0 0.0
  %8867 = vmatpush.msra.mxu0 0.0
  %8868 = vmatpush.msra.mxu0 0.0
  %8869 = vmatpush.msra.mxu0 0.0
  %8870 = vmatpush.msra.mxu0 0.0
  %8871 = vmatpush.msra.mxu0 0.0
  %8872 = vmatpush.msra.mxu0 0.0
  %8873 = vmatpush.msra.mxu0 0.0
  %8874 = vmatpush.msra.mxu0 0.0
  %v8875 = vand.u32 %v8708, 4294901760
  %8876 = vmatpush.msra.mxu0 %v8875
  %v8877 = vand.u32 %v8712, 4294901760
  %v8878 = vsub.f32 %v8712, %v8877
  %v8879 = vand.u32 %v8878, 4294901760
  %v8880 = vsub.f32 %v8878, %v8879
  %v8881 = vand.u32 %v8880, 4294901760
  %8882 = vmatmul.f32.gmra.mxu0 %v8881
  %v8883 = vpop.f32.mrf.mxu0
  %v8884 = vadd.f32 0.0, %v8883
  %8885 = vdwg.mxu0
  %8886 = vmatpush.msra.mxu0 0.0
  %8887 = vmatpush.msra.mxu0 0.0
  %8888 = vmatpush.msra.mxu0 0.0
  %8889 = vmatpush.msra.mxu0 0.0
  %8890 = vmatpush.msra.mxu0 0.0
  %8891 = vmatpush.msra.mxu0 0.0
  %8892 = vmatpush.msra.mxu0 0.0
  %8893 = vmatpush.msra.mxu0 0.0
  %8894 = vmatpush.msra.mxu0 0.0
  %8895 = vmatpush.msra.mxu0 0.0
  %8896 = vmatpush.msra.mxu0 0.0
  %8897 = vmatpush.msra.mxu0 0.0
  %8898 = vmatpush.msra.mxu0 0.0
  %8899 = vmatpush.msra.mxu0 0.0
  %8900 = vmatpush.msra.mxu0 0.0
  %v8901 = vand.u32 %v8708, 4294901760
  %v8902 = vsub.f32 %v8708, %v8901
  %v8903 = vand.u32 %v8902, 4294901760
  %v8904 = vsub.f32 %v8902, %v8903
  %v8905 = vand.u32 %v8904, 4294901760
  %8906 = vmatpush.msra.mxu0 %v8905
  %v8907 = vand.u32 %v8712, 4294901760
  %8908 = vmatmul.f32.gmra.mxu0 %v8907
  %v8909 = vpop.f32.mrf.mxu0
  %v8910 = vadd.f32 %v8884, %v8909
  %8911 = vdwg.mxu0
  %8912 = vmatpush.msra.mxu0 0.0
  %8913 = vmatpush.msra.mxu0 0.0
  %8914 = vmatpush.msra.mxu0 0.0
  %8915 = vmatpush.msra.mxu0 0.0
  %8916 = vmatpush.msra.mxu0 0.0
  %8917 = vmatpush.msra.mxu0 0.0
  %8918 = vmatpush.msra.mxu0 0.0
  %8919 = vmatpush.msra.mxu0 0.0
  %8920 = vmatpush.msra.mxu0 0.0
  %8921 = vmatpush.msra.mxu0 0.0
  %8922 = vmatpush.msra.mxu0 0.0
  %8923 = vmatpush.msra.mxu0 0.0
  %8924 = vmatpush.msra.mxu0 0.0
  %8925 = vmatpush.msra.mxu0 0.0
  %8926 = vmatpush.msra.mxu0 0.0
  %v8927 = vand.u32 %v8708, 4294901760
  %v8928 = vsub.f32 %v8708, %v8927
  %8929 = vmatpush.msra.mxu0 %v8928
  %v8930 = vand.u32 %v8712, 4294901760
  %v8931 = vsub.f32 %v8712, %v8930
  %8932 = vmatmul.f32.gmra.mxu0 %v8931
  %v8933 = vpop.f32.mrf.mxu0
  %v8934 = vadd.f32 %v8910, %v8933
  %8935 = vdwg.mxu0
  %8936 = vmatpush.msra.mxu0 0.0
  %8937 = vmatpush.msra.mxu0 0.0
  %8938 = vmatpush.msra.mxu0 0.0
  %8939 = vmatpush.msra.mxu0 0.0
  %8940 = vmatpush.msra.mxu0 0.0
  %8941 = vmatpush.msra.mxu0 0.0
  %8942 = vmatpush.msra.mxu0 0.0
  %8943 = vmatpush.msra.mxu0 0.0
  %8944 = vmatpush.msra.mxu0 0.0
  %8945 = vmatpush.msra.mxu0 0.0
  %8946 = vmatpush.msra.mxu0 0.0
  %8947 = vmatpush.msra.mxu0 0.0
  %8948 = vmatpush.msra.mxu0 0.0
  %8949 = vmatpush.msra.mxu0 0.0
  %8950 = vmatpush.msra.mxu0 0.0
  %v8951 = vand.u32 %v8708, 4294901760
  %8952 = vmatpush.msra.mxu0 %v8951
  %v8953 = vand.u32 %v8712, 4294901760
  %v8954 = vsub.f32 %v8712, %v8953
  %v8955 = vand.u32 %v8954, 4294901760
  %8956 = vmatmul.f32.gmra.mxu0 %v8955
  %v8957 = vpop.f32.mrf.mxu0
  %v8958 = vadd.f32 %v8934, %v8957
  %8959 = vdwg.mxu0
  %8960 = vmatpush.msra.mxu0 0.0
  %8961 = vmatpush.msra.mxu0 0.0
  %8962 = vmatpush.msra.mxu0 0.0
  %8963 = vmatpush.msra.mxu0 0.0
  %8964 = vmatpush.msra.mxu0 0.0
  %8965 = vmatpush.msra.mxu0 0.0
  %8966 = vmatpush.msra.mxu0 0.0
  %8967 = vmatpush.msra.mxu0 0.0
  %8968 = vmatpush.msra.mxu0 0.0
  %8969 = vmatpush.msra.mxu0 0.0
  %8970 = vmatpush.msra.mxu0 0.0
  %8971 = vmatpush.msra.mxu0 0.0
  %8972 = vmatpush.msra.mxu0 0.0
  %8973 = vmatpush.msra.mxu0 0.0
  %8974 = vmatpush.msra.mxu0 0.0
  %v8975 = vand.u32 %v8708, 4294901760
  %v8976 = vsub.f32 %v8708, %v8975
  %v8977 = vand.u32 %v8976, 4294901760
  %8978 = vmatpush.msra.mxu0 %v8977
  %v8979 = vand.u32 %v8712, 4294901760
  %8980 = vmatmul.f32.gmra.mxu0 %v8979
  %v8981 = vpop.f32.mrf.mxu0
  %v8982 = vadd.f32 %v8958, %v8981
  %8983 = vdwg.mxu0
  %8984 = vmatpush.msra.mxu0 0.0
  %8985 = vmatpush.msra.mxu0 0.0
  %8986 = vmatpush.msra.mxu0 0.0
  %8987 = vmatpush.msra.mxu0 0.0
  %8988 = vmatpush.msra.mxu0 0.0
  %8989 = vmatpush.msra.mxu0 0.0
  %8990 = vmatpush.msra.mxu0 0.0
  %8991 = vmatpush.msra.mxu0 0.0
  %8992 = vmatpush.msra.mxu0 0.0
  %8993 = vmatpush.msra.mxu0 0.0
  %8994 = vmatpush.msra.mxu0 0.0
  %8995 = vmatpush.msra.mxu0 0.0
  %8996 = vmatpush.msra.mxu0 0.0
  %8997 = vmatpush.msra.mxu0 0.0
  %8998 = vmatpush.msra.mxu0 0.0
  %v8999 = vand.u32 %v8708, 4294901760
  %9000 = vmatpush.msra.mxu0 %v8999
  %v9001 = vand.u32 %v8712, 4294901760
  %9002 = vmatmul.f32.gmra.mxu0 %v9001
  %v9003 = vpop.f32.mrf.mxu0
  %v9004 = vadd.f32 %v8982, %v9003
  %9005 = vdwg.mxu0
  %9006 = vmatpush.msra.mxu0 0.0
  %9007 = vmatpush.msra.mxu0 0.0
  %9008 = vmatpush.msra.mxu0 0.0
  %9009 = vmatpush.msra.mxu0 0.0
  %9010 = vmatpush.msra.mxu0 0.0
  %9011 = vmatpush.msra.mxu0 0.0
  %9012 = vmatpush.msra.mxu0 0.0
  %9013 = vmatpush.msra.mxu0 0.0
  %9014 = vmatpush.msra.mxu0 0.0
  %9015 = vmatpush.msra.mxu0 0.0
  %9016 = vmatpush.msra.mxu0 0.0
  %9017 = vmatpush.msra.mxu0 0.0
  %9018 = vmatpush.msra.mxu0 0.0
  %9019 = vmatpush.msra.mxu0 0.0
  %9020 = vmatpush.msra.mxu0 0.0
  %v9021 = vand.u32 %v8709, 4294901760
  %9022 = vmatpush.msra.mxu0 %v9021
  %v9023 = vand.u32 %v8712, 4294901760
  %v9024 = vsub.f32 %v8712, %v9023
  %v9025 = vand.u32 %v9024, 4294901760
  %v9026 = vsub.f32 %v9024, %v9025
  %v9027 = vand.u32 %v9026, 4294901760
  %9028 = vmatmul.f32.gmra.mxu0 %v9027
  %v9029 = vpop.f32.mrf.mxu0
  %v9030 = vadd.f32 0.0, %v9029
  %9031 = vdwg.mxu0
  %9032 = vmatpush.msra.mxu0 0.0
  %9033 = vmatpush.msra.mxu0 0.0
  %9034 = vmatpush.msra.mxu0 0.0
  %9035 = vmatpush.msra.mxu0 0.0
  %9036 = vmatpush.msra.mxu0 0.0
  %9037 = vmatpush.msra.mxu0 0.0
  %9038 = vmatpush.msra.mxu0 0.0
  %9039 = vmatpush.msra.mxu0 0.0
  %9040 = vmatpush.msra.mxu0 0.0
  %9041 = vmatpush.msra.mxu0 0.0
  %9042 = vmatpush.msra.mxu0 0.0
  %9043 = vmatpush.msra.mxu0 0.0
  %9044 = vmatpush.msra.mxu0 0.0
  %9045 = vmatpush.msra.mxu0 0.0
  %9046 = vmatpush.msra.mxu0 0.0
  %v9047 = vand.u32 %v8709, 4294901760
  %v9048 = vsub.f32 %v8709, %v9047
  %v9049 = vand.u32 %v9048, 4294901760
  %v9050 = vsub.f32 %v9048, %v9049
  %v9051 = vand.u32 %v9050, 4294901760
  %9052 = vmatpush.msra.mxu0 %v9051
  %v9053 = vand.u32 %v8712, 4294901760
  %9054 = vmatmul.f32.gmra.mxu0 %v9053
  %v9055 = vpop.f32.mrf.mxu0
  %v9056 = vadd.f32 %v9030, %v9055
  %9057 = vdwg.mxu0
  %9058 = vmatpush.msra.mxu0 0.0
  %9059 = vmatpush.msra.mxu0 0.0
  %9060 = vmatpush.msra.mxu0 0.0
  %9061 = vmatpush.msra.mxu0 0.0
  %9062 = vmatpush.msra.mxu0 0.0
  %9063 = vmatpush.msra.mxu0 0.0
  %9064 = vmatpush.msra.mxu0 0.0
  %9065 = vmatpush.msra.mxu0 0.0
  %9066 = vmatpush.msra.mxu0 0.0
  %9067 = vmatpush.msra.mxu0 0.0
  %9068 = vmatpush.msra.mxu0 0.0
  %9069 = vmatpush.msra.mxu0 0.0
  %9070 = vmatpush.msra.mxu0 0.0
  %9071 = vmatpush.msra.mxu0 0.0
  %9072 = vmatpush.msra.mxu0 0.0
  %v9073 = vand.u32 %v8709, 4294901760
  %v9074 = vsub.f32 %v8709, %v9073
  %9075 = vmatpush.msra.mxu0 %v9074
  %v9076 = vand.u32 %v8712, 4294901760
  %v9077 = vsub.f32 %v8712, %v9076
  %9078 = vmatmul.f32.gmra.mxu0 %v9077
  %v9079 = vpop.f32.mrf.mxu0
  %v9080 = vadd.f32 %v9056, %v9079
  %9081 = vdwg.mxu0
  %9082 = vmatpush.msra.mxu0 0.0
  %9083 = vmatpush.msra.mxu0 0.0
  %9084 = vmatpush.msra.mxu0 0.0
  %9085 = vmatpush.msra.mxu0 0.0
  %9086 = vmatpush.msra.mxu0 0.0
  %9087 = vmatpush.msra.mxu0 0.0
  %9088 = vmatpush.msra.mxu0 0.0
  %9089 = vmatpush.msra.mxu0 0.0
  %9090 = vmatpush.msra.mxu0 0.0
  %9091 = vmatpush.msra.mxu0 0.0
  %9092 = vmatpush.msra.mxu0 0.0
  %9093 = vmatpush.msra.mxu0 0.0
  %9094 = vmatpush.msra.mxu0 0.0
  %9095 = vmatpush.msra.mxu0 0.0
  %9096 = vmatpush.msra.mxu0 0.0
  %v9097 = vand.u32 %v8709, 4294901760
  %9098 = vmatpush.msra.mxu0 %v9097
  %v9099 = vand.u32 %v8712, 4294901760
  %v9100 = vsub.f32 %v8712, %v9099
  %v9101 = vand.u32 %v9100, 4294901760
  %9102 = vmatmul.f32.gmra.mxu0 %v9101
  %v9103 = vpop.f32.mrf.mxu0
  %v9104 = vadd.f32 %v9080, %v9103
  %9105 = vdwg.mxu0
  %9106 = vmatpush.msra.mxu0 0.0
  %9107 = vmatpush.msra.mxu0 0.0
  %9108 = vmatpush.msra.mxu0 0.0
  %9109 = vmatpush.msra.mxu0 0.0
  %9110 = vmatpush.msra.mxu0 0.0
  %9111 = vmatpush.msra.mxu0 0.0
  %9112 = vmatpush.msra.mxu0 0.0
  %9113 = vmatpush.msra.mxu0 0.0
  %9114 = vmatpush.msra.mxu0 0.0
  %9115 = vmatpush.msra.mxu0 0.0
  %9116 = vmatpush.msra.mxu0 0.0
  %9117 = vmatpush.msra.mxu0 0.0
  %9118 = vmatpush.msra.mxu0 0.0
  %9119 = vmatpush.msra.mxu0 0.0
  %9120 = vmatpush.msra.mxu0 0.0
  %v9121 = vand.u32 %v8709, 4294901760
  %v9122 = vsub.f32 %v8709, %v9121
  %v9123 = vand.u32 %v9122, 4294901760
  %9124 = vmatpush.msra.mxu0 %v9123
  %v9125 = vand.u32 %v8712, 4294901760
  %9126 = vmatmul.f32.gmra.mxu0 %v9125
  %v9127 = vpop.f32.mrf.mxu0
  %v9128 = vadd.f32 %v9104, %v9127
  %9129 = vdwg.mxu0
  %9130 = vmatpush.msra.mxu0 0.0
  %9131 = vmatpush.msra.mxu0 0.0
  %9132 = vmatpush.msra.mxu0 0.0
  %9133 = vmatpush.msra.mxu0 0.0
  %9134 = vmatpush.msra.mxu0 0.0
  %9135 = vmatpush.msra.mxu0 0.0
  %9136 = vmatpush.msra.mxu0 0.0
  %9137 = vmatpush.msra.mxu0 0.0
  %9138 = vmatpush.msra.mxu0 0.0
  %9139 = vmatpush.msra.mxu0 0.0
  %9140 = vmatpush.msra.mxu0 0.0
  %9141 = vmatpush.msra.mxu0 0.0
  %9142 = vmatpush.msra.mxu0 0.0
  %9143 = vmatpush.msra.mxu0 0.0
  %9144 = vmatpush.msra.mxu0 0.0
  %v9145 = vand.u32 %v8709, 4294901760
  %9146 = vmatpush.msra.mxu0 %v9145
  %v9147 = vand.u32 %v8712, 4294901760
  %9148 = vmatmul.f32.gmra.mxu0 %v9147
  %v9149 = vpop.f32.mrf.mxu0
  %v9150 = vadd.f32 %v9128, %v9149
  %9151 = vdwg.mxu0
  %9152 = vmatpush.msra.mxu0 0.0
  %9153 = vmatpush.msra.mxu0 0.0
  %9154 = vmatpush.msra.mxu0 0.0
  %9155 = vmatpush.msra.mxu0 0.0
  %9156 = vmatpush.msra.mxu0 0.0
  %9157 = vmatpush.msra.mxu0 0.0
  %9158 = vmatpush.msra.mxu0 0.0
  %9159 = vmatpush.msra.mxu0 0.0
  %9160 = vmatpush.msra.mxu0 0.0
  %9161 = vmatpush.msra.mxu0 0.0
  %9162 = vmatpush.msra.mxu0 0.0
  %9163 = vmatpush.msra.mxu0 0.0
  %9164 = vmatpush.msra.mxu0 0.0
  %9165 = vmatpush.msra.mxu0 0.0
  %9166 = vmatpush.msra.mxu0 0.0
  %v9167 = vand.u32 %v8710, 4294901760
  %9168 = vmatpush.msra.mxu0 %v9167
  %v9169 = vand.u32 %v8712, 4294901760
  %v9170 = vsub.f32 %v8712, %v9169
  %v9171 = vand.u32 %v9170, 4294901760
  %v9172 = vsub.f32 %v9170, %v9171
  %v9173 = vand.u32 %v9172, 4294901760
  %9174 = vmatmul.f32.gmra.mxu0 %v9173
  %v9175 = vpop.f32.mrf.mxu0
  %v9176 = vadd.f32 0.0, %v9175
  %9177 = vdwg.mxu0
  %9178 = vmatpush.msra.mxu0 0.0
  %9179 = vmatpush.msra.mxu0 0.0
  %9180 = vmatpush.msra.mxu0 0.0
  %9181 = vmatpush.msra.mxu0 0.0
  %9182 = vmatpush.msra.mxu0 0.0
  %9183 = vmatpush.msra.mxu0 0.0
  %9184 = vmatpush.msra.mxu0 0.0
  %9185 = vmatpush.msra.mxu0 0.0
  %9186 = vmatpush.msra.mxu0 0.0
  %9187 = vmatpush.msra.mxu0 0.0
  %9188 = vmatpush.msra.mxu0 0.0
  %9189 = vmatpush.msra.mxu0 0.0
  %9190 = vmatpush.msra.mxu0 0.0
  %9191 = vmatpush.msra.mxu0 0.0
  %9192 = vmatpush.msra.mxu0 0.0
  %v9193 = vand.u32 %v8710, 4294901760
  %v9194 = vsub.f32 %v8710, %v9193
  %v9195 = vand.u32 %v9194, 4294901760
  %v9196 = vsub.f32 %v9194, %v9195
  %v9197 = vand.u32 %v9196, 4294901760
  %9198 = vmatpush.msra.mxu0 %v9197
  %v9199 = vand.u32 %v8712, 4294901760
  %9200 = vmatmul.f32.gmra.mxu0 %v9199
  %v9201 = vpop.f32.mrf.mxu0
  %v9202 = vadd.f32 %v9176, %v9201
  %9203 = vdwg.mxu0
  %9204 = vmatpush.msra.mxu0 0.0
  %9205 = vmatpush.msra.mxu0 0.0
  %9206 = vmatpush.msra.mxu0 0.0
  %9207 = vmatpush.msra.mxu0 0.0
  %9208 = vmatpush.msra.mxu0 0.0
  %9209 = vmatpush.msra.mxu0 0.0
  %9210 = vmatpush.msra.mxu0 0.0
  %9211 = vmatpush.msra.mxu0 0.0
  %9212 = vmatpush.msra.mxu0 0.0
  %9213 = vmatpush.msra.mxu0 0.0
  %9214 = vmatpush.msra.mxu0 0.0
  %9215 = vmatpush.msra.mxu0 0.0
  %9216 = vmatpush.msra.mxu0 0.0
  %9217 = vmatpush.msra.mxu0 0.0
  %9218 = vmatpush.msra.mxu0 0.0
  %v9219 = vand.u32 %v8710, 4294901760
  %v9220 = vsub.f32 %v8710, %v9219
  %9221 = vmatpush.msra.mxu0 %v9220
  %v9222 = vand.u32 %v8712, 4294901760
  %v9223 = vsub.f32 %v8712, %v9222
  %9224 = vmatmul.f32.gmra.mxu0 %v9223
  %v9225 = vpop.f32.mrf.mxu0
  %v9226 = vadd.f32 %v9202, %v9225
  %9227 = vdwg.mxu0
  %9228 = vmatpush.msra.mxu0 0.0
  %9229 = vmatpush.msra.mxu0 0.0
  %9230 = vmatpush.msra.mxu0 0.0
  %9231 = vmatpush.msra.mxu0 0.0
  %9232 = vmatpush.msra.mxu0 0.0
  %9233 = vmatpush.msra.mxu0 0.0
  %9234 = vmatpush.msra.mxu0 0.0
  %9235 = vmatpush.msra.mxu0 0.0
  %9236 = vmatpush.msra.mxu0 0.0
  %9237 = vmatpush.msra.mxu0 0.0
  %9238 = vmatpush.msra.mxu0 0.0
  %9239 = vmatpush.msra.mxu0 0.0
  %9240 = vmatpush.msra.mxu0 0.0
  %9241 = vmatpush.msra.mxu0 0.0
  %9242 = vmatpush.msra.mxu0 0.0
  %v9243 = vand.u32 %v8710, 4294901760
  %9244 = vmatpush.msra.mxu0 %v9243
  %v9245 = vand.u32 %v8712, 4294901760
  %v9246 = vsub.f32 %v8712, %v9245
  %v9247 = vand.u32 %v9246, 4294901760
  %9248 = vmatmul.f32.gmra.mxu0 %v9247
  %v9249 = vpop.f32.mrf.mxu0
  %v9250 = vadd.f32 %v9226, %v9249
  %9251 = vdwg.mxu0
  %9252 = vmatpush.msra.mxu0 0.0
  %9253 = vmatpush.msra.mxu0 0.0
  %9254 = vmatpush.msra.mxu0 0.0
  %9255 = vmatpush.msra.mxu0 0.0
  %9256 = vmatpush.msra.mxu0 0.0
  %9257 = vmatpush.msra.mxu0 0.0
  %9258 = vmatpush.msra.mxu0 0.0
  %9259 = vmatpush.msra.mxu0 0.0
  %9260 = vmatpush.msra.mxu0 0.0
  %9261 = vmatpush.msra.mxu0 0.0
  %9262 = vmatpush.msra.mxu0 0.0
  %9263 = vmatpush.msra.mxu0 0.0
  %9264 = vmatpush.msra.mxu0 0.0
  %9265 = vmatpush.msra.mxu0 0.0
  %9266 = vmatpush.msra.mxu0 0.0
  %v9267 = vand.u32 %v8710, 4294901760
  %v9268 = vsub.f32 %v8710, %v9267
  %v9269 = vand.u32 %v9268, 4294901760
  %9270 = vmatpush.msra.mxu0 %v9269
  %v9271 = vand.u32 %v8712, 4294901760
  %9272 = vmatmul.f32.gmra.mxu0 %v9271
  %v9273 = vpop.f32.mrf.mxu0
  %v9274 = vadd.f32 %v9250, %v9273
  %9275 = vdwg.mxu0
  %9276 = vmatpush.msra.mxu0 0.0
  %9277 = vmatpush.msra.mxu0 0.0
  %9278 = vmatpush.msra.mxu0 0.0
  %9279 = vmatpush.msra.mxu0 0.0
  %9280 = vmatpush.msra.mxu0 0.0
  %9281 = vmatpush.msra.mxu0 0.0
  %9282 = vmatpush.msra.mxu0 0.0
  %9283 = vmatpush.msra.mxu0 0.0
  %9284 = vmatpush.msra.mxu0 0.0
  %9285 = vmatpush.msra.mxu0 0.0
  %9286 = vmatpush.msra.mxu0 0.0
  %9287 = vmatpush.msra.mxu0 0.0
  %9288 = vmatpush.msra.mxu0 0.0
  %9289 = vmatpush.msra.mxu0 0.0
  %9290 = vmatpush.msra.mxu0 0.0
  %v9291 = vand.u32 %v8710, 4294901760
  %9292 = vmatpush.msra.mxu0 %v9291
  %v9293 = vand.u32 %v8712, 4294901760
  %9294 = vmatmul.f32.gmra.mxu0 %v9293
  %v9295 = vpop.f32.mrf.mxu0
  %v9296 = vadd.f32 %v9274, %v9295
  %9297 = vdwg.mxu0
  %v9298 = vperm.slane %v8858, 0
  %v9299 = vperm.slane %v9004, 0
  %v9300 = vperm.slane %v9150, 0
  %v9301 = vperm.slane %v9296, 0
  %v9302 = vmul.f32 %v7171, %v9298
  %v9303 = vmul.f32 %v7172, %v9299
  %v9304 = vmul.f32 %v7173, %v9300
  %v9305 = vmul.f32 %v7174, %v9301
  %v9306 = vmul.f32 %v7175, %v9298
  %v9307 = vmul.f32 %v7176, %v9299
  %v9308 = vmul.f32 %v7177, %v9300
  %v9309 = vmul.f32 %v7178, %v9301
  %v9310 = vperm.slane %v8858, 1
  %v9311 = vperm.slane %v9004, 1
  %v9312 = vperm.slane %v9150, 1
  %v9313 = vperm.slane %v9296, 1
  %v9314 = vadd.f32 %v9302, %v9310
  %v9315 = vadd.f32 %v9303, %v9311
  %v9316 = vadd.f32 %v9304, %v9312
  %v9317 = vadd.f32 %v9305, %v9313
  %v9318 = vadd.f32 %v9306, %v9310
  %v9319 = vadd.f32 %v9307, %v9311
  %v9320 = vadd.f32 %v9308, %v9312
  %v9321 = vadd.f32 %v9309, %v9313
  %v9322 = vmax.f32 %v9314, 0.0
  %v9323 = vmax.f32 %v9315, 0.0
  %v9324 = vmax.f32 %v9316, 0.0
  %v9325 = vmax.f32 %v9317, 0.0
  %v9326 = vmax.f32 %v9318, 0.0
  %v9327 = vmax.f32 %v9319, 0.0
  %v9328 = vmax.f32 %v9320, 0.0
  %v9329 = vmax.f32 %v9321, 0.0
  %9330 = vst [vmem:[%s11] sm:$0xff] %v9322
  %9331 = vst [vmem:[%s11 + $0x8] sm:$0xff] %v9323
  %9332 = vst [vmem:[%s11 + $0x10] sm:$0xff] %v9324
  %9333 = vst [vmem:[%s11 + $0x18] sm:$0xff] %v9325
  %9334 = vst [vmem:[%s11 + $0x20] sm:$0xff] %v9326
  %9335 = vst [vmem:[%s11 + $0x28] sm:$0xff] %v9327
  %9336 = vst [vmem:[%s11 + $0x30] sm:$0xff] %v9328
  %9337 = vst [vmem:[%s11 + $0x38] sm:$0xff] %v9329
  // Predicated region
  $region46: #{encoder3d_forward.1} parent=0 // pred_check
    _
  $region47: #{encoder3d_forward.1} parent=0 // pred_check_branch
    %9339 = sbr.rel (0) target = $region49
  $region48: #{encoder3d_forward.1} parent=0 // pred_region
    _
  $region49: #{encoder3d_forward.1} parent=0 // pred_fallthru
    _
  // Predicated region
  $region50: #{encoder3d_forward.1} parent=0 // pred_check
    _
  $region51: #{encoder3d_forward.1} parent=0 // pred_check_branch
    %9341 = sbr.rel (0) target = $region53
  $region52: #{encoder3d_forward.1} parent=0 // pred_region
    _
  $region53: #{encoder3d_forward.1} parent=0 // pred_fallthru
    _

</llo_original>
